<compile_context>
chip_gen: v7x
topology: tpu7x:2x2x1
jax: 0.10.0
libtpu: 0.0.40
codegen_flags: <defaults>
</compile_context>

<pallas_src>
import functools
import numpy as np
import jax
import jax.numpy as jnp
from jax import lax
from jax.experimental import pallas as pl
from jax.experimental.pallas import tpu as pltpu

EPS = 1e-5


def _round_up(x, m):
    return ((x + m - 1) // m) * m


def _pick_rows(total_rows, target=2048):
    """Largest row-block <= target that divides total_rows and is 8-aligned."""
    if total_rows <= target:
        return total_rows
    b = target - (target % 8)
    while b >= 8:
        if total_rows % b == 0:
            return b
        b -= 8
    return total_rows


# --------------------------------------------------------------------------
# Fused 3x3 conv (padding=1, stride=1) with:
#   * optional BN(scale,bias)+ReLU prologue applied to the input tile,
#   * im2col slab build in VMEM -> single long-K bf16 MXU matmul (f32 acc),
#   * per-batch-element per-channel sum / sum-of-squares outputs (BN stats).
# One grid step per batch element; the image is a single (H*W, Cin) slab.
# --------------------------------------------------------------------------
def _conv3x3_kernel(x_ref, w_ref, scale_ref, bias_ref,
                    o_ref, sum_ref, sq_ref, xpad_ref, col_ref,
                    *, H, W, interior, pad_rows, apply_bn_relu):
    # x_ref:     [1, H*W, Cin]   f32 or bf16 (flattened NHWC image)
    # w_ref:     [9*Cin, Cout]   bf16 (tap-major rows: (kh*3+kw)*Cin + cin)
    # scale/bias:[1, Cin]        f32  (folded BN applied to the *input*)
    # o_ref:     [1, H*W, Cout]  bf16
    # sum_ref,sq_ref: [1,1,Cout] f32  per-batch-element partial stats
    # xpad_ref:  [pad_rows, Cin] bf16 scratch with a zero halo
    # col_ref:   [H*W, 9*Cin]    bf16 im2col scratch
    HW = H * W
    Cin = x_ref.shape[-1]

    # Zero the halo rows of the padded scratch on every grid step (no
    # cross-step state -> the batch axis can be "parallel"/megacore-sharded).
    xpad_ref[pl.ds(0, interior), :] = jnp.zeros((interior, Cin), xpad_ref.dtype)
    tail = pad_rows - (interior + HW)
    xpad_ref[pl.ds(interior + HW, tail), :] = jnp.zeros((tail, Cin),
                                                        xpad_ref.dtype)

    # Input prologue: optional folded BN + ReLU in f32, then bf16 for the MXU.
    x = x_ref[0].astype(jnp.float32)
    if apply_bn_relu:
        x = jnp.maximum(x * scale_ref[...] + bias_ref[...], 0.0)
    # 8-sublane-aligned interior store.
    xpad_ref[pl.ds(interior, HW), :] = x.astype(jnp.bfloat16)

    # Column-validity masks for horizontally shifted taps (flattened-image
    # shifts wrap across image rows at the left/right borders).
    col = lax.broadcasted_iota(jnp.int32, (HW, 1), 0) % W
    not_first = col != 0               # kw == 0 taps invalid at w == 0
    not_last = col != (W - 1)          # kw == 2 taps invalid at w == W-1

    # Build the shift-concatenated (HW, 9*Cin) im2col slab so the 9-tap
    # accumulation happens inside the MXU as one long-K matmul.
    base = interior - (W + 1)          # tap (kh,kw) lives at row base+kh*W+kw+p
    for kh in range(3):                # fully unrolled at trace time
        for kw in range(3):
            t = kh * 3 + kw
            slab = xpad_ref[pl.ds(base + kh * W + kw, HW), :]
            if kw == 0:
                slab = jnp.where(not_first, slab, jnp.zeros_like(slab))
            elif kw == 2:
                slab = jnp.where(not_last, slab, jnp.zeros_like(slab))
            col_ref[:, t * Cin:(t + 1) * Cin] = slab

    acc = jnp.dot(col_ref[...], w_ref[...],
                  preferred_element_type=jnp.float32)      # (HW, Cout) f32

    out_b = acc.astype(o_ref.dtype)                        # bf16 intermediate
    o_ref[0] = out_b

    # Per-channel batch statistics of the (bf16-rounded) conv output, emitted
    # as per-batch-element partials so the grid axis stays parallel.
    outf = out_b.astype(jnp.float32)
    sum_ref[0] = jnp.sum(outf, axis=0, keepdims=True)
    sq_ref[0] = jnp.sum(outf * outf, axis=0, keepdims=True)


def conv3x3_fused(x_flat, w_col, H, W, scale=None, bias=None):
    """x_flat: (N, H*W, Cin) f32/bf16; w_col: (9*Cin, Cout) bf16.
    Returns (conv_out (N,H*W,Cout) bf16, sum (N,1,Cout) f32, sq (N,1,Cout) f32)."""
    N, HW, Cin = x_flat.shape
    Cout = w_col.shape[-1]
    assert w_col.shape[0] == 9 * Cin
    fuse = scale is not None
    if not fuse:
        scale = jnp.ones((1, Cin), jnp.float32)
        bias = jnp.zeros((1, Cin), jnp.float32)
    else:
        scale = scale.reshape(1, Cin).astype(jnp.float32)
        bias = bias.reshape(1, Cin).astype(jnp.float32)

    interior = _round_up(W + 1, 8)                 # aligned interior start
    pad_rows = _round_up(interior + HW + W + 1, 8)

    kernel = functools.partial(_conv3x3_kernel, H=H, W=W, interior=interior,
                               pad_rows=pad_rows, apply_bn_relu=fuse)

    # Rough per-step VMEM estimate (double-buffered blocks + scratches).
    est = (2 * (HW * Cin * x_flat.dtype.itemsize         # x block
                + HW * Cout * 2                           # bf16 out block
                + 9 * Cin * Cout * 2)                     # weights
           + pad_rows * Cin * 2 + HW * 9 * Cin * 2)       # scratches
    vmem_limit = int(min(max(3 * est, 32 * 2**20), 48 * 2**20))
    # TODO(synk): add row-tile grid axis (overlapping halo) for large images;
    # raise vmem_limit on v5e/v6e (128 MiB physical) once tiles are sized.

    return pl.pallas_call(
        kernel,
        out_shape=(jax.ShapeDtypeStruct((N, HW, Cout), jnp.bfloat16),
                   jax.ShapeDtypeStruct((N, 1, Cout), jnp.float32),
                   jax.ShapeDtypeStruct((N, 1, Cout), jnp.float32)),
        grid=(N,),
        in_specs=[
            pl.BlockSpec((1, HW, Cin), lambda n: (n, 0, 0)),
            pl.BlockSpec((9 * Cin, Cout), lambda n: (0, 0)),
            pl.BlockSpec((1, Cin), lambda n: (0, 0)),
            pl.BlockSpec((1, Cin), lambda n: (0, 0)),
        ],
        out_specs=(pl.BlockSpec((1, HW, Cout), lambda n: (n, 0, 0)),
                   pl.BlockSpec((1, 1, Cout), lambda n: (n, 0, 0)),
                   pl.BlockSpec((1, 1, Cout), lambda n: (n, 0, 0))),
        scratch_shapes=[pltpu.VMEM((pad_rows, Cin), jnp.bfloat16),
                        pltpu.VMEM((HW, 9 * Cin), jnp.bfloat16)],
        compiler_params=pltpu.CompilerParams(
            dimension_semantics=("parallel",),
            vmem_limit_bytes=vmem_limit),
    )(x_flat, w_col, scale, bias)


# --------------------------------------------------------------------------
# Final fused elementwise pass: BN2 (pre-folded scale/bias) + residual + ReLU,
# in a lane-dense (rows, 128) layout whenever the shapes allow it.
# --------------------------------------------------------------------------
def _bn_add_relu_flat_kernel(x_ref, res_ref, scale_ref, bias_ref, o_ref):
    y = x_ref[...].astype(jnp.float32) * scale_ref[...] + bias_ref[...] \
        + res_ref[...]
    o_ref[...] = jnp.maximum(y, 0.0)


def _bn_add_relu_img_kernel(x_ref, res_ref, scale_ref, bias_ref, o_ref):
    y = x_ref[0].astype(jnp.float32) * scale_ref[...] + bias_ref[...] \
        + res_ref[0]
    o_ref[0] = jnp.maximum(y, 0.0)


def bn_add_relu(x_flat_b16, res_flat_f32, scale, bias):
    """x_flat_b16: (N,HW,C) bf16 conv2 output; res_flat_f32: (N,HW,C) f32."""
    N, HW, C = x_flat_b16.shape
    total = N * HW * C
    if total % 128 == 0 and 128 % C == 0:
        # Lane-dense layout: channel index = lane % C, identical on every row.
        T = total // 128
        reps = 128 // C
        scale_row = jnp.tile(scale.astype(jnp.float32), reps).reshape(1, 128)
        bias_row = jnp.tile(bias.astype(jnp.float32), reps).reshape(1, 128)
        xd = x_flat_b16.reshape(T, 128)
        rd = res_flat_f32.reshape(T, 128)
        rblk = _pick_rows(T)
        row = pl.BlockSpec((rblk, 128), lambda i: (i, 0))
        vec = pl.BlockSpec((1, 128), lambda i: (0, 0))
        out = pl.pallas_call(
            _bn_add_relu_flat_kernel,
            out_shape=jax.ShapeDtypeStruct((T, 128), jnp.float32),
            grid=(T // rblk,),
            in_specs=[row, row, vec, vec],
            out_specs=row,
            compiler_params=pltpu.CompilerParams(
                dimension_semantics=("parallel",)),
        )(xd, rd, scale_row, bias_row)
        return out.reshape(N, HW, C)

    # Fallback: channel-last per-image blocking (C not a divisor of 128).
    scale2 = scale.reshape(1, C).astype(jnp.float32)
    bias2 = bias.reshape(1, C).astype(jnp.float32)
    img = pl.BlockSpec((1, HW, C), lambda n: (n, 0, 0))
    vec = pl.BlockSpec((1, C), lambda n: (0, 0))
    return pl.pallas_call(
        _bn_add_relu_img_kernel,
        out_shape=jax.ShapeDtypeStruct((N, HW, C), jnp.float32),
        grid=(N,),
        in_specs=[img, img, vec, vec],
        out_specs=img,
        compiler_params=pltpu.CompilerParams(dimension_semantics=("parallel",)),
    )(x_flat_b16, res_flat_f32, scale2, bias2)


# --------------------------------------------------------------------------
# Fold batch-norm batch statistics into per-channel scale/bias (tiny JAX ops).
# --------------------------------------------------------------------------
def _bn_fold(gamma, beta, s, q, count):
    s_tot = jnp.sum(s, axis=(0, 1))                 # (Cout,)
    q_tot = jnp.sum(q, axis=(0, 1))
    mean = s_tot / count
    var = jnp.maximum(q_tot / count - mean * mean, 0.0)   # biased (training)
    scale = gamma * lax.rsqrt(var + EPS)
    bias = beta - mean * scale
    return scale, bias


# --------------------------------------------------------------------------
# BasicBlock forward (NCHW in / NCHW out, like PyTorch).
# --------------------------------------------------------------------------
@jax.jit
def basic_block_forward(x_nchw, params):
    N, C, H, W = x_nchw.shape
    # TODO(synk): transposes could be dropped if the surrounding model is NHWC.
    x = jnp.transpose(x_nchw, (0, 2, 3, 1)).astype(jnp.float32)   # -> NHWC
    xf = x.reshape(N, H * W, C)                                   # flattened
    cnt = float(N * H * W)

    planes = params["w1"].shape[-1]
    w1 = params["w1"].reshape(9 * C, planes).astype(jnp.bfloat16)
    w2 = params["w2"].reshape(9 * planes, planes).astype(jnp.bfloat16)

    # conv1 (+ BN1 batch stats fused)
    c1, s1, q1 = conv3x3_fused(xf, w1, H, W)
    scale1, bias1 = _bn_fold(params["gamma1"], params["beta1"], s1, q1, cnt)

    # conv2 with bn1+ReLU fused into its input prologue (+ BN2 batch stats)
    c2, s2, q2 = conv3x3_fused(c1, w2, H, W, scale=scale1, bias=bias1)
    scale2, bias2 = _bn_fold(params["gamma2"], params["beta2"], s2, q2, cnt)

    # bn2 + residual add + ReLU (lane-dense elementwise pass)
    out = bn_add_relu(c2, xf, scale2, bias2)

    out = out.reshape(N, H, W, C)
    return jnp.transpose(out, (0, 3, 1, 2))                       # -> NCHW


# --------------------------------------------------------------------------
# Plain-JAX reference with matching numerics (bf16 MXU inputs, bf16-stored
# conv intermediates, f32 batch-norm) for the correctness check in __main__.
# --------------------------------------------------------------------------
def _ref_forward(x_nchw, p):
    x = jnp.transpose(x_nchw, (0, 2, 3, 1)).astype(jnp.float32)

    def conv(v, w):
        out = lax.conv_general_dilated(
            v.astype(jnp.bfloat16), w.astype(jnp.bfloat16), (1, 1), "SAME",
            dimension_numbers=("NHWC", "HWIO", "NHWC"),
            preferred_element_type=jnp.float32)
        # kernel stores conv intermediates as bf16
        return out.astype(jnp.bfloat16).astype(jnp.float32)

    def bn(v, g, b):
        mean = jnp.mean(v, axis=(0, 1, 2))
        var = jnp.mean(v * v, axis=(0, 1, 2)) - mean * mean
        return g * (v - mean) * lax.rsqrt(var + EPS) + b

    out = jax.nn.relu(bn(conv(x, p["w1"]), p["gamma1"], p["beta1"]))
    out = bn(conv(out, p["w2"]), p["gamma2"], p["beta2"])
    out = jax.nn.relu(out + x)
    return jnp.transpose(out, (0, 3, 1, 2))


if __name__ == "__main__":
    # small shapes consistent with BasicBlock(inplanes=4, planes=4, stride=1)
    N, C, H, W = 2, 4, 16, 16
    key = jax.random.PRNGKey(0)
    k = jax.random.split(key, 7)

    params = {
        "w1": 0.1 * jax.random.normal(k[0], (3, 3, C, C), jnp.float32),
        "w2": 0.1 * jax.random.normal(k[1], (3, 3, C, C), jnp.float32),
        "gamma1": 1.0 + 0.1 * jax.random.normal(k[2], (C,), jnp.float32),
        "beta1": 0.1 * jax.random.normal(k[3], (C,), jnp.float32),
        "gamma2": 1.0 + 0.1 * jax.random.normal(k[4], (C,), jnp.float32),
        "beta2": 0.1 * jax.random.normal(k[5], (C,), jnp.float32),
    }
    x = jax.random.normal(k[6], (N, C, H, W), jnp.float32)

    out = jax.block_until_ready(basic_block_forward(x, params))
    ref = jax.block_until_ready(_ref_forward(x, params))
    np.testing.assert_allclose(np.asarray(out), np.asarray(ref),
                               rtol=5e-3, atol=5e-3)

    print("KERNEL_OK")
</pallas_src>

<mosaic_0001>
module attributes {stable_mosaic.version = 11 : i64} {
  func.func @_conv3x3_kernel(%arg0: i32, %arg1: memref<1x256x4xf32, #tpu.memory_space<vmem>>, %arg2: memref<36x4xbf16, #tpu.memory_space<vmem>>, %arg3: memref<1x4xf32, #tpu.memory_space<vmem>>, %arg4: memref<1x4xf32, #tpu.memory_space<vmem>>, %arg5: memref<1x256x4xbf16, #tpu.memory_space<vmem>>, %arg6: memref<1x1x4xf32, #tpu.memory_space<vmem>>, %arg7: memref<1x1x4xf32, #tpu.memory_space<vmem>>, %arg8: memref<304x4xbf16, #tpu.memory_space<vmem>>, %arg9: memref<256x36xbf16, #tpu.memory_space<vmem>>) attributes {dimension_semantics = [#tpu.dimension_semantics<parallel>], iteration_bounds = array<i64: 2>, scalar_prefetch = 0 : i64, scratch_operands = 2 : i64, tpu.core_type = #tpu.core_type<tc>, window_params = [{transform_indices = @transform_0, window_bounds = array<i64: 1, 256, 4>}, {pipeline_mode = #tpu.pipeline_mode<synchronous>, transform_indices = @transform_1, window_bounds = array<i64: 36, 4>}, {pipeline_mode = #tpu.pipeline_mode<synchronous>, transform_indices = @transform_2, window_bounds = array<i64: 1, 4>}, {pipeline_mode = #tpu.pipeline_mode<synchronous>, transform_indices = @transform_3, window_bounds = array<i64: 1, 4>}, {transform_indices = @transform_4, window_bounds = array<i64: 1, 256, 4>}, {transform_indices = @transform_5, window_bounds = array<i64: 1, 1, 4>}, {transform_indices = @transform_6, window_bounds = array<i64: 1, 1, 4>}]} {
    %cst = arith.constant 0.000000e+00 : bf16
    %0 = vector.broadcast %cst : bf16 to vector<24x4xbf16>
    %c0 = arith.constant 0 : index
    %c0_0 = arith.constant 0 : index
    %1 = vector.load %arg8[%c0, %c0_0] : memref<304x4xbf16, #tpu.memory_space<vmem>>, vector<24x4xbf16>
    tpu.vector_store %arg8[%c0, %c0_0], %0 {strides = array<i32>} : memref<304x4xbf16, #tpu.memory_space<vmem>>, vector<24x4xbf16>,
    %cst_1 = arith.constant 0.000000e+00 : bf16
    %2 = vector.broadcast %cst_1 : bf16 to vector<24x4xbf16>
    %c280 = arith.constant 280 : index
    %c0_2 = arith.constant 0 : index
    %3 = vector.load %arg8[%c280, %c0_2] : memref<304x4xbf16, #tpu.memory_space<vmem>>, vector<24x4xbf16>
    tpu.vector_store %arg8[%c280, %c0_2], %2 {strides = array<i32>} : memref<304x4xbf16, #tpu.memory_space<vmem>>, vector<24x4xbf16>,
    %c0_3 = arith.constant 0 : index
    %c0_4 = arith.constant 0 : index
    %c0_5 = arith.constant 0 : index
    %4 = vector.load %arg1[%c0_3, %c0_4, %c0_5] : memref<1x256x4xf32, #tpu.memory_space<vmem>>, vector<1x256x4xf32>
    %5 = vector.shape_cast %4 : vector<1x256x4xf32> to vector<256x4xf32>
    %6 = arith.truncf %5 : vector<256x4xf32> to vector<256x4xbf16>
    %c24 = arith.constant 24 : index
    %c0_6 = arith.constant 0 : index
    %7 = vector.load %arg8[%c24, %c0_6] : memref<304x4xbf16, #tpu.memory_space<vmem>>, vector<256x4xbf16>
    tpu.vector_store %arg8[%c24, %c0_6], %6 {strides = array<i32>} : memref<304x4xbf16, #tpu.memory_space<vmem>>, vector<256x4xbf16>,
    %8 = tpu.iota {dimensions = array<i32: 0>} : vector<256x1xi32>
    %c16_i32 = arith.constant 16 : i32
    %c0_i32 = arith.constant 0 : i32
    %9 = arith.cmpi eq, %c16_i32, %c0_i32 : i32
    %c1_i32 = arith.constant 1 : i32
    %10 = arith.select %9, %c1_i32, %c16_i32 : i32
    %11 = vector.broadcast %10 : i32 to vector<256x1xi32>
    %12 = arith.remsi %8, %11 : vector<256x1xi32>
    %c0_i32_7 = arith.constant 0 : i32
    %13 = vector.broadcast %c0_i32_7 : i32 to vector<256x1xi32>
    %14 = arith.cmpi ne, %12, %13 : vector<256x1xi32>
    %c0_i32_8 = arith.constant 0 : i32
    %15 = vector.broadcast %c0_i32_8 : i32 to vector<256x1xi32>
    %16 = arith.cmpi slt, %12, %15 : vector<256x1xi32>
    %c0_i32_9 = arith.constant 0 : i32
    %17 = arith.cmpi slt, %10, %c0_i32_9 : i32
    %18 = vector.broadcast %17 : i1 to vector<256x1xi1>
    %19 = vector.broadcast %18 : vector<256x1xi1> to vector<256x1xi1>
    %20 = arith.xori %16, %19 : vector<256x1xi1>
    %21 = arith.andi %20, %14 : vector<256x1xi1>
    %22 = vector.broadcast %10 : i32 to vector<256x1xi32>
    %23 = arith.addi %12, %22 : vector<256x1xi32>
    %24 = arith.select %21, %23, %12 : vector<256x1xi1>, vector<256x1xi32>
    %c0_i32_10 = arith.constant 0 : i32
    %25 = vector.broadcast %c0_i32_10 : i32 to vector<256x1xi32>
    %26 = arith.cmpi ne, %24, %25 : vector<256x1xi32>
    %c15_i32 = arith.constant 15 : i32
    %27 = vector.broadcast %c15_i32 : i32 to vector<256x1xi32>
    %28 = arith.cmpi ne, %24, %27 : vector<256x1xi32>
    %c7 = arith.constant 7 : index
    %c0_11 = arith.constant 0 : index
    %29 = vector.load %arg8[%c7, %c0_11] : memref<304x4xbf16, #tpu.memory_space<vmem>>, vector<256x4xbf16>
    %cst_12 = arith.constant 0.000000e+00 : bf16
    %30 = vector.broadcast %cst_12 : bf16 to vector<256x4xbf16>
    %31 = vector.shape_cast %26 : vector<256x1xi1> to vector<256x1xi1>
    %32 = vector.broadcast %31 : vector<256x1xi1> to vector<256x4xi1>
    %33 = arith.select %32, %29, %30 : vector<256x4xi1>, vector<256x4xbf16>
    %c0_13 = arith.constant 0 : index
    %c0_14 = arith.constant 0 : index
    %34 = vector.load %arg9[%c0_13, %c0_14] : memref<256x36xbf16, #tpu.memory_space<vmem>>, vector<256x4xbf16>
    tpu.vector_store %arg9[%c0_13, %c0_14], %33 {strides = array<i32>} : memref<256x36xbf16, #tpu.memory_space<vmem>>, vector<256x4xbf16>,
    %c8 = arith.constant 8 : index
    %c0_15 = arith.constant 0 : index
    %35 = vector.load %arg8[%c8, %c0_15] : memref<304x4xbf16, #tpu.memory_space<vmem>>, vector<256x4xbf16>
    %c0_16 = arith.constant 0 : index
    %c4 = arith.constant 4 : index
    %36 = vector.load %arg9[%c0_16, %c4] : memref<256x36xbf16, #tpu.memory_space<vmem>>, vector<256x4xbf16>
    tpu.vector_store %arg9[%c0_16, %c4], %35 {strides = array<i32>} : memref<256x36xbf16, #tpu.memory_space<vmem>>, vector<256x4xbf16>,
    %c9 = arith.constant 9 : index
    %c0_17 = arith.constant 0 : index
    %37 = vector.load %arg8[%c9, %c0_17] : memref<304x4xbf16, #tpu.memory_space<vmem>>, vector<256x4xbf16>
    %cst_18 = arith.constant 0.000000e+00 : bf16
    %38 = vector.broadcast %cst_18 : bf16 to vector<256x4xbf16>
    %39 = vector.shape_cast %28 : vector<256x1xi1> to vector<256x1xi1>
    %40 = vector.broadcast %39 : vector<256x1xi1> to vector<256x4xi1>
    %41 = arith.select %40, %37, %38 : vector<256x4xi1>, vector<256x4xbf16>
    %c0_19 = arith.constant 0 : index
    %c8_20 = arith.constant 8 : index
    %42 = vector.load %arg9[%c0_19, %c8_20] : memref<256x36xbf16, #tpu.memory_space<vmem>>, vector<256x4xbf16>
    tpu.vector_store %arg9[%c0_19, %c8_20], %41 {strides = array<i32>} : memref<256x36xbf16, #tpu.memory_space<vmem>>, vector<256x4xbf16>,
    %c23 = arith.constant 23 : index
    %c0_21 = arith.constant 0 : index
    %43 = vector.load %arg8[%c23, %c0_21] : memref<304x4xbf16, #tpu.memory_space<vmem>>, vector<256x4xbf16>
    %cst_22 = arith.constant 0.000000e+00 : bf16
    %44 = vector.broadcast %cst_22 : bf16 to vector<256x4xbf16>
    %45 = vector.shape_cast %26 : vector<256x1xi1> to vector<256x1xi1>
    %46 = vector.broadcast %45 : vector<256x1xi1> to vector<256x4xi1>
    %47 = arith.select %46, %43, %44 : vector<256x4xi1>, vector<256x4xbf16>
    %c0_23 = arith.constant 0 : index
    %c12 = arith.constant 12 : index
    %48 = vector.load %arg9[%c0_23, %c12] : memref<256x36xbf16, #tpu.memory_space<vmem>>, vector<256x4xbf16>
    tpu.vector_store %arg9[%c0_23, %c12], %47 {strides = array<i32>} : memref<256x36xbf16, #tpu.memory_space<vmem>>, vector<256x4xbf16>,
    %c24_24 = arith.constant 24 : index
    %c0_25 = arith.constant 0 : index
    %49 = vector.load %arg8[%c24_24, %c0_25] : memref<304x4xbf16, #tpu.memory_space<vmem>>, vector<256x4xbf16>
    %c0_26 = arith.constant 0 : index
    %c16 = arith.constant 16 : index
    %50 = vector.load %arg9[%c0_26, %c16] : memref<256x36xbf16, #tpu.memory_space<vmem>>, vector<256x4xbf16>
    tpu.vector_store %arg9[%c0_26, %c16], %49 {strides = array<i32>} : memref<256x36xbf16, #tpu.memory_space<vmem>>, vector<256x4xbf16>,
    %c25 = arith.constant 25 : index
    %c0_27 = arith.constant 0 : index
    %51 = vector.load %arg8[%c25, %c0_27] : memref<304x4xbf16, #tpu.memory_space<vmem>>, vector<256x4xbf16>
    %cst_28 = arith.constant 0.000000e+00 : bf16
    %52 = vector.broadcast %cst_28 : bf16 to vector<256x4xbf16>
    %53 = vector.shape_cast %28 : vector<256x1xi1> to vector<256x1xi1>
    %54 = vector.broadcast %53 : vector<256x1xi1> to vector<256x4xi1>
    %55 = arith.select %54, %51, %52 : vector<256x4xi1>, vector<256x4xbf16>
    %c0_29 = arith.constant 0 : index
    %c20 = arith.constant 20 : index
    %56 = vector.load %arg9[%c0_29, %c20] : memref<256x36xbf16, #tpu.memory_space<vmem>>, vector<256x4xbf16>
    tpu.vector_store %arg9[%c0_29, %c20], %55 {strides = array<i32>} : memref<256x36xbf16, #tpu.memory_space<vmem>>, vector<256x4xbf16>,
    %c39 = arith.constant 39 : index
    %c0_30 = arith.constant 0 : index
    %57 = vector.load %arg8[%c39, %c0_30] : memref<304x4xbf16, #tpu.memory_space<vmem>>, vector<256x4xbf16>
    %cst_31 = arith.constant 0.000000e+00 : bf16
    %58 = vector.broadcast %cst_31 : bf16 to vector<256x4xbf16>
    %59 = vector.shape_cast %26 : vector<256x1xi1> to vector<256x1xi1>
    %60 = vector.broadcast %59 : vector<256x1xi1> to vector<256x4xi1>
    %61 = arith.select %60, %57, %58 : vector<256x4xi1>, vector<256x4xbf16>
    %c0_32 = arith.constant 0 : index
    %c24_33 = arith.constant 24 : index
    %62 = vector.load %arg9[%c0_32, %c24_33] : memref<256x36xbf16, #tpu.memory_space<vmem>>, vector<256x4xbf16>
    tpu.vector_store %arg9[%c0_32, %c24_33], %61 {strides = array<i32>} : memref<256x36xbf16, #tpu.memory_space<vmem>>, vector<256x4xbf16>,
    %c40 = arith.constant 40 : index
    %c0_34 = arith.constant 0 : index
    %63 = vector.load %arg8[%c40, %c0_34] : memref<304x4xbf16, #tpu.memory_space<vmem>>, vector<256x4xbf16>
    %c0_35 = arith.constant 0 : index
    %c28 = arith.constant 28 : index
    %64 = vector.load %arg9[%c0_35, %c28] : memref<256x36xbf16, #tpu.memory_space<vmem>>, vector<256x4xbf16>
    tpu.vector_store %arg9[%c0_35, %c28], %63 {strides = array<i32>} : memref<256x36xbf16, #tpu.memory_space<vmem>>, vector<256x4xbf16>,
    %c41 = arith.constant 41 : index
    %c0_36 = arith.constant 0 : index
    %65 = vector.load %arg8[%c41, %c0_36] : memref<304x4xbf16, #tpu.memory_space<vmem>>, vector<256x4xbf16>
    %cst_37 = arith.constant 0.000000e+00 : bf16
    %66 = vector.broadcast %cst_37 : bf16 to vector<256x4xbf16>
    %67 = vector.shape_cast %28 : vector<256x1xi1> to vector<256x1xi1>
    %68 = vector.broadcast %67 : vector<256x1xi1> to vector<256x4xi1>
    %69 = arith.select %68, %65, %66 : vector<256x4xi1>, vector<256x4xbf16>
    %c0_38 = arith.constant 0 : index
    %c32 = arith.constant 32 : index
    %70 = vector.load %arg9[%c0_38, %c32] : memref<256x36xbf16, #tpu.memory_space<vmem>>, vector<256x4xbf16>
    tpu.vector_store %arg9[%c0_38, %c32], %69 {strides = array<i32>} : memref<256x36xbf16, #tpu.memory_space<vmem>>, vector<256x4xbf16>,
    %c0_39 = arith.constant 0 : index
    %c0_40 = arith.constant 0 : index
    %71 = vector.load %arg9[%c0_39, %c0_40] : memref<256x36xbf16, #tpu.memory_space<vmem>>, vector<256x36xbf16>
    %c0_41 = arith.constant 0 : index
    %c0_42 = arith.constant 0 : index
    %72 = vector.load %arg2[%c0_41, %c0_42] : memref<36x4xbf16, #tpu.memory_space<vmem>>, vector<36x4xbf16>
    %cst_43 = arith.constant dense<0.000000e+00> : vector<256x4xf32>
    %73 = tpu.matmul %71, %72, %cst_43 {dimension_numbers = #tpu.dot_dimension_numbers<[1], [0], [0], [1], [0, 0, 1, 1], [], []>} : vector<256x36xbf16>, vector<36x4xbf16>, vector<256x4xf32> -> vector<256x4xf32>
    %74 = arith.truncf %73 : vector<256x4xf32> to vector<256x4xbf16>
    %c0_44 = arith.constant 0 : index
    %c0_45 = arith.constant 0 : index
    %c0_46 = arith.constant 0 : index
    %75 = vector.load %arg5[%c0_44, %c0_45, %c0_46] : memref<1x256x4xbf16, #tpu.memory_space<vmem>>, vector<1x256x4xbf16>
    %76 = vector.shape_cast %75 : vector<1x256x4xbf16> to vector<256x4xbf16>
    %77 = vector.shape_cast %74 : vector<256x4xbf16> to vector<1x256x4xbf16>
    tpu.vector_store %arg5[%c0_44, %c0_45, %c0_46], %77 {strides = array<i32>} : memref<1x256x4xbf16, #tpu.memory_space<vmem>>, vector<1x256x4xbf16>,
    %78 = arith.extf %74 : vector<256x4xbf16> to vector<256x4xf32>
    %cst_47 = arith.constant dense<0.000000e+00> : vector<4xf32>
    %79 = vector.multi_reduction <add>, %78, %cst_47 [0] : vector<256x4xf32> to vector<4xf32>
    %80 = vector.shape_cast %79 : vector<4xf32> to vector<1x4xf32>
    %c0_48 = arith.constant 0 : index
    %c0_49 = arith.constant 0 : index
    %c0_50 = arith.constant 0 : index
    %81 = vector.load %arg6[%c0_48, %c0_49, %c0_50] : memref<1x1x4xf32, #tpu.memory_space<vmem>>, vector<1x1x4xf32>
    %82 = vector.shape_cast %81 : vector<1x1x4xf32> to vector<1x4xf32>
    %83 = vector.shape_cast %80 : vector<1x4xf32> to vector<1x1x4xf32>
    tpu.vector_store %arg6[%c0_48, %c0_49, %c0_50], %83 {strides = array<i32>} : memref<1x1x4xf32, #tpu.memory_space<vmem>>, vector<1x1x4xf32>,
    %84 = arith.mulf %78, %78 : vector<256x4xf32>
    %cst_51 = arith.constant dense<0.000000e+00> : vector<4xf32>
    %85 = vector.multi_reduction <add>, %84, %cst_51 [0] : vector<256x4xf32> to vector<4xf32>
    %86 = vector.shape_cast %85 : vector<4xf32> to vector<1x4xf32>
    %c0_52 = arith.constant 0 : index
    %c0_53 = arith.constant 0 : index
    %c0_54 = arith.constant 0 : index
    %87 = vector.load %arg7[%c0_52, %c0_53, %c0_54] : memref<1x1x4xf32, #tpu.memory_space<vmem>>, vector<1x1x4xf32>
    %88 = vector.shape_cast %87 : vector<1x1x4xf32> to vector<1x4xf32>
    %89 = vector.shape_cast %86 : vector<1x4xf32> to vector<1x1x4xf32>
    tpu.vector_store %arg7[%c0_52, %c0_53, %c0_54], %89 {strides = array<i32>} : memref<1x1x4xf32, #tpu.memory_space<vmem>>, vector<1x1x4xf32>,
    return
  }
  func.func @transform_0(%arg0: i32) -> (i32, i32, i32) {
    %c0_i32 = arith.constant 0 : i32
    %c0_i32_0 = arith.constant 0 : i32
    %c0_i32_1 = arith.constant 0 : i32
    return %arg0, %c0_i32, %c0_i32_0 : i32, i32, i32
  }
  func.func @transform_1(%arg0: i32) -> (i32, i32) {
    %c0_i32 = arith.constant 0 : i32
    %c0_i32_0 = arith.constant 0 : i32
    %c0_i32_1 = arith.constant 0 : i32
    return %c0_i32, %c0_i32_0 : i32, i32
  }
  func.func @transform_2(%arg0: i32) -> (i32, i32) {
    %c0_i32 = arith.constant 0 : i32
    %c0_i32_0 = arith.constant 0 : i32
    %c0_i32_1 = arith.constant 0 : i32
    return %c0_i32, %c0_i32_0 : i32, i32
  }
  func.func @transform_3(%arg0: i32) -> (i32, i32) {
    %c0_i32 = arith.constant 0 : i32
    %c0_i32_0 = arith.constant 0 : i32
    %c0_i32_1 = arith.constant 0 : i32
    return %c0_i32, %c0_i32_0 : i32, i32
  }
  func.func @transform_4(%arg0: i32) -> (i32, i32, i32) {
    %c0_i32 = arith.constant 0 : i32
    %c0_i32_0 = arith.constant 0 : i32
    %c0_i32_1 = arith.constant 0 : i32
    return %arg0, %c0_i32, %c0_i32_0 : i32, i32, i32
  }
  func.func @transform_5(%arg0: i32) -> (i32, i32, i32) {
    %c0_i32 = arith.constant 0 : i32
    %c0_i32_0 = arith.constant 0 : i32
    %c0_i32_1 = arith.constant 0 : i32
    return %arg0, %c0_i32, %c0_i32_0 : i32, i32, i32
  }
  func.func @transform_6(%arg0: i32) -> (i32, i32, i32) {
    %c0_i32 = arith.constant 0 : i32
    %c0_i32_0 = arith.constant 0 : i32
    %c0_i32_1 = arith.constant 0 : i32
    return %arg0, %c0_i32, %c0_i32_0 : i32, i32, i32
  }
}

module attributes {stable_mosaic.version = 11 : i64} {
  func.func @_conv3x3_kernel(%arg0: i32, %arg1: memref<1x256x4xbf16, #tpu.memory_space<vmem>>, %arg2: memref<36x4xbf16, #tpu.memory_space<vmem>>, %arg3: memref<1x4xf32, #tpu.memory_space<vmem>>, %arg4: memref<1x4xf32, #tpu.memory_space<vmem>>, %arg5: memref<1x256x4xbf16, #tpu.memory_space<vmem>>, %arg6: memref<1x1x4xf32, #tpu.memory_space<vmem>>, %arg7: memref<1x1x4xf32, #tpu.memory_space<vmem>>, %arg8: memref<304x4xbf16, #tpu.memory_space<vmem>>, %arg9: memref<256x36xbf16, #tpu.memory_space<vmem>>) attributes {dimension_semantics = [#tpu.dimension_semantics<parallel>], iteration_bounds = array<i64: 2>, scalar_prefetch = 0 : i64, scratch_operands = 2 : i64, tpu.core_type = #tpu.core_type<tc>, window_params = [{transform_indices = @transform_0, window_bounds = array<i64: 1, 256, 4>}, {pipeline_mode = #tpu.pipeline_mode<synchronous>, transform_indices = @transform_1, window_bounds = array<i64: 36, 4>}, {pipeline_mode = #tpu.pipeline_mode<synchronous>, transform_indices = @transform_2, window_bounds = array<i64: 1, 4>}, {pipeline_mode = #tpu.pipeline_mode<synchronous>, transform_indices = @transform_3, window_bounds = array<i64: 1, 4>}, {transform_indices = @transform_4, window_bounds = array<i64: 1, 256, 4>}, {transform_indices = @transform_5, window_bounds = array<i64: 1, 1, 4>}, {transform_indices = @transform_6, window_bounds = array<i64: 1, 1, 4>}]} {
    %cst = arith.constant 0.000000e+00 : bf16
    %0 = vector.broadcast %cst : bf16 to vector<24x4xbf16>
    %c0 = arith.constant 0 : index
    %c0_0 = arith.constant 0 : index
    %1 = vector.load %arg8[%c0, %c0_0] : memref<304x4xbf16, #tpu.memory_space<vmem>>, vector<24x4xbf16>
    tpu.vector_store %arg8[%c0, %c0_0], %0 {strides = array<i32>} : memref<304x4xbf16, #tpu.memory_space<vmem>>, vector<24x4xbf16>,
    %cst_1 = arith.constant 0.000000e+00 : bf16
    %2 = vector.broadcast %cst_1 : bf16 to vector<24x4xbf16>
    %c280 = arith.constant 280 : index
    %c0_2 = arith.constant 0 : index
    %3 = vector.load %arg8[%c280, %c0_2] : memref<304x4xbf16, #tpu.memory_space<vmem>>, vector<24x4xbf16>
    tpu.vector_store %arg8[%c280, %c0_2], %2 {strides = array<i32>} : memref<304x4xbf16, #tpu.memory_space<vmem>>, vector<24x4xbf16>,
    %c0_3 = arith.constant 0 : index
    %c0_4 = arith.constant 0 : index
    %c0_5 = arith.constant 0 : index
    %4 = vector.load %arg1[%c0_3, %c0_4, %c0_5] : memref<1x256x4xbf16, #tpu.memory_space<vmem>>, vector<1x256x4xbf16>
    %5 = vector.shape_cast %4 : vector<1x256x4xbf16> to vector<256x4xbf16>
    %6 = arith.extf %5 : vector<256x4xbf16> to vector<256x4xf32>
    %c0_6 = arith.constant 0 : index
    %c0_7 = arith.constant 0 : index
    %7 = vector.load %arg3[%c0_6, %c0_7] : memref<1x4xf32, #tpu.memory_space<vmem>>, vector<1x4xf32>
    %8 = vector.broadcast %7 : vector<1x4xf32> to vector<256x4xf32>
    %9 = arith.mulf %6, %8 : vector<256x4xf32>
    %c0_8 = arith.constant 0 : index
    %c0_9 = arith.constant 0 : index
    %10 = vector.load %arg4[%c0_8, %c0_9] : memref<1x4xf32, #tpu.memory_space<vmem>>, vector<1x4xf32>
    %11 = vector.broadcast %10 : vector<1x4xf32> to vector<256x4xf32>
    %12 = arith.addf %9, %11 : vector<256x4xf32>
    %cst_10 = arith.constant 0.000000e+00 : f32
    %13 = vector.broadcast %cst_10 : f32 to vector<256x4xf32>
    %14 = arith.maximumf %12, %13 : vector<256x4xf32>
    %15 = arith.truncf %14 : vector<256x4xf32> to vector<256x4xbf16>
    %c24 = arith.constant 24 : index
    %c0_11 = arith.constant 0 : index
    %16 = vector.load %arg8[%c24, %c0_11] : memref<304x4xbf16, #tpu.memory_space<vmem>>, vector<256x4xbf16>
    tpu.vector_store %arg8[%c24, %c0_11], %15 {strides = array<i32>} : memref<304x4xbf16, #tpu.memory_space<vmem>>, vector<256x4xbf16>,
    %17 = tpu.iota {dimensions = array<i32: 0>} : vector<256x1xi32>
    %c16_i32 = arith.constant 16 : i32
    %c0_i32 = arith.constant 0 : i32
    %18 = arith.cmpi eq, %c16_i32, %c0_i32 : i32
    %c1_i32 = arith.constant 1 : i32
    %19 = arith.select %18, %c1_i32, %c16_i32 : i32
    %20 = vector.broadcast %19 : i32 to vector<256x1xi32>
    %21 = arith.remsi %17, %20 : vector<256x1xi32>
    %c0_i32_12 = arith.constant 0 : i32
    %22 = vector.broadcast %c0_i32_12 : i32 to vector<256x1xi32>
    %23 = arith.cmpi ne, %21, %22 : vector<256x1xi32>
    %c0_i32_13 = arith.constant 0 : i32
    %24 = vector.broadcast %c0_i32_13 : i32 to vector<256x1xi32>
    %25 = arith.cmpi slt, %21, %24 : vector<256x1xi32>
    %c0_i32_14 = arith.constant 0 : i32
    %26 = arith.cmpi slt, %19, %c0_i32_14 : i32
    %27 = vector.broadcast %26 : i1 to vector<256x1xi1>
    %28 = vector.broadcast %27 : vector<256x1xi1> to vector<256x1xi1>
    %29 = arith.xori %25, %28 : vector<256x1xi1>
    %30 = arith.andi %29, %23 : vector<256x1xi1>
    %31 = vector.broadcast %19 : i32 to vector<256x1xi32>
    %32 = arith.addi %21, %31 : vector<256x1xi32>
    %33 = arith.select %30, %32, %21 : vector<256x1xi1>, vector<256x1xi32>
    %c0_i32_15 = arith.constant 0 : i32
    %34 = vector.broadcast %c0_i32_15 : i32 to vector<256x1xi32>
    %35 = arith.cmpi ne, %33, %34 : vector<256x1xi32>
    %c15_i32 = arith.constant 15 : i32
    %36 = vector.broadcast %c15_i32 : i32 to vector<256x1xi32>
    %37 = arith.cmpi ne, %33, %36 : vector<256x1xi32>
    %c7 = arith.constant 7 : index
    %c0_16 = arith.constant 0 : index
    %38 = vector.load %arg8[%c7, %c0_16] : memref<304x4xbf16, #tpu.memory_space<vmem>>, vector<256x4xbf16>
    %cst_17 = arith.constant 0.000000e+00 : bf16
    %39 = vector.broadcast %cst_17 : bf16 to vector<256x4xbf16>
    %40 = vector.shape_cast %35 : vector<256x1xi1> to vector<256x1xi1>
    %41 = vector.broadcast %40 : vector<256x1xi1> to vector<256x4xi1>
    %42 = arith.select %41, %38, %39 : vector<256x4xi1>, vector<256x4xbf16>
    %c0_18 = arith.constant 0 : index
    %c0_19 = arith.constant 0 : index
    %43 = vector.load %arg9[%c0_18, %c0_19] : memref<256x36xbf16, #tpu.memory_space<vmem>>, vector<256x4xbf16>
    tpu.vector_store %arg9[%c0_18, %c0_19], %42 {strides = array<i32>} : memref<256x36xbf16, #tpu.memory_space<vmem>>, vector<256x4xbf16>,
    %c8 = arith.constant 8 : index
    %c0_20 = arith.constant 0 : index
    %44 = vector.load %arg8[%c8, %c0_20] : memref<304x4xbf16, #tpu.memory_space<vmem>>, vector<256x4xbf16>
    %c0_21 = arith.constant 0 : index
    %c4 = arith.constant 4 : index
    %45 = vector.load %arg9[%c0_21, %c4] : memref<256x36xbf16, #tpu.memory_space<vmem>>, vector<256x4xbf16>
    tpu.vector_store %arg9[%c0_21, %c4], %44 {strides = array<i32>} : memref<256x36xbf16, #tpu.memory_space<vmem>>, vector<256x4xbf16>,
    %c9 = arith.constant 9 : index
    %c0_22 = arith.constant 0 : index
    %46 = vector.load %arg8[%c9, %c0_22] : memref<304x4xbf16, #tpu.memory_space<vmem>>, vector<256x4xbf16>
    %cst_23 = arith.constant 0.000000e+00 : bf16
    %47 = vector.broadcast %cst_23 : bf16 to vector<256x4xbf16>
    %48 = vector.shape_cast %37 : vector<256x1xi1> to vector<256x1xi1>
    %49 = vector.broadcast %48 : vector<256x1xi1> to vector<256x4xi1>
    %50 = arith.select %49, %46, %47 : vector<256x4xi1>, vector<256x4xbf16>
    %c0_24 = arith.constant 0 : index
    %c8_25 = arith.constant 8 : index
    %51 = vector.load %arg9[%c0_24, %c8_25] : memref<256x36xbf16, #tpu.memory_space<vmem>>, vector<256x4xbf16>
    tpu.vector_store %arg9[%c0_24, %c8_25], %50 {strides = array<i32>} : memref<256x36xbf16, #tpu.memory_space<vmem>>, vector<256x4xbf16>,
    %c23 = arith.constant 23 : index
    %c0_26 = arith.constant 0 : index
    %52 = vector.load %arg8[%c23, %c0_26] : memref<304x4xbf16, #tpu.memory_space<vmem>>, vector<256x4xbf16>
    %cst_27 = arith.constant 0.000000e+00 : bf16
    %53 = vector.broadcast %cst_27 : bf16 to vector<256x4xbf16>
    %54 = vector.shape_cast %35 : vector<256x1xi1> to vector<256x1xi1>
    %55 = vector.broadcast %54 : vector<256x1xi1> to vector<256x4xi1>
    %56 = arith.select %55, %52, %53 : vector<256x4xi1>, vector<256x4xbf16>
    %c0_28 = arith.constant 0 : index
    %c12 = arith.constant 12 : index
    %57 = vector.load %arg9[%c0_28, %c12] : memref<256x36xbf16, #tpu.memory_space<vmem>>, vector<256x4xbf16>
    tpu.vector_store %arg9[%c0_28, %c12], %56 {strides = array<i32>} : memref<256x36xbf16, #tpu.memory_space<vmem>>, vector<256x4xbf16>,
    %c24_29 = arith.constant 24 : index
    %c0_30 = arith.constant 0 : index
    %58 = vector.load %arg8[%c24_29, %c0_30] : memref<304x4xbf16, #tpu.memory_space<vmem>>, vector<256x4xbf16>
    %c0_31 = arith.constant 0 : index
    %c16 = arith.constant 16 : index
    %59 = vector.load %arg9[%c0_31, %c16] : memref<256x36xbf16, #tpu.memory_space<vmem>>, vector<256x4xbf16>
    tpu.vector_store %arg9[%c0_31, %c16], %58 {strides = array<i32>} : memref<256x36xbf16, #tpu.memory_space<vmem>>, vector<256x4xbf16>,
    %c25 = arith.constant 25 : index
    %c0_32 = arith.constant 0 : index
    %60 = vector.load %arg8[%c25, %c0_32] : memref<304x4xbf16, #tpu.memory_space<vmem>>, vector<256x4xbf16>
    %cst_33 = arith.constant 0.000000e+00 : bf16
    %61 = vector.broadcast %cst_33 : bf16 to vector<256x4xbf16>
    %62 = vector.shape_cast %37 : vector<256x1xi1> to vector<256x1xi1>
    %63 = vector.broadcast %62 : vector<256x1xi1> to vector<256x4xi1>
    %64 = arith.select %63, %60, %61 : vector<256x4xi1>, vector<256x4xbf16>
    %c0_34 = arith.constant 0 : index
    %c20 = arith.constant 20 : index
    %65 = vector.load %arg9[%c0_34, %c20] : memref<256x36xbf16, #tpu.memory_space<vmem>>, vector<256x4xbf16>
    tpu.vector_store %arg9[%c0_34, %c20], %64 {strides = array<i32>} : memref<256x36xbf16, #tpu.memory_space<vmem>>, vector<256x4xbf16>,
    %c39 = arith.constant 39 : index
    %c0_35 = arith.constant 0 : index
    %66 = vector.load %arg8[%c39, %c0_35] : memref<304x4xbf16, #tpu.memory_space<vmem>>, vector<256x4xbf16>
    %cst_36 = arith.constant 0.000000e+00 : bf16
    %67 = vector.broadcast %cst_36 : bf16 to vector<256x4xbf16>
    %68 = vector.shape_cast %35 : vector<256x1xi1> to vector<256x1xi1>
    %69 = vector.broadcast %68 : vector<256x1xi1> to vector<256x4xi1>
    %70 = arith.select %69, %66, %67 : vector<256x4xi1>, vector<256x4xbf16>
    %c0_37 = arith.constant 0 : index
    %c24_38 = arith.constant 24 : index
    %71 = vector.load %arg9[%c0_37, %c24_38] : memref<256x36xbf16, #tpu.memory_space<vmem>>, vector<256x4xbf16>
    tpu.vector_store %arg9[%c0_37, %c24_38], %70 {strides = array<i32>} : memref<256x36xbf16, #tpu.memory_space<vmem>>, vector<256x4xbf16>,
    %c40 = arith.constant 40 : index
    %c0_39 = arith.constant 0 : index
    %72 = vector.load %arg8[%c40, %c0_39] : memref<304x4xbf16, #tpu.memory_space<vmem>>, vector<256x4xbf16>
    %c0_40 = arith.constant 0 : index
    %c28 = arith.constant 28 : index
    %73 = vector.load %arg9[%c0_40, %c28] : memref<256x36xbf16, #tpu.memory_space<vmem>>, vector<256x4xbf16>
    tpu.vector_store %arg9[%c0_40, %c28], %72 {strides = array<i32>} : memref<256x36xbf16, #tpu.memory_space<vmem>>, vector<256x4xbf16>,
    %c41 = arith.constant 41 : index
    %c0_41 = arith.constant 0 : index
    %74 = vector.load %arg8[%c41, %c0_41] : memref<304x4xbf16, #tpu.memory_space<vmem>>, vector<256x4xbf16>
    %cst_42 = arith.constant 0.000000e+00 : bf16
    %75 = vector.broadcast %cst_42 : bf16 to vector<256x4xbf16>
    %76 = vector.shape_cast %37 : vector<256x1xi1> to vector<256x1xi1>
    %77 = vector.broadcast %76 : vector<256x1xi1> to vector<256x4xi1>
    %78 = arith.select %77, %74, %75 : vector<256x4xi1>, vector<256x4xbf16>
    %c0_43 = arith.constant 0 : index
    %c32 = arith.constant 32 : index
    %79 = vector.load %arg9[%c0_43, %c32] : memref<256x36xbf16, #tpu.memory_space<vmem>>, vector<256x4xbf16>
    tpu.vector_store %arg9[%c0_43, %c32], %78 {strides = array<i32>} : memref<256x36xbf16, #tpu.memory_space<vmem>>, vector<256x4xbf16>,
    %c0_44 = arith.constant 0 : index
    %c0_45 = arith.constant 0 : index
    %80 = vector.load %arg9[%c0_44, %c0_45] : memref<256x36xbf16, #tpu.memory_space<vmem>>, vector<256x36xbf16>
    %c0_46 = arith.constant 0 : index
    %c0_47 = arith.constant 0 : index
    %81 = vector.load %arg2[%c0_46, %c0_47] : memref<36x4xbf16, #tpu.memory_space<vmem>>, vector<36x4xbf16>
    %cst_48 = arith.constant dense<0.000000e+00> : vector<256x4xf32>
    %82 = tpu.matmul %80, %81, %cst_48 {dimension_numbers = #tpu.dot_dimension_numbers<[1], [0], [0], [1], [0, 0, 1, 1], [], []>} : vector<256x36xbf16>, vector<36x4xbf16>, vector<256x4xf32> -> vector<256x4xf32>
    %83 = arith.truncf %82 : vector<256x4xf32> to vector<256x4xbf16>
    %c0_49 = arith.constant 0 : index
    %c0_50 = arith.constant 0 : index
    %c0_51 = arith.constant 0 : index
    %84 = vector.load %arg5[%c0_49, %c0_50, %c0_51] : memref<1x256x4xbf16, #tpu.memory_space<vmem>>, vector<1x256x4xbf16>
    %85 = vector.shape_cast %84 : vector<1x256x4xbf16> to vector<256x4xbf16>
    %86 = vector.shape_cast %83 : vector<256x4xbf16> to vector<1x256x4xbf16>
    tpu.vector_store %arg5[%c0_49, %c0_50, %c0_51], %86 {strides = array<i32>} : memref<1x256x4xbf16, #tpu.memory_space<vmem>>, vector<1x256x4xbf16>,
    %87 = arith.extf %83 : vector<256x4xbf16> to vector<256x4xf32>
    %cst_52 = arith.constant dense<0.000000e+00> : vector<4xf32>
    %88 = vector.multi_reduction <add>, %87, %cst_52 [0] : vector<256x4xf32> to vector<4xf32>
    %89 = vector.shape_cast %88 : vector<4xf32> to vector<1x4xf32>
    %c0_53 = arith.constant 0 : index
    %c0_54 = arith.constant 0 : index
    %c0_55 = arith.constant 0 : index
    %90 = vector.load %arg6[%c0_53, %c0_54, %c0_55] : memref<1x1x4xf32, #tpu.memory_space<vmem>>, vector<1x1x4xf32>
    %91 = vector.shape_cast %90 : vector<1x1x4xf32> to vector<1x4xf32>
    %92 = vector.shape_cast %89 : vector<1x4xf32> to vector<1x1x4xf32>
    tpu.vector_store %arg6[%c0_53, %c0_54, %c0_55], %92 {strides = array<i32>} : memref<1x1x4xf32, #tpu.memory_space<vmem>>, vector<1x1x4xf32>,
    %93 = arith.mulf %87, %87 : vector<256x4xf32>
    %cst_56 = arith.constant dense<0.000000e+00> : vector<4xf32>
    %94 = vector.multi_reduction <add>, %93, %cst_56 [0] : vector<256x4xf32> to vector<4xf32>
    %95 = vector.shape_cast %94 : vector<4xf32> to vector<1x4xf32>
    %c0_57 = arith.constant 0 : index
    %c0_58 = arith.constant 0 : index
    %c0_59 = arith.constant 0 : index
    %96 = vector.load %arg7[%c0_57, %c0_58, %c0_59] : memref<1x1x4xf32, #tpu.memory_space<vmem>>, vector<1x1x4xf32>
    %97 = vector.shape_cast %96 : vector<1x1x4xf32> to vector<1x4xf32>
    %98 = vector.shape_cast %95 : vector<1x4xf32> to vector<1x1x4xf32>
    tpu.vector_store %arg7[%c0_57, %c0_58, %c0_59], %98 {strides = array<i32>} : memref<1x1x4xf32, #tpu.memory_space<vmem>>, vector<1x1x4xf32>,
    return
  }
  func.func @transform_0(%arg0: i32) -> (i32, i32, i32) {
    %c0_i32 = arith.constant 0 : i32
    %c0_i32_0 = arith.constant 0 : i32
    %c0_i32_1 = arith.constant 0 : i32
    return %arg0, %c0_i32, %c0_i32_0 : i32, i32, i32
  }
  func.func @transform_1(%arg0: i32) -> (i32, i32) {
    %c0_i32 = arith.constant 0 : i32
    %c0_i32_0 = arith.constant 0 : i32
    %c0_i32_1 = arith.constant 0 : i32
    return %c0_i32, %c0_i32_0 : i32, i32
  }
  func.func @transform_2(%arg0: i32) -> (i32, i32) {
    %c0_i32 = arith.constant 0 : i32
    %c0_i32_0 = arith.constant 0 : i32
    %c0_i32_1 = arith.constant 0 : i32
    return %c0_i32, %c0_i32_0 : i32, i32
  }
  func.func @transform_3(%arg0: i32) -> (i32, i32) {
    %c0_i32 = arith.constant 0 : i32
    %c0_i32_0 = arith.constant 0 : i32
    %c0_i32_1 = arith.constant 0 : i32
    return %c0_i32, %c0_i32_0 : i32, i32
  }
  func.func @transform_4(%arg0: i32) -> (i32, i32, i32) {
    %c0_i32 = arith.constant 0 : i32
    %c0_i32_0 = arith.constant 0 : i32
    %c0_i32_1 = arith.constant 0 : i32
    return %arg0, %c0_i32, %c0_i32_0 : i32, i32, i32
  }
  func.func @transform_5(%arg0: i32) -> (i32, i32, i32) {
    %c0_i32 = arith.constant 0 : i32
    %c0_i32_0 = arith.constant 0 : i32
    %c0_i32_1 = arith.constant 0 : i32
    return %arg0, %c0_i32, %c0_i32_0 : i32, i32, i32
  }
  func.func @transform_6(%arg0: i32) -> (i32, i32, i32) {
    %c0_i32 = arith.constant 0 : i32
    %c0_i32_0 = arith.constant 0 : i32
    %c0_i32_1 = arith.constant 0 : i32
    return %arg0, %c0_i32, %c0_i32_0 : i32, i32, i32
  }
}

module attributes {stable_mosaic.version = 11 : i64} {
  func.func @_bn_add_relu_flat_kernel(%arg0: i32, %arg1: memref<16x128xbf16, #tpu.memory_space<vmem>>, %arg2: memref<16x128xf32, #tpu.memory_space<vmem>>, %arg3: memref<1x128xf32, #tpu.memory_space<vmem>>, %arg4: memref<1x128xf32, #tpu.memory_space<vmem>>, %arg5: memref<16x128xf32, #tpu.memory_space<vmem>>) attributes {dimension_semantics = [#tpu.dimension_semantics<parallel>], iteration_bounds = array<i64: 1>, scalar_prefetch = 0 : i64, scratch_operands = 0 : i64, tpu.core_type = #tpu.core_type<tc>, window_params = [{transform_indices = @transform_0, window_bounds = array<i64: 16, 128>}, {transform_indices = @transform_1, window_bounds = array<i64: 16, 128>}, {pipeline_mode = #tpu.pipeline_mode<synchronous>, transform_indices = @transform_2, window_bounds = array<i64: 1, 128>}, {pipeline_mode = #tpu.pipeline_mode<synchronous>, transform_indices = @transform_3, window_bounds = array<i64: 1, 128>}, {transform_indices = @transform_4, window_bounds = array<i64: 16, 128>}]} {
    %c0 = arith.constant 0 : index
    %c0_0 = arith.constant 0 : index
    %0 = vector.load %arg1[%c0, %c0_0] : memref<16x128xbf16, #tpu.memory_space<vmem>>, vector<16x128xbf16>
    %1 = arith.extf %0 : vector<16x128xbf16> to vector<16x128xf32>
    %c0_1 = arith.constant 0 : index
    %c0_2 = arith.constant 0 : index
    %2 = vector.load %arg3[%c0_1, %c0_2] : memref<1x128xf32, #tpu.memory_space<vmem>>, vector<1x128xf32>
    %3 = vector.broadcast %2 : vector<1x128xf32> to vector<16x128xf32>
    %4 = arith.mulf %1, %3 : vector<16x128xf32>
    %c0_3 = arith.constant 0 : index
    %c0_4 = arith.constant 0 : index
    %5 = vector.load %arg4[%c0_3, %c0_4] : memref<1x128xf32, #tpu.memory_space<vmem>>, vector<1x128xf32>
    %6 = vector.broadcast %5 : vector<1x128xf32> to vector<16x128xf32>
    %7 = arith.addf %4, %6 : vector<16x128xf32>
    %c0_5 = arith.constant 0 : index
    %c0_6 = arith.constant 0 : index
    %8 = vector.load %arg2[%c0_5, %c0_6] : memref<16x128xf32, #tpu.memory_space<vmem>>, vector<16x128xf32>
    %9 = arith.addf %7, %8 : vector<16x128xf32>
    %cst = arith.constant 0.000000e+00 : f32
    %10 = vector.broadcast %cst : f32 to vector<16x128xf32>
    %11 = arith.maximumf %9, %10 : vector<16x128xf32>
    %c0_7 = arith.constant 0 : index
    %c0_8 = arith.constant 0 : index
    %12 = vector.load %arg5[%c0_7, %c0_8] : memref<16x128xf32, #tpu.memory_space<vmem>>, vector<16x128xf32>
    tpu.vector_store %arg5[%c0_7, %c0_8], %11 {strides = array<i32>} : memref<16x128xf32, #tpu.memory_space<vmem>>, vector<16x128xf32>,
    return
  }
  func.func @transform_0(%arg0: i32) -> (i32, i32) {
    %c0_i32 = arith.constant 0 : i32
    %c0_i32_0 = arith.constant 0 : i32
    return %arg0, %c0_i32 : i32, i32
  }
  func.func @transform_1(%arg0: i32) -> (i32, i32) {
    %c0_i32 = arith.constant 0 : i32
    %c0_i32_0 = arith.constant 0 : i32
    return %arg0, %c0_i32 : i32, i32
  }
  func.func @transform_2(%arg0: i32) -> (i32, i32) {
    %c0_i32 = arith.constant 0 : i32
    %c0_i32_0 = arith.constant 0 : i32
    %c0_i32_1 = arith.constant 0 : i32
    return %c0_i32, %c0_i32_0 : i32, i32
  }
  func.func @transform_3(%arg0: i32) -> (i32, i32) {
    %c0_i32 = arith.constant 0 : i32
    %c0_i32_0 = arith.constant 0 : i32
    %c0_i32_1 = arith.constant 0 : i32
    return %c0_i32, %c0_i32_0 : i32, i32
  }
  func.func @transform_4(%arg0: i32) -> (i32, i32) {
    %c0_i32 = arith.constant 0 : i32
    %c0_i32_0 = arith.constant 0 : i32
    return %arg0, %c0_i32 : i32, i32
  }
}

</mosaic_0001>

<llo_original>
// kernel: tile.18
$region0: #{tile.18}
  #allocation0 [shape = 's32[1]{0}', space=sflag, size = 0x4, scoped, tag = 'scoped memory for tile.18']
  %s0 = inlined_call_operand.vmem [shape: f32[4], index: 0, kind: input, shape index: {}]
  %s1 = inlined_call_operand.vmem [shape: f32[32,4], index: 1, kind: output, shape index: {}]
  // Predicated region
  $region2: #{tile.18} parent=0 // pred_check
    _
  $region3: #{tile.18} parent=0 // pred_check_branch
    %3 = sbr.rel (0) target = $region5
  $region4: #{tile.18} parent=0 // pred_region
    _
  $region5: #{tile.18} parent=0 // pred_fallthru
    _
  %v4 = vld [vmem:[%s0] ss:$0 sm:$0xff]
  %5 = vst [vmem:[%s1] sm:$0xff] %v4
  %s6 = scalar_lea.vmem %s1, 8
  %7 = vst [vmem:[%s6] sm:$0xff] %v4
  %s8 = scalar_lea.vmem %s1, 16
  %9 = vst [vmem:[%s8] sm:$0xff] %v4
  %s10 = scalar_lea.vmem %s1, 24
  %11 = vst [vmem:[%s10] sm:$0xff] %v4

// kernel: tile.19
$region0: #{tile.19}
  %s0 = inlined_call_operand.vmem [shape: f32[32,4], index: 0, kind: input, shape index: {}]
  %s1 = inlined_call_operand.vmem [shape: f32[1,128], index: 1, kind: output, shape index: {}]
  $region1: #{tile.19} parent=0
    #allocation0 [shape = 'u8[4096]{0}', space=vmem, size = 0x1000, scoped, tag = 'scoped mem for output reshape']
    %v2 = vld [vmem:[%s0] sm:$0x1]
    %vm3 = vcmask 31744
    %4 = vst.msk [vmem:[#allocation0] sm:$0x1] %vm3, %v2
    %s5 = scalar_lea.vmem %s0, 31
    %v6 = vld [vmem:[%s5] sm:$0x1]
    %7 = vrot.lane.b32.xlu0 %v6, 124
    %v8 = vpop.permute.xlu0 %7
    %vm9 = vcmask 1048544
    %10 = vst.msk [vmem:[#allocation0] sm:$0x1] %vm9, %v8
    %s11 = scalar_lea.vmem %s0, 30
    %v12 = vld [vmem:[%s11] sm:$0x1]
    %13 = vrot.lane.b32.xlu0 %v12, 120
    %v14 = vpop.permute.xlu0 %13
    %vm15 = vcmask 1015744
    %16 = vst.msk [vmem:[#allocation0] sm:$0x1] %vm15, %v14
    %s17 = scalar_lea.vmem %s0, 29
    %v18 = vld [vmem:[%s17] sm:$0x1]
    %19 = vrot.lane.b32.xlu0 %v18, 116
    %v20 = vpop.permute.xlu0 %19
    %vm21 = vcmask 982944
    %22 = vst.msk [vmem:[#allocation0] sm:$0x1] %vm21, %v20
    %s23 = scalar_lea.vmem %s0, 28
    %v24 = vld [vmem:[%s23] sm:$0x1]
    %25 = vrot.lane.b32.xlu0 %v24, 112
    %v26 = vpop.permute.xlu0 %25
    %vm27 = vcmask 950144
    %28 = vst.msk [vmem:[#allocation0] sm:$0x1] %vm27, %v26
    %s29 = scalar_lea.vmem %s0, 27
    %v30 = vld [vmem:[%s29] sm:$0x1]
    %31 = vrot.lane.b32.xlu0 %v30, 108
    %v32 = vpop.permute.xlu0 %31
    %vm33 = vcmask 917344
    %34 = vst.msk [vmem:[#allocation0] sm:$0x1] %vm33, %v32
    %s35 = scalar_lea.vmem %s0, 26
    %v36 = vld [vmem:[%s35] sm:$0x1]
    %37 = vrot.lane.b32.xlu0 %v36, 104
    %v38 = vpop.permute.xlu0 %37
    %vm39 = vcmask 884544
    %40 = vst.msk [vmem:[#allocation0] sm:$0x1] %vm39, %v38
    %s41 = scalar_lea.vmem %s0, 25
    %v42 = vld [vmem:[%s41] sm:$0x1]
    %43 = vrot.lane.b32.xlu0 %v42, 100
    %v44 = vpop.permute.xlu0 %43
    %vm45 = vcmask 851744
    %46 = vst.msk [vmem:[#allocation0] sm:$0x1] %vm45, %v44
    %s47 = scalar_lea.vmem %s0, 24
    %v48 = vld [vmem:[%s47] sm:$0x1]
    %49 = vrot.lane.b32.xlu0 %v48, 96
    %v50 = vpop.permute.xlu0 %49
    %vm51 = vcmask 818944
    %52 = vst.msk [vmem:[#allocation0] sm:$0x1] %vm51, %v50
    %s53 = scalar_lea.vmem %s0, 23
    %v54 = vld [vmem:[%s53] sm:$0x1]
    %55 = vrot.lane.b32.xlu0 %v54, 92
    %v56 = vpop.permute.xlu0 %55
    %vm57 = vcmask 786144
    %58 = vst.msk [vmem:[#allocation0] sm:$0x1] %vm57, %v56
    %s59 = scalar_lea.vmem %s0, 22
    %v60 = vld [vmem:[%s59] sm:$0x1]
    %61 = vrot.lane.b32.xlu0 %v60, 88
    %v62 = vpop.permute.xlu0 %61
    %vm63 = vcmask 753344
    %64 = vst.msk [vmem:[#allocation0] sm:$0x1] %vm63, %v62
    %s65 = scalar_lea.vmem %s0, 21
    %v66 = vld [vmem:[%s65] sm:$0x1]
    %67 = vrot.lane.b32.xlu0 %v66, 84
    %v68 = vpop.permute.xlu0 %67
    %vm69 = vcmask 720544
    %70 = vst.msk [vmem:[#allocation0] sm:$0x1] %vm69, %v68
    %s71 = scalar_lea.vmem %s0, 20
    %v72 = vld [vmem:[%s71] sm:$0x1]
    %73 = vrot.lane.b32.xlu0 %v72, 80
    %v74 = vpop.permute.xlu0 %73
    %vm75 = vcmask 687744
    %76 = vst.msk [vmem:[#allocation0] sm:$0x1] %vm75, %v74
    %s77 = scalar_lea.vmem %s0, 19
    %v78 = vld [vmem:[%s77] sm:$0x1]
    %79 = vrot.lane.b32.xlu0 %v78, 76
    %v80 = vpop.permute.xlu0 %79
    %vm81 = vcmask 654944
    %82 = vst.msk [vmem:[#allocation0] sm:$0x1] %vm81, %v80
    %s83 = scalar_lea.vmem %s0, 18
    %v84 = vld [vmem:[%s83] sm:$0x1]
    %85 = vrot.lane.b32.xlu0 %v84, 72
    %v86 = vpop.permute.xlu0 %85
    %vm87 = vcmask 622144
    %88 = vst.msk [vmem:[#allocation0] sm:$0x1] %vm87, %v86
    %s89 = scalar_lea.vmem %s0, 17
    %v90 = vld [vmem:[%s89] sm:$0x1]
    %91 = vrot.lane.b32.xlu0 %v90, 68
    %v92 = vpop.permute.xlu0 %91
    %vm93 = vcmask 589344
    %94 = vst.msk [vmem:[#allocation0] sm:$0x1] %vm93, %v92
    %s95 = scalar_lea.vmem %s0, 16
    %v96 = vld [vmem:[%s95] sm:$0x1]
    %97 = vrot.lane.b32.xlu0 %v96, 64
    %v98 = vpop.permute.xlu0 %97
    %vm99 = vcmask 556544
    %100 = vst.msk [vmem:[#allocation0] sm:$0x1] %vm99, %v98
    %s101 = scalar_lea.vmem %s0, 15
    %v102 = vld [vmem:[%s101] sm:$0x1]
    %103 = vrot.lane.b32.xlu0 %v102, 60
    %v104 = vpop.permute.xlu0 %103
    %vm105 = vcmask 523744
    %106 = vst.msk [vmem:[#allocation0] sm:$0x1] %vm105, %v104
    %s107 = scalar_lea.vmem %s0, 14
    %v108 = vld [vmem:[%s107] sm:$0x1]
    %109 = vrot.lane.b32.xlu0 %v108, 56
    %v110 = vpop.permute.xlu0 %109
    %vm111 = vcmask 490944
    %112 = vst.msk [vmem:[#allocation0] sm:$0x1] %vm111, %v110
    %s113 = scalar_lea.vmem %s0, 13
    %v114 = vld [vmem:[%s113] sm:$0x1]
    %115 = vrot.lane.b32.xlu0 %v114, 52
    %v116 = vpop.permute.xlu0 %115
    %vm117 = vcmask 458144
    %118 = vst.msk [vmem:[#allocation0] sm:$0x1] %vm117, %v116
    %s119 = scalar_lea.vmem %s0, 12
    %v120 = vld [vmem:[%s119] sm:$0x1]
    %121 = vrot.lane.b32.xlu0 %v120, 48
    %v122 = vpop.permute.xlu0 %121
    %vm123 = vcmask 425344
    %124 = vst.msk [vmem:[#allocation0] sm:$0x1] %vm123, %v122
    %s125 = scalar_lea.vmem %s0, 11
    %v126 = vld [vmem:[%s125] sm:$0x1]
    %127 = vrot.lane.b32.xlu0 %v126, 44
    %v128 = vpop.permute.xlu0 %127
    %vm129 = vcmask 392544
    %130 = vst.msk [vmem:[#allocation0] sm:$0x1] %vm129, %v128
    %s131 = scalar_lea.vmem %s0, 10
    %v132 = vld [vmem:[%s131] sm:$0x1]
    %133 = vrot.lane.b32.xlu0 %v132, 40
    %v134 = vpop.permute.xlu0 %133
    %vm135 = vcmask 359744
    %136 = vst.msk [vmem:[#allocation0] sm:$0x1] %vm135, %v134
    %s137 = scalar_lea.vmem %s0, 9
    %v138 = vld [vmem:[%s137] sm:$0x1]
    %139 = vrot.lane.b32.xlu0 %v138, 36
    %v140 = vpop.permute.xlu0 %139
    %vm141 = vcmask 326944
    %142 = vst.msk [vmem:[#allocation0] sm:$0x1] %vm141, %v140
    %s143 = scalar_lea.vmem %s0, 8
    %v144 = vld [vmem:[%s143] sm:$0x1]
    %145 = vrot.lane.b32.xlu0 %v144, 32
    %v146 = vpop.permute.xlu0 %145
    %vm147 = vcmask 294144
    %148 = vst.msk [vmem:[#allocation0] sm:$0x1] %vm147, %v146
    %s149 = scalar_lea.vmem %s0, 7
    %v150 = vld [vmem:[%s149] sm:$0x1]
    %151 = vrot.lane.b32.xlu0 %v150, 28
    %v152 = vpop.permute.xlu0 %151
    %vm153 = vcmask 261344
    %154 = vst.msk [vmem:[#allocation0] sm:$0x1] %vm153, %v152
    %s155 = scalar_lea.vmem %s0, 6
    %v156 = vld [vmem:[%s155] sm:$0x1]
    %157 = vrot.lane.b32.xlu0 %v156, 24
    %v158 = vpop.permute.xlu0 %157
    %vm159 = vcmask 228544
    %160 = vst.msk [vmem:[#allocation0] sm:$0x1] %vm159, %v158
    %s161 = scalar_lea.vmem %s0, 5
    %v162 = vld [vmem:[%s161] sm:$0x1]
    %163 = vrot.lane.b32.xlu0 %v162, 20
    %v164 = vpop.permute.xlu0 %163
    %vm165 = vcmask 195744
    %166 = vst.msk [vmem:[#allocation0] sm:$0x1] %vm165, %v164
    %s167 = scalar_lea.vmem %s0, 4
    %v168 = vld [vmem:[%s167] sm:$0x1]
    %169 = vrot.lane.b32.xlu0 %v168, 16
    %v170 = vpop.permute.xlu0 %169
    %vm171 = vcmask 162944
    %172 = vst.msk [vmem:[#allocation0] sm:$0x1] %vm171, %v170
    %s173 = scalar_lea.vmem %s0, 3
    %v174 = vld [vmem:[%s173] sm:$0x1]
    %175 = vrot.lane.b32.xlu0 %v174, 12
    %v176 = vpop.permute.xlu0 %175
    %vm177 = vcmask 130144
    %178 = vst.msk [vmem:[#allocation0] sm:$0x1] %vm177, %v176
    %s179 = scalar_lea.vmem %s0, 2
    %v180 = vld [vmem:[%s179] sm:$0x1]
    %181 = vrot.lane.b32.xlu0 %v180, 8
    %v182 = vpop.permute.xlu0 %181
    %vm183 = vcmask 97344
    %184 = vst.msk [vmem:[#allocation0] sm:$0x1] %vm183, %v182
    %s185 = scalar_lea.vmem %s0, 1
    %v186 = vld [vmem:[%s185] sm:$0x1]
    %187 = vrot.lane.b32.xlu0 %v186, 4
    %v188 = vpop.permute.xlu0 %187
    %vm189 = vcmask 64544
    %190 = vst.msk [vmem:[#allocation0] sm:$0x1] %vm189, %v188
    %s192 = sshllo.u32 0, 1
    %v194 = vld [vmem:[#allocation0] sm:%s192]
    %s195 = sshllo.u32 0, 1
    %196 = vst [vmem:[%s1] sm:%s195] %v194

// kernel: basic_block_forward.5
$region0: #{basic_block_forward.5}
  #allocation0 [shape = 'u32[]', space=smem, size = 0x4, offset = 0x4, fixed_abs, tag = 'smem constant byte address 0x4 - core index']
  #allocation1 [shape = 'u32[144,128]{1,0:T(1,128)}', space=vmem, size = 0x12000, scoped, tag = 'internal scratch']
  %s0 = inlined_call_operand.vmem [shape: bf16[16,128], index: 0, kind: input, shape index: {}]
  %s1 = inlined_call_operand.vmem [shape: f32[16,128], index: 1, kind: input, shape index: {}]
  %s2 = inlined_call_operand.vmem [shape: f32[1,128], index: 2, kind: input, shape index: {}]
  %s3 = inlined_call_operand.vmem [shape: f32[1,128], index: 3, kind: input, shape index: {}]
  %s4 = inlined_call_operand.vmem [shape: f32[16,128], index: 4, kind: output, shape index: {}]
  %s5 = sld [smem:[#allocation0]]
  $region26: #{basic_block_forward.5} parent=0
    _
  %s7 = ssub.s32 1, %s5
  %s8 = scalar_select 0, %s7, %s5
  // Predicated region
  $region2: #{basic_block_forward.5} parent=0 // pred_check
    _
  $region3: #{basic_block_forward.5} parent=0 // pred_check_branch
    %10 = sbr.rel (0) target = $region5
  $region4: #{basic_block_forward.5} parent=0 // pred_region
    _
  $region5: #{basic_block_forward.5} parent=0 // pred_fallthru
    _
  // Predicated region
  $region6: #{basic_block_forward.5} parent=0 // pred_check
    _
  $region7: #{basic_block_forward.5} parent=0 // pred_check_branch
    %12 = sbr.rel (0) target = $region9
  $region8: #{basic_block_forward.5} parent=0 // pred_region
    _
  $region9: #{basic_block_forward.5} parent=0 // pred_fallthru
    _
  // Predicated region
  $region10: #{basic_block_forward.5} parent=0 // pred_check
    _
  $region11: #{basic_block_forward.5} parent=0 // pred_check_branch
    %14 = sbr.rel (0) target = $region13
  $region12: #{basic_block_forward.5} parent=0 // pred_region
    _
  $region13: #{basic_block_forward.5} parent=0 // pred_fallthru
    _
  // Predicated region
  $region14: #{basic_block_forward.5} parent=0 // pred_check
    _
  $region15: #{basic_block_forward.5} parent=0 // pred_check_branch
    %16 = sbr.rel (0) target = $region17
  $region16: #{basic_block_forward.5} parent=0 // pred_region
    _
  $region17: #{basic_block_forward.5} parent=0 // pred_fallthru
    _
  %v17 = vld [vmem:[%s0] sm:$0xf]
  %v18 = vld [vmem:[%s0 + $0x4] sm:$0xf]
  %v19 = vunpack.c.l.bf16 %v17
  %v20 = vunpack.c.l.bf16 %v18
  %v21 = vld [vmem:[%s2] sm:$0x1]
  %v23 = vlaneseq
  %v24 = vshrl.u32 %v23, 7
  %v25 = vsub.s32 0, %v24
  %v26 = vrot.slane %v21, %v25
  %v28 = vmul.f32 %v19, %v26
  %v29 = vmul.f32 %v20, %v26
  %v30 = vld [vmem:[%s3] sm:$0x1]
  %v32 = vlaneseq
  %v33 = vshrl.u32 %v32, 7
  %v34 = vsub.s32 0, %v33
  %v35 = vrot.slane %v30, %v34
  %v37 = vadd.f32 %v28, %v35
  %v38 = vadd.f32 %v29, %v35
  %v39 = vld [vmem:[%s1] sm:$0xff]
  %v40 = vld [vmem:[%s1 + $0x8] sm:$0xff]
  %v41 = vadd.f32 %v37, %v39
  %v42 = vadd.f32 %v38, %v40
  %v43 = vmax.f32 %v41, 0.0
  %v44 = vmax.f32 %v42, 0.0
  %45 = vst [vmem:[%s4] sm:$0xff] %v43
  %46 = vst [vmem:[%s4 + $0x8] sm:$0xff] %v44
  // Predicated region
  $region18: #{basic_block_forward.5} parent=0 // pred_check
    _
  $region19: #{basic_block_forward.5} parent=0 // pred_check_branch
    %48 = sbr.rel (0) target = $region21
  $region20: #{basic_block_forward.5} parent=0 // pred_region
    _
  $region21: #{basic_block_forward.5} parent=0 // pred_fallthru
    _
  // Predicated region
  $region22: #{basic_block_forward.5} parent=0 // pred_check
    _
  $region23: #{basic_block_forward.5} parent=0 // pred_check_branch
    %50 = sbr.rel (0) target = $region25
  $region24: #{basic_block_forward.5} parent=0 // pred_region
    _
  $region25: #{basic_block_forward.5} parent=0 // pred_fallthru
    _

// kernel: basic_block_forward.3
$region0: #{basic_block_forward.3}
  #allocation0 [shape = 'u32[]', space=smem, size = 0x4, offset = 0x4, fixed_abs, tag = 'smem constant byte address 0x4 - core index']
  #allocation1 [shape = 'u32[144,128]{1,0:T(1,128)}', space=vmem, size = 0x12000, scoped, tag = 'internal scratch']
  #allocation2 [shape = 'bf16[304,4]{1,0:T(16,128)(2,1)}', space=vmem, size = 0x13000, scoped, tag = 'scratch operand']
  #allocation3 [shape = 'bf16[256,36]{1,0:T(16,128)(2,1)}', space=vmem, size = 0x10000, scoped, tag = 'scratch operand']
  %s0 = inlined_call_operand.vmem [shape: f32[2,256,4], index: 0, kind: input, shape index: {}]
  %s1 = inlined_call_operand.vmem [shape: bf16[36,4], index: 1, kind: input, shape index: {}]
  %s2 = inlined_call_operand.vmem [shape: f32[1,4], index: 2, kind: input, shape index: {}]
  %s3 = inlined_call_operand.vmem [shape: f32[1,4], index: 3, kind: input, shape index: {}]
  %s4 = inlined_call_operand.vmem [shape: bf16[2,256,4], index: 4, kind: output, shape index: {0}]
  %s5 = inlined_call_operand.vmem [shape: f32[2,1,4], index: 5, kind: output, shape index: {1}]
  %s6 = inlined_call_operand.vmem [shape: f32[2,1,4], index: 6, kind: output, shape index: {2}]
  %7 = xla_tuple %s4, %s5, %s6
  %s8 = sld [smem:[#allocation0]]
  $region65: #{basic_block_forward.3} parent=0
    _
  %s10 = ssub.s32 1, %s8
  %s11 = scalar_select 0, %s10, %s8
  loop: start=0, step=1, limit=4
  $region2: #{basic_block_forward.3} parent=0 // loop_pre_header
    _
  $region3: #{basic_block_forward.3} parent=0 // loop_header
    %s13 = sphi 0, %s17
    %p14 = scmp.ge.s32.totalorder %s13, 4
    %s23 = sphi 0, %s25
    %s26 = sphi 0, %s23
    %s27 = sphi 0, %s26
    %s43 = sphi 0, %s27
    %s47 = sphi 0, %s47
    %s49 = sphi 0, %s47
    %s50 = sphi 0, %s49
    %s64 = sphi 0, %s50
    %s68 = sphi 0, %s68
    %s70 = sphi 0, %s68
    %s71 = sphi 0, %s70
    %s85 = sphi 0, %s71
    %s89 = sphi 0, %s89
    %s91 = sphi 0, %s89
    %s92 = sphi 0, %s91
    %s106 = sphi 0, %s92
    %s112 = sphi 0, %s114
    %s115 = sphi 0, %s112
    %s116 = sphi 0, %s115
    %s132 = sphi 0, %s116
    %s138 = sphi 0, %s140
    %s141 = sphi 0, %s138
    %s142 = sphi 0, %s141
    %s158 = sphi 0, %s142
    %s164 = sphi 0, %s166
    %s167 = sphi 0, %s164
    %s168 = sphi 0, %s167
    %s184 = sphi 0, %s168
  $region4: #{basic_block_forward.3} parent=0 // loop_header_branch
    %16 = sbr.rel (%p14) target = $region8
  $region5: #{basic_block_forward.3} parent=0 // loop_body
    %s18 = ssub.s32 %s13, 1
    %s19 = ssub.s32 %s13, 2
    %s20 = sadd.s32 %s13, 1
    %s21 = ssub.s32 %s13, %s20
    %p22 = scmp.eq.s32.totalorder %s21, 0
    %s24 = sadd.s32 %s23, 1
    %s25 = scalar_select %p22, %s23, %s24
    %p28 = pneg %p22
    %p29 = scmp.eq.s32.totalorder %s13, 1
    %p30 = por %p28, %p29
    %p31 = scmp.ne.s32.totalorder %s23, %s26
    %p32 = scmp.eq.s32.totalorder %s13, 0
    %p33 = por %p31, %p32
    %p34 = scmp.ne.s32.totalorder %s23, %s26
    %p35 = scmp.eq.s32.totalorder %s18, 1
    %p36 = por %p34, %p35
    %p37 = scmp.ne.s32.totalorder %s26, %s27
    %p38 = scmp.eq.s32.totalorder %s18, 0
    %p39 = por %p37, %p38
    %p40 = scmp.ne.s32.totalorder %s26, %s27
    %p41 = scmp.eq.s32.totalorder %s19, 1
    %p42 = por %p40, %p41
    %p44 = scmp.ne.s32.totalorder %s27, %s43
    %p45 = scmp.eq.s32.totalorder %s19, 0
    %p46 = por %p44, %p45
    %s48 = sadd.s32 %s47, 1
    %p51 = scmp.eq.s32.totalorder %s13, 1
    %p52 = scmp.ne.s32.totalorder %s47, %s49
    %p53 = scmp.eq.s32.totalorder %s13, 0
    %p54 = por %p52, %p53
    %p55 = scmp.ne.s32.totalorder %s47, %s49
    %p56 = scmp.eq.s32.totalorder %s18, 1
    %p57 = por %p55, %p56
    %p58 = scmp.ne.s32.totalorder %s49, %s50
    %p59 = scmp.eq.s32.totalorder %s18, 0
    %p60 = por %p58, %p59
    %p61 = scmp.ne.s32.totalorder %s49, %s50
    %p62 = scmp.eq.s32.totalorder %s19, 1
    %p63 = por %p61, %p62
    %p65 = scmp.ne.s32.totalorder %s50, %s64
    %p66 = scmp.eq.s32.totalorder %s19, 0
    %p67 = por %p65, %p66
    %s69 = sadd.s32 %s68, 1
    %p72 = scmp.eq.s32.totalorder %s13, 1
    %p73 = scmp.ne.s32.totalorder %s68, %s70
    %p74 = scmp.eq.s32.totalorder %s13, 0
    %p75 = por %p73, %p74
    %p76 = scmp.ne.s32.totalorder %s68, %s70
    %p77 = scmp.eq.s32.totalorder %s18, 1
    %p78 = por %p76, %p77
    %p79 = scmp.ne.s32.totalorder %s70, %s71
    %p80 = scmp.eq.s32.totalorder %s18, 0
    %p81 = por %p79, %p80
    %p82 = scmp.ne.s32.totalorder %s70, %s71
    %p83 = scmp.eq.s32.totalorder %s19, 1
    %p84 = por %p82, %p83
    %p86 = scmp.ne.s32.totalorder %s71, %s85
    %p87 = scmp.eq.s32.totalorder %s19, 0
    %p88 = por %p86, %p87
    %s90 = sadd.s32 %s89, 1
    %p93 = scmp.eq.s32.totalorder %s13, 1
    %p94 = scmp.ne.s32.totalorder %s89, %s91
    %p95 = scmp.eq.s32.totalorder %s13, 0
    %p96 = por %p94, %p95
    %p97 = scmp.ne.s32.totalorder %s89, %s91
    %p98 = scmp.eq.s32.totalorder %s18, 1
    %p99 = por %p97, %p98
    %p100 = scmp.ne.s32.totalorder %s91, %s92
    %p101 = scmp.eq.s32.totalorder %s18, 0
    %p102 = por %p100, %p101
    %p103 = scmp.ne.s32.totalorder %s91, %s92
    %p104 = scmp.eq.s32.totalorder %s19, 1
    %p105 = por %p103, %p104
    %p107 = scmp.ne.s32.totalorder %s92, %s106
    %p108 = scmp.eq.s32.totalorder %s19, 0
    %p109 = por %p107, %p108
    %s110 = ssub.s32 %s13, %s20
    %p111 = scmp.eq.s32.totalorder %s110, 0
    %s113 = sadd.s32 %s112, 1
    %s114 = scalar_select %p111, %s112, %s113
    %p117 = pneg %p111
    %p118 = scmp.eq.s32.totalorder %s13, 1
    %p119 = por %p117, %p118
    %p120 = scmp.ne.s32.totalorder %s112, %s115
    %p121 = scmp.eq.s32.totalorder %s13, 0
    %p122 = por %p120, %p121
    %p123 = scmp.ne.s32.totalorder %s112, %s115
    %p124 = scmp.eq.s32.totalorder %s18, 1
    %p125 = por %p123, %p124
    %p126 = scmp.ne.s32.totalorder %s115, %s116
    %p127 = scmp.eq.s32.totalorder %s18, 0
    %p128 = por %p126, %p127
    %p129 = scmp.ne.s32.totalorder %s115, %s116
    %p130 = scmp.eq.s32.totalorder %s19, 1
    %p131 = por %p129, %p130
    %p133 = scmp.ne.s32.totalorder %s116, %s132
    %p134 = scmp.eq.s32.totalorder %s19, 0
    %p135 = por %p133, %p134
    %s136 = ssub.s32 %s13, %s20
    %p137 = scmp.eq.s32.totalorder %s136, 0
    %s139 = sadd.s32 %s138, 1
    %s140 = scalar_select %p137, %s138, %s139
    %p143 = pneg %p137
    %p144 = scmp.eq.s32.totalorder %s13, 1
    %p145 = por %p143, %p144
    %p146 = scmp.ne.s32.totalorder %s138, %s141
    %p147 = scmp.eq.s32.totalorder %s13, 0
    %p148 = por %p146, %p147
    %p149 = scmp.ne.s32.totalorder %s138, %s141
    %p150 = scmp.eq.s32.totalorder %s18, 1
    %p151 = por %p149, %p150
    %p152 = scmp.ne.s32.totalorder %s141, %s142
    %p153 = scmp.eq.s32.totalorder %s18, 0
    %p154 = por %p152, %p153
    %p155 = scmp.ne.s32.totalorder %s141, %s142
    %p156 = scmp.eq.s32.totalorder %s19, 1
    %p157 = por %p155, %p156
    %p159 = scmp.ne.s32.totalorder %s142, %s158
    %p160 = scmp.eq.s32.totalorder %s19, 0
    %p161 = por %p159, %p160
    %s162 = ssub.s32 %s13, %s20
    %p163 = scmp.eq.s32.totalorder %s162, 0
    %s165 = sadd.s32 %s164, 1
    %s166 = scalar_select %p163, %s164, %s165
    %p169 = pneg %p163
    %p170 = scmp.eq.s32.totalorder %s13, 1
    %p171 = por %p169, %p170
    %p172 = scmp.ne.s32.totalorder %s164, %s167
    %p173 = scmp.eq.s32.totalorder %s13, 0
    %p174 = por %p172, %p173
    %p175 = scmp.ne.s32.totalorder %s164, %s167
    %p176 = scmp.eq.s32.totalorder %s18, 1
    %p177 = por %p175, %p176
    %p178 = scmp.ne.s32.totalorder %s167, %s168
    %p179 = scmp.eq.s32.totalorder %s18, 0
    %p180 = por %p178, %p179
    %p181 = scmp.ne.s32.totalorder %s167, %s168
    %p182 = scmp.eq.s32.totalorder %s19, 1
    %p183 = por %p181, %p182
    %p185 = scmp.ne.s32.totalorder %s168, %s184
    %p186 = scmp.eq.s32.totalorder %s19, 0
    %p187 = por %p185, %p186
    %p188 = scmp.le.s32.totalorder 1, %s13
    %p189 = scmp.lt.s32.totalorder %s13, 3
    %p190 = pnand %p188, %p189
    %p191 = pneg %p190
    // Predicated region
    $region9: #{basic_block_forward.3} parent=5 // pred_check
      _
    $region10: #{basic_block_forward.3} parent=5 // pred_check_branch
      %193 = sbr.rel (%p190) target = $region12
    $region11: #{basic_block_forward.3} parent=5 // pred_region
      %s194 = ssub.s32 %s13, 1
      // Predicated region
      $region13: #{basic_block_forward.3} parent=11 // pred_check
        %p195 = pneg %p60
      $region14: #{basic_block_forward.3} parent=11 // pred_check_branch
        %197 = sbr.rel (%p195) target = $region16
      $region15: #{basic_block_forward.3} parent=11 // pred_region
        _
      $region16: #{basic_block_forward.3} parent=11 // pred_fallthru
        _
      // Predicated region
      $region17: #{basic_block_forward.3} parent=11 // pred_check
        %p198 = pneg %p81
      $region18: #{basic_block_forward.3} parent=11 // pred_check_branch
        %200 = sbr.rel (%p198) target = $region20
      $region19: #{basic_block_forward.3} parent=11 // pred_region
        _
      $region20: #{basic_block_forward.3} parent=11 // pred_fallthru
        _
      // Predicated region
      $region21: #{basic_block_forward.3} parent=11 // pred_check
        %p201 = pneg %p102
      $region22: #{basic_block_forward.3} parent=11 // pred_check_branch
        %203 = sbr.rel (%p201) target = $region24
      $region23: #{basic_block_forward.3} parent=11 // pred_region
        _
      $region24: #{basic_block_forward.3} parent=11 // pred_fallthru
        _
    $region12: #{basic_block_forward.3} parent=5 // pred_fallthru
      _
    %p204 = scmp.lt.s32.totalorder %s13, 2
    // Predicated region
    $region25: #{basic_block_forward.3} parent=5 // pred_check
      %p205 = pneg %p204
    $region26: #{basic_block_forward.3} parent=5 // pred_check_branch
      %207 = sbr.rel (%p205) target = $region28
    $region27: #{basic_block_forward.3} parent=5 // pred_region
      // Predicated region
      $region29: #{basic_block_forward.3} parent=27 // pred_check
        %p208 = pneg %p33
      $region30: #{basic_block_forward.3} parent=27 // pred_check_branch
        %210 = sbr.rel (%p208) target = $region32
      $region31: #{basic_block_forward.3} parent=27 // pred_region
        %p211 = scmp.lt.s32.totalorder %s13, 1
        %s212 = scalar_select %p211, %s13, 1
        %s213 = smul.addr %s212, 32
        %s214 = smul.addr %s213, 8
        %s215 = scalar_lea.vmem %s0, %s214
      $region32: #{basic_block_forward.3} parent=27 // pred_fallthru
        _
    $region28: #{basic_block_forward.3} parent=5 // pred_fallthru
      _
    %p216 = scmp.le.s32.totalorder 1, %s13
    %p217 = scmp.lt.s32.totalorder %s13, 3
    %p218 = pnand %p216, %p217
    %p219 = pneg %p218
    // Predicated region
    $region33: #{basic_block_forward.3} parent=5 // pred_check
      _
    $region34: #{basic_block_forward.3} parent=5 // pred_check_branch
      %221 = sbr.rel (%p218) target = $region36
    $region35: #{basic_block_forward.3} parent=5 // pred_region
      %s222 = ssub.s32 %s13, 1
      %p223 = scmp.lt.s32.totalorder %s18, 1
      %s224 = scalar_select %p223, %s18, 1
      %s225 = smul.addr %s224, 32
      %s226 = smul.addr %s225, 8
      %s227 = scalar_lea.vmem %s0, %s226
      %p228 = pneg %p39
      %p229 = pneg %p36
      %p230 = pneg %p60
      %p231 = pneg %p57
      %p232 = pneg %p81
      %p233 = pneg %p78
      %p234 = pneg %p102
      %p235 = pneg %p99
      %p236 = pneg %p128
      %p237 = pneg %p125
      %p238 = scmp.lt.s32.totalorder %s18, 1
      %s239 = scalar_select %p238, %s18, 1
      %s240 = smul.addr %s239, 32
      %s241 = smul.addr %s240, 4
      %s242 = scalar_lea.vmem %s4, %s241
      %p243 = pneg %p154
      %p244 = pneg %p151
      %p245 = scmp.lt.s32.totalorder %s18, 1
      %s246 = scalar_select %p245, %s18, 1
      %s247 = scalar_lea.vmem %s5, %s246
      %p248 = pneg %p180
      %p249 = pneg %p177
      %p250 = scmp.lt.s32.totalorder %s18, 1
      %s251 = scalar_select %p250, %s18, 1
      %s252 = scalar_lea.vmem %s6, %s251
      %p253 = scmp.lt.s32.totalorder %s18, 1
      %s254 = scalar_select %p253, %s18, 1
      %s255 = smul.addr %s254, 32
      %s256 = smul.addr %s255, 8
      %s257 = scalar_lea.vmem %s0, %s256
      %p258 = scmp.lt.s32.totalorder %s18, 1
      %s259 = scalar_select %p258, %s18, 1
      %s260 = smul.addr %s259, 32
      %s261 = smul.addr %s260, 4
      %s262 = scalar_lea.vmem %s4, %s261
      %p263 = scmp.lt.s32.totalorder %s18, 1
      %s264 = scalar_select %p263, %s18, 1
      %s265 = scalar_lea.vmem %s5, %s264
      %p266 = scmp.lt.s32.totalorder %s18, 1
      %s267 = scalar_select %p266, %s18, 1
      %s268 = scalar_lea.vmem %s6, %s267
      %vm272 = vcmask 31744
      %273 = vst.msk [vmem:[#allocation2] sm:$0xff] %vm272, 0
      %vm274 = vcmask 27648
      %275 = vst.msk [vmem:[#allocation2 + $0x8] sm:$0xf] %vm274, 0
      %vm276 = vcmask 31748
      %277 = vst.msk [vmem:[#allocation2 + $0x88] sm:$0xf0] %vm276, 0
      %278 = vst.msk [vmem:[#allocation2 + $0x90] sm:$0xff] %vm272, 0
      %v279 = vld [vmem:[%s257] sm:$0xff]
      %v280 = vld [vmem:[%s257 + $0x8] sm:$0xff]
      %v281 = vld [vmem:[%s257 + $0x10] sm:$0xff]
      %v282 = vld [vmem:[%s257 + $0x18] sm:$0xff]
      %v283 = vld [vmem:[%s257 + $0x20] sm:$0xff]
      %v284 = vld [vmem:[%s257 + $0x28] sm:$0xff]
      %v285 = vld [vmem:[%s257 + $0x30] sm:$0xff]
      %v286 = vld [vmem:[%s257 + $0x38] sm:$0xff]
      %v287 = vld [vmem:[%s257 + $0x40] sm:$0xff]
      %v288 = vld [vmem:[%s257 + $0x48] sm:$0xff]
      %v289 = vld [vmem:[%s257 + $0x50] sm:$0xff]
      %v290 = vld [vmem:[%s257 + $0x58] sm:$0xff]
      %v291 = vld [vmem:[%s257 + $0x60] sm:$0xff]
      %v292 = vld [vmem:[%s257 + $0x68] sm:$0xff]
      %v293 = vld [vmem:[%s257 + $0x70] sm:$0xff]
      %v294 = vld [vmem:[%s257 + $0x78] sm:$0xff]
      %v295 = vld [vmem:[%s257 + $0x80] sm:$0xff]
      %v296 = vld [vmem:[%s257 + $0x88] sm:$0xff]
      %v297 = vld [vmem:[%s257 + $0x90] sm:$0xff]
      %v298 = vld [vmem:[%s257 + $0x98] sm:$0xff]
      %v299 = vld [vmem:[%s257 + $0xa0] sm:$0xff]
      %v300 = vld [vmem:[%s257 + $0xa8] sm:$0xff]
      %v301 = vld [vmem:[%s257 + $0xb0] sm:$0xff]
      %v302 = vld [vmem:[%s257 + $0xb8] sm:$0xff]
      %v303 = vld [vmem:[%s257 + $0xc0] sm:$0xff]
      %v304 = vld [vmem:[%s257 + $0xc8] sm:$0xff]
      %v305 = vld [vmem:[%s257 + $0xd0] sm:$0xff]
      %v306 = vld [vmem:[%s257 + $0xd8] sm:$0xff]
      %v307 = vld [vmem:[%s257 + $0xe0] sm:$0xff]
      %v308 = vld [vmem:[%s257 + $0xe8] sm:$0xff]
      %v309 = vld [vmem:[%s257 + $0xf0] sm:$0xff]
      %v310 = vld [vmem:[%s257 + $0xf8] sm:$0xff]
      %v311 = vpack.c.bf16 %v280, %v279
      %v312 = vpack.c.bf16 %v282, %v281
      %v313 = vpack.c.bf16 %v284, %v283
      %v314 = vpack.c.bf16 %v286, %v285
      %v315 = vpack.c.bf16 %v288, %v287
      %v316 = vpack.c.bf16 %v290, %v289
      %v317 = vpack.c.bf16 %v292, %v291
      %v318 = vpack.c.bf16 %v294, %v293
      %v319 = vpack.c.bf16 %v296, %v295
      %v320 = vpack.c.bf16 %v298, %v297
      %v321 = vpack.c.bf16 %v300, %v299
      %v322 = vpack.c.bf16 %v302, %v301
      %v323 = vpack.c.bf16 %v304, %v303
      %v324 = vpack.c.bf16 %v306, %v305
      %v325 = vpack.c.bf16 %v308, %v307
      %v326 = vpack.c.bf16 %v310, %v309
      %vm343 = vcmask 1043456
      %v344 = vrot.slane %v311, 4
      %v345 = vrot.slane %v312, 4
      %v346 = vsel %vm343, %v344, %v345
      %v347 = vrot.slane %v313, 4
      %v348 = vsel %vm343, %v345, %v347
      %v349 = vrot.slane %v314, 4
      %v350 = vsel %vm343, %v347, %v349
      %v351 = vrot.slane %v315, 4
      %v352 = vsel %vm343, %v349, %v351
      %v353 = vrot.slane %v316, 4
      %v354 = vsel %vm343, %v351, %v353
      %v355 = vrot.slane %v317, 4
      %v356 = vsel %vm343, %v353, %v355
      %v357 = vrot.slane %v318, 4
      %v358 = vsel %vm343, %v355, %v357
      %v359 = vrot.slane %v319, 4
      %v360 = vsel %vm343, %v357, %v359
      %v361 = vrot.slane %v320, 4
      %v362 = vsel %vm343, %v359, %v361
      %v363 = vrot.slane %v321, 4
      %v364 = vsel %vm343, %v361, %v363
      %v365 = vrot.slane %v322, 4
      %v366 = vsel %vm343, %v363, %v365
      %v367 = vrot.slane %v323, 4
      %v368 = vsel %vm343, %v365, %v367
      %v369 = vrot.slane %v324, 4
      %v370 = vsel %vm343, %v367, %v369
      %v371 = vrot.slane %v325, 4
      %v372 = vsel %vm343, %v369, %v371
      %v373 = vrot.slane %v326, 4
      %v374 = vsel %vm343, %v371, %v373
      %392 = vst.msk [vmem:[#allocation2 + $0x8] sm:$0xf0] %vm276, %v344
      %393 = vst.msk [vmem:[#allocation2 + $0x10] sm:$0xff] %vm272, %v346
      %394 = vst.msk [vmem:[#allocation2 + $0x18] sm:$0xff] %vm272, %v348
      %395 = vst.msk [vmem:[#allocation2 + $0x20] sm:$0xff] %vm272, %v350
      %396 = vst.msk [vmem:[#allocation2 + $0x28] sm:$0xff] %vm272, %v352
      %397 = vst.msk [vmem:[#allocation2 + $0x30] sm:$0xff] %vm272, %v354
      %398 = vst.msk [vmem:[#allocation2 + $0x38] sm:$0xff] %vm272, %v356
      %399 = vst.msk [vmem:[#allocation2 + $0x40] sm:$0xff] %vm272, %v358
      %400 = vst.msk [vmem:[#allocation2 + $0x48] sm:$0xff] %vm272, %v360
      %401 = vst.msk [vmem:[#allocation2 + $0x50] sm:$0xff] %vm272, %v362
      %402 = vst.msk [vmem:[#allocation2 + $0x58] sm:$0xff] %vm272, %v364
      %403 = vst.msk [vmem:[#allocation2 + $0x60] sm:$0xff] %vm272, %v366
      %404 = vst.msk [vmem:[#allocation2 + $0x68] sm:$0xff] %vm272, %v368
      %405 = vst.msk [vmem:[#allocation2 + $0x70] sm:$0xff] %vm272, %v370
      %406 = vst.msk [vmem:[#allocation2 + $0x78] sm:$0xff] %vm272, %v372
      %407 = vst.msk [vmem:[#allocation2 + $0x80] sm:$0xff] %vm272, %v374
      %408 = vst.msk [vmem:[#allocation2 + $0x88] sm:$0xf] %vm274, %v373
      %v409 = vlaneseq
      %v410 = vshrl.u32 %v409, 7
      %v411 = vadd.s32 %v410, 8
      %v412 = vadd.s32 %v410, 16
      %v413 = vadd.s32 %v410, 24
      %v414 = vadd.s32 %v410, 32
      %v415 = vadd.s32 %v410, 40
      %v416 = vadd.s32 %v410, 48
      %v417 = vadd.s32 %v410, 56
      %v418 = vadd.s32 %v410, 64
      %v419 = vadd.s32 %v410, 72
      %v420 = vadd.s32 %v410, 80
      %v421 = vadd.s32 %v410, 88
      %v422 = vadd.s32 %v410, 96
      %v423 = vadd.s32 %v410, 104
      %v424 = vadd.s32 %v410, 112
      %v425 = vadd.s32 %v410, 120
      %v426 = vadd.s32 %v410, 128
      %v427 = vadd.s32 %v410, 136
      %v428 = vadd.s32 %v410, 144
      %v429 = vadd.s32 %v410, 152
      %v430 = vadd.s32 %v410, 160
      %v431 = vadd.s32 %v410, 168
      %v432 = vadd.s32 %v410, 176
      %v433 = vadd.s32 %v410, 184
      %v434 = vadd.s32 %v410, 192
      %v435 = vadd.s32 %v410, 200
      %v436 = vadd.s32 %v410, 208
      %v437 = vadd.s32 %v410, 216
      %v438 = vadd.s32 %v410, 224
      %v439 = vadd.s32 %v410, 232
      %v440 = vadd.s32 %v410, 240
      %v441 = vadd.s32 %v410, 248
      %vm442 = vcmp.lt.s32.totalorder %v410, 0
      %v443 = vsub.s32 0, %v410
      %v444 = vsel %vm442, %v443, %v410
      %v445 = vshrl.u32 %v444, 4
      %v446 = vand.u32 %v444, 15
      %v447 = vsub.s32 0, %v446
      %v448 = vsel %vm442, %v447, %v446
      %vm449 = vcmp.lt.s32.totalorder %v411, 0
      %v450 = vsub.s32 0, %v411
      %v451 = vsel %vm449, %v450, %v411
      %v452 = vshrl.u32 %v451, 4
      %v453 = vand.u32 %v451, 15
      %v454 = vsub.s32 0, %v453
      %v455 = vsel %vm449, %v454, %v453
      %vm456 = vcmp.lt.s32.totalorder %v412, 0
      %v457 = vsub.s32 0, %v412
      %v458 = vsel %vm456, %v457, %v412
      %v459 = vshrl.u32 %v458, 4
      %v460 = vand.u32 %v458, 15
      %v461 = vsub.s32 0, %v460
      %v462 = vsel %vm456, %v461, %v460
      %vm463 = vcmp.lt.s32.totalorder %v413, 0
      %v464 = vsub.s32 0, %v413
      %v465 = vsel %vm463, %v464, %v413
      %v466 = vshrl.u32 %v465, 4
      %v467 = vand.u32 %v465, 15
      %v468 = vsub.s32 0, %v467
      %v469 = vsel %vm463, %v468, %v467
      %vm470 = vcmp.lt.s32.totalorder %v414, 0
      %v471 = vsub.s32 0, %v414
      %v472 = vsel %vm470, %v471, %v414
      %v473 = vshrl.u32 %v472, 4
      %v474 = vand.u32 %v472, 15
      %v475 = vsub.s32 0, %v474
      %v476 = vsel %vm470, %v475, %v474
      %vm477 = vcmp.lt.s32.totalorder %v415, 0
      %v478 = vsub.s32 0, %v415
      %v479 = vsel %vm477, %v478, %v415
      %v480 = vshrl.u32 %v479, 4
      %v481 = vand.u32 %v479, 15
      %v482 = vsub.s32 0, %v481
      %v483 = vsel %vm477, %v482, %v481
      %vm484 = vcmp.lt.s32.totalorder %v416, 0
      %v485 = vsub.s32 0, %v416
      %v486 = vsel %vm484, %v485, %v416
      %v487 = vshrl.u32 %v486, 4
      %v488 = vand.u32 %v486, 15
      %v489 = vsub.s32 0, %v488
      %v490 = vsel %vm484, %v489, %v488
      %vm491 = vcmp.lt.s32.totalorder %v417, 0
      %v492 = vsub.s32 0, %v417
      %v493 = vsel %vm491, %v492, %v417
      %v494 = vshrl.u32 %v493, 4
      %v495 = vand.u32 %v493, 15
      %v496 = vsub.s32 0, %v495
      %v497 = vsel %vm491, %v496, %v495
      %vm498 = vcmp.lt.s32.totalorder %v418, 0
      %v499 = vsub.s32 0, %v418
      %v500 = vsel %vm498, %v499, %v418
      %v501 = vshrl.u32 %v500, 4
      %v502 = vand.u32 %v500, 15
      %v503 = vsub.s32 0, %v502
      %v504 = vsel %vm498, %v503, %v502
      %vm505 = vcmp.lt.s32.totalorder %v419, 0
      %v506 = vsub.s32 0, %v419
      %v507 = vsel %vm505, %v506, %v419
      %v508 = vshrl.u32 %v507, 4
      %v509 = vand.u32 %v507, 15
      %v510 = vsub.s32 0, %v509
      %v511 = vsel %vm505, %v510, %v509
      %vm512 = vcmp.lt.s32.totalorder %v420, 0
      %v513 = vsub.s32 0, %v420
      %v514 = vsel %vm512, %v513, %v420
      %v515 = vshrl.u32 %v514, 4
      %v516 = vand.u32 %v514, 15
      %v517 = vsub.s32 0, %v516
      %v518 = vsel %vm512, %v517, %v516
      %vm519 = vcmp.lt.s32.totalorder %v421, 0
      %v520 = vsub.s32 0, %v421
      %v521 = vsel %vm519, %v520, %v421
      %v522 = vshrl.u32 %v521, 4
      %v523 = vand.u32 %v521, 15
      %v524 = vsub.s32 0, %v523
      %v525 = vsel %vm519, %v524, %v523
      %vm526 = vcmp.lt.s32.totalorder %v422, 0
      %v527 = vsub.s32 0, %v422
      %v528 = vsel %vm526, %v527, %v422
      %v529 = vshrl.u32 %v528, 4
      %v530 = vand.u32 %v528, 15
      %v531 = vsub.s32 0, %v530
      %v532 = vsel %vm526, %v531, %v530
      %vm533 = vcmp.lt.s32.totalorder %v423, 0
      %v534 = vsub.s32 0, %v423
      %v535 = vsel %vm533, %v534, %v423
      %v536 = vshrl.u32 %v535, 4
      %v537 = vand.u32 %v535, 15
      %v538 = vsub.s32 0, %v537
      %v539 = vsel %vm533, %v538, %v537
      %vm540 = vcmp.lt.s32.totalorder %v424, 0
      %v541 = vsub.s32 0, %v424
      %v542 = vsel %vm540, %v541, %v424
      %v543 = vshrl.u32 %v542, 4
      %v544 = vand.u32 %v542, 15
      %v545 = vsub.s32 0, %v544
      %v546 = vsel %vm540, %v545, %v544
      %vm547 = vcmp.lt.s32.totalorder %v425, 0
      %v548 = vsub.s32 0, %v425
      %v549 = vsel %vm547, %v548, %v425
      %v550 = vshrl.u32 %v549, 4
      %v551 = vand.u32 %v549, 15
      %v552 = vsub.s32 0, %v551
      %v553 = vsel %vm547, %v552, %v551
      %vm554 = vcmp.lt.s32.totalorder %v426, 0
      %v555 = vsub.s32 0, %v426
      %v556 = vsel %vm554, %v555, %v426
      %v557 = vshrl.u32 %v556, 4
      %v558 = vand.u32 %v556, 15
      %v559 = vsub.s32 0, %v558
      %v560 = vsel %vm554, %v559, %v558
      %vm561 = vcmp.lt.s32.totalorder %v427, 0
      %v562 = vsub.s32 0, %v427
      %v563 = vsel %vm561, %v562, %v427
      %v564 = vshrl.u32 %v563, 4
      %v565 = vand.u32 %v563, 15
      %v566 = vsub.s32 0, %v565
      %v567 = vsel %vm561, %v566, %v565
      %vm568 = vcmp.lt.s32.totalorder %v428, 0
      %v569 = vsub.s32 0, %v428
      %v570 = vsel %vm568, %v569, %v428
      %v571 = vshrl.u32 %v570, 4
      %v572 = vand.u32 %v570, 15
      %v573 = vsub.s32 0, %v572
      %v574 = vsel %vm568, %v573, %v572
      %vm575 = vcmp.lt.s32.totalorder %v429, 0
      %v576 = vsub.s32 0, %v429
      %v577 = vsel %vm575, %v576, %v429
      %v578 = vshrl.u32 %v577, 4
      %v579 = vand.u32 %v577, 15
      %v580 = vsub.s32 0, %v579
      %v581 = vsel %vm575, %v580, %v579
      %vm582 = vcmp.lt.s32.totalorder %v430, 0
      %v583 = vsub.s32 0, %v430
      %v584 = vsel %vm582, %v583, %v430
      %v585 = vshrl.u32 %v584, 4
      %v586 = vand.u32 %v584, 15
      %v587 = vsub.s32 0, %v586
      %v588 = vsel %vm582, %v587, %v586
      %vm589 = vcmp.lt.s32.totalorder %v431, 0
      %v590 = vsub.s32 0, %v431
      %v591 = vsel %vm589, %v590, %v431
      %v592 = vshrl.u32 %v591, 4
      %v593 = vand.u32 %v591, 15
      %v594 = vsub.s32 0, %v593
      %v595 = vsel %vm589, %v594, %v593
      %vm596 = vcmp.lt.s32.totalorder %v432, 0
      %v597 = vsub.s32 0, %v432
      %v598 = vsel %vm596, %v597, %v432
      %v599 = vshrl.u32 %v598, 4
      %v600 = vand.u32 %v598, 15
      %v601 = vsub.s32 0, %v600
      %v602 = vsel %vm596, %v601, %v600
      %vm603 = vcmp.lt.s32.totalorder %v433, 0
      %v604 = vsub.s32 0, %v433
      %v605 = vsel %vm603, %v604, %v433
      %v606 = vshrl.u32 %v605, 4
      %v607 = vand.u32 %v605, 15
      %v608 = vsub.s32 0, %v607
      %v609 = vsel %vm603, %v608, %v607
      %vm610 = vcmp.lt.s32.totalorder %v434, 0
      %v611 = vsub.s32 0, %v434
      %v612 = vsel %vm610, %v611, %v434
      %v613 = vshrl.u32 %v612, 4
      %v614 = vand.u32 %v612, 15
      %v615 = vsub.s32 0, %v614
      %v616 = vsel %vm610, %v615, %v614
      %vm617 = vcmp.lt.s32.totalorder %v435, 0
      %v618 = vsub.s32 0, %v435
      %v619 = vsel %vm617, %v618, %v435
      %v620 = vshrl.u32 %v619, 4
      %v621 = vand.u32 %v619, 15
      %v622 = vsub.s32 0, %v621
      %v623 = vsel %vm617, %v622, %v621
      %vm624 = vcmp.lt.s32.totalorder %v436, 0
      %v625 = vsub.s32 0, %v436
      %v626 = vsel %vm624, %v625, %v436
      %v627 = vshrl.u32 %v626, 4
      %v628 = vand.u32 %v626, 15
      %v629 = vsub.s32 0, %v628
      %v630 = vsel %vm624, %v629, %v628
      %vm631 = vcmp.lt.s32.totalorder %v437, 0
      %v632 = vsub.s32 0, %v437
      %v633 = vsel %vm631, %v632, %v437
      %v634 = vshrl.u32 %v633, 4
      %v635 = vand.u32 %v633, 15
      %v636 = vsub.s32 0, %v635
      %v637 = vsel %vm631, %v636, %v635
      %vm638 = vcmp.lt.s32.totalorder %v438, 0
      %v639 = vsub.s32 0, %v438
      %v640 = vsel %vm638, %v639, %v438
      %v641 = vshrl.u32 %v640, 4
      %v642 = vand.u32 %v640, 15
      %v643 = vsub.s32 0, %v642
      %v644 = vsel %vm638, %v643, %v642
      %vm645 = vcmp.lt.s32.totalorder %v439, 0
      %v646 = vsub.s32 0, %v439
      %v647 = vsel %vm645, %v646, %v439
      %v648 = vshrl.u32 %v647, 4
      %v649 = vand.u32 %v647, 15
      %v650 = vsub.s32 0, %v649
      %v651 = vsel %vm645, %v650, %v649
      %vm652 = vcmp.lt.s32.totalorder %v440, 0
      %v653 = vsub.s32 0, %v440
      %v654 = vsel %vm652, %v653, %v440
      %v655 = vshrl.u32 %v654, 4
      %v656 = vand.u32 %v654, 15
      %v657 = vsub.s32 0, %v656
      %v658 = vsel %vm652, %v657, %v656
      %vm659 = vcmp.lt.s32.totalorder %v441, 0
      %v660 = vsub.s32 0, %v441
      %v661 = vsel %vm659, %v660, %v441
      %v662 = vshrl.u32 %v661, 4
      %v663 = vand.u32 %v661, 15
      %v664 = vsub.s32 0, %v663
      %v665 = vsel %vm659, %v664, %v663
      %vm666 = vcmp.ne.s32.totalorder %v448, 0
      %vm667 = vcmp.ne.s32.totalorder %v455, 0
      %vm668 = vcmp.ne.s32.totalorder %v462, 0
      %vm669 = vcmp.ne.s32.totalorder %v469, 0
      %vm670 = vcmp.ne.s32.totalorder %v476, 0
      %vm671 = vcmp.ne.s32.totalorder %v483, 0
      %vm672 = vcmp.ne.s32.totalorder %v490, 0
      %vm673 = vcmp.ne.s32.totalorder %v497, 0
      %vm674 = vcmp.ne.s32.totalorder %v504, 0
      %vm675 = vcmp.ne.s32.totalorder %v511, 0
      %vm676 = vcmp.ne.s32.totalorder %v518, 0
      %vm677 = vcmp.ne.s32.totalorder %v525, 0
      %vm678 = vcmp.ne.s32.totalorder %v532, 0
      %vm679 = vcmp.ne.s32.totalorder %v539, 0
      %vm680 = vcmp.ne.s32.totalorder %v546, 0
      %vm681 = vcmp.ne.s32.totalorder %v553, 0
      %vm682 = vcmp.ne.s32.totalorder %v560, 0
      %vm683 = vcmp.ne.s32.totalorder %v567, 0
      %vm684 = vcmp.ne.s32.totalorder %v574, 0
      %vm685 = vcmp.ne.s32.totalorder %v581, 0
      %vm686 = vcmp.ne.s32.totalorder %v588, 0
      %vm687 = vcmp.ne.s32.totalorder %v595, 0
      %vm688 = vcmp.ne.s32.totalorder %v602, 0
      %vm689 = vcmp.ne.s32.totalorder %v609, 0
      %vm690 = vcmp.ne.s32.totalorder %v616, 0
      %vm691 = vcmp.ne.s32.totalorder %v623, 0
      %vm692 = vcmp.ne.s32.totalorder %v630, 0
      %vm693 = vcmp.ne.s32.totalorder %v637, 0
      %vm694 = vcmp.ne.s32.totalorder %v644, 0
      %vm695 = vcmp.ne.s32.totalorder %v651, 0
      %vm696 = vcmp.ne.s32.totalorder %v658, 0
      %vm697 = vcmp.ne.s32.totalorder %v665, 0
      %vm698 = vcmp.lt.s32.totalorder %v448, 0
      %vm699 = vcmp.lt.s32.totalorder %v455, 0
      %vm700 = vcmp.lt.s32.totalorder %v462, 0
      %vm701 = vcmp.lt.s32.totalorder %v469, 0
      %vm702 = vcmp.lt.s32.totalorder %v476, 0
      %vm703 = vcmp.lt.s32.totalorder %v483, 0
      %vm704 = vcmp.lt.s32.totalorder %v490, 0
      %vm705 = vcmp.lt.s32.totalorder %v497, 0
      %vm706 = vcmp.lt.s32.totalorder %v504, 0
      %vm707 = vcmp.lt.s32.totalorder %v511, 0
      %vm708 = vcmp.lt.s32.totalorder %v518, 0
      %vm709 = vcmp.lt.s32.totalorder %v525, 0
      %vm710 = vcmp.lt.s32.totalorder %v532, 0
      %vm711 = vcmp.lt.s32.totalorder %v539, 0
      %vm712 = vcmp.lt.s32.totalorder %v546, 0
      %vm713 = vcmp.lt.s32.totalorder %v553, 0
      %vm714 = vcmp.lt.s32.totalorder %v560, 0
      %vm715 = vcmp.lt.s32.totalorder %v567, 0
      %vm716 = vcmp.lt.s32.totalorder %v574, 0
      %vm717 = vcmp.lt.s32.totalorder %v581, 0
      %vm718 = vcmp.lt.s32.totalorder %v588, 0
      %vm719 = vcmp.lt.s32.totalorder %v595, 0
      %vm720 = vcmp.lt.s32.totalorder %v602, 0
      %vm721 = vcmp.lt.s32.totalorder %v609, 0
      %vm722 = vcmp.lt.s32.totalorder %v616, 0
      %vm723 = vcmp.lt.s32.totalorder %v623, 0
      %vm724 = vcmp.lt.s32.totalorder %v630, 0
      %vm725 = vcmp.lt.s32.totalorder %v637, 0
      %vm726 = vcmp.lt.s32.totalorder %v644, 0
      %vm727 = vcmp.lt.s32.totalorder %v651, 0
      %vm728 = vcmp.lt.s32.totalorder %v658, 0
      %vm729 = vcmp.lt.s32.totalorder %v665, 0
      %vm730 = vmand %vm698, %vm666
      %vm731 = vmand %vm699, %vm667
      %vm732 = vmand %vm700, %vm668
      %vm733 = vmand %vm701, %vm669
      %vm734 = vmand %vm702, %vm670
      %vm735 = vmand %vm703, %vm671
      %vm736 = vmand %vm704, %vm672
      %vm737 = vmand %vm705, %vm673
      %vm738 = vmand %vm706, %vm674
      %vm739 = vmand %vm707, %vm675
      %vm740 = vmand %vm708, %vm676
      %vm741 = vmand %vm709, %vm677
      %vm742 = vmand %vm710, %vm678
      %vm743 = vmand %vm711, %vm679
      %vm744 = vmand %vm712, %vm680
      %vm745 = vmand %vm713, %vm681
      %vm746 = vmand %vm714, %vm682
      %vm747 = vmand %vm715, %vm683
      %vm748 = vmand %vm716, %vm684
      %vm749 = vmand %vm717, %vm685
      %vm750 = vmand %vm718, %vm686
      %vm751 = vmand %vm719, %vm687
      %vm752 = vmand %vm720, %vm688
      %vm753 = vmand %vm721, %vm689
      %vm754 = vmand %vm722, %vm690
      %vm755 = vmand %vm723, %vm691
      %vm756 = vmand %vm724, %vm692
      %vm757 = vmand %vm725, %vm693
      %vm758 = vmand %vm726, %vm694
      %vm759 = vmand %vm727, %vm695
      %vm760 = vmand %vm728, %vm696
      %vm761 = vmand %vm729, %vm697
      %v762 = vadd.s32 %v448, 16
      %v763 = vadd.s32 %v455, 16
      %v764 = vadd.s32 %v462, 16
      %v765 = vadd.s32 %v469, 16
      %v766 = vadd.s32 %v476, 16
      %v767 = vadd.s32 %v483, 16
      %v768 = vadd.s32 %v490, 16
      %v769 = vadd.s32 %v497, 16
      %v770 = vadd.s32 %v504, 16
      %v771 = vadd.s32 %v511, 16
      %v772 = vadd.s32 %v518, 16
      %v773 = vadd.s32 %v525, 16
      %v774 = vadd.s32 %v532, 16
      %v775 = vadd.s32 %v539, 16
      %v776 = vadd.s32 %v546, 16
      %v777 = vadd.s32 %v553, 16
      %v778 = vadd.s32 %v560, 16
      %v779 = vadd.s32 %v567, 16
      %v780 = vadd.s32 %v574, 16
      %v781 = vadd.s32 %v581, 16
      %v782 = vadd.s32 %v588, 16
      %v783 = vadd.s32 %v595, 16
      %v784 = vadd.s32 %v602, 16
      %v785 = vadd.s32 %v609, 16
      %v786 = vadd.s32 %v616, 16
      %v787 = vadd.s32 %v623, 16
      %v788 = vadd.s32 %v630, 16
      %v789 = vadd.s32 %v637, 16
      %v790 = vadd.s32 %v644, 16
      %v791 = vadd.s32 %v651, 16
      %v792 = vadd.s32 %v658, 16
      %v793 = vadd.s32 %v665, 16
      %v794 = vsel %vm730, %v762, %v448
      %v795 = vsel %vm731, %v763, %v455
      %v796 = vsel %vm732, %v764, %v462
      %v797 = vsel %vm733, %v765, %v469
      %v798 = vsel %vm734, %v766, %v476
      %v799 = vsel %vm735, %v767, %v483
      %v800 = vsel %vm736, %v768, %v490
      %v801 = vsel %vm737, %v769, %v497
      %v802 = vsel %vm738, %v770, %v504
      %v803 = vsel %vm739, %v771, %v511
      %v804 = vsel %vm740, %v772, %v518
      %v805 = vsel %vm741, %v773, %v525
      %v806 = vsel %vm742, %v774, %v532
      %v807 = vsel %vm743, %v775, %v539
      %v808 = vsel %vm744, %v776, %v546
      %v809 = vsel %vm745, %v777, %v553
      %v810 = vsel %vm746, %v778, %v560
      %v811 = vsel %vm747, %v779, %v567
      %v812 = vsel %vm748, %v780, %v574
      %v813 = vsel %vm749, %v781, %v581
      %v814 = vsel %vm750, %v782, %v588
      %v815 = vsel %vm751, %v783, %v595
      %v816 = vsel %vm752, %v784, %v602
      %v817 = vsel %vm753, %v785, %v609
      %v818 = vsel %vm754, %v786, %v616
      %v819 = vsel %vm755, %v787, %v623
      %v820 = vsel %vm756, %v788, %v630
      %v821 = vsel %vm757, %v789, %v637
      %v822 = vsel %vm758, %v790, %v644
      %v823 = vsel %vm759, %v791, %v651
      %v824 = vsel %vm760, %v792, %v658
      %v825 = vsel %vm761, %v793, %v665
      %vm826 = vcmp.ne.s32.totalorder %v794, 0
      %vm827 = vcmp.ne.s32.totalorder %v795, 0
      %vm828 = vcmp.ne.s32.totalorder %v796, 0
      %vm829 = vcmp.ne.s32.totalorder %v797, 0
      %vm830 = vcmp.ne.s32.totalorder %v798, 0
      %vm831 = vcmp.ne.s32.totalorder %v799, 0
      %vm832 = vcmp.ne.s32.totalorder %v800, 0
      %vm833 = vcmp.ne.s32.totalorder %v801, 0
      %vm834 = vcmp.ne.s32.totalorder %v802, 0
      %vm835 = vcmp.ne.s32.totalorder %v803, 0
      %vm836 = vcmp.ne.s32.totalorder %v804, 0
      %vm837 = vcmp.ne.s32.totalorder %v805, 0
      %vm838 = vcmp.ne.s32.totalorder %v806, 0
      %vm839 = vcmp.ne.s32.totalorder %v807, 0
      %vm840 = vcmp.ne.s32.totalorder %v808, 0
      %vm841 = vcmp.ne.s32.totalorder %v809, 0
      %vm842 = vcmp.ne.s32.totalorder %v810, 0
      %vm843 = vcmp.ne.s32.totalorder %v811, 0
      %vm844 = vcmp.ne.s32.totalorder %v812, 0
      %vm845 = vcmp.ne.s32.totalorder %v813, 0
      %vm846 = vcmp.ne.s32.totalorder %v814, 0
      %vm847 = vcmp.ne.s32.totalorder %v815, 0
      %vm848 = vcmp.ne.s32.totalorder %v816, 0
      %vm849 = vcmp.ne.s32.totalorder %v817, 0
      %vm850 = vcmp.ne.s32.totalorder %v818, 0
      %vm851 = vcmp.ne.s32.totalorder %v819, 0
      %vm852 = vcmp.ne.s32.totalorder %v820, 0
      %vm853 = vcmp.ne.s32.totalorder %v821, 0
      %vm854 = vcmp.ne.s32.totalorder %v822, 0
      %vm855 = vcmp.ne.s32.totalorder %v823, 0
      %vm856 = vcmp.ne.s32.totalorder %v824, 0
      %vm857 = vcmp.ne.s32.totalorder %v825, 0
      %vm858 = vcmp.ne.s32.totalorder %v794, 15
      %vm859 = vcmp.ne.s32.totalorder %v795, 15
      %vm860 = vcmp.ne.s32.totalorder %v796, 15
      %vm861 = vcmp.ne.s32.totalorder %v797, 15
      %vm862 = vcmp.ne.s32.totalorder %v798, 15
      %vm863 = vcmp.ne.s32.totalorder %v799, 15
      %vm864 = vcmp.ne.s32.totalorder %v800, 15
      %vm865 = vcmp.ne.s32.totalorder %v801, 15
      %vm866 = vcmp.ne.s32.totalorder %v802, 15
      %vm867 = vcmp.ne.s32.totalorder %v803, 15
      %vm868 = vcmp.ne.s32.totalorder %v804, 15
      %vm869 = vcmp.ne.s32.totalorder %v805, 15
      %vm870 = vcmp.ne.s32.totalorder %v806, 15
      %vm871 = vcmp.ne.s32.totalorder %v807, 15
      %vm872 = vcmp.ne.s32.totalorder %v808, 15
      %vm873 = vcmp.ne.s32.totalorder %v809, 15
      %vm874 = vcmp.ne.s32.totalorder %v810, 15
      %vm875 = vcmp.ne.s32.totalorder %v811, 15
      %vm876 = vcmp.ne.s32.totalorder %v812, 15
      %vm877 = vcmp.ne.s32.totalorder %v813, 15
      %vm878 = vcmp.ne.s32.totalorder %v814, 15
      %vm879 = vcmp.ne.s32.totalorder %v815, 15
      %vm880 = vcmp.ne.s32.totalorder %v816, 15
      %vm881 = vcmp.ne.s32.totalorder %v817, 15
      %vm882 = vcmp.ne.s32.totalorder %v818, 15
      %vm883 = vcmp.ne.s32.totalorder %v819, 15
      %vm884 = vcmp.ne.s32.totalorder %v820, 15
      %vm885 = vcmp.ne.s32.totalorder %v821, 15
      %vm886 = vcmp.ne.s32.totalorder %v822, 15
      %vm887 = vcmp.ne.s32.totalorder %v823, 15
      %vm888 = vcmp.ne.s32.totalorder %v824, 15
      %vm889 = vcmp.ne.s32.totalorder %v825, 15
      %v890 = vld [vmem:[#allocation2] sm:$0xf8]
      %v891 = vld [vmem:[#allocation2 + $0x8] sm:$0xff]
      %v892 = vld [vmem:[#allocation2 + $0x10] sm:$0xff]
      %v893 = vld [vmem:[#allocation2 + $0x18] sm:$0xff]
      %v894 = vld [vmem:[#allocation2 + $0x20] sm:$0xff]
      %v895 = vld [vmem:[#allocation2 + $0x28] sm:$0xff]
      %v896 = vld [vmem:[#allocation2 + $0x30] sm:$0xff]
      %v897 = vld [vmem:[#allocation2 + $0x38] sm:$0xff]
      %v898 = vld [vmem:[#allocation2 + $0x40] sm:$0xff]
      %v899 = vld [vmem:[#allocation2 + $0x48] sm:$0xff]
      %v900 = vld [vmem:[#allocation2 + $0x50] sm:$0xff]
      %v901 = vld [vmem:[#allocation2 + $0x58] sm:$0xff]
      %v902 = vld [vmem:[#allocation2 + $0x60] sm:$0xff]
      %v903 = vld [vmem:[#allocation2 + $0x68] sm:$0xff]
      %v904 = vld [vmem:[#allocation2 + $0x70] sm:$0xff]
      %v905 = vld [vmem:[#allocation2 + $0x78] sm:$0xff]
      %v906 = vld [vmem:[#allocation2 + $0x80] sm:$0xf]
      %v907 = vsel %vm826, 1, 0
      %v908 = vsel %vm827, 1, 0
      %v909 = vsel %vm828, 1, 0
      %v910 = vsel %vm829, 1, 0
      %v911 = vsel %vm830, 1, 0
      %v912 = vsel %vm831, 1, 0
      %v913 = vsel %vm832, 1, 0
      %v914 = vsel %vm833, 1, 0
      %v915 = vsel %vm834, 1, 0
      %v916 = vsel %vm835, 1, 0
      %v917 = vsel %vm836, 1, 0
      %v918 = vsel %vm837, 1, 0
      %v919 = vsel %vm838, 1, 0
      %v920 = vsel %vm839, 1, 0
      %v921 = vsel %vm840, 1, 0
      %v922 = vsel %vm841, 1, 0
      %v923 = vsel %vm842, 1, 0
      %v924 = vsel %vm843, 1, 0
      %v925 = vsel %vm844, 1, 0
      %v926 = vsel %vm845, 1, 0
      %v927 = vsel %vm846, 1, 0
      %v928 = vsel %vm847, 1, 0
      %v929 = vsel %vm848, 1, 0
      %v930 = vsel %vm849, 1, 0
      %v931 = vsel %vm850, 1, 0
      %v932 = vsel %vm851, 1, 0
      %v933 = vsel %vm852, 1, 0
      %v934 = vsel %vm853, 1, 0
      %v935 = vsel %vm854, 1, 0
      %v936 = vsel %vm855, 1, 0
      %v937 = vsel %vm856, 1, 0
      %v938 = vsel %vm857, 1, 0
      %vm939 = vcmp.eq.s32.totalorder %v907, 1
      %vm940 = vcmp.eq.s32.totalorder %v908, 1
      %vm941 = vcmp.eq.s32.totalorder %v909, 1
      %vm942 = vcmp.eq.s32.totalorder %v910, 1
      %vm943 = vcmp.eq.s32.totalorder %v911, 1
      %vm944 = vcmp.eq.s32.totalorder %v912, 1
      %vm945 = vcmp.eq.s32.totalorder %v913, 1
      %vm946 = vcmp.eq.s32.totalorder %v914, 1
      %vm947 = vcmp.eq.s32.totalorder %v915, 1
      %vm948 = vcmp.eq.s32.totalorder %v916, 1
      %vm949 = vcmp.eq.s32.totalorder %v917, 1
      %vm950 = vcmp.eq.s32.totalorder %v918, 1
      %vm951 = vcmp.eq.s32.totalorder %v919, 1
      %vm952 = vcmp.eq.s32.totalorder %v920, 1
      %vm953 = vcmp.eq.s32.totalorder %v921, 1
      %vm954 = vcmp.eq.s32.totalorder %v922, 1
      %vm955 = vcmp.eq.s32.totalorder %v923, 1
      %vm956 = vcmp.eq.s32.totalorder %v924, 1
      %vm957 = vcmp.eq.s32.totalorder %v925, 1
      %vm958 = vcmp.eq.s32.totalorder %v926, 1
      %vm959 = vcmp.eq.s32.totalorder %v927, 1
      %vm960 = vcmp.eq.s32.totalorder %v928, 1
      %vm961 = vcmp.eq.s32.totalorder %v929, 1
      %vm962 = vcmp.eq.s32.totalorder %v930, 1
      %vm963 = vcmp.eq.s32.totalorder %v931, 1
      %vm964 = vcmp.eq.s32.totalorder %v932, 1
      %vm965 = vcmp.eq.s32.totalorder %v933, 1
      %vm966 = vcmp.eq.s32.totalorder %v934, 1
      %vm967 = vcmp.eq.s32.totalorder %v935, 1
      %vm968 = vcmp.eq.s32.totalorder %v936, 1
      %vm969 = vcmp.eq.s32.totalorder %v937, 1
      %vm970 = vcmp.eq.s32.totalorder %v938, 1
      %vm971 = vmpackc.low %vm939, %vm939
      %vm972 = vmpackc.low %vm940, %vm940
      %vm973 = vmpackc.low %vm941, %vm941
      %vm974 = vmpackc.low %vm942, %vm942
      %vm975 = vmpackc.low %vm943, %vm943
      %vm976 = vmpackc.low %vm944, %vm944
      %vm977 = vmpackc.low %vm945, %vm945
      %vm978 = vmpackc.low %vm946, %vm946
      %vm979 = vmpackc.low %vm947, %vm947
      %vm980 = vmpackc.low %vm948, %vm948
      %vm981 = vmpackc.low %vm949, %vm949
      %vm982 = vmpackc.low %vm950, %vm950
      %vm983 = vmpackc.low %vm951, %vm951
      %vm984 = vmpackc.low %vm952, %vm952
      %vm985 = vmpackc.low %vm953, %vm953
      %vm986 = vmpackc.low %vm954, %vm954
      %vm987 = vmpackc.low %vm955, %vm955
      %vm988 = vmpackc.low %vm956, %vm956
      %vm989 = vmpackc.low %vm957, %vm957
      %vm990 = vmpackc.low %vm958, %vm958
      %vm991 = vmpackc.low %vm959, %vm959
      %vm992 = vmpackc.low %vm960, %vm960
      %vm993 = vmpackc.low %vm961, %vm961
      %vm994 = vmpackc.low %vm962, %vm962
      %vm995 = vmpackc.low %vm963, %vm963
      %vm996 = vmpackc.low %vm964, %vm964
      %vm997 = vmpackc.low %vm965, %vm965
      %vm998 = vmpackc.low %vm966, %vm966
      %vm999 = vmpackc.low %vm967, %vm967
      %vm1000 = vmpackc.low %vm968, %vm968
      %vm1001 = vmpackc.low %vm969, %vm969
      %vm1002 = vmpackc.low %vm970, %vm970
      %v1003 = vsel %vm971, 65537, 0
      %v1004 = vsel %vm972, 65537, 0
      %v1005 = vsel %vm973, 65537, 0
      %v1006 = vsel %vm974, 65537, 0
      %v1007 = vsel %vm975, 65537, 0
      %v1008 = vsel %vm976, 65537, 0
      %v1009 = vsel %vm977, 65537, 0
      %v1010 = vsel %vm978, 65537, 0
      %v1011 = vsel %vm979, 65537, 0
      %v1012 = vsel %vm980, 65537, 0
      %v1013 = vsel %vm981, 65537, 0
      %v1014 = vsel %vm982, 65537, 0
      %v1015 = vsel %vm983, 65537, 0
      %v1016 = vsel %vm984, 65537, 0
      %v1017 = vsel %vm985, 65537, 0
      %v1018 = vsel %vm986, 65537, 0
      %v1019 = vsel %vm987, 65537, 0
      %v1020 = vsel %vm988, 65537, 0
      %v1021 = vsel %vm989, 65537, 0
      %v1022 = vsel %vm990, 65537, 0
      %v1023 = vsel %vm991, 65537, 0
      %v1024 = vsel %vm992, 65537, 0
      %v1025 = vsel %vm993, 65537, 0
      %v1026 = vsel %vm994, 65537, 0
      %v1027 = vsel %vm995, 65537, 0
      %v1028 = vsel %vm996, 65537, 0
      %v1029 = vsel %vm997, 65537, 0
      %v1030 = vsel %vm998, 65537, 0
      %v1031 = vsel %vm999, 65537, 0
      %v1032 = vsel %vm1000, 65537, 0
      %v1033 = vsel %vm1001, 65537, 0
      %v1034 = vsel %vm1002, 65537, 0
      %v1035 = vunpack.c.l.b16 %v1003
      %v1036 = vunpack.c.l.b16 %v1004
      %v1037 = vunpack.c.l.b16 %v1005
      %v1038 = vunpack.c.l.b16 %v1006
      %v1039 = vunpack.c.l.b16 %v1007
      %v1040 = vunpack.c.l.b16 %v1008
      %v1041 = vunpack.c.l.b16 %v1009
      %v1042 = vunpack.c.l.b16 %v1010
      %v1043 = vunpack.c.l.b16 %v1011
      %v1044 = vunpack.c.l.b16 %v1012
      %v1045 = vunpack.c.l.b16 %v1013
      %v1046 = vunpack.c.l.b16 %v1014
      %v1047 = vunpack.c.l.b16 %v1015
      %v1048 = vunpack.c.l.b16 %v1016
      %v1049 = vunpack.c.l.b16 %v1017
      %v1050 = vunpack.c.l.b16 %v1018
      %v1051 = vunpack.c.l.b16 %v1019
      %v1052 = vunpack.c.l.b16 %v1020
      %v1053 = vunpack.c.l.b16 %v1021
      %v1054 = vunpack.c.l.b16 %v1022
      %v1055 = vunpack.c.l.b16 %v1023
      %v1056 = vunpack.c.l.b16 %v1024
      %v1057 = vunpack.c.l.b16 %v1025
      %v1058 = vunpack.c.l.b16 %v1026
      %v1059 = vunpack.c.l.b16 %v1027
      %v1060 = vunpack.c.l.b16 %v1028
      %v1061 = vunpack.c.l.b16 %v1029
      %v1062 = vunpack.c.l.b16 %v1030
      %v1063 = vunpack.c.l.b16 %v1031
      %v1064 = vunpack.c.l.b16 %v1032
      %v1065 = vunpack.c.l.b16 %v1033
      %v1066 = vunpack.c.l.b16 %v1034
      %v1067 = vpack.c.b16 %v1036, %v1035
      %v1068 = vpack.c.b16 %v1038, %v1037
      %v1069 = vpack.c.b16 %v1040, %v1039
      %v1070 = vpack.c.b16 %v1042, %v1041
      %v1071 = vpack.c.b16 %v1044, %v1043
      %v1072 = vpack.c.b16 %v1046, %v1045
      %v1073 = vpack.c.b16 %v1048, %v1047
      %v1074 = vpack.c.b16 %v1050, %v1049
      %v1075 = vpack.c.b16 %v1052, %v1051
      %v1076 = vpack.c.b16 %v1054, %v1053
      %v1077 = vpack.c.b16 %v1056, %v1055
      %v1078 = vpack.c.b16 %v1058, %v1057
      %v1079 = vpack.c.b16 %v1060, %v1059
      %v1080 = vpack.c.b16 %v1062, %v1061
      %v1081 = vpack.c.b16 %v1064, %v1063
      %v1082 = vpack.c.b16 %v1066, %v1065
      %vm1083 = vsmask.f32 3328
      %v1085 = vshrl.u32 %v1067, 16
      %v1087 = vrot.slane %v1085, 4
      %v1088 = vshll.u32 %v1067, 16
      %v1090 = vrot.slane %v1088, 5
      %v1091 = vor.u32 %v1087, %v1090
      %v1093 = vshrl.u32 %v1068, 16
      %v1095 = vrot.slane %v1093, 4
      %v1096 = vshll.u32 %v1068, 16
      %v1098 = vrot.slane %v1096, 5
      %v1099 = vor.u32 %v1095, %v1098
      %v1100 = vsel %vm1083, %v1091, %v1099
      %v1102 = vshrl.u32 %v1069, 16
      %v1104 = vrot.slane %v1102, 4
      %v1105 = vshll.u32 %v1069, 16
      %v1107 = vrot.slane %v1105, 5
      %v1108 = vor.u32 %v1104, %v1107
      %v1109 = vsel %vm1083, %v1099, %v1108
      %v1111 = vshrl.u32 %v1070, 16
      %v1113 = vrot.slane %v1111, 4
      %v1114 = vshll.u32 %v1070, 16
      %v1116 = vrot.slane %v1114, 5
      %v1117 = vor.u32 %v1113, %v1116
      %v1118 = vsel %vm1083, %v1108, %v1117
      %v1120 = vshrl.u32 %v1071, 16
      %v1122 = vrot.slane %v1120, 4
      %v1123 = vshll.u32 %v1071, 16
      %v1125 = vrot.slane %v1123, 5
      %v1126 = vor.u32 %v1122, %v1125
      %v1127 = vsel %vm1083, %v1117, %v1126
      %v1129 = vshrl.u32 %v1072, 16
      %v1131 = vrot.slane %v1129, 4
      %v1132 = vshll.u32 %v1072, 16
      %v1134 = vrot.slane %v1132, 5
      %v1135 = vor.u32 %v1131, %v1134
      %v1136 = vsel %vm1083, %v1126, %v1135
      %v1138 = vshrl.u32 %v1073, 16
      %v1140 = vrot.slane %v1138, 4
      %v1141 = vshll.u32 %v1073, 16
      %v1143 = vrot.slane %v1141, 5
      %v1144 = vor.u32 %v1140, %v1143
      %v1145 = vsel %vm1083, %v1135, %v1144
      %v1147 = vshrl.u32 %v1074, 16
      %v1149 = vrot.slane %v1147, 4
      %v1150 = vshll.u32 %v1074, 16
      %v1152 = vrot.slane %v1150, 5
      %v1153 = vor.u32 %v1149, %v1152
      %v1154 = vsel %vm1083, %v1144, %v1153
      %v1156 = vshrl.u32 %v1075, 16
      %v1158 = vrot.slane %v1156, 4
      %v1159 = vshll.u32 %v1075, 16
      %v1161 = vrot.slane %v1159, 5
      %v1162 = vor.u32 %v1158, %v1161
      %v1163 = vsel %vm1083, %v1153, %v1162
      %v1165 = vshrl.u32 %v1076, 16
      %v1167 = vrot.slane %v1165, 4
      %v1168 = vshll.u32 %v1076, 16
      %v1170 = vrot.slane %v1168, 5
      %v1171 = vor.u32 %v1167, %v1170
      %v1172 = vsel %vm1083, %v1162, %v1171
      %v1174 = vshrl.u32 %v1077, 16
      %v1176 = vrot.slane %v1174, 4
      %v1177 = vshll.u32 %v1077, 16
      %v1179 = vrot.slane %v1177, 5
      %v1180 = vor.u32 %v1176, %v1179
      %v1181 = vsel %vm1083, %v1171, %v1180
      %v1183 = vshrl.u32 %v1078, 16
      %v1185 = vrot.slane %v1183, 4
      %v1186 = vshll.u32 %v1078, 16
      %v1188 = vrot.slane %v1186, 5
      %v1189 = vor.u32 %v1185, %v1188
      %v1190 = vsel %vm1083, %v1180, %v1189
      %v1192 = vshrl.u32 %v1079, 16
      %v1194 = vrot.slane %v1192, 4
      %v1195 = vshll.u32 %v1079, 16
      %v1197 = vrot.slane %v1195, 5
      %v1198 = vor.u32 %v1194, %v1197
      %v1199 = vsel %vm1083, %v1189, %v1198
      %v1201 = vshrl.u32 %v1080, 16
      %v1203 = vrot.slane %v1201, 4
      %v1204 = vshll.u32 %v1080, 16
      %v1206 = vrot.slane %v1204, 5
      %v1207 = vor.u32 %v1203, %v1206
      %v1208 = vsel %vm1083, %v1198, %v1207
      %v1210 = vshrl.u32 %v1081, 16
      %v1212 = vrot.slane %v1210, 4
      %v1213 = vshll.u32 %v1081, 16
      %v1215 = vrot.slane %v1213, 5
      %v1216 = vor.u32 %v1212, %v1215
      %v1217 = vsel %vm1083, %v1207, %v1216
      %v1219 = vshrl.u32 %v1082, 16
      %v1221 = vrot.slane %v1219, 4
      %v1222 = vshll.u32 %v1082, 16
      %v1224 = vrot.slane %v1222, 5
      %v1225 = vor.u32 %v1221, %v1224
      %v1226 = vsel %vm1083, %v1216, %v1225
      %vm1227 = vcmp.ne.s16.totalorder %v1091, 0
      %vm1228 = vcmp.ne.s16.totalorder %v1100, 0
      %vm1229 = vcmp.ne.s16.totalorder %v1109, 0
      %vm1230 = vcmp.ne.s16.totalorder %v1118, 0
      %vm1231 = vcmp.ne.s16.totalorder %v1127, 0
      %vm1232 = vcmp.ne.s16.totalorder %v1136, 0
      %vm1233 = vcmp.ne.s16.totalorder %v1145, 0
      %vm1234 = vcmp.ne.s16.totalorder %v1154, 0
      %vm1235 = vcmp.ne.s16.totalorder %v1163, 0
      %vm1236 = vcmp.ne.s16.totalorder %v1172, 0
      %vm1237 = vcmp.ne.s16.totalorder %v1181, 0
      %vm1238 = vcmp.ne.s16.totalorder %v1190, 0
      %vm1239 = vcmp.ne.s16.totalorder %v1199, 0
      %vm1240 = vcmp.ne.s16.totalorder %v1208, 0
      %vm1241 = vcmp.ne.s16.totalorder %v1217, 0
      %vm1242 = vcmp.ne.s16.totalorder %v1226, 0
      %vm1243 = vcmp.ne.s16.totalorder %v1225, 0
      %v1244 = vsel %vm1227, %v890, 0
      %v1245 = vsel %vm1228, %v891, 0
      %v1246 = vsel %vm1229, %v892, 0
      %v1247 = vsel %vm1230, %v893, 0
      %v1248 = vsel %vm1231, %v894, 0
      %v1249 = vsel %vm1232, %v895, 0
      %v1250 = vsel %vm1233, %v896, 0
      %v1251 = vsel %vm1234, %v897, 0
      %v1252 = vsel %vm1235, %v898, 0
      %v1253 = vsel %vm1236, %v899, 0
      %v1254 = vsel %vm1237, %v900, 0
      %v1255 = vsel %vm1238, %v901, 0
      %v1256 = vsel %vm1239, %v902, 0
      %v1257 = vsel %vm1240, %v903, 0
      %v1258 = vsel %vm1241, %v904, 0
      %v1259 = vsel %vm1242, %v905, 0
      %v1260 = vsel %vm1243, %v906, 0
      %vm1261 = vsmask.f32 4352
      %v1263 = vshrl.u32 %v1244, 16
      %v1265 = vrot.slane %v1263, 3
      %v1266 = vshll.u32 %v1244, 16
      %v1268 = vrot.slane %v1266, 4
      %v1269 = vor.u32 %v1265, %v1268
      %v1271 = vshrl.u32 %v1245, 16
      %v1273 = vrot.slane %v1271, 3
      %v1274 = vshll.u32 %v1245, 16
      %v1276 = vrot.slane %v1274, 4
      %v1277 = vor.u32 %v1273, %v1276
      %v1278 = vsel %vm1261, %v1269, %v1277
      %v1280 = vshrl.u32 %v1246, 16
      %v1282 = vrot.slane %v1280, 3
      %v1283 = vshll.u32 %v1246, 16
      %v1285 = vrot.slane %v1283, 4
      %v1286 = vor.u32 %v1282, %v1285
      %v1287 = vsel %vm1261, %v1277, %v1286
      %v1289 = vshrl.u32 %v1247, 16
      %v1291 = vrot.slane %v1289, 3
      %v1292 = vshll.u32 %v1247, 16
      %v1294 = vrot.slane %v1292, 4
      %v1295 = vor.u32 %v1291, %v1294
      %v1296 = vsel %vm1261, %v1286, %v1295
      %v1298 = vshrl.u32 %v1248, 16
      %v1300 = vrot.slane %v1298, 3
      %v1301 = vshll.u32 %v1248, 16
      %v1303 = vrot.slane %v1301, 4
      %v1304 = vor.u32 %v1300, %v1303
      %v1305 = vsel %vm1261, %v1295, %v1304
      %v1307 = vshrl.u32 %v1249, 16
      %v1309 = vrot.slane %v1307, 3
      %v1310 = vshll.u32 %v1249, 16
      %v1312 = vrot.slane %v1310, 4
      %v1313 = vor.u32 %v1309, %v1312
      %v1314 = vsel %vm1261, %v1304, %v1313
      %v1316 = vshrl.u32 %v1250, 16
      %v1318 = vrot.slane %v1316, 3
      %v1319 = vshll.u32 %v1250, 16
      %v1321 = vrot.slane %v1319, 4
      %v1322 = vor.u32 %v1318, %v1321
      %v1323 = vsel %vm1261, %v1313, %v1322
      %v1325 = vshrl.u32 %v1251, 16
      %v1327 = vrot.slane %v1325, 3
      %v1328 = vshll.u32 %v1251, 16
      %v1330 = vrot.slane %v1328, 4
      %v1331 = vor.u32 %v1327, %v1330
      %v1332 = vsel %vm1261, %v1322, %v1331
      %v1334 = vshrl.u32 %v1252, 16
      %v1336 = vrot.slane %v1334, 3
      %v1337 = vshll.u32 %v1252, 16
      %v1339 = vrot.slane %v1337, 4
      %v1340 = vor.u32 %v1336, %v1339
      %v1341 = vsel %vm1261, %v1331, %v1340
      %v1343 = vshrl.u32 %v1253, 16
      %v1345 = vrot.slane %v1343, 3
      %v1346 = vshll.u32 %v1253, 16
      %v1348 = vrot.slane %v1346, 4
      %v1349 = vor.u32 %v1345, %v1348
      %v1350 = vsel %vm1261, %v1340, %v1349
      %v1352 = vshrl.u32 %v1254, 16
      %v1354 = vrot.slane %v1352, 3
      %v1355 = vshll.u32 %v1254, 16
      %v1357 = vrot.slane %v1355, 4
      %v1358 = vor.u32 %v1354, %v1357
      %v1359 = vsel %vm1261, %v1349, %v1358
      %v1361 = vshrl.u32 %v1255, 16
      %v1363 = vrot.slane %v1361, 3
      %v1364 = vshll.u32 %v1255, 16
      %v1366 = vrot.slane %v1364, 4
      %v1367 = vor.u32 %v1363, %v1366
      %v1368 = vsel %vm1261, %v1358, %v1367
      %v1370 = vshrl.u32 %v1256, 16
      %v1372 = vrot.slane %v1370, 3
      %v1373 = vshll.u32 %v1256, 16
      %v1375 = vrot.slane %v1373, 4
      %v1376 = vor.u32 %v1372, %v1375
      %v1377 = vsel %vm1261, %v1367, %v1376
      %v1379 = vshrl.u32 %v1257, 16
      %v1381 = vrot.slane %v1379, 3
      %v1382 = vshll.u32 %v1257, 16
      %v1384 = vrot.slane %v1382, 4
      %v1385 = vor.u32 %v1381, %v1384
      %v1386 = vsel %vm1261, %v1376, %v1385
      %v1388 = vshrl.u32 %v1258, 16
      %v1390 = vrot.slane %v1388, 3
      %v1391 = vshll.u32 %v1258, 16
      %v1393 = vrot.slane %v1391, 4
      %v1394 = vor.u32 %v1390, %v1393
      %v1395 = vsel %vm1261, %v1385, %v1394
      %v1397 = vshrl.u32 %v1259, 16
      %v1399 = vrot.slane %v1397, 3
      %v1400 = vshll.u32 %v1259, 16
      %v1402 = vrot.slane %v1400, 4
      %v1403 = vor.u32 %v1399, %v1402
      %v1404 = vsel %vm1261, %v1394, %v1403
      %v1406 = vshrl.u32 %v1260, 16
      %v1408 = vrot.slane %v1406, 3
      %v1409 = vshll.u32 %v1260, 16
      %v1411 = vrot.slane %v1409, 4
      %v1412 = vor.u32 %v1408, %v1411
      %v1413 = vsel %vm1261, %v1403, %v1412
      %1430 = vst.msk [vmem:[#allocation3] sm:$0xff] %vm272, %v1278
      %1431 = vst.msk [vmem:[#allocation3 + $0x8] sm:$0xff] %vm272, %v1287
      %1432 = vst.msk [vmem:[#allocation3 + $0x10] sm:$0xff] %vm272, %v1296
      %1433 = vst.msk [vmem:[#allocation3 + $0x18] sm:$0xff] %vm272, %v1305
      %1434 = vst.msk [vmem:[#allocation3 + $0x20] sm:$0xff] %vm272, %v1314
      %1435 = vst.msk [vmem:[#allocation3 + $0x28] sm:$0xff] %vm272, %v1323
      %1436 = vst.msk [vmem:[#allocation3 + $0x30] sm:$0xff] %vm272, %v1332
      %1437 = vst.msk [vmem:[#allocation3 + $0x38] sm:$0xff] %vm272, %v1341
      %1438 = vst.msk [vmem:[#allocation3 + $0x40] sm:$0xff] %vm272, %v1350
      %1439 = vst.msk [vmem:[#allocation3 + $0x48] sm:$0xff] %vm272, %v1359
      %1440 = vst.msk [vmem:[#allocation3 + $0x50] sm:$0xff] %vm272, %v1368
      %1441 = vst.msk [vmem:[#allocation3 + $0x58] sm:$0xff] %vm272, %v1377
      %1442 = vst.msk [vmem:[#allocation3 + $0x60] sm:$0xff] %vm272, %v1386
      %1443 = vst.msk [vmem:[#allocation3 + $0x68] sm:$0xff] %vm272, %v1395
      %1444 = vst.msk [vmem:[#allocation3 + $0x70] sm:$0xff] %vm272, %v1404
      %1445 = vst.msk [vmem:[#allocation3 + $0x78] sm:$0xff] %vm272, %v1413
      %v1446 = vld [vmem:[#allocation2] sm:$0xf0]
      %v1447 = vld [vmem:[#allocation2 + $0x8] sm:$0xff]
      %v1448 = vld [vmem:[#allocation2 + $0x10] sm:$0xff]
      %v1449 = vld [vmem:[#allocation2 + $0x18] sm:$0xff]
      %v1450 = vld [vmem:[#allocation2 + $0x20] sm:$0xff]
      %v1451 = vld [vmem:[#allocation2 + $0x28] sm:$0xff]
      %v1452 = vld [vmem:[#allocation2 + $0x30] sm:$0xff]
      %v1453 = vld [vmem:[#allocation2 + $0x38] sm:$0xff]
      %v1454 = vld [vmem:[#allocation2 + $0x40] sm:$0xff]
      %v1455 = vld [vmem:[#allocation2 + $0x48] sm:$0xff]
      %v1456 = vld [vmem:[#allocation2 + $0x50] sm:$0xff]
      %v1457 = vld [vmem:[#allocation2 + $0x58] sm:$0xff]
      %v1458 = vld [vmem:[#allocation2 + $0x60] sm:$0xff]
      %v1459 = vld [vmem:[#allocation2 + $0x68] sm:$0xff]
      %v1460 = vld [vmem:[#allocation2 + $0x70] sm:$0xff]
      %v1461 = vld [vmem:[#allocation2 + $0x78] sm:$0xff]
      %v1462 = vld [vmem:[#allocation2 + $0x80] sm:$0xf]
      %v1480 = vrot.slane %v1446, 4
      %v1481 = vrot.slane %v1447, 4
      %v1482 = vsel %vm343, %v1480, %v1481
      %v1483 = vrot.slane %v1448, 4
      %v1484 = vsel %vm343, %v1481, %v1483
      %v1485 = vrot.slane %v1449, 4
      %v1486 = vsel %vm343, %v1483, %v1485
      %v1487 = vrot.slane %v1450, 4
      %v1488 = vsel %vm343, %v1485, %v1487
      %v1489 = vrot.slane %v1451, 4
      %v1490 = vsel %vm343, %v1487, %v1489
      %v1491 = vrot.slane %v1452, 4
      %v1492 = vsel %vm343, %v1489, %v1491
      %v1493 = vrot.slane %v1453, 4
      %v1494 = vsel %vm343, %v1491, %v1493
      %v1495 = vrot.slane %v1454, 4
      %v1496 = vsel %vm343, %v1493, %v1495
      %v1497 = vrot.slane %v1455, 4
      %v1498 = vsel %vm343, %v1495, %v1497
      %v1499 = vrot.slane %v1456, 4
      %v1500 = vsel %vm343, %v1497, %v1499
      %v1501 = vrot.slane %v1457, 4
      %v1502 = vsel %vm343, %v1499, %v1501
      %v1503 = vrot.slane %v1458, 4
      %v1504 = vsel %vm343, %v1501, %v1503
      %v1505 = vrot.slane %v1459, 4
      %v1506 = vsel %vm343, %v1503, %v1505
      %v1507 = vrot.slane %v1460, 4
      %v1508 = vsel %vm343, %v1505, %v1507
      %v1509 = vrot.slane %v1461, 4
      %v1510 = vsel %vm343, %v1507, %v1509
      %v1511 = vrot.slane %v1462, 4
      %v1512 = vsel %vm343, %v1509, %v1511
      %1513 = vrot.lane.b32.xlu0 %v1482, 4
      %v1514 = vpop.permute.xlu0 %1513
      %1515 = vrot.lane.b32.xlu0 %v1484, 4
      %v1516 = vpop.permute.xlu0 %1515
      %1517 = vrot.lane.b32.xlu0 %v1486, 4
      %v1518 = vpop.permute.xlu0 %1517
      %1519 = vrot.lane.b32.xlu0 %v1488, 4
      %v1520 = vpop.permute.xlu0 %1519
      %1521 = vrot.lane.b32.xlu0 %v1490, 4
      %v1522 = vpop.permute.xlu0 %1521
      %1523 = vrot.lane.b32.xlu0 %v1492, 4
      %v1524 = vpop.permute.xlu0 %1523
      %1525 = vrot.lane.b32.xlu0 %v1494, 4
      %v1526 = vpop.permute.xlu0 %1525
      %1527 = vrot.lane.b32.xlu0 %v1496, 4
      %v1528 = vpop.permute.xlu0 %1527
      %1529 = vrot.lane.b32.xlu0 %v1498, 4
      %v1530 = vpop.permute.xlu0 %1529
      %1531 = vrot.lane.b32.xlu0 %v1500, 4
      %v1532 = vpop.permute.xlu0 %1531
      %1533 = vrot.lane.b32.xlu0 %v1502, 4
      %v1534 = vpop.permute.xlu0 %1533
      %1535 = vrot.lane.b32.xlu0 %v1504, 4
      %v1536 = vpop.permute.xlu0 %1535
      %1537 = vrot.lane.b32.xlu0 %v1506, 4
      %v1538 = vpop.permute.xlu0 %1537
      %1539 = vrot.lane.b32.xlu0 %v1508, 4
      %v1540 = vpop.permute.xlu0 %1539
      %1541 = vrot.lane.b32.xlu0 %v1510, 4
      %v1542 = vpop.permute.xlu0 %1541
      %1543 = vrot.lane.b32.xlu0 %v1512, 4
      %v1544 = vpop.permute.xlu0 %1543
      %vm1561 = vcmask 64544
      %1562 = vst.msk [vmem:[#allocation3] sm:$0xff] %vm1561, %v1514
      %1563 = vst.msk [vmem:[#allocation3 + $0x8] sm:$0xff] %vm1561, %v1516
      %1564 = vst.msk [vmem:[#allocation3 + $0x10] sm:$0xff] %vm1561, %v1518
      %1565 = vst.msk [vmem:[#allocation3 + $0x18] sm:$0xff] %vm1561, %v1520
      %1566 = vst.msk [vmem:[#allocation3 + $0x20] sm:$0xff] %vm1561, %v1522
      %1567 = vst.msk [vmem:[#allocation3 + $0x28] sm:$0xff] %vm1561, %v1524
      %1568 = vst.msk [vmem:[#allocation3 + $0x30] sm:$0xff] %vm1561, %v1526
      %1569 = vst.msk [vmem:[#allocation3 + $0x38] sm:$0xff] %vm1561, %v1528
      %1570 = vst.msk [vmem:[#allocation3 + $0x40] sm:$0xff] %vm1561, %v1530
      %1571 = vst.msk [vmem:[#allocation3 + $0x48] sm:$0xff] %vm1561, %v1532
      %1572 = vst.msk [vmem:[#allocation3 + $0x50] sm:$0xff] %vm1561, %v1534
      %1573 = vst.msk [vmem:[#allocation3 + $0x58] sm:$0xff] %vm1561, %v1536
      %1574 = vst.msk [vmem:[#allocation3 + $0x60] sm:$0xff] %vm1561, %v1538
      %1575 = vst.msk [vmem:[#allocation3 + $0x68] sm:$0xff] %vm1561, %v1540
      %1576 = vst.msk [vmem:[#allocation3 + $0x70] sm:$0xff] %vm1561, %v1542
      %1577 = vst.msk [vmem:[#allocation3 + $0x78] sm:$0xff] %vm1561, %v1544
      %v1578 = vld [vmem:[#allocation2] sm:$0xf0]
      %v1579 = vld [vmem:[#allocation2 + $0x8] sm:$0xff]
      %v1580 = vld [vmem:[#allocation2 + $0x10] sm:$0xff]
      %v1581 = vld [vmem:[#allocation2 + $0x18] sm:$0xff]
      %v1582 = vld [vmem:[#allocation2 + $0x20] sm:$0xff]
      %v1583 = vld [vmem:[#allocation2 + $0x28] sm:$0xff]
      %v1584 = vld [vmem:[#allocation2 + $0x30] sm:$0xff]
      %v1585 = vld [vmem:[#allocation2 + $0x38] sm:$0xff]
      %v1586 = vld [vmem:[#allocation2 + $0x40] sm:$0xff]
      %v1587 = vld [vmem:[#allocation2 + $0x48] sm:$0xff]
      %v1588 = vld [vmem:[#allocation2 + $0x50] sm:$0xff]
      %v1589 = vld [vmem:[#allocation2 + $0x58] sm:$0xff]
      %v1590 = vld [vmem:[#allocation2 + $0x60] sm:$0xff]
      %v1591 = vld [vmem:[#allocation2 + $0x68] sm:$0xff]
      %v1592 = vld [vmem:[#allocation2 + $0x70] sm:$0xff]
      %v1593 = vld [vmem:[#allocation2 + $0x78] sm:$0xff]
      %v1594 = vld [vmem:[#allocation2 + $0x80] sm:$0x1f]
      %v1595 = vsel %vm858, 1, 0
      %v1596 = vsel %vm859, 1, 0
      %v1597 = vsel %vm860, 1, 0
      %v1598 = vsel %vm861, 1, 0
      %v1599 = vsel %vm862, 1, 0
      %v1600 = vsel %vm863, 1, 0
      %v1601 = vsel %vm864, 1, 0
      %v1602 = vsel %vm865, 1, 0
      %v1603 = vsel %vm866, 1, 0
      %v1604 = vsel %vm867, 1, 0
      %v1605 = vsel %vm868, 1, 0
      %v1606 = vsel %vm869, 1, 0
      %v1607 = vsel %vm870, 1, 0
      %v1608 = vsel %vm871, 1, 0
      %v1609 = vsel %vm872, 1, 0
      %v1610 = vsel %vm873, 1, 0
      %v1611 = vsel %vm874, 1, 0
      %v1612 = vsel %vm875, 1, 0
      %v1613 = vsel %vm876, 1, 0
      %v1614 = vsel %vm877, 1, 0
      %v1615 = vsel %vm878, 1, 0
      %v1616 = vsel %vm879, 1, 0
      %v1617 = vsel %vm880, 1, 0
      %v1618 = vsel %vm881, 1, 0
      %v1619 = vsel %vm882, 1, 0
      %v1620 = vsel %vm883, 1, 0
      %v1621 = vsel %vm884, 1, 0
      %v1622 = vsel %vm885, 1, 0
      %v1623 = vsel %vm886, 1, 0
      %v1624 = vsel %vm887, 1, 0
      %v1625 = vsel %vm888, 1, 0
      %v1626 = vsel %vm889, 1, 0
      %vm1627 = vcmp.eq.s32.totalorder %v1595, 1
      %vm1628 = vcmp.eq.s32.totalorder %v1596, 1
      %vm1629 = vcmp.eq.s32.totalorder %v1597, 1
      %vm1630 = vcmp.eq.s32.totalorder %v1598, 1
      %vm1631 = vcmp.eq.s32.totalorder %v1599, 1
      %vm1632 = vcmp.eq.s32.totalorder %v1600, 1
      %vm1633 = vcmp.eq.s32.totalorder %v1601, 1
      %vm1634 = vcmp.eq.s32.totalorder %v1602, 1
      %vm1635 = vcmp.eq.s32.totalorder %v1603, 1
      %vm1636 = vcmp.eq.s32.totalorder %v1604, 1
      %vm1637 = vcmp.eq.s32.totalorder %v1605, 1
      %vm1638 = vcmp.eq.s32.totalorder %v1606, 1
      %vm1639 = vcmp.eq.s32.totalorder %v1607, 1
      %vm1640 = vcmp.eq.s32.totalorder %v1608, 1
      %vm1641 = vcmp.eq.s32.totalorder %v1609, 1
      %vm1642 = vcmp.eq.s32.totalorder %v1610, 1
      %vm1643 = vcmp.eq.s32.totalorder %v1611, 1
      %vm1644 = vcmp.eq.s32.totalorder %v1612, 1
      %vm1645 = vcmp.eq.s32.totalorder %v1613, 1
      %vm1646 = vcmp.eq.s32.totalorder %v1614, 1
      %vm1647 = vcmp.eq.s32.totalorder %v1615, 1
      %vm1648 = vcmp.eq.s32.totalorder %v1616, 1
      %vm1649 = vcmp.eq.s32.totalorder %v1617, 1
      %vm1650 = vcmp.eq.s32.totalorder %v1618, 1
      %vm1651 = vcmp.eq.s32.totalorder %v1619, 1
      %vm1652 = vcmp.eq.s32.totalorder %v1620, 1
      %vm1653 = vcmp.eq.s32.totalorder %v1621, 1
      %vm1654 = vcmp.eq.s32.totalorder %v1622, 1
      %vm1655 = vcmp.eq.s32.totalorder %v1623, 1
      %vm1656 = vcmp.eq.s32.totalorder %v1624, 1
      %vm1657 = vcmp.eq.s32.totalorder %v1625, 1
      %vm1658 = vcmp.eq.s32.totalorder %v1626, 1
      %vm1659 = vmpackc.low %vm1627, %vm1627
      %vm1660 = vmpackc.low %vm1628, %vm1628
      %vm1661 = vmpackc.low %vm1629, %vm1629
      %vm1662 = vmpackc.low %vm1630, %vm1630
      %vm1663 = vmpackc.low %vm1631, %vm1631
      %vm1664 = vmpackc.low %vm1632, %vm1632
      %vm1665 = vmpackc.low %vm1633, %vm1633
      %vm1666 = vmpackc.low %vm1634, %vm1634
      %vm1667 = vmpackc.low %vm1635, %vm1635
      %vm1668 = vmpackc.low %vm1636, %vm1636
      %vm1669 = vmpackc.low %vm1637, %vm1637
      %vm1670 = vmpackc.low %vm1638, %vm1638
      %vm1671 = vmpackc.low %vm1639, %vm1639
      %vm1672 = vmpackc.low %vm1640, %vm1640
      %vm1673 = vmpackc.low %vm1641, %vm1641
      %vm1674 = vmpackc.low %vm1642, %vm1642
      %vm1675 = vmpackc.low %vm1643, %vm1643
      %vm1676 = vmpackc.low %vm1644, %vm1644
      %vm1677 = vmpackc.low %vm1645, %vm1645
      %vm1678 = vmpackc.low %vm1646, %vm1646
      %vm1679 = vmpackc.low %vm1647, %vm1647
      %vm1680 = vmpackc.low %vm1648, %vm1648
      %vm1681 = vmpackc.low %vm1649, %vm1649
      %vm1682 = vmpackc.low %vm1650, %vm1650
      %vm1683 = vmpackc.low %vm1651, %vm1651
      %vm1684 = vmpackc.low %vm1652, %vm1652
      %vm1685 = vmpackc.low %vm1653, %vm1653
      %vm1686 = vmpackc.low %vm1654, %vm1654
      %vm1687 = vmpackc.low %vm1655, %vm1655
      %vm1688 = vmpackc.low %vm1656, %vm1656
      %vm1689 = vmpackc.low %vm1657, %vm1657
      %vm1690 = vmpackc.low %vm1658, %vm1658
      %v1691 = vsel %vm1659, 65537, 0
      %v1692 = vsel %vm1660, 65537, 0
      %v1693 = vsel %vm1661, 65537, 0
      %v1694 = vsel %vm1662, 65537, 0
      %v1695 = vsel %vm1663, 65537, 0
      %v1696 = vsel %vm1664, 65537, 0
      %v1697 = vsel %vm1665, 65537, 0
      %v1698 = vsel %vm1666, 65537, 0
      %v1699 = vsel %vm1667, 65537, 0
      %v1700 = vsel %vm1668, 65537, 0
      %v1701 = vsel %vm1669, 65537, 0
      %v1702 = vsel %vm1670, 65537, 0
      %v1703 = vsel %vm1671, 65537, 0
      %v1704 = vsel %vm1672, 65537, 0
      %v1705 = vsel %vm1673, 65537, 0
      %v1706 = vsel %vm1674, 65537, 0
      %v1707 = vsel %vm1675, 65537, 0
      %v1708 = vsel %vm1676, 65537, 0
      %v1709 = vsel %vm1677, 65537, 0
      %v1710 = vsel %vm1678, 65537, 0
      %v1711 = vsel %vm1679, 65537, 0
      %v1712 = vsel %vm1680, 65537, 0
      %v1713 = vsel %vm1681, 65537, 0
      %v1714 = vsel %vm1682, 65537, 0
      %v1715 = vsel %vm1683, 65537, 0
      %v1716 = vsel %vm1684, 65537, 0
      %v1717 = vsel %vm1685, 65537, 0
      %v1718 = vsel %vm1686, 65537, 0
      %v1719 = vsel %vm1687, 65537, 0
      %v1720 = vsel %vm1688, 65537, 0
      %v1721 = vsel %vm1689, 65537, 0
      %v1722 = vsel %vm1690, 65537, 0
      %v1723 = vunpack.c.l.b16 %v1691
      %v1724 = vunpack.c.l.b16 %v1692
      %v1725 = vunpack.c.l.b16 %v1693
      %v1726 = vunpack.c.l.b16 %v1694
      %v1727 = vunpack.c.l.b16 %v1695
      %v1728 = vunpack.c.l.b16 %v1696
      %v1729 = vunpack.c.l.b16 %v1697
      %v1730 = vunpack.c.l.b16 %v1698
      %v1731 = vunpack.c.l.b16 %v1699
      %v1732 = vunpack.c.l.b16 %v1700
      %v1733 = vunpack.c.l.b16 %v1701
      %v1734 = vunpack.c.l.b16 %v1702
      %v1735 = vunpack.c.l.b16 %v1703
      %v1736 = vunpack.c.l.b16 %v1704
      %v1737 = vunpack.c.l.b16 %v1705
      %v1738 = vunpack.c.l.b16 %v1706
      %v1739 = vunpack.c.l.b16 %v1707
      %v1740 = vunpack.c.l.b16 %v1708
      %v1741 = vunpack.c.l.b16 %v1709
      %v1742 = vunpack.c.l.b16 %v1710
      %v1743 = vunpack.c.l.b16 %v1711
      %v1744 = vunpack.c.l.b16 %v1712
      %v1745 = vunpack.c.l.b16 %v1713
      %v1746 = vunpack.c.l.b16 %v1714
      %v1747 = vunpack.c.l.b16 %v1715
      %v1748 = vunpack.c.l.b16 %v1716
      %v1749 = vunpack.c.l.b16 %v1717
      %v1750 = vunpack.c.l.b16 %v1718
      %v1751 = vunpack.c.l.b16 %v1719
      %v1752 = vunpack.c.l.b16 %v1720
      %v1753 = vunpack.c.l.b16 %v1721
      %v1754 = vunpack.c.l.b16 %v1722
      %v1755 = vpack.c.b16 %v1724, %v1723
      %v1756 = vpack.c.b16 %v1726, %v1725
      %v1757 = vpack.c.b16 %v1728, %v1727
      %v1758 = vpack.c.b16 %v1730, %v1729
      %v1759 = vpack.c.b16 %v1732, %v1731
      %v1760 = vpack.c.b16 %v1734, %v1733
      %v1761 = vpack.c.b16 %v1736, %v1735
      %v1762 = vpack.c.b16 %v1738, %v1737
      %v1763 = vpack.c.b16 %v1740, %v1739
      %v1764 = vpack.c.b16 %v1742, %v1741
      %v1765 = vpack.c.b16 %v1744, %v1743
      %v1766 = vpack.c.b16 %v1746, %v1745
      %v1767 = vpack.c.b16 %v1748, %v1747
      %v1768 = vpack.c.b16 %v1750, %v1749
      %v1769 = vpack.c.b16 %v1752, %v1751
      %v1770 = vpack.c.b16 %v1754, %v1753
      %v1772 = vshrl.u32 %v1755, 16
      %v1774 = vrot.slane %v1772, 3
      %v1775 = vshll.u32 %v1755, 16
      %v1777 = vrot.slane %v1775, 4
      %v1778 = vor.u32 %v1774, %v1777
      %v1780 = vshrl.u32 %v1756, 16
      %v1782 = vrot.slane %v1780, 3
      %v1783 = vshll.u32 %v1756, 16
      %v1785 = vrot.slane %v1783, 4
      %v1786 = vor.u32 %v1782, %v1785
      %v1787 = vsel %vm1261, %v1778, %v1786
      %v1789 = vshrl.u32 %v1757, 16
      %v1791 = vrot.slane %v1789, 3
      %v1792 = vshll.u32 %v1757, 16
      %v1794 = vrot.slane %v1792, 4
      %v1795 = vor.u32 %v1791, %v1794
      %v1796 = vsel %vm1261, %v1786, %v1795
      %v1798 = vshrl.u32 %v1758, 16
      %v1800 = vrot.slane %v1798, 3
      %v1801 = vshll.u32 %v1758, 16
      %v1803 = vrot.slane %v1801, 4
      %v1804 = vor.u32 %v1800, %v1803
      %v1805 = vsel %vm1261, %v1795, %v1804
      %v1807 = vshrl.u32 %v1759, 16
      %v1809 = vrot.slane %v1807, 3
      %v1810 = vshll.u32 %v1759, 16
      %v1812 = vrot.slane %v1810, 4
      %v1813 = vor.u32 %v1809, %v1812
      %v1814 = vsel %vm1261, %v1804, %v1813
      %v1816 = vshrl.u32 %v1760, 16
      %v1818 = vrot.slane %v1816, 3
      %v1819 = vshll.u32 %v1760, 16
      %v1821 = vrot.slane %v1819, 4
      %v1822 = vor.u32 %v1818, %v1821
      %v1823 = vsel %vm1261, %v1813, %v1822
      %v1825 = vshrl.u32 %v1761, 16
      %v1827 = vrot.slane %v1825, 3
      %v1828 = vshll.u32 %v1761, 16
      %v1830 = vrot.slane %v1828, 4
      %v1831 = vor.u32 %v1827, %v1830
      %v1832 = vsel %vm1261, %v1822, %v1831
      %v1834 = vshrl.u32 %v1762, 16
      %v1836 = vrot.slane %v1834, 3
      %v1837 = vshll.u32 %v1762, 16
      %v1839 = vrot.slane %v1837, 4
      %v1840 = vor.u32 %v1836, %v1839
      %v1841 = vsel %vm1261, %v1831, %v1840
      %v1843 = vshrl.u32 %v1763, 16
      %v1845 = vrot.slane %v1843, 3
      %v1846 = vshll.u32 %v1763, 16
      %v1848 = vrot.slane %v1846, 4
      %v1849 = vor.u32 %v1845, %v1848
      %v1850 = vsel %vm1261, %v1840, %v1849
      %v1852 = vshrl.u32 %v1764, 16
      %v1854 = vrot.slane %v1852, 3
      %v1855 = vshll.u32 %v1764, 16
      %v1857 = vrot.slane %v1855, 4
      %v1858 = vor.u32 %v1854, %v1857
      %v1859 = vsel %vm1261, %v1849, %v1858
      %v1861 = vshrl.u32 %v1765, 16
      %v1863 = vrot.slane %v1861, 3
      %v1864 = vshll.u32 %v1765, 16
      %v1866 = vrot.slane %v1864, 4
      %v1867 = vor.u32 %v1863, %v1866
      %v1868 = vsel %vm1261, %v1858, %v1867
      %v1870 = vshrl.u32 %v1766, 16
      %v1872 = vrot.slane %v1870, 3
      %v1873 = vshll.u32 %v1766, 16
      %v1875 = vrot.slane %v1873, 4
      %v1876 = vor.u32 %v1872, %v1875
      %v1877 = vsel %vm1261, %v1867, %v1876
      %v1879 = vshrl.u32 %v1767, 16
      %v1881 = vrot.slane %v1879, 3
      %v1882 = vshll.u32 %v1767, 16
      %v1884 = vrot.slane %v1882, 4
      %v1885 = vor.u32 %v1881, %v1884
      %v1886 = vsel %vm1261, %v1876, %v1885
      %v1888 = vshrl.u32 %v1768, 16
      %v1890 = vrot.slane %v1888, 3
      %v1891 = vshll.u32 %v1768, 16
      %v1893 = vrot.slane %v1891, 4
      %v1894 = vor.u32 %v1890, %v1893
      %v1895 = vsel %vm1261, %v1885, %v1894
      %v1897 = vshrl.u32 %v1769, 16
      %v1899 = vrot.slane %v1897, 3
      %v1900 = vshll.u32 %v1769, 16
      %v1902 = vrot.slane %v1900, 4
      %v1903 = vor.u32 %v1899, %v1902
      %v1904 = vsel %vm1261, %v1894, %v1903
      %v1906 = vshrl.u32 %v1770, 16
      %v1908 = vrot.slane %v1906, 3
      %v1909 = vshll.u32 %v1770, 16
      %v1911 = vrot.slane %v1909, 4
      %v1912 = vor.u32 %v1908, %v1911
      %v1913 = vsel %vm1261, %v1903, %v1912
      %vm1914 = vcmp.ne.s16.totalorder %v1778, 0
      %vm1915 = vcmp.ne.s16.totalorder %v1787, 0
      %vm1916 = vcmp.ne.s16.totalorder %v1796, 0
      %vm1917 = vcmp.ne.s16.totalorder %v1805, 0
      %vm1918 = vcmp.ne.s16.totalorder %v1814, 0
      %vm1919 = vcmp.ne.s16.totalorder %v1823, 0
      %vm1920 = vcmp.ne.s16.totalorder %v1832, 0
      %vm1921 = vcmp.ne.s16.totalorder %v1841, 0
      %vm1922 = vcmp.ne.s16.totalorder %v1850, 0
      %vm1923 = vcmp.ne.s16.totalorder %v1859, 0
      %vm1924 = vcmp.ne.s16.totalorder %v1868, 0
      %vm1925 = vcmp.ne.s16.totalorder %v1877, 0
      %vm1926 = vcmp.ne.s16.totalorder %v1886, 0
      %vm1927 = vcmp.ne.s16.totalorder %v1895, 0
      %vm1928 = vcmp.ne.s16.totalorder %v1904, 0
      %vm1929 = vcmp.ne.s16.totalorder %v1913, 0
      %vm1930 = vcmp.ne.s16.totalorder %v1912, 0
      %v1931 = vsel %vm1914, %v1578, 0
      %v1932 = vsel %vm1915, %v1579, 0
      %v1933 = vsel %vm1916, %v1580, 0
      %v1934 = vsel %vm1917, %v1581, 0
      %v1935 = vsel %vm1918, %v1582, 0
      %v1936 = vsel %vm1919, %v1583, 0
      %v1937 = vsel %vm1920, %v1584, 0
      %v1938 = vsel %vm1921, %v1585, 0
      %v1939 = vsel %vm1922, %v1586, 0
      %v1940 = vsel %vm1923, %v1587, 0
      %v1941 = vsel %vm1924, %v1588, 0
      %v1942 = vsel %vm1925, %v1589, 0
      %v1943 = vsel %vm1926, %v1590, 0
      %v1944 = vsel %vm1927, %v1591, 0
      %v1945 = vsel %vm1928, %v1592, 0
      %v1946 = vsel %vm1929, %v1593, 0
      %v1947 = vsel %vm1930, %v1594, 0
      %v1949 = vshrl.u32 %v1931, 16
      %v1951 = vrot.slane %v1949, 4
      %v1952 = vshll.u32 %v1931, 16
      %v1954 = vrot.slane %v1952, 5
      %v1955 = vor.u32 %v1951, %v1954
      %v1957 = vshrl.u32 %v1932, 16
      %v1959 = vrot.slane %v1957, 4
      %v1960 = vshll.u32 %v1932, 16
      %v1962 = vrot.slane %v1960, 5
      %v1963 = vor.u32 %v1959, %v1962
      %v1964 = vsel %vm1083, %v1955, %v1963
      %v1966 = vshrl.u32 %v1933, 16
      %v1968 = vrot.slane %v1966, 4
      %v1969 = vshll.u32 %v1933, 16
      %v1971 = vrot.slane %v1969, 5
      %v1972 = vor.u32 %v1968, %v1971
      %v1973 = vsel %vm1083, %v1963, %v1972
      %v1975 = vshrl.u32 %v1934, 16
      %v1977 = vrot.slane %v1975, 4
      %v1978 = vshll.u32 %v1934, 16
      %v1980 = vrot.slane %v1978, 5
      %v1981 = vor.u32 %v1977, %v1980
      %v1982 = vsel %vm1083, %v1972, %v1981
      %v1984 = vshrl.u32 %v1935, 16
      %v1986 = vrot.slane %v1984, 4
      %v1987 = vshll.u32 %v1935, 16
      %v1989 = vrot.slane %v1987, 5
      %v1990 = vor.u32 %v1986, %v1989
      %v1991 = vsel %vm1083, %v1981, %v1990
      %v1993 = vshrl.u32 %v1936, 16
      %v1995 = vrot.slane %v1993, 4
      %v1996 = vshll.u32 %v1936, 16
      %v1998 = vrot.slane %v1996, 5
      %v1999 = vor.u32 %v1995, %v1998
      %v2000 = vsel %vm1083, %v1990, %v1999
      %v2002 = vshrl.u32 %v1937, 16
      %v2004 = vrot.slane %v2002, 4
      %v2005 = vshll.u32 %v1937, 16
      %v2007 = vrot.slane %v2005, 5
      %v2008 = vor.u32 %v2004, %v2007
      %v2009 = vsel %vm1083, %v1999, %v2008
      %v2011 = vshrl.u32 %v1938, 16
      %v2013 = vrot.slane %v2011, 4
      %v2014 = vshll.u32 %v1938, 16
      %v2016 = vrot.slane %v2014, 5
      %v2017 = vor.u32 %v2013, %v2016
      %v2018 = vsel %vm1083, %v2008, %v2017
      %v2020 = vshrl.u32 %v1939, 16
      %v2022 = vrot.slane %v2020, 4
      %v2023 = vshll.u32 %v1939, 16
      %v2025 = vrot.slane %v2023, 5
      %v2026 = vor.u32 %v2022, %v2025
      %v2027 = vsel %vm1083, %v2017, %v2026
      %v2029 = vshrl.u32 %v1940, 16
      %v2031 = vrot.slane %v2029, 4
      %v2032 = vshll.u32 %v1940, 16
      %v2034 = vrot.slane %v2032, 5
      %v2035 = vor.u32 %v2031, %v2034
      %v2036 = vsel %vm1083, %v2026, %v2035
      %v2038 = vshrl.u32 %v1941, 16
      %v2040 = vrot.slane %v2038, 4
      %v2041 = vshll.u32 %v1941, 16
      %v2043 = vrot.slane %v2041, 5
      %v2044 = vor.u32 %v2040, %v2043
      %v2045 = vsel %vm1083, %v2035, %v2044
      %v2047 = vshrl.u32 %v1942, 16
      %v2049 = vrot.slane %v2047, 4
      %v2050 = vshll.u32 %v1942, 16
      %v2052 = vrot.slane %v2050, 5
      %v2053 = vor.u32 %v2049, %v2052
      %v2054 = vsel %vm1083, %v2044, %v2053
      %v2056 = vshrl.u32 %v1943, 16
      %v2058 = vrot.slane %v2056, 4
      %v2059 = vshll.u32 %v1943, 16
      %v2061 = vrot.slane %v2059, 5
      %v2062 = vor.u32 %v2058, %v2061
      %v2063 = vsel %vm1083, %v2053, %v2062
      %v2065 = vshrl.u32 %v1944, 16
      %v2067 = vrot.slane %v2065, 4
      %v2068 = vshll.u32 %v1944, 16
      %v2070 = vrot.slane %v2068, 5
      %v2071 = vor.u32 %v2067, %v2070
      %v2072 = vsel %vm1083, %v2062, %v2071
      %v2074 = vshrl.u32 %v1945, 16
      %v2076 = vrot.slane %v2074, 4
      %v2077 = vshll.u32 %v1945, 16
      %v2079 = vrot.slane %v2077, 5
      %v2080 = vor.u32 %v2076, %v2079
      %v2081 = vsel %vm1083, %v2071, %v2080
      %v2083 = vshrl.u32 %v1946, 16
      %v2085 = vrot.slane %v2083, 4
      %v2086 = vshll.u32 %v1946, 16
      %v2088 = vrot.slane %v2086, 5
      %v2089 = vor.u32 %v2085, %v2088
      %v2090 = vsel %vm1083, %v2080, %v2089
      %v2092 = vshrl.u32 %v1947, 16
      %v2094 = vrot.slane %v2092, 4
      %v2095 = vshll.u32 %v1947, 16
      %v2097 = vrot.slane %v2095, 5
      %v2098 = vor.u32 %v2094, %v2097
      %v2099 = vsel %vm1083, %v2089, %v2098
      %2100 = vrot.lane.b32.xlu0 %v1964, 8
      %v2101 = vpop.permute.xlu0 %2100
      %2102 = vrot.lane.b32.xlu0 %v1973, 8
      %v2103 = vpop.permute.xlu0 %2102
      %2104 = vrot.lane.b32.xlu0 %v1982, 8
      %v2105 = vpop.permute.xlu0 %2104
      %2106 = vrot.lane.b32.xlu0 %v1991, 8
      %v2107 = vpop.permute.xlu0 %2106
      %2108 = vrot.lane.b32.xlu0 %v2000, 8
      %v2109 = vpop.permute.xlu0 %2108
      %2110 = vrot.lane.b32.xlu0 %v2009, 8
      %v2111 = vpop.permute.xlu0 %2110
      %2112 = vrot.lane.b32.xlu0 %v2018, 8
      %v2113 = vpop.permute.xlu0 %2112
      %2114 = vrot.lane.b32.xlu0 %v2027, 8
      %v2115 = vpop.permute.xlu0 %2114
      %2116 = vrot.lane.b32.xlu0 %v2036, 8
      %v2117 = vpop.permute.xlu0 %2116
      %2118 = vrot.lane.b32.xlu0 %v2045, 8
      %v2119 = vpop.permute.xlu0 %2118
      %2120 = vrot.lane.b32.xlu0 %v2054, 8
      %v2121 = vpop.permute.xlu0 %2120
      %2122 = vrot.lane.b32.xlu0 %v2063, 8
      %v2123 = vpop.permute.xlu0 %2122
      %2124 = vrot.lane.b32.xlu0 %v2072, 8
      %v2125 = vpop.permute.xlu0 %2124
      %2126 = vrot.lane.b32.xlu0 %v2081, 8
      %v2127 = vpop.permute.xlu0 %2126
      %2128 = vrot.lane.b32.xlu0 %v2090, 8
      %v2129 = vpop.permute.xlu0 %2128
      %2130 = vrot.lane.b32.xlu0 %v2099, 8
      %v2131 = vpop.permute.xlu0 %2130
      %vm2148 = vcmask 97344
      %2149 = vst.msk [vmem:[#allocation3] sm:$0xff] %vm2148, %v2101
      %2150 = vst.msk [vmem:[#allocation3 + $0x8] sm:$0xff] %vm2148, %v2103
      %2151 = vst.msk [vmem:[#allocation3 + $0x10] sm:$0xff] %vm2148, %v2105
      %2152 = vst.msk [vmem:[#allocation3 + $0x18] sm:$0xff] %vm2148, %v2107
      %2153 = vst.msk [vmem:[#allocation3 + $0x20] sm:$0xff] %vm2148, %v2109
      %2154 = vst.msk [vmem:[#allocation3 + $0x28] sm:$0xff] %vm2148, %v2111
      %2155 = vst.msk [vmem:[#allocation3 + $0x30] sm:$0xff] %vm2148, %v2113
      %2156 = vst.msk [vmem:[#allocation3 + $0x38] sm:$0xff] %vm2148, %v2115
      %2157 = vst.msk [vmem:[#allocation3 + $0x40] sm:$0xff] %vm2148, %v2117
      %2158 = vst.msk [vmem:[#allocation3 + $0x48] sm:$0xff] %vm2148, %v2119
      %2159 = vst.msk [vmem:[#allocation3 + $0x50] sm:$0xff] %vm2148, %v2121
      %2160 = vst.msk [vmem:[#allocation3 + $0x58] sm:$0xff] %vm2148, %v2123
      %2161 = vst.msk [vmem:[#allocation3 + $0x60] sm:$0xff] %vm2148, %v2125
      %2162 = vst.msk [vmem:[#allocation3 + $0x68] sm:$0xff] %vm2148, %v2127
      %2163 = vst.msk [vmem:[#allocation3 + $0x70] sm:$0xff] %vm2148, %v2129
      %2164 = vst.msk [vmem:[#allocation3 + $0x78] sm:$0xff] %vm2148, %v2131
      %v2165 = vld [vmem:[#allocation2 + $0x8] sm:$0xf8]
      %v2166 = vld [vmem:[#allocation2 + $0x10] sm:$0xff]
      %v2167 = vld [vmem:[#allocation2 + $0x18] sm:$0xff]
      %v2168 = vld [vmem:[#allocation2 + $0x20] sm:$0xff]
      %v2169 = vld [vmem:[#allocation2 + $0x28] sm:$0xff]
      %v2170 = vld [vmem:[#allocation2 + $0x30] sm:$0xff]
      %v2171 = vld [vmem:[#allocation2 + $0x38] sm:$0xff]
      %v2172 = vld [vmem:[#allocation2 + $0x40] sm:$0xff]
      %v2173 = vld [vmem:[#allocation2 + $0x48] sm:$0xff]
      %v2174 = vld [vmem:[#allocation2 + $0x50] sm:$0xff]
      %v2175 = vld [vmem:[#allocation2 + $0x58] sm:$0xff]
      %v2176 = vld [vmem:[#allocation2 + $0x60] sm:$0xff]
      %v2177 = vld [vmem:[#allocation2 + $0x68] sm:$0xff]
      %v2178 = vld [vmem:[#allocation2 + $0x70] sm:$0xff]
      %v2179 = vld [vmem:[#allocation2 + $0x78] sm:$0xff]
      %v2180 = vld [vmem:[#allocation2 + $0x80] sm:$0xff]
      %v2181 = vld [vmem:[#allocation2 + $0x88] sm:$0xf]
      %v2182 = vsel %vm1227, %v2165, 0
      %v2183 = vsel %vm1228, %v2166, 0
      %v2184 = vsel %vm1229, %v2167, 0
      %v2185 = vsel %vm1230, %v2168, 0
      %v2186 = vsel %vm1231, %v2169, 0
      %v2187 = vsel %vm1232, %v2170, 0
      %v2188 = vsel %vm1233, %v2171, 0
      %v2189 = vsel %vm1234, %v2172, 0
      %v2190 = vsel %vm1235, %v2173, 0
      %v2191 = vsel %vm1236, %v2174, 0
      %v2192 = vsel %vm1237, %v2175, 0
      %v2193 = vsel %vm1238, %v2176, 0
      %v2194 = vsel %vm1239, %v2177, 0
      %v2195 = vsel %vm1240, %v2178, 0
      %v2196 = vsel %vm1241, %v2179, 0
      %v2197 = vsel %vm1242, %v2180, 0
      %v2198 = vsel %vm1243, %v2181, 0
      %v2200 = vshrl.u32 %v2182, 16
      %v2202 = vrot.slane %v2200, 3
      %v2203 = vshll.u32 %v2182, 16
      %v2205 = vrot.slane %v2203, 4
      %v2206 = vor.u32 %v2202, %v2205
      %v2208 = vshrl.u32 %v2183, 16
      %v2210 = vrot.slane %v2208, 3
      %v2211 = vshll.u32 %v2183, 16
      %v2213 = vrot.slane %v2211, 4
      %v2214 = vor.u32 %v2210, %v2213
      %v2215 = vsel %vm1261, %v2206, %v2214
      %v2217 = vshrl.u32 %v2184, 16
      %v2219 = vrot.slane %v2217, 3
      %v2220 = vshll.u32 %v2184, 16
      %v2222 = vrot.slane %v2220, 4
      %v2223 = vor.u32 %v2219, %v2222
      %v2224 = vsel %vm1261, %v2214, %v2223
      %v2226 = vshrl.u32 %v2185, 16
      %v2228 = vrot.slane %v2226, 3
      %v2229 = vshll.u32 %v2185, 16
      %v2231 = vrot.slane %v2229, 4
      %v2232 = vor.u32 %v2228, %v2231
      %v2233 = vsel %vm1261, %v2223, %v2232
      %v2235 = vshrl.u32 %v2186, 16
      %v2237 = vrot.slane %v2235, 3
      %v2238 = vshll.u32 %v2186, 16
      %v2240 = vrot.slane %v2238, 4
      %v2241 = vor.u32 %v2237, %v2240
      %v2242 = vsel %vm1261, %v2232, %v2241
      %v2244 = vshrl.u32 %v2187, 16
      %v2246 = vrot.slane %v2244, 3
      %v2247 = vshll.u32 %v2187, 16
      %v2249 = vrot.slane %v2247, 4
      %v2250 = vor.u32 %v2246, %v2249
      %v2251 = vsel %vm1261, %v2241, %v2250
      %v2253 = vshrl.u32 %v2188, 16
      %v2255 = vrot.slane %v2253, 3
      %v2256 = vshll.u32 %v2188, 16
      %v2258 = vrot.slane %v2256, 4
      %v2259 = vor.u32 %v2255, %v2258
      %v2260 = vsel %vm1261, %v2250, %v2259
      %v2262 = vshrl.u32 %v2189, 16
      %v2264 = vrot.slane %v2262, 3
      %v2265 = vshll.u32 %v2189, 16
      %v2267 = vrot.slane %v2265, 4
      %v2268 = vor.u32 %v2264, %v2267
      %v2269 = vsel %vm1261, %v2259, %v2268
      %v2271 = vshrl.u32 %v2190, 16
      %v2273 = vrot.slane %v2271, 3
      %v2274 = vshll.u32 %v2190, 16
      %v2276 = vrot.slane %v2274, 4
      %v2277 = vor.u32 %v2273, %v2276
      %v2278 = vsel %vm1261, %v2268, %v2277
      %v2280 = vshrl.u32 %v2191, 16
      %v2282 = vrot.slane %v2280, 3
      %v2283 = vshll.u32 %v2191, 16
      %v2285 = vrot.slane %v2283, 4
      %v2286 = vor.u32 %v2282, %v2285
      %v2287 = vsel %vm1261, %v2277, %v2286
      %v2289 = vshrl.u32 %v2192, 16
      %v2291 = vrot.slane %v2289, 3
      %v2292 = vshll.u32 %v2192, 16
      %v2294 = vrot.slane %v2292, 4
      %v2295 = vor.u32 %v2291, %v2294
      %v2296 = vsel %vm1261, %v2286, %v2295
      %v2298 = vshrl.u32 %v2193, 16
      %v2300 = vrot.slane %v2298, 3
      %v2301 = vshll.u32 %v2193, 16
      %v2303 = vrot.slane %v2301, 4
      %v2304 = vor.u32 %v2300, %v2303
      %v2305 = vsel %vm1261, %v2295, %v2304
      %v2307 = vshrl.u32 %v2194, 16
      %v2309 = vrot.slane %v2307, 3
      %v2310 = vshll.u32 %v2194, 16
      %v2312 = vrot.slane %v2310, 4
      %v2313 = vor.u32 %v2309, %v2312
      %v2314 = vsel %vm1261, %v2304, %v2313
      %v2316 = vshrl.u32 %v2195, 16
      %v2318 = vrot.slane %v2316, 3
      %v2319 = vshll.u32 %v2195, 16
      %v2321 = vrot.slane %v2319, 4
      %v2322 = vor.u32 %v2318, %v2321
      %v2323 = vsel %vm1261, %v2313, %v2322
      %v2325 = vshrl.u32 %v2196, 16
      %v2327 = vrot.slane %v2325, 3
      %v2328 = vshll.u32 %v2196, 16
      %v2330 = vrot.slane %v2328, 4
      %v2331 = vor.u32 %v2327, %v2330
      %v2332 = vsel %vm1261, %v2322, %v2331
      %v2334 = vshrl.u32 %v2197, 16
      %v2336 = vrot.slane %v2334, 3
      %v2337 = vshll.u32 %v2197, 16
      %v2339 = vrot.slane %v2337, 4
      %v2340 = vor.u32 %v2336, %v2339
      %v2341 = vsel %vm1261, %v2331, %v2340
      %v2343 = vshrl.u32 %v2198, 16
      %v2345 = vrot.slane %v2343, 3
      %v2346 = vshll.u32 %v2198, 16
      %v2348 = vrot.slane %v2346, 4
      %v2349 = vor.u32 %v2345, %v2348
      %v2350 = vsel %vm1261, %v2340, %v2349
      %2351 = vrot.lane.b32.xlu0 %v2215, 12
      %v2352 = vpop.permute.xlu0 %2351
      %2353 = vrot.lane.b32.xlu0 %v2224, 12
      %v2354 = vpop.permute.xlu0 %2353
      %2355 = vrot.lane.b32.xlu0 %v2233, 12
      %v2356 = vpop.permute.xlu0 %2355
      %2357 = vrot.lane.b32.xlu0 %v2242, 12
      %v2358 = vpop.permute.xlu0 %2357
      %2359 = vrot.lane.b32.xlu0 %v2251, 12
      %v2360 = vpop.permute.xlu0 %2359
      %2361 = vrot.lane.b32.xlu0 %v2260, 12
      %v2362 = vpop.permute.xlu0 %2361
      %2363 = vrot.lane.b32.xlu0 %v2269, 12
      %v2364 = vpop.permute.xlu0 %2363
      %2365 = vrot.lane.b32.xlu0 %v2278, 12
      %v2366 = vpop.permute.xlu0 %2365
      %2367 = vrot.lane.b32.xlu0 %v2287, 12
      %v2368 = vpop.permute.xlu0 %2367
      %2369 = vrot.lane.b32.xlu0 %v2296, 12
      %v2370 = vpop.permute.xlu0 %2369
      %2371 = vrot.lane.b32.xlu0 %v2305, 12
      %v2372 = vpop.permute.xlu0 %2371
      %2373 = vrot.lane.b32.xlu0 %v2314, 12
      %v2374 = vpop.permute.xlu0 %2373
      %2375 = vrot.lane.b32.xlu0 %v2323, 12
      %v2376 = vpop.permute.xlu0 %2375
      %2377 = vrot.lane.b32.xlu0 %v2332, 12
      %v2378 = vpop.permute.xlu0 %2377
      %2379 = vrot.lane.b32.xlu0 %v2341, 12
      %v2380 = vpop.permute.xlu0 %2379
      %2381 = vrot.lane.b32.xlu0 %v2350, 12
      %v2382 = vpop.permute.xlu0 %2381
      %vm2399 = vcmask 130144
      %2400 = vst.msk [vmem:[#allocation3] sm:$0xff] %vm2399, %v2352
      %2401 = vst.msk [vmem:[#allocation3 + $0x8] sm:$0xff] %vm2399, %v2354
      %2402 = vst.msk [vmem:[#allocation3 + $0x10] sm:$0xff] %vm2399, %v2356
      %2403 = vst.msk [vmem:[#allocation3 + $0x18] sm:$0xff] %vm2399, %v2358
      %2404 = vst.msk [vmem:[#allocation3 + $0x20] sm:$0xff] %vm2399, %v2360
      %2405 = vst.msk [vmem:[#allocation3 + $0x28] sm:$0xff] %vm2399, %v2362
      %2406 = vst.msk [vmem:[#allocation3 + $0x30] sm:$0xff] %vm2399, %v2364
      %2407 = vst.msk [vmem:[#allocation3 + $0x38] sm:$0xff] %vm2399, %v2366
      %2408 = vst.msk [vmem:[#allocation3 + $0x40] sm:$0xff] %vm2399, %v2368
      %2409 = vst.msk [vmem:[#allocation3 + $0x48] sm:$0xff] %vm2399, %v2370
      %2410 = vst.msk [vmem:[#allocation3 + $0x50] sm:$0xff] %vm2399, %v2372
      %2411 = vst.msk [vmem:[#allocation3 + $0x58] sm:$0xff] %vm2399, %v2374
      %2412 = vst.msk [vmem:[#allocation3 + $0x60] sm:$0xff] %vm2399, %v2376
      %2413 = vst.msk [vmem:[#allocation3 + $0x68] sm:$0xff] %vm2399, %v2378
      %2414 = vst.msk [vmem:[#allocation3 + $0x70] sm:$0xff] %vm2399, %v2380
      %2415 = vst.msk [vmem:[#allocation3 + $0x78] sm:$0xff] %vm2399, %v2382
      %v2416 = vld [vmem:[#allocation2 + $0x8] sm:$0xf0]
      %v2417 = vld [vmem:[#allocation2 + $0x10] sm:$0xff]
      %v2418 = vld [vmem:[#allocation2 + $0x18] sm:$0xff]
      %v2419 = vld [vmem:[#allocation2 + $0x20] sm:$0xff]
      %v2420 = vld [vmem:[#allocation2 + $0x28] sm:$0xff]
      %v2421 = vld [vmem:[#allocation2 + $0x30] sm:$0xff]
      %v2422 = vld [vmem:[#allocation2 + $0x38] sm:$0xff]
      %v2423 = vld [vmem:[#allocation2 + $0x40] sm:$0xff]
      %v2424 = vld [vmem:[#allocation2 + $0x48] sm:$0xff]
      %v2425 = vld [vmem:[#allocation2 + $0x50] sm:$0xff]
      %v2426 = vld [vmem:[#allocation2 + $0x58] sm:$0xff]
      %v2427 = vld [vmem:[#allocation2 + $0x60] sm:$0xff]
      %v2428 = vld [vmem:[#allocation2 + $0x68] sm:$0xff]
      %v2429 = vld [vmem:[#allocation2 + $0x70] sm:$0xff]
      %v2430 = vld [vmem:[#allocation2 + $0x78] sm:$0xff]
      %v2431 = vld [vmem:[#allocation2 + $0x80] sm:$0xff]
      %v2432 = vld [vmem:[#allocation2 + $0x88] sm:$0xf]
      %v2450 = vrot.slane %v2416, 4
      %v2451 = vrot.slane %v2417, 4
      %v2452 = vsel %vm343, %v2450, %v2451
      %v2453 = vrot.slane %v2418, 4
      %v2454 = vsel %vm343, %v2451, %v2453
      %v2455 = vrot.slane %v2419, 4
      %v2456 = vsel %vm343, %v2453, %v2455
      %v2457 = vrot.slane %v2420, 4
      %v2458 = vsel %vm343, %v2455, %v2457
      %v2459 = vrot.slane %v2421, 4
      %v2460 = vsel %vm343, %v2457, %v2459
      %v2461 = vrot.slane %v2422, 4
      %v2462 = vsel %vm343, %v2459, %v2461
      %v2463 = vrot.slane %v2423, 4
      %v2464 = vsel %vm343, %v2461, %v2463
      %v2465 = vrot.slane %v2424, 4
      %v2466 = vsel %vm343, %v2463, %v2465
      %v2467 = vrot.slane %v2425, 4
      %v2468 = vsel %vm343, %v2465, %v2467
      %v2469 = vrot.slane %v2426, 4
      %v2470 = vsel %vm343, %v2467, %v2469
      %v2471 = vrot.slane %v2427, 4
      %v2472 = vsel %vm343, %v2469, %v2471
      %v2473 = vrot.slane %v2428, 4
      %v2474 = vsel %vm343, %v2471, %v2473
      %v2475 = vrot.slane %v2429, 4
      %v2476 = vsel %vm343, %v2473, %v2475
      %v2477 = vrot.slane %v2430, 4
      %v2478 = vsel %vm343, %v2475, %v2477
      %v2479 = vrot.slane %v2431, 4
      %v2480 = vsel %vm343, %v2477, %v2479
      %v2481 = vrot.slane %v2432, 4
      %v2482 = vsel %vm343, %v2479, %v2481
      %2483 = vrot.lane.b32.xlu0 %v2452, 16
      %v2484 = vpop.permute.xlu0 %2483
      %2485 = vrot.lane.b32.xlu0 %v2454, 16
      %v2486 = vpop.permute.xlu0 %2485
      %2487 = vrot.lane.b32.xlu0 %v2456, 16
      %v2488 = vpop.permute.xlu0 %2487
      %2489 = vrot.lane.b32.xlu0 %v2458, 16
      %v2490 = vpop.permute.xlu0 %2489
      %2491 = vrot.lane.b32.xlu0 %v2460, 16
      %v2492 = vpop.permute.xlu0 %2491
      %2493 = vrot.lane.b32.xlu0 %v2462, 16
      %v2494 = vpop.permute.xlu0 %2493
      %2495 = vrot.lane.b32.xlu0 %v2464, 16
      %v2496 = vpop.permute.xlu0 %2495
      %2497 = vrot.lane.b32.xlu0 %v2466, 16
      %v2498 = vpop.permute.xlu0 %2497
      %2499 = vrot.lane.b32.xlu0 %v2468, 16
      %v2500 = vpop.permute.xlu0 %2499
      %2501 = vrot.lane.b32.xlu0 %v2470, 16
      %v2502 = vpop.permute.xlu0 %2501
      %2503 = vrot.lane.b32.xlu0 %v2472, 16
      %v2504 = vpop.permute.xlu0 %2503
      %2505 = vrot.lane.b32.xlu0 %v2474, 16
      %v2506 = vpop.permute.xlu0 %2505
      %2507 = vrot.lane.b32.xlu0 %v2476, 16
      %v2508 = vpop.permute.xlu0 %2507
      %2509 = vrot.lane.b32.xlu0 %v2478, 16
      %v2510 = vpop.permute.xlu0 %2509
      %2511 = vrot.lane.b32.xlu0 %v2480, 16
      %v2512 = vpop.permute.xlu0 %2511
      %2513 = vrot.lane.b32.xlu0 %v2482, 16
      %v2514 = vpop.permute.xlu0 %2513
      %vm2531 = vcmask 162944
      %2532 = vst.msk [vmem:[#allocation3] sm:$0xff] %vm2531, %v2484
      %2533 = vst.msk [vmem:[#allocation3 + $0x8] sm:$0xff] %vm2531, %v2486
      %2534 = vst.msk [vmem:[#allocation3 + $0x10] sm:$0xff] %vm2531, %v2488
      %2535 = vst.msk [vmem:[#allocation3 + $0x18] sm:$0xff] %vm2531, %v2490
      %2536 = vst.msk [vmem:[#allocation3 + $0x20] sm:$0xff] %vm2531, %v2492
      %2537 = vst.msk [vmem:[#allocation3 + $0x28] sm:$0xff] %vm2531, %v2494
      %2538 = vst.msk [vmem:[#allocation3 + $0x30] sm:$0xff] %vm2531, %v2496
      %2539 = vst.msk [vmem:[#allocation3 + $0x38] sm:$0xff] %vm2531, %v2498
      %2540 = vst.msk [vmem:[#allocation3 + $0x40] sm:$0xff] %vm2531, %v2500
      %2541 = vst.msk [vmem:[#allocation3 + $0x48] sm:$0xff] %vm2531, %v2502
      %2542 = vst.msk [vmem:[#allocation3 + $0x50] sm:$0xff] %vm2531, %v2504
      %2543 = vst.msk [vmem:[#allocation3 + $0x58] sm:$0xff] %vm2531, %v2506
      %2544 = vst.msk [vmem:[#allocation3 + $0x60] sm:$0xff] %vm2531, %v2508
      %2545 = vst.msk [vmem:[#allocation3 + $0x68] sm:$0xff] %vm2531, %v2510
      %2546 = vst.msk [vmem:[#allocation3 + $0x70] sm:$0xff] %vm2531, %v2512
      %2547 = vst.msk [vmem:[#allocation3 + $0x78] sm:$0xff] %vm2531, %v2514
      %v2548 = vld [vmem:[#allocation2 + $0x8] sm:$0xf0]
      %v2549 = vld [vmem:[#allocation2 + $0x10] sm:$0xff]
      %v2550 = vld [vmem:[#allocation2 + $0x18] sm:$0xff]
      %v2551 = vld [vmem:[#allocation2 + $0x20] sm:$0xff]
      %v2552 = vld [vmem:[#allocation2 + $0x28] sm:$0xff]
      %v2553 = vld [vmem:[#allocation2 + $0x30] sm:$0xff]
      %v2554 = vld [vmem:[#allocation2 + $0x38] sm:$0xff]
      %v2555 = vld [vmem:[#allocation2 + $0x40] sm:$0xff]
      %v2556 = vld [vmem:[#allocation2 + $0x48] sm:$0xff]
      %v2557 = vld [vmem:[#allocation2 + $0x50] sm:$0xff]
      %v2558 = vld [vmem:[#allocation2 + $0x58] sm:$0xff]
      %v2559 = vld [vmem:[#allocation2 + $0x60] sm:$0xff]
      %v2560 = vld [vmem:[#allocation2 + $0x68] sm:$0xff]
      %v2561 = vld [vmem:[#allocation2 + $0x70] sm:$0xff]
      %v2562 = vld [vmem:[#allocation2 + $0x78] sm:$0xff]
      %v2563 = vld [vmem:[#allocation2 + $0x80] sm:$0xff]
      %v2564 = vld [vmem:[#allocation2 + $0x88] sm:$0x1f]
      %v2565 = vsel %vm1914, %v2548, 0
      %v2566 = vsel %vm1915, %v2549, 0
      %v2567 = vsel %vm1916, %v2550, 0
      %v2568 = vsel %vm1917, %v2551, 0
      %v2569 = vsel %vm1918, %v2552, 0
      %v2570 = vsel %vm1919, %v2553, 0
      %v2571 = vsel %vm1920, %v2554, 0
      %v2572 = vsel %vm1921, %v2555, 0
      %v2573 = vsel %vm1922, %v2556, 0
      %v2574 = vsel %vm1923, %v2557, 0
      %v2575 = vsel %vm1924, %v2558, 0
      %v2576 = vsel %vm1925, %v2559, 0
      %v2577 = vsel %vm1926, %v2560, 0
      %v2578 = vsel %vm1927, %v2561, 0
      %v2579 = vsel %vm1928, %v2562, 0
      %v2580 = vsel %vm1929, %v2563, 0
      %v2581 = vsel %vm1930, %v2564, 0
      %v2583 = vshrl.u32 %v2565, 16
      %v2585 = vrot.slane %v2583, 4
      %v2586 = vshll.u32 %v2565, 16
      %v2588 = vrot.slane %v2586, 5
      %v2589 = vor.u32 %v2585, %v2588
      %v2591 = vshrl.u32 %v2566, 16
      %v2593 = vrot.slane %v2591, 4
      %v2594 = vshll.u32 %v2566, 16
      %v2596 = vrot.slane %v2594, 5
      %v2597 = vor.u32 %v2593, %v2596
      %v2598 = vsel %vm1083, %v2589, %v2597
      %v2600 = vshrl.u32 %v2567, 16
      %v2602 = vrot.slane %v2600, 4
      %v2603 = vshll.u32 %v2567, 16
      %v2605 = vrot.slane %v2603, 5
      %v2606 = vor.u32 %v2602, %v2605
      %v2607 = vsel %vm1083, %v2597, %v2606
      %v2609 = vshrl.u32 %v2568, 16
      %v2611 = vrot.slane %v2609, 4
      %v2612 = vshll.u32 %v2568, 16
      %v2614 = vrot.slane %v2612, 5
      %v2615 = vor.u32 %v2611, %v2614
      %v2616 = vsel %vm1083, %v2606, %v2615
      %v2618 = vshrl.u32 %v2569, 16
      %v2620 = vrot.slane %v2618, 4
      %v2621 = vshll.u32 %v2569, 16
      %v2623 = vrot.slane %v2621, 5
      %v2624 = vor.u32 %v2620, %v2623
      %v2625 = vsel %vm1083, %v2615, %v2624
      %v2627 = vshrl.u32 %v2570, 16
      %v2629 = vrot.slane %v2627, 4
      %v2630 = vshll.u32 %v2570, 16
      %v2632 = vrot.slane %v2630, 5
      %v2633 = vor.u32 %v2629, %v2632
      %v2634 = vsel %vm1083, %v2624, %v2633
      %v2636 = vshrl.u32 %v2571, 16
      %v2638 = vrot.slane %v2636, 4
      %v2639 = vshll.u32 %v2571, 16
      %v2641 = vrot.slane %v2639, 5
      %v2642 = vor.u32 %v2638, %v2641
      %v2643 = vsel %vm1083, %v2633, %v2642
      %v2645 = vshrl.u32 %v2572, 16
      %v2647 = vrot.slane %v2645, 4
      %v2648 = vshll.u32 %v2572, 16
      %v2650 = vrot.slane %v2648, 5
      %v2651 = vor.u32 %v2647, %v2650
      %v2652 = vsel %vm1083, %v2642, %v2651
      %v2654 = vshrl.u32 %v2573, 16
      %v2656 = vrot.slane %v2654, 4
      %v2657 = vshll.u32 %v2573, 16
      %v2659 = vrot.slane %v2657, 5
      %v2660 = vor.u32 %v2656, %v2659
      %v2661 = vsel %vm1083, %v2651, %v2660
      %v2663 = vshrl.u32 %v2574, 16
      %v2665 = vrot.slane %v2663, 4
      %v2666 = vshll.u32 %v2574, 16
      %v2668 = vrot.slane %v2666, 5
      %v2669 = vor.u32 %v2665, %v2668
      %v2670 = vsel %vm1083, %v2660, %v2669
      %v2672 = vshrl.u32 %v2575, 16
      %v2674 = vrot.slane %v2672, 4
      %v2675 = vshll.u32 %v2575, 16
      %v2677 = vrot.slane %v2675, 5
      %v2678 = vor.u32 %v2674, %v2677
      %v2679 = vsel %vm1083, %v2669, %v2678
      %v2681 = vshrl.u32 %v2576, 16
      %v2683 = vrot.slane %v2681, 4
      %v2684 = vshll.u32 %v2576, 16
      %v2686 = vrot.slane %v2684, 5
      %v2687 = vor.u32 %v2683, %v2686
      %v2688 = vsel %vm1083, %v2678, %v2687
      %v2690 = vshrl.u32 %v2577, 16
      %v2692 = vrot.slane %v2690, 4
      %v2693 = vshll.u32 %v2577, 16
      %v2695 = vrot.slane %v2693, 5
      %v2696 = vor.u32 %v2692, %v2695
      %v2697 = vsel %vm1083, %v2687, %v2696
      %v2699 = vshrl.u32 %v2578, 16
      %v2701 = vrot.slane %v2699, 4
      %v2702 = vshll.u32 %v2578, 16
      %v2704 = vrot.slane %v2702, 5
      %v2705 = vor.u32 %v2701, %v2704
      %v2706 = vsel %vm1083, %v2696, %v2705
      %v2708 = vshrl.u32 %v2579, 16
      %v2710 = vrot.slane %v2708, 4
      %v2711 = vshll.u32 %v2579, 16
      %v2713 = vrot.slane %v2711, 5
      %v2714 = vor.u32 %v2710, %v2713
      %v2715 = vsel %vm1083, %v2705, %v2714
      %v2717 = vshrl.u32 %v2580, 16
      %v2719 = vrot.slane %v2717, 4
      %v2720 = vshll.u32 %v2580, 16
      %v2722 = vrot.slane %v2720, 5
      %v2723 = vor.u32 %v2719, %v2722
      %v2724 = vsel %vm1083, %v2714, %v2723
      %v2726 = vshrl.u32 %v2581, 16
      %v2728 = vrot.slane %v2726, 4
      %v2729 = vshll.u32 %v2581, 16
      %v2731 = vrot.slane %v2729, 5
      %v2732 = vor.u32 %v2728, %v2731
      %v2733 = vsel %vm1083, %v2723, %v2732
      %2734 = vrot.lane.b32.xlu0 %v2598, 20
      %v2735 = vpop.permute.xlu0 %2734
      %2736 = vrot.lane.b32.xlu0 %v2607, 20
      %v2737 = vpop.permute.xlu0 %2736
      %2738 = vrot.lane.b32.xlu0 %v2616, 20
      %v2739 = vpop.permute.xlu0 %2738
      %2740 = vrot.lane.b32.xlu0 %v2625, 20
      %v2741 = vpop.permute.xlu0 %2740
      %2742 = vrot.lane.b32.xlu0 %v2634, 20
      %v2743 = vpop.permute.xlu0 %2742
      %2744 = vrot.lane.b32.xlu0 %v2643, 20
      %v2745 = vpop.permute.xlu0 %2744
      %2746 = vrot.lane.b32.xlu0 %v2652, 20
      %v2747 = vpop.permute.xlu0 %2746
      %2748 = vrot.lane.b32.xlu0 %v2661, 20
      %v2749 = vpop.permute.xlu0 %2748
      %2750 = vrot.lane.b32.xlu0 %v2670, 20
      %v2751 = vpop.permute.xlu0 %2750
      %2752 = vrot.lane.b32.xlu0 %v2679, 20
      %v2753 = vpop.permute.xlu0 %2752
      %2754 = vrot.lane.b32.xlu0 %v2688, 20
      %v2755 = vpop.permute.xlu0 %2754
      %2756 = vrot.lane.b32.xlu0 %v2697, 20
      %v2757 = vpop.permute.xlu0 %2756
      %2758 = vrot.lane.b32.xlu0 %v2706, 20
      %v2759 = vpop.permute.xlu0 %2758
      %2760 = vrot.lane.b32.xlu0 %v2715, 20
      %v2761 = vpop.permute.xlu0 %2760
      %2762 = vrot.lane.b32.xlu0 %v2724, 20
      %v2763 = vpop.permute.xlu0 %2762
      %2764 = vrot.lane.b32.xlu0 %v2733, 20
      %v2765 = vpop.permute.xlu0 %2764
      %vm2782 = vcmask 195744
      %2783 = vst.msk [vmem:[#allocation3] sm:$0xff] %vm2782, %v2735
      %2784 = vst.msk [vmem:[#allocation3 + $0x8] sm:$0xff] %vm2782, %v2737
      %2785 = vst.msk [vmem:[#allocation3 + $0x10] sm:$0xff] %vm2782, %v2739
      %2786 = vst.msk [vmem:[#allocation3 + $0x18] sm:$0xff] %vm2782, %v2741
      %2787 = vst.msk [vmem:[#allocation3 + $0x20] sm:$0xff] %vm2782, %v2743
      %2788 = vst.msk [vmem:[#allocation3 + $0x28] sm:$0xff] %vm2782, %v2745
      %2789 = vst.msk [vmem:[#allocation3 + $0x30] sm:$0xff] %vm2782, %v2747
      %2790 = vst.msk [vmem:[#allocation3 + $0x38] sm:$0xff] %vm2782, %v2749
      %2791 = vst.msk [vmem:[#allocation3 + $0x40] sm:$0xff] %vm2782, %v2751
      %2792 = vst.msk [vmem:[#allocation3 + $0x48] sm:$0xff] %vm2782, %v2753
      %2793 = vst.msk [vmem:[#allocation3 + $0x50] sm:$0xff] %vm2782, %v2755
      %2794 = vst.msk [vmem:[#allocation3 + $0x58] sm:$0xff] %vm2782, %v2757
      %2795 = vst.msk [vmem:[#allocation3 + $0x60] sm:$0xff] %vm2782, %v2759
      %2796 = vst.msk [vmem:[#allocation3 + $0x68] sm:$0xff] %vm2782, %v2761
      %2797 = vst.msk [vmem:[#allocation3 + $0x70] sm:$0xff] %vm2782, %v2763
      %2798 = vst.msk [vmem:[#allocation3 + $0x78] sm:$0xff] %vm2782, %v2765
      %v2799 = vld [vmem:[#allocation2 + $0x10] sm:$0xf8]
      %v2800 = vld [vmem:[#allocation2 + $0x18] sm:$0xff]
      %v2801 = vld [vmem:[#allocation2 + $0x20] sm:$0xff]
      %v2802 = vld [vmem:[#allocation2 + $0x28] sm:$0xff]
      %v2803 = vld [vmem:[#allocation2 + $0x30] sm:$0xff]
      %v2804 = vld [vmem:[#allocation2 + $0x38] sm:$0xff]
      %v2805 = vld [vmem:[#allocation2 + $0x40] sm:$0xff]
      %v2806 = vld [vmem:[#allocation2 + $0x48] sm:$0xff]
      %v2807 = vld [vmem:[#allocation2 + $0x50] sm:$0xff]
      %v2808 = vld [vmem:[#allocation2 + $0x58] sm:$0xff]
      %v2809 = vld [vmem:[#allocation2 + $0x60] sm:$0xff]
      %v2810 = vld [vmem:[#allocation2 + $0x68] sm:$0xff]
      %v2811 = vld [vmem:[#allocation2 + $0x70] sm:$0xff]
      %v2812 = vld [vmem:[#allocation2 + $0x78] sm:$0xff]
      %v2813 = vld [vmem:[#allocation2 + $0x80] sm:$0xff]
      %v2814 = vld [vmem:[#allocation2 + $0x88] sm:$0xff]
      %v2815 = vld [vmem:[#allocation2 + $0x90] sm:$0xf]
      %v2816 = vsel %vm1227, %v2799, 0
      %v2817 = vsel %vm1228, %v2800, 0
      %v2818 = vsel %vm1229, %v2801, 0
      %v2819 = vsel %vm1230, %v2802, 0
      %v2820 = vsel %vm1231, %v2803, 0
      %v2821 = vsel %vm1232, %v2804, 0
      %v2822 = vsel %vm1233, %v2805, 0
      %v2823 = vsel %vm1234, %v2806, 0
      %v2824 = vsel %vm1235, %v2807, 0
      %v2825 = vsel %vm1236, %v2808, 0
      %v2826 = vsel %vm1237, %v2809, 0
      %v2827 = vsel %vm1238, %v2810, 0
      %v2828 = vsel %vm1239, %v2811, 0
      %v2829 = vsel %vm1240, %v2812, 0
      %v2830 = vsel %vm1241, %v2813, 0
      %v2831 = vsel %vm1242, %v2814, 0
      %v2832 = vsel %vm1243, %v2815, 0
      %v2834 = vshrl.u32 %v2816, 16
      %v2836 = vrot.slane %v2834, 3
      %v2837 = vshll.u32 %v2816, 16
      %v2839 = vrot.slane %v2837, 4
      %v2840 = vor.u32 %v2836, %v2839
      %v2842 = vshrl.u32 %v2817, 16
      %v2844 = vrot.slane %v2842, 3
      %v2845 = vshll.u32 %v2817, 16
      %v2847 = vrot.slane %v2845, 4
      %v2848 = vor.u32 %v2844, %v2847
      %v2849 = vsel %vm1261, %v2840, %v2848
      %v2851 = vshrl.u32 %v2818, 16
      %v2853 = vrot.slane %v2851, 3
      %v2854 = vshll.u32 %v2818, 16
      %v2856 = vrot.slane %v2854, 4
      %v2857 = vor.u32 %v2853, %v2856
      %v2858 = vsel %vm1261, %v2848, %v2857
      %v2860 = vshrl.u32 %v2819, 16
      %v2862 = vrot.slane %v2860, 3
      %v2863 = vshll.u32 %v2819, 16
      %v2865 = vrot.slane %v2863, 4
      %v2866 = vor.u32 %v2862, %v2865
      %v2867 = vsel %vm1261, %v2857, %v2866
      %v2869 = vshrl.u32 %v2820, 16
      %v2871 = vrot.slane %v2869, 3
      %v2872 = vshll.u32 %v2820, 16
      %v2874 = vrot.slane %v2872, 4
      %v2875 = vor.u32 %v2871, %v2874
      %v2876 = vsel %vm1261, %v2866, %v2875
      %v2878 = vshrl.u32 %v2821, 16
      %v2880 = vrot.slane %v2878, 3
      %v2881 = vshll.u32 %v2821, 16
      %v2883 = vrot.slane %v2881, 4
      %v2884 = vor.u32 %v2880, %v2883
      %v2885 = vsel %vm1261, %v2875, %v2884
      %v2887 = vshrl.u32 %v2822, 16
      %v2889 = vrot.slane %v2887, 3
      %v2890 = vshll.u32 %v2822, 16
      %v2892 = vrot.slane %v2890, 4
      %v2893 = vor.u32 %v2889, %v2892
      %v2894 = vsel %vm1261, %v2884, %v2893
      %v2896 = vshrl.u32 %v2823, 16
      %v2898 = vrot.slane %v2896, 3
      %v2899 = vshll.u32 %v2823, 16
      %v2901 = vrot.slane %v2899, 4
      %v2902 = vor.u32 %v2898, %v2901
      %v2903 = vsel %vm1261, %v2893, %v2902
      %v2905 = vshrl.u32 %v2824, 16
      %v2907 = vrot.slane %v2905, 3
      %v2908 = vshll.u32 %v2824, 16
      %v2910 = vrot.slane %v2908, 4
      %v2911 = vor.u32 %v2907, %v2910
      %v2912 = vsel %vm1261, %v2902, %v2911
      %v2914 = vshrl.u32 %v2825, 16
      %v2916 = vrot.slane %v2914, 3
      %v2917 = vshll.u32 %v2825, 16
      %v2919 = vrot.slane %v2917, 4
      %v2920 = vor.u32 %v2916, %v2919
      %v2921 = vsel %vm1261, %v2911, %v2920
      %v2923 = vshrl.u32 %v2826, 16
      %v2925 = vrot.slane %v2923, 3
      %v2926 = vshll.u32 %v2826, 16
      %v2928 = vrot.slane %v2926, 4
      %v2929 = vor.u32 %v2925, %v2928
      %v2930 = vsel %vm1261, %v2920, %v2929
      %v2932 = vshrl.u32 %v2827, 16
      %v2934 = vrot.slane %v2932, 3
      %v2935 = vshll.u32 %v2827, 16
      %v2937 = vrot.slane %v2935, 4
      %v2938 = vor.u32 %v2934, %v2937
      %v2939 = vsel %vm1261, %v2929, %v2938
      %v2941 = vshrl.u32 %v2828, 16
      %v2943 = vrot.slane %v2941, 3
      %v2944 = vshll.u32 %v2828, 16
      %v2946 = vrot.slane %v2944, 4
      %v2947 = vor.u32 %v2943, %v2946
      %v2948 = vsel %vm1261, %v2938, %v2947
      %v2950 = vshrl.u32 %v2829, 16
      %v2952 = vrot.slane %v2950, 3
      %v2953 = vshll.u32 %v2829, 16
      %v2955 = vrot.slane %v2953, 4
      %v2956 = vor.u32 %v2952, %v2955
      %v2957 = vsel %vm1261, %v2947, %v2956
      %v2959 = vshrl.u32 %v2830, 16
      %v2961 = vrot.slane %v2959, 3
      %v2962 = vshll.u32 %v2830, 16
      %v2964 = vrot.slane %v2962, 4
      %v2965 = vor.u32 %v2961, %v2964
      %v2966 = vsel %vm1261, %v2956, %v2965
      %v2968 = vshrl.u32 %v2831, 16
      %v2970 = vrot.slane %v2968, 3
      %v2971 = vshll.u32 %v2831, 16
      %v2973 = vrot.slane %v2971, 4
      %v2974 = vor.u32 %v2970, %v2973
      %v2975 = vsel %vm1261, %v2965, %v2974
      %v2977 = vshrl.u32 %v2832, 16
      %v2979 = vrot.slane %v2977, 3
      %v2980 = vshll.u32 %v2832, 16
      %v2982 = vrot.slane %v2980, 4
      %v2983 = vor.u32 %v2979, %v2982
      %v2984 = vsel %vm1261, %v2974, %v2983
      %2985 = vrot.lane.b32.xlu0 %v2849, 24
      %v2986 = vpop.permute.xlu0 %2985
      %2987 = vrot.lane.b32.xlu0 %v2858, 24
      %v2988 = vpop.permute.xlu0 %2987
      %2989 = vrot.lane.b32.xlu0 %v2867, 24
      %v2990 = vpop.permute.xlu0 %2989
      %2991 = vrot.lane.b32.xlu0 %v2876, 24
      %v2992 = vpop.permute.xlu0 %2991
      %2993 = vrot.lane.b32.xlu0 %v2885, 24
      %v2994 = vpop.permute.xlu0 %2993
      %2995 = vrot.lane.b32.xlu0 %v2894, 24
      %v2996 = vpop.permute.xlu0 %2995
      %2997 = vrot.lane.b32.xlu0 %v2903, 24
      %v2998 = vpop.permute.xlu0 %2997
      %2999 = vrot.lane.b32.xlu0 %v2912, 24
      %v3000 = vpop.permute.xlu0 %2999
      %3001 = vrot.lane.b32.xlu0 %v2921, 24
      %v3002 = vpop.permute.xlu0 %3001
      %3003 = vrot.lane.b32.xlu0 %v2930, 24
      %v3004 = vpop.permute.xlu0 %3003
      %3005 = vrot.lane.b32.xlu0 %v2939, 24
      %v3006 = vpop.permute.xlu0 %3005
      %3007 = vrot.lane.b32.xlu0 %v2948, 24
      %v3008 = vpop.permute.xlu0 %3007
      %3009 = vrot.lane.b32.xlu0 %v2957, 24
      %v3010 = vpop.permute.xlu0 %3009
      %3011 = vrot.lane.b32.xlu0 %v2966, 24
      %v3012 = vpop.permute.xlu0 %3011
      %3013 = vrot.lane.b32.xlu0 %v2975, 24
      %v3014 = vpop.permute.xlu0 %3013
      %3015 = vrot.lane.b32.xlu0 %v2984, 24
      %v3016 = vpop.permute.xlu0 %3015
      %vm3033 = vcmask 228544
      %3034 = vst.msk [vmem:[#allocation3] sm:$0xff] %vm3033, %v2986
      %3035 = vst.msk [vmem:[#allocation3 + $0x8] sm:$0xff] %vm3033, %v2988
      %3036 = vst.msk [vmem:[#allocation3 + $0x10] sm:$0xff] %vm3033, %v2990
      %3037 = vst.msk [vmem:[#allocation3 + $0x18] sm:$0xff] %vm3033, %v2992
      %3038 = vst.msk [vmem:[#allocation3 + $0x20] sm:$0xff] %vm3033, %v2994
      %3039 = vst.msk [vmem:[#allocation3 + $0x28] sm:$0xff] %vm3033, %v2996
      %3040 = vst.msk [vmem:[#allocation3 + $0x30] sm:$0xff] %vm3033, %v2998
      %3041 = vst.msk [vmem:[#allocation3 + $0x38] sm:$0xff] %vm3033, %v3000
      %3042 = vst.msk [vmem:[#allocation3 + $0x40] sm:$0xff] %vm3033, %v3002
      %3043 = vst.msk [vmem:[#allocation3 + $0x48] sm:$0xff] %vm3033, %v3004
      %3044 = vst.msk [vmem:[#allocation3 + $0x50] sm:$0xff] %vm3033, %v3006
      %3045 = vst.msk [vmem:[#allocation3 + $0x58] sm:$0xff] %vm3033, %v3008
      %3046 = vst.msk [vmem:[#allocation3 + $0x60] sm:$0xff] %vm3033, %v3010
      %3047 = vst.msk [vmem:[#allocation3 + $0x68] sm:$0xff] %vm3033, %v3012
      %3048 = vst.msk [vmem:[#allocation3 + $0x70] sm:$0xff] %vm3033, %v3014
      %3049 = vst.msk [vmem:[#allocation3 + $0x78] sm:$0xff] %vm3033, %v3016
      %v3050 = vld [vmem:[#allocation2 + $0x10] sm:$0xf0]
      %v3051 = vld [vmem:[#allocation2 + $0x18] sm:$0xff]
      %v3052 = vld [vmem:[#allocation2 + $0x20] sm:$0xff]
      %v3053 = vld [vmem:[#allocation2 + $0x28] sm:$0xff]
      %v3054 = vld [vmem:[#allocation2 + $0x30] sm:$0xff]
      %v3055 = vld [vmem:[#allocation2 + $0x38] sm:$0xff]
      %v3056 = vld [vmem:[#allocation2 + $0x40] sm:$0xff]
      %v3057 = vld [vmem:[#allocation2 + $0x48] sm:$0xff]
      %v3058 = vld [vmem:[#allocation2 + $0x50] sm:$0xff]
      %v3059 = vld [vmem:[#allocation2 + $0x58] sm:$0xff]
      %v3060 = vld [vmem:[#allocation2 + $0x60] sm:$0xff]
      %v3061 = vld [vmem:[#allocation2 + $0x68] sm:$0xff]
      %v3062 = vld [vmem:[#allocation2 + $0x70] sm:$0xff]
      %v3063 = vld [vmem:[#allocation2 + $0x78] sm:$0xff]
      %v3064 = vld [vmem:[#allocation2 + $0x80] sm:$0xff]
      %v3065 = vld [vmem:[#allocation2 + $0x88] sm:$0xff]
      %v3066 = vld [vmem:[#allocation2 + $0x90] sm:$0xf]
      %v3084 = vrot.slane %v3050, 4
      %v3085 = vrot.slane %v3051, 4
      %v3086 = vsel %vm343, %v3084, %v3085
      %v3087 = vrot.slane %v3052, 4
      %v3088 = vsel %vm343, %v3085, %v3087
      %v3089 = vrot.slane %v3053, 4
      %v3090 = vsel %vm343, %v3087, %v3089
      %v3091 = vrot.slane %v3054, 4
      %v3092 = vsel %vm343, %v3089, %v3091
      %v3093 = vrot.slane %v3055, 4
      %v3094 = vsel %vm343, %v3091, %v3093
      %v3095 = vrot.slane %v3056, 4
      %v3096 = vsel %vm343, %v3093, %v3095
      %v3097 = vrot.slane %v3057, 4
      %v3098 = vsel %vm343, %v3095, %v3097
      %v3099 = vrot.slane %v3058, 4
      %v3100 = vsel %vm343, %v3097, %v3099
      %v3101 = vrot.slane %v3059, 4
      %v3102 = vsel %vm343, %v3099, %v3101
      %v3103 = vrot.slane %v3060, 4
      %v3104 = vsel %vm343, %v3101, %v3103
      %v3105 = vrot.slane %v3061, 4
      %v3106 = vsel %vm343, %v3103, %v3105
      %v3107 = vrot.slane %v3062, 4
      %v3108 = vsel %vm343, %v3105, %v3107
      %v3109 = vrot.slane %v3063, 4
      %v3110 = vsel %vm343, %v3107, %v3109
      %v3111 = vrot.slane %v3064, 4
      %v3112 = vsel %vm343, %v3109, %v3111
      %v3113 = vrot.slane %v3065, 4
      %v3114 = vsel %vm343, %v3111, %v3113
      %v3115 = vrot.slane %v3066, 4
      %v3116 = vsel %vm343, %v3113, %v3115
      %3117 = vrot.lane.b32.xlu0 %v3086, 28
      %v3118 = vpop.permute.xlu0 %3117
      %3119 = vrot.lane.b32.xlu0 %v3088, 28
      %v3120 = vpop.permute.xlu0 %3119
      %3121 = vrot.lane.b32.xlu0 %v3090, 28
      %v3122 = vpop.permute.xlu0 %3121
      %3123 = vrot.lane.b32.xlu0 %v3092, 28
      %v3124 = vpop.permute.xlu0 %3123
      %3125 = vrot.lane.b32.xlu0 %v3094, 28
      %v3126 = vpop.permute.xlu0 %3125
      %3127 = vrot.lane.b32.xlu0 %v3096, 28
      %v3128 = vpop.permute.xlu0 %3127
      %3129 = vrot.lane.b32.xlu0 %v3098, 28
      %v3130 = vpop.permute.xlu0 %3129
      %3131 = vrot.lane.b32.xlu0 %v3100, 28
      %v3132 = vpop.permute.xlu0 %3131
      %3133 = vrot.lane.b32.xlu0 %v3102, 28
      %v3134 = vpop.permute.xlu0 %3133
      %3135 = vrot.lane.b32.xlu0 %v3104, 28
      %v3136 = vpop.permute.xlu0 %3135
      %3137 = vrot.lane.b32.xlu0 %v3106, 28
      %v3138 = vpop.permute.xlu0 %3137
      %3139 = vrot.lane.b32.xlu0 %v3108, 28
      %v3140 = vpop.permute.xlu0 %3139
      %3141 = vrot.lane.b32.xlu0 %v3110, 28
      %v3142 = vpop.permute.xlu0 %3141
      %3143 = vrot.lane.b32.xlu0 %v3112, 28
      %v3144 = vpop.permute.xlu0 %3143
      %3145 = vrot.lane.b32.xlu0 %v3114, 28
      %v3146 = vpop.permute.xlu0 %3145
      %3147 = vrot.lane.b32.xlu0 %v3116, 28
      %v3148 = vpop.permute.xlu0 %3147
      %vm3165 = vcmask 261344
      %3166 = vst.msk [vmem:[#allocation3] sm:$0xff] %vm3165, %v3118
      %3167 = vst.msk [vmem:[#allocation3 + $0x8] sm:$0xff] %vm3165, %v3120
      %3168 = vst.msk [vmem:[#allocation3 + $0x10] sm:$0xff] %vm3165, %v3122
      %3169 = vst.msk [vmem:[#allocation3 + $0x18] sm:$0xff] %vm3165, %v3124
      %3170 = vst.msk [vmem:[#allocation3 + $0x20] sm:$0xff] %vm3165, %v3126
      %3171 = vst.msk [vmem:[#allocation3 + $0x28] sm:$0xff] %vm3165, %v3128
      %3172 = vst.msk [vmem:[#allocation3 + $0x30] sm:$0xff] %vm3165, %v3130
      %3173 = vst.msk [vmem:[#allocation3 + $0x38] sm:$0xff] %vm3165, %v3132
      %3174 = vst.msk [vmem:[#allocation3 + $0x40] sm:$0xff] %vm3165, %v3134
      %3175 = vst.msk [vmem:[#allocation3 + $0x48] sm:$0xff] %vm3165, %v3136
      %3176 = vst.msk [vmem:[#allocation3 + $0x50] sm:$0xff] %vm3165, %v3138
      %3177 = vst.msk [vmem:[#allocation3 + $0x58] sm:$0xff] %vm3165, %v3140
      %3178 = vst.msk [vmem:[#allocation3 + $0x60] sm:$0xff] %vm3165, %v3142
      %3179 = vst.msk [vmem:[#allocation3 + $0x68] sm:$0xff] %vm3165, %v3144
      %3180 = vst.msk [vmem:[#allocation3 + $0x70] sm:$0xff] %vm3165, %v3146
      %3181 = vst.msk [vmem:[#allocation3 + $0x78] sm:$0xff] %vm3165, %v3148
      %v3182 = vld [vmem:[#allocation2 + $0x10] sm:$0xf0]
      %v3183 = vld [vmem:[#allocation2 + $0x18] sm:$0xff]
      %v3184 = vld [vmem:[#allocation2 + $0x20] sm:$0xff]
      %v3185 = vld [vmem:[#allocation2 + $0x28] sm:$0xff]
      %v3186 = vld [vmem:[#allocation2 + $0x30] sm:$0xff]
      %v3187 = vld [vmem:[#allocation2 + $0x38] sm:$0xff]
      %v3188 = vld [vmem:[#allocation2 + $0x40] sm:$0xff]
      %v3189 = vld [vmem:[#allocation2 + $0x48] sm:$0xff]
      %v3190 = vld [vmem:[#allocation2 + $0x50] sm:$0xff]
      %v3191 = vld [vmem:[#allocation2 + $0x58] sm:$0xff]
      %v3192 = vld [vmem:[#allocation2 + $0x60] sm:$0xff]
      %v3193 = vld [vmem:[#allocation2 + $0x68] sm:$0xff]
      %v3194 = vld [vmem:[#allocation2 + $0x70] sm:$0xff]
      %v3195 = vld [vmem:[#allocation2 + $0x78] sm:$0xff]
      %v3196 = vld [vmem:[#allocation2 + $0x80] sm:$0xff]
      %v3197 = vld [vmem:[#allocation2 + $0x88] sm:$0xff]
      %v3198 = vld [vmem:[#allocation2 + $0x90] sm:$0x1f]
      %v3199 = vsel %vm1914, %v3182, 0
      %v3200 = vsel %vm1915, %v3183, 0
      %v3201 = vsel %vm1916, %v3184, 0
      %v3202 = vsel %vm1917, %v3185, 0
      %v3203 = vsel %vm1918, %v3186, 0
      %v3204 = vsel %vm1919, %v3187, 0
      %v3205 = vsel %vm1920, %v3188, 0
      %v3206 = vsel %vm1921, %v3189, 0
      %v3207 = vsel %vm1922, %v3190, 0
      %v3208 = vsel %vm1923, %v3191, 0
      %v3209 = vsel %vm1924, %v3192, 0
      %v3210 = vsel %vm1925, %v3193, 0
      %v3211 = vsel %vm1926, %v3194, 0
      %v3212 = vsel %vm1927, %v3195, 0
      %v3213 = vsel %vm1928, %v3196, 0
      %v3214 = vsel %vm1929, %v3197, 0
      %v3215 = vsel %vm1930, %v3198, 0
      %v3217 = vshrl.u32 %v3199, 16
      %v3219 = vrot.slane %v3217, 4
      %v3220 = vshll.u32 %v3199, 16
      %v3222 = vrot.slane %v3220, 5
      %v3223 = vor.u32 %v3219, %v3222
      %v3225 = vshrl.u32 %v3200, 16
      %v3227 = vrot.slane %v3225, 4
      %v3228 = vshll.u32 %v3200, 16
      %v3230 = vrot.slane %v3228, 5
      %v3231 = vor.u32 %v3227, %v3230
      %v3232 = vsel %vm1083, %v3223, %v3231
      %v3234 = vshrl.u32 %v3201, 16
      %v3236 = vrot.slane %v3234, 4
      %v3237 = vshll.u32 %v3201, 16
      %v3239 = vrot.slane %v3237, 5
      %v3240 = vor.u32 %v3236, %v3239
      %v3241 = vsel %vm1083, %v3231, %v3240
      %v3243 = vshrl.u32 %v3202, 16
      %v3245 = vrot.slane %v3243, 4
      %v3246 = vshll.u32 %v3202, 16
      %v3248 = vrot.slane %v3246, 5
      %v3249 = vor.u32 %v3245, %v3248
      %v3250 = vsel %vm1083, %v3240, %v3249
      %v3252 = vshrl.u32 %v3203, 16
      %v3254 = vrot.slane %v3252, 4
      %v3255 = vshll.u32 %v3203, 16
      %v3257 = vrot.slane %v3255, 5
      %v3258 = vor.u32 %v3254, %v3257
      %v3259 = vsel %vm1083, %v3249, %v3258
      %v3261 = vshrl.u32 %v3204, 16
      %v3263 = vrot.slane %v3261, 4
      %v3264 = vshll.u32 %v3204, 16
      %v3266 = vrot.slane %v3264, 5
      %v3267 = vor.u32 %v3263, %v3266
      %v3268 = vsel %vm1083, %v3258, %v3267
      %v3270 = vshrl.u32 %v3205, 16
      %v3272 = vrot.slane %v3270, 4
      %v3273 = vshll.u32 %v3205, 16
      %v3275 = vrot.slane %v3273, 5
      %v3276 = vor.u32 %v3272, %v3275
      %v3277 = vsel %vm1083, %v3267, %v3276
      %v3279 = vshrl.u32 %v3206, 16
      %v3281 = vrot.slane %v3279, 4
      %v3282 = vshll.u32 %v3206, 16
      %v3284 = vrot.slane %v3282, 5
      %v3285 = vor.u32 %v3281, %v3284
      %v3286 = vsel %vm1083, %v3276, %v3285
      %v3288 = vshrl.u32 %v3207, 16
      %v3290 = vrot.slane %v3288, 4
      %v3291 = vshll.u32 %v3207, 16
      %v3293 = vrot.slane %v3291, 5
      %v3294 = vor.u32 %v3290, %v3293
      %v3295 = vsel %vm1083, %v3285, %v3294
      %v3297 = vshrl.u32 %v3208, 16
      %v3299 = vrot.slane %v3297, 4
      %v3300 = vshll.u32 %v3208, 16
      %v3302 = vrot.slane %v3300, 5
      %v3303 = vor.u32 %v3299, %v3302
      %v3304 = vsel %vm1083, %v3294, %v3303
      %v3306 = vshrl.u32 %v3209, 16
      %v3308 = vrot.slane %v3306, 4
      %v3309 = vshll.u32 %v3209, 16
      %v3311 = vrot.slane %v3309, 5
      %v3312 = vor.u32 %v3308, %v3311
      %v3313 = vsel %vm1083, %v3303, %v3312
      %v3315 = vshrl.u32 %v3210, 16
      %v3317 = vrot.slane %v3315, 4
      %v3318 = vshll.u32 %v3210, 16
      %v3320 = vrot.slane %v3318, 5
      %v3321 = vor.u32 %v3317, %v3320
      %v3322 = vsel %vm1083, %v3312, %v3321
      %v3324 = vshrl.u32 %v3211, 16
      %v3326 = vrot.slane %v3324, 4
      %v3327 = vshll.u32 %v3211, 16
      %v3329 = vrot.slane %v3327, 5
      %v3330 = vor.u32 %v3326, %v3329
      %v3331 = vsel %vm1083, %v3321, %v3330
      %v3333 = vshrl.u32 %v3212, 16
      %v3335 = vrot.slane %v3333, 4
      %v3336 = vshll.u32 %v3212, 16
      %v3338 = vrot.slane %v3336, 5
      %v3339 = vor.u32 %v3335, %v3338
      %v3340 = vsel %vm1083, %v3330, %v3339
      %v3342 = vshrl.u32 %v3213, 16
      %v3344 = vrot.slane %v3342, 4
      %v3345 = vshll.u32 %v3213, 16
      %v3347 = vrot.slane %v3345, 5
      %v3348 = vor.u32 %v3344, %v3347
      %v3349 = vsel %vm1083, %v3339, %v3348
      %v3351 = vshrl.u32 %v3214, 16
      %v3353 = vrot.slane %v3351, 4
      %v3354 = vshll.u32 %v3214, 16
      %v3356 = vrot.slane %v3354, 5
      %v3357 = vor.u32 %v3353, %v3356
      %v3358 = vsel %vm1083, %v3348, %v3357
      %v3360 = vshrl.u32 %v3215, 16
      %v3362 = vrot.slane %v3360, 4
      %v3363 = vshll.u32 %v3215, 16
      %v3365 = vrot.slane %v3363, 5
      %v3366 = vor.u32 %v3362, %v3365
      %v3367 = vsel %vm1083, %v3357, %v3366
      %3368 = vrot.lane.b32.xlu0 %v3232, 32
      %v3369 = vpop.permute.xlu0 %3368
      %3370 = vrot.lane.b32.xlu0 %v3241, 32
      %v3371 = vpop.permute.xlu0 %3370
      %3372 = vrot.lane.b32.xlu0 %v3250, 32
      %v3373 = vpop.permute.xlu0 %3372
      %3374 = vrot.lane.b32.xlu0 %v3259, 32
      %v3375 = vpop.permute.xlu0 %3374
      %3376 = vrot.lane.b32.xlu0 %v3268, 32
      %v3377 = vpop.permute.xlu0 %3376
      %3378 = vrot.lane.b32.xlu0 %v3277, 32
      %v3379 = vpop.permute.xlu0 %3378
      %3380 = vrot.lane.b32.xlu0 %v3286, 32
      %v3381 = vpop.permute.xlu0 %3380
      %3382 = vrot.lane.b32.xlu0 %v3295, 32
      %v3383 = vpop.permute.xlu0 %3382
      %3384 = vrot.lane.b32.xlu0 %v3304, 32
      %v3385 = vpop.permute.xlu0 %3384
      %3386 = vrot.lane.b32.xlu0 %v3313, 32
      %v3387 = vpop.permute.xlu0 %3386
      %3388 = vrot.lane.b32.xlu0 %v3322, 32
      %v3389 = vpop.permute.xlu0 %3388
      %3390 = vrot.lane.b32.xlu0 %v3331, 32
      %v3391 = vpop.permute.xlu0 %3390
      %3392 = vrot.lane.b32.xlu0 %v3340, 32
      %v3393 = vpop.permute.xlu0 %3392
      %3394 = vrot.lane.b32.xlu0 %v3349, 32
      %v3395 = vpop.permute.xlu0 %3394
      %3396 = vrot.lane.b32.xlu0 %v3358, 32
      %v3397 = vpop.permute.xlu0 %3396
      %3398 = vrot.lane.b32.xlu0 %v3367, 32
      %v3399 = vpop.permute.xlu0 %3398
      %vm3416 = vcmask 294144
      %3417 = vst.msk [vmem:[#allocation3] sm:$0xff] %vm3416, %v3369
      %3418 = vst.msk [vmem:[#allocation3 + $0x8] sm:$0xff] %vm3416, %v3371
      %3419 = vst.msk [vmem:[#allocation3 + $0x10] sm:$0xff] %vm3416, %v3373
      %3420 = vst.msk [vmem:[#allocation3 + $0x18] sm:$0xff] %vm3416, %v3375
      %3421 = vst.msk [vmem:[#allocation3 + $0x20] sm:$0xff] %vm3416, %v3377
      %3422 = vst.msk [vmem:[#allocation3 + $0x28] sm:$0xff] %vm3416, %v3379
      %3423 = vst.msk [vmem:[#allocation3 + $0x30] sm:$0xff] %vm3416, %v3381
      %3424 = vst.msk [vmem:[#allocation3 + $0x38] sm:$0xff] %vm3416, %v3383
      %3425 = vst.msk [vmem:[#allocation3 + $0x40] sm:$0xff] %vm3416, %v3385
      %3426 = vst.msk [vmem:[#allocation3 + $0x48] sm:$0xff] %vm3416, %v3387
      %3427 = vst.msk [vmem:[#allocation3 + $0x50] sm:$0xff] %vm3416, %v3389
      %3428 = vst.msk [vmem:[#allocation3 + $0x58] sm:$0xff] %vm3416, %v3391
      %3429 = vst.msk [vmem:[#allocation3 + $0x60] sm:$0xff] %vm3416, %v3393
      %3430 = vst.msk [vmem:[#allocation3 + $0x68] sm:$0xff] %vm3416, %v3395
      %3431 = vst.msk [vmem:[#allocation3 + $0x70] sm:$0xff] %vm3416, %v3397
      %3432 = vst.msk [vmem:[#allocation3 + $0x78] sm:$0xff] %vm3416, %v3399
      %v3433 = vld [vmem:[#allocation3] sm:$0xff]
      %v3434 = vld [vmem:[#allocation3 + $0x8] sm:$0xff]
      %v3435 = vld [vmem:[#allocation3 + $0x10] sm:$0xff]
      %v3436 = vld [vmem:[#allocation3 + $0x18] sm:$0xff]
      %v3437 = vld [vmem:[#allocation3 + $0x20] sm:$0xff]
      %v3438 = vld [vmem:[#allocation3 + $0x28] sm:$0xff]
      %v3439 = vld [vmem:[#allocation3 + $0x30] sm:$0xff]
      %v3440 = vld [vmem:[#allocation3 + $0x38] sm:$0xff]
      %v3441 = vld [vmem:[#allocation3 + $0x40] sm:$0xff]
      %v3442 = vld [vmem:[#allocation3 + $0x48] sm:$0xff]
      %v3443 = vld [vmem:[#allocation3 + $0x50] sm:$0xff]
      %v3444 = vld [vmem:[#allocation3 + $0x58] sm:$0xff]
      %v3445 = vld [vmem:[#allocation3 + $0x60] sm:$0xff]
      %v3446 = vld [vmem:[#allocation3 + $0x68] sm:$0xff]
      %v3447 = vld [vmem:[#allocation3 + $0x70] sm:$0xff]
      %v3448 = vld [vmem:[#allocation3 + $0x78] sm:$0xff]
      %v3449 = vld [vmem:[%s1] sm:$0xf]
      %v3450 = vld [vmem:[%s1 + $0x4] sm:$0xf]
      %v3451 = vld [vmem:[%s1 + $0x8] sm:$0xf]
      %v3452 = vld [vmem:[%s1 + $0xc] sm:$0xf]
      %v3453 = vld [vmem:[%s1 + $0x10] sm:$0x3]
      %v3459 = vunpack.c.l.b16 %v3449
      %v3460 = vunpack.c.l.b16 %v3450
      %v3461 = vunpack.c.l.b16 %v3451
      %v3462 = vunpack.c.l.b16 %v3452
      %v3463 = vunpack.c.l.b16 %v3453
      %v3464 = vpack.c.b16 %v3460, %v3459
      %v3465 = vpack.c.b16 %v3462, %v3461
      %v3466 = vpack.c.b16 %v3463, %v3463
      %vm3469 = vcmask 293888
      %v3471 = vsel %vm3469, %v3433, 0
      %v3474 = vsel %vm3469, %v3434, 0
      %v3477 = vsel %vm3469, %v3435, 0
      %v3480 = vsel %vm3469, %v3436, 0
      %v3483 = vsel %vm3469, %v3437, 0
      %v3486 = vsel %vm3469, %v3438, 0
      %v3489 = vsel %vm3469, %v3439, 0
      %v3492 = vsel %vm3469, %v3440, 0
      %v3495 = vsel %vm3469, %v3441, 0
      %v3498 = vsel %vm3469, %v3442, 0
      %v3501 = vsel %vm3469, %v3443, 0
      %v3504 = vsel %vm3469, %v3444, 0
      %v3507 = vsel %vm3469, %v3445, 0
      %v3510 = vsel %vm3469, %v3446, 0
      %v3513 = vsel %vm3469, %v3447, 0
      %v3516 = vsel %vm3469, %v3448, 0
      %vm3518 = vcmask 1041408
      %v3520 = vsel %vm3518, %v3466, 0
      %3522 = vmatprep.subr.bf16.mxu0 0
      %3523 = vmatpush1.bf16.msra.mxu0 %v3464
      %3524 = vmatprep.subr.bf16.mxu0 0
      %3525 = vmatpush1.bf16.msra.mxu0 %v3465
      %3526 = vmatprep.subr.bf16.mxu0 0
      %3527 = vmatpush1.bf16.msra.mxu0 %v3520
      %3528 = vmatprep.subr.bf16.mxu0 0
      %3529 = vmatpush1.bf16.msra.mxu0 0
      %3530 = vmatprep.subr.bf16.mxu0 0
      %3531 = vmatpush1.bf16.msra.mxu0 0
      %3532 = vmatprep.subr.bf16.mxu0 0
      %3533 = vmatpush1.bf16.msra.mxu0 0
      %3534 = vmatprep.subr.bf16.mxu0 0
      %3535 = vmatpush1.bf16.msra.mxu0 0
      %3536 = vmatprep.subr.bf16.mxu0 0
      %3537 = vmatpush1.bf16.msra.mxu0 0
      %3538 = vmatprep.subr.bf16.mxu0 0
      %3539 = vmatpush1.bf16.msra.mxu0 0
      %3540 = vmatprep.subr.bf16.mxu0 0
      %3541 = vmatpush1.bf16.msra.mxu0 0
      %3542 = vmatprep.subr.bf16.mxu0 0
      %3543 = vmatpush1.bf16.msra.mxu0 0
      %3544 = vmatprep.subr.bf16.mxu0 0
      %3545 = vmatpush1.bf16.msra.mxu0 0
      %3546 = vmatprep.subr.bf16.mxu0 0
      %3547 = vmatpush1.bf16.msra.mxu0 0
      %3548 = vmatprep.subr.bf16.mxu0 0
      %3549 = vmatpush1.bf16.msra.mxu0 0
      %3550 = vmatprep.subr.bf16.mxu0 0
      %3551 = vmatpush1.bf16.msra.mxu0 0
      %3552 = vmatprep.subr.bf16.mxu0 0
      %3553 = vmatpush1.bf16.msra.mxu0 0
      %3554 = vmatprep.mubr.bf16.mxu0 0
      %3555 = vmatmul.mubr.bf16.gmra.mrb[0].mxu0 %v3471
      %v3556 = vpop.f32.mrb[0].mxu0
      %v3557 = vadd.f32 0.0, %v3556
      %v3558 = vpop.f32.mrb[0].mxu0
      %v3559 = vpop.f32.mrb[0].mxu0
      %v3560 = vadd.f32 0.0, %v3559
      %v3561 = vpop.f32.mrb[0].mxu0
      %3562 = vmatprep.mubr.bf16.mxu0 0
      %3563 = vmatmul.mubr.bf16.gmra.mrb[0].mxu0 %v3474
      %v3564 = vpop.f32.mrb[0].mxu0
      %v3565 = vadd.f32 0.0, %v3564
      %v3566 = vpop.f32.mrb[0].mxu0
      %v3567 = vpop.f32.mrb[0].mxu0
      %v3568 = vadd.f32 0.0, %v3567
      %v3569 = vpop.f32.mrb[0].mxu0
      %3570 = vmatprep.mubr.bf16.mxu0 0
      %3571 = vmatmul.mubr.bf16.gmra.mrb[0].mxu0 %v3477
      %v3572 = vpop.f32.mrb[0].mxu0
      %v3573 = vadd.f32 0.0, %v3572
      %v3574 = vpop.f32.mrb[0].mxu0
      %v3575 = vpop.f32.mrb[0].mxu0
      %v3576 = vadd.f32 0.0, %v3575
      %v3577 = vpop.f32.mrb[0].mxu0
      %3578 = vmatprep.mubr.bf16.mxu0 0
      %3579 = vmatmul.mubr.bf16.gmra.mrb[0].mxu0 %v3480
      %v3580 = vpop.f32.mrb[0].mxu0
      %v3581 = vadd.f32 0.0, %v3580
      %v3582 = vpop.f32.mrb[0].mxu0
      %v3583 = vpop.f32.mrb[0].mxu0
      %v3584 = vadd.f32 0.0, %v3583
      %v3585 = vpop.f32.mrb[0].mxu0
      %3586 = vmatprep.mubr.bf16.mxu0 0
      %3587 = vmatmul.mubr.bf16.gmra.mrb[0].mxu0 %v3483
      %v3588 = vpop.f32.mrb[0].mxu0
      %v3589 = vadd.f32 0.0, %v3588
      %v3590 = vpop.f32.mrb[0].mxu0
      %v3591 = vpop.f32.mrb[0].mxu0
      %v3592 = vadd.f32 0.0, %v3591
      %v3593 = vpop.f32.mrb[0].mxu0
      %3594 = vmatprep.mubr.bf16.mxu0 0
      %3595 = vmatmul.mubr.bf16.gmra.mrb[0].mxu0 %v3486
      %v3596 = vpop.f32.mrb[0].mxu0
      %v3597 = vadd.f32 0.0, %v3596
      %v3598 = vpop.f32.mrb[0].mxu0
      %v3599 = vpop.f32.mrb[0].mxu0
      %v3600 = vadd.f32 0.0, %v3599
      %v3601 = vpop.f32.mrb[0].mxu0
      %3602 = vmatprep.mubr.bf16.mxu0 0
      %3603 = vmatmul.mubr.bf16.gmra.mrb[0].mxu0 %v3489
      %v3604 = vpop.f32.mrb[0].mxu0
      %v3605 = vadd.f32 0.0, %v3604
      %v3606 = vpop.f32.mrb[0].mxu0
      %v3607 = vpop.f32.mrb[0].mxu0
      %v3608 = vadd.f32 0.0, %v3607
      %v3609 = vpop.f32.mrb[0].mxu0
      %3610 = vmatprep.mubr.bf16.mxu0 0
      %3611 = vmatmul.mubr.bf16.gmra.mrb[0].mxu0 %v3492
      %v3612 = vpop.f32.mrb[0].mxu0
      %v3613 = vadd.f32 0.0, %v3612
      %v3614 = vpop.f32.mrb[0].mxu0
      %v3615 = vpop.f32.mrb[0].mxu0
      %v3616 = vadd.f32 0.0, %v3615
      %v3617 = vpop.f32.mrb[0].mxu0
      %3618 = vmatprep.mubr.bf16.mxu0 0
      %3619 = vmatmul.mubr.bf16.gmra.mrb[0].mxu0 %v3495
      %v3620 = vpop.f32.mrb[0].mxu0
      %v3621 = vadd.f32 0.0, %v3620
      %v3622 = vpop.f32.mrb[0].mxu0
      %v3623 = vpop.f32.mrb[0].mxu0
      %v3624 = vadd.f32 0.0, %v3623
      %v3625 = vpop.f32.mrb[0].mxu0
      %3626 = vmatprep.mubr.bf16.mxu0 0
      %3627 = vmatmul.mubr.bf16.gmra.mrb[0].mxu0 %v3498
      %v3628 = vpop.f32.mrb[0].mxu0
      %v3629 = vadd.f32 0.0, %v3628
      %v3630 = vpop.f32.mrb[0].mxu0
      %v3631 = vpop.f32.mrb[0].mxu0
      %v3632 = vadd.f32 0.0, %v3631
      %v3633 = vpop.f32.mrb[0].mxu0
      %3634 = vmatprep.mubr.bf16.mxu0 0
      %3635 = vmatmul.mubr.bf16.gmra.mrb[0].mxu0 %v3501
      %v3636 = vpop.f32.mrb[0].mxu0
      %v3637 = vadd.f32 0.0, %v3636
      %v3638 = vpop.f32.mrb[0].mxu0
      %v3639 = vpop.f32.mrb[0].mxu0
      %v3640 = vadd.f32 0.0, %v3639
      %v3641 = vpop.f32.mrb[0].mxu0
      %3642 = vmatprep.mubr.bf16.mxu0 0
      %3643 = vmatmul.mubr.bf16.gmra.mrb[0].mxu0 %v3504
      %v3644 = vpop.f32.mrb[0].mxu0
      %v3645 = vadd.f32 0.0, %v3644
      %v3646 = vpop.f32.mrb[0].mxu0
      %v3647 = vpop.f32.mrb[0].mxu0
      %v3648 = vadd.f32 0.0, %v3647
      %v3649 = vpop.f32.mrb[0].mxu0
      %3650 = vmatprep.mubr.bf16.mxu0 0
      %3651 = vmatmul.mubr.bf16.gmra.mrb[0].mxu0 %v3507
      %v3652 = vpop.f32.mrb[0].mxu0
      %v3653 = vadd.f32 0.0, %v3652
      %v3654 = vpop.f32.mrb[0].mxu0
      %v3655 = vpop.f32.mrb[0].mxu0
      %v3656 = vadd.f32 0.0, %v3655
      %v3657 = vpop.f32.mrb[0].mxu0
      %3658 = vmatprep.mubr.bf16.mxu0 0
      %3659 = vmatmul.mubr.bf16.gmra.mrb[0].mxu0 %v3510
      %v3660 = vpop.f32.mrb[0].mxu0
      %v3661 = vadd.f32 0.0, %v3660
      %v3662 = vpop.f32.mrb[0].mxu0
      %v3663 = vpop.f32.mrb[0].mxu0
      %v3664 = vadd.f32 0.0, %v3663
      %v3665 = vpop.f32.mrb[0].mxu0
      %3666 = vmatprep.mubr.bf16.mxu0 0
      %3667 = vmatmul.mubr.bf16.gmra.mrb[0].mxu0 %v3513
      %v3668 = vpop.f32.mrb[0].mxu0
      %v3669 = vadd.f32 0.0, %v3668
      %v3670 = vpop.f32.mrb[0].mxu0
      %v3671 = vpop.f32.mrb[0].mxu0
      %v3672 = vadd.f32 0.0, %v3671
      %v3673 = vpop.f32.mrb[0].mxu0
      %3674 = vmatprep.mubr.bf16.mxu0 0
      %3675 = vmatmul.mubr.bf16.gmra.mrb[0].mxu0 %v3516
      %v3676 = vpop.f32.mrb[0].mxu0
      %v3677 = vadd.f32 0.0, %v3676
      %v3678 = vpop.f32.mrb[0].mxu0
      %v3679 = vpop.f32.mrb[0].mxu0
      %v3680 = vadd.f32 0.0, %v3679
      %v3681 = vpop.f32.mrb[0].mxu0
      %3682 = vdwg.mxu0
      %v3683 = vpack.c.bf16 %v3560, %v3557
      %v3684 = vpack.c.bf16 %v3568, %v3565
      %v3685 = vpack.c.bf16 %v3576, %v3573
      %v3686 = vpack.c.bf16 %v3584, %v3581
      %v3687 = vpack.c.bf16 %v3592, %v3589
      %v3688 = vpack.c.bf16 %v3600, %v3597
      %v3689 = vpack.c.bf16 %v3608, %v3605
      %v3690 = vpack.c.bf16 %v3616, %v3613
      %v3691 = vpack.c.bf16 %v3624, %v3621
      %v3692 = vpack.c.bf16 %v3632, %v3629
      %v3693 = vpack.c.bf16 %v3640, %v3637
      %v3694 = vpack.c.bf16 %v3648, %v3645
      %v3695 = vpack.c.bf16 %v3656, %v3653
      %v3696 = vpack.c.bf16 %v3664, %v3661
      %v3697 = vpack.c.bf16 %v3672, %v3669
      %v3698 = vpack.c.bf16 %v3680, %v3677
      %v3715 = vunpack.c.l.b16 %v3683
      %v3716 = vunpack.c.h.b16 %v3683
      %v3717 = vunpack.c.l.b16 %v3684
      %v3718 = vunpack.c.h.b16 %v3684
      %v3719 = vunpack.c.l.b16 %v3685
      %v3720 = vunpack.c.h.b16 %v3685
      %v3721 = vunpack.c.l.b16 %v3686
      %v3722 = vunpack.c.h.b16 %v3686
      %v3723 = vunpack.c.l.b16 %v3687
      %v3724 = vunpack.c.h.b16 %v3687
      %v3725 = vunpack.c.l.b16 %v3688
      %v3726 = vunpack.c.h.b16 %v3688
      %v3727 = vunpack.c.l.b16 %v3689
      %v3728 = vunpack.c.h.b16 %v3689
      %v3729 = vunpack.c.l.b16 %v3690
      %v3730 = vunpack.c.h.b16 %v3690
      %v3731 = vunpack.c.l.b16 %v3691
      %v3732 = vunpack.c.h.b16 %v3691
      %v3733 = vunpack.c.l.b16 %v3692
      %v3734 = vunpack.c.h.b16 %v3692
      %v3735 = vunpack.c.l.b16 %v3693
      %v3736 = vunpack.c.h.b16 %v3693
      %v3737 = vunpack.c.l.b16 %v3694
      %v3738 = vunpack.c.h.b16 %v3694
      %v3739 = vunpack.c.l.b16 %v3695
      %v3740 = vunpack.c.h.b16 %v3695
      %v3741 = vunpack.c.l.b16 %v3696
      %v3742 = vunpack.c.h.b16 %v3696
      %v3743 = vunpack.c.l.b16 %v3697
      %v3744 = vunpack.c.h.b16 %v3697
      %v3745 = vunpack.c.l.b16 %v3698
      %v3746 = vunpack.c.h.b16 %v3698
      %v3747 = vpack.c.b16 %v3715, %v3715
      %v3748 = vpack.c.b16 %v3716, %v3716
      %v3749 = vpack.c.b16 %v3717, %v3717
      %v3750 = vpack.c.b16 %v3718, %v3718
      %v3751 = vpack.c.b16 %v3719, %v3719
      %v3752 = vpack.c.b16 %v3720, %v3720
      %v3753 = vpack.c.b16 %v3721, %v3721
      %v3754 = vpack.c.b16 %v3722, %v3722
      %v3755 = vpack.c.b16 %v3723, %v3723
      %v3756 = vpack.c.b16 %v3724, %v3724
      %v3757 = vpack.c.b16 %v3725, %v3725
      %v3758 = vpack.c.b16 %v3726, %v3726
      %v3759 = vpack.c.b16 %v3727, %v3727
      %v3760 = vpack.c.b16 %v3728, %v3728
      %v3761 = vpack.c.b16 %v3729, %v3729
      %v3762 = vpack.c.b16 %v3730, %v3730
      %v3763 = vpack.c.b16 %v3731, %v3731
      %v3764 = vpack.c.b16 %v3732, %v3732
      %v3765 = vpack.c.b16 %v3733, %v3733
      %v3766 = vpack.c.b16 %v3734, %v3734
      %v3767 = vpack.c.b16 %v3735, %v3735
      %v3768 = vpack.c.b16 %v3736, %v3736
      %v3769 = vpack.c.b16 %v3737, %v3737
      %v3770 = vpack.c.b16 %v3738, %v3738
      %v3771 = vpack.c.b16 %v3739, %v3739
      %v3772 = vpack.c.b16 %v3740, %v3740
      %v3773 = vpack.c.b16 %v3741, %v3741
      %v3774 = vpack.c.b16 %v3742, %v3742
      %v3775 = vpack.c.b16 %v3743, %v3743
      %v3776 = vpack.c.b16 %v3744, %v3744
      %v3777 = vpack.c.b16 %v3745, %v3745
      %v3778 = vpack.c.b16 %v3746, %v3746
      %3811 = vst.msk [vmem:[%s262] sm:$0xf] %vm274, %v3747
      %3812 = vst.msk [vmem:[%s262 + $0x4] sm:$0xf] %vm274, %v3748
      %3813 = vst.msk [vmem:[%s262 + $0x8] sm:$0xf] %vm274, %v3749
      %3814 = vst.msk [vmem:[%s262 + $0xc] sm:$0xf] %vm274, %v3750
      %3815 = vst.msk [vmem:[%s262 + $0x10] sm:$0xf] %vm274, %v3751
      %3816 = vst.msk [vmem:[%s262 + $0x14] sm:$0xf] %vm274, %v3752
      %3817 = vst.msk [vmem:[%s262 + $0x18] sm:$0xf] %vm274, %v3753
      %3818 = vst.msk [vmem:[%s262 + $0x1c] sm:$0xf] %vm274, %v3754
      %3819 = vst.msk [vmem:[%s262 + $0x20] sm:$0xf] %vm274, %v3755
      %3820 = vst.msk [vmem:[%s262 + $0x24] sm:$0xf] %vm274, %v3756
      %3821 = vst.msk [vmem:[%s262 + $0x28] sm:$0xf] %vm274, %v3757
      %3822 = vst.msk [vmem:[%s262 + $0x2c] sm:$0xf] %vm274, %v3758
      %3823 = vst.msk [vmem:[%s262 + $0x30] sm:$0xf] %vm274, %v3759
      %3824 = vst.msk [vmem:[%s262 + $0x34] sm:$0xf] %vm274, %v3760
      %3825 = vst.msk [vmem:[%s262 + $0x38] sm:$0xf] %vm274, %v3761
      %3826 = vst.msk [vmem:[%s262 + $0x3c] sm:$0xf] %vm274, %v3762
      %3827 = vst.msk [vmem:[%s262 + $0x40] sm:$0xf] %vm274, %v3763
      %3828 = vst.msk [vmem:[%s262 + $0x44] sm:$0xf] %vm274, %v3764
      %3829 = vst.msk [vmem:[%s262 + $0x48] sm:$0xf] %vm274, %v3765
      %3830 = vst.msk [vmem:[%s262 + $0x4c] sm:$0xf] %vm274, %v3766
      %3831 = vst.msk [vmem:[%s262 + $0x50] sm:$0xf] %vm274, %v3767
      %3832 = vst.msk [vmem:[%s262 + $0x54] sm:$0xf] %vm274, %v3768
      %3833 = vst.msk [vmem:[%s262 + $0x58] sm:$0xf] %vm274, %v3769
      %3834 = vst.msk [vmem:[%s262 + $0x5c] sm:$0xf] %vm274, %v3770
      %3835 = vst.msk [vmem:[%s262 + $0x60] sm:$0xf] %vm274, %v3771
      %3836 = vst.msk [vmem:[%s262 + $0x64] sm:$0xf] %vm274, %v3772
      %3837 = vst.msk [vmem:[%s262 + $0x68] sm:$0xf] %vm274, %v3773
      %3838 = vst.msk [vmem:[%s262 + $0x6c] sm:$0xf] %vm274, %v3774
      %3839 = vst.msk [vmem:[%s262 + $0x70] sm:$0xf] %vm274, %v3775
      %3840 = vst.msk [vmem:[%s262 + $0x74] sm:$0xf] %vm274, %v3776
      %3841 = vst.msk [vmem:[%s262 + $0x78] sm:$0xf] %vm274, %v3777
      %3842 = vst.msk [vmem:[%s262 + $0x7c] sm:$0xf] %vm274, %v3778
      %v3843 = vunpack.c.l.bf16 %v3683
      %v3844 = vunpack.c.h.bf16 %v3683
      %v3845 = vunpack.c.l.bf16 %v3684
      %v3846 = vunpack.c.h.bf16 %v3684
      %v3847 = vunpack.c.l.bf16 %v3685
      %v3848 = vunpack.c.h.bf16 %v3685
      %v3849 = vunpack.c.l.bf16 %v3686
      %v3850 = vunpack.c.h.bf16 %v3686
      %v3851 = vunpack.c.l.bf16 %v3687
      %v3852 = vunpack.c.h.bf16 %v3687
      %v3853 = vunpack.c.l.bf16 %v3688
      %v3854 = vunpack.c.h.bf16 %v3688
      %v3855 = vunpack.c.l.bf16 %v3689
      %v3856 = vunpack.c.h.bf16 %v3689
      %v3857 = vunpack.c.l.bf16 %v3690
      %v3858 = vunpack.c.h.bf16 %v3690
      %v3859 = vunpack.c.l.bf16 %v3691
      %v3860 = vunpack.c.h.bf16 %v3691
      %v3861 = vunpack.c.l.bf16 %v3692
      %v3862 = vunpack.c.h.bf16 %v3692
      %v3863 = vunpack.c.l.bf16 %v3693
      %v3864 = vunpack.c.h.bf16 %v3693
      %v3865 = vunpack.c.l.bf16 %v3694
      %v3866 = vunpack.c.h.bf16 %v3694
      %v3867 = vunpack.c.l.bf16 %v3695
      %v3868 = vunpack.c.h.bf16 %v3695
      %v3869 = vunpack.c.l.bf16 %v3696
      %v3870 = vunpack.c.h.bf16 %v3696
      %v3871 = vunpack.c.l.bf16 %v3697
      %v3872 = vunpack.c.h.bf16 %v3697
      %v3873 = vunpack.c.l.bf16 %v3698
      %v3874 = vunpack.c.h.bf16 %v3698
      %v3875 = vsel %vm272, %v3843, 0.0
      %v3876 = vsel %vm272, %v3844, 0.0
      %v3877 = vadd.f32 %v3875, %v3876
      %v3878 = vsel %vm272, %v3845, 0.0
      %v3879 = vadd.f32 %v3877, %v3878
      %v3880 = vsel %vm272, %v3846, 0.0
      %v3881 = vadd.f32 %v3879, %v3880
      %v3882 = vsel %vm272, %v3847, 0.0
      %v3883 = vadd.f32 %v3881, %v3882
      %v3884 = vsel %vm272, %v3848, 0.0
      %v3885 = vadd.f32 %v3883, %v3884
      %v3886 = vsel %vm272, %v3849, 0.0
      %v3887 = vadd.f32 %v3885, %v3886
      %v3888 = vsel %vm272, %v3850, 0.0
      %v3889 = vadd.f32 %v3887, %v3888
      %v3890 = vsel %vm272, %v3851, 0.0
      %v3891 = vadd.f32 %v3889, %v3890
      %v3892 = vsel %vm272, %v3852, 0.0
      %v3893 = vadd.f32 %v3891, %v3892
      %v3894 = vsel %vm272, %v3853, 0.0
      %v3895 = vadd.f32 %v3893, %v3894
      %v3896 = vsel %vm272, %v3854, 0.0
      %v3897 = vadd.f32 %v3895, %v3896
      %v3898 = vsel %vm272, %v3855, 0.0
      %v3899 = vadd.f32 %v3897, %v3898
      %v3900 = vsel %vm272, %v3856, 0.0
      %v3901 = vadd.f32 %v3899, %v3900
      %v3902 = vsel %vm272, %v3857, 0.0
      %v3903 = vadd.f32 %v3901, %v3902
      %v3904 = vsel %vm272, %v3858, 0.0
      %v3905 = vadd.f32 %v3903, %v3904
      %v3906 = vsel %vm272, %v3859, 0.0
      %v3907 = vadd.f32 %v3905, %v3906
      %v3908 = vsel %vm272, %v3860, 0.0
      %v3909 = vadd.f32 %v3907, %v3908
      %v3910 = vsel %vm272, %v3861, 0.0
      %v3911 = vadd.f32 %v3909, %v3910
      %v3912 = vsel %vm272, %v3862, 0.0
      %v3913 = vadd.f32 %v3911, %v3912
      %v3914 = vsel %vm272, %v3863, 0.0
      %v3915 = vadd.f32 %v3913, %v3914
      %v3916 = vsel %vm272, %v3864, 0.0
      %v3917 = vadd.f32 %v3915, %v3916
      %v3918 = vsel %vm272, %v3865, 0.0
      %v3919 = vadd.f32 %v3917, %v3918
      %v3920 = vsel %vm272, %v3866, 0.0
      %v3921 = vadd.f32 %v3919, %v3920
      %v3922 = vsel %vm272, %v3867, 0.0
      %v3923 = vadd.f32 %v3921, %v3922
      %v3924 = vsel %vm272, %v3868, 0.0
      %v3925 = vadd.f32 %v3923, %v3924
      %v3926 = vsel %vm272, %v3869, 0.0
      %v3927 = vadd.f32 %v3925, %v3926
      %v3928 = vsel %vm272, %v3870, 0.0
      %v3929 = vadd.f32 %v3927, %v3928
      %v3930 = vsel %vm272, %v3871, 0.0
      %v3931 = vadd.f32 %v3929, %v3930
      %v3932 = vsel %vm272, %v3872, 0.0
      %v3933 = vadd.f32 %v3931, %v3932
      %v3934 = vsel %vm272, %v3873, 0.0
      %v3935 = vadd.f32 %v3933, %v3934
      %v3936 = vsel %vm272, %v3874, 0.0
      %v3937 = vadd.f32 %v3935, %v3936
      %v3938 = vrot.slane %v3937, 4
      %v3939 = vadd.f32 %v3937, %v3938
      %v3940 = vrot.slane %v3939, 2
      %v3941 = vadd.f32 %v3939, %v3940
      %v3942 = vrot.slane %v3941, 1
      %v3943 = vadd.f32 %v3941, %v3942
      %vm3944 = vcmask 24576
      %3945 = vst.msk [vmem:[%s265] sm:$0x1] %vm3944, %v3943
      %v3946 = vmul.f32 %v3843, %v3843
      %v3947 = vmul.f32 %v3844, %v3844
      %v3948 = vmul.f32 %v3845, %v3845
      %v3949 = vmul.f32 %v3846, %v3846
      %v3950 = vmul.f32 %v3847, %v3847
      %v3951 = vmul.f32 %v3848, %v3848
      %v3952 = vmul.f32 %v3849, %v3849
      %v3953 = vmul.f32 %v3850, %v3850
      %v3954 = vmul.f32 %v3851, %v3851
      %v3955 = vmul.f32 %v3852, %v3852
      %v3956 = vmul.f32 %v3853, %v3853
      %v3957 = vmul.f32 %v3854, %v3854
      %v3958 = vmul.f32 %v3855, %v3855
      %v3959 = vmul.f32 %v3856, %v3856
      %v3960 = vmul.f32 %v3857, %v3857
      %v3961 = vmul.f32 %v3858, %v3858
      %v3962 = vmul.f32 %v3859, %v3859
      %v3963 = vmul.f32 %v3860, %v3860
      %v3964 = vmul.f32 %v3861, %v3861
      %v3965 = vmul.f32 %v3862, %v3862
      %v3966 = vmul.f32 %v3863, %v3863
      %v3967 = vmul.f32 %v3864, %v3864
      %v3968 = vmul.f32 %v3865, %v3865
      %v3969 = vmul.f32 %v3866, %v3866
      %v3970 = vmul.f32 %v3867, %v3867
      %v3971 = vmul.f32 %v3868, %v3868
      %v3972 = vmul.f32 %v3869, %v3869
      %v3973 = vmul.f32 %v3870, %v3870
      %v3974 = vmul.f32 %v3871, %v3871
      %v3975 = vmul.f32 %v3872, %v3872
      %v3976 = vmul.f32 %v3873, %v3873
      %v3977 = vmul.f32 %v3874, %v3874
      %v3978 = vsel %vm272, %v3946, 0.0
      %v3979 = vsel %vm272, %v3947, 0.0
      %v3980 = vadd.f32 %v3978, %v3979
      %v3981 = vsel %vm272, %v3948, 0.0
      %v3982 = vadd.f32 %v3980, %v3981
      %v3983 = vsel %vm272, %v3949, 0.0
      %v3984 = vadd.f32 %v3982, %v3983
      %v3985 = vsel %vm272, %v3950, 0.0
      %v3986 = vadd.f32 %v3984, %v3985
      %v3987 = vsel %vm272, %v3951, 0.0
      %v3988 = vadd.f32 %v3986, %v3987
      %v3989 = vsel %vm272, %v3952, 0.0
      %v3990 = vadd.f32 %v3988, %v3989
      %v3991 = vsel %vm272, %v3953, 0.0
      %v3992 = vadd.f32 %v3990, %v3991
      %v3993 = vsel %vm272, %v3954, 0.0
      %v3994 = vadd.f32 %v3992, %v3993
      %v3995 = vsel %vm272, %v3955, 0.0
      %v3996 = vadd.f32 %v3994, %v3995
      %v3997 = vsel %vm272, %v3956, 0.0
      %v3998 = vadd.f32 %v3996, %v3997
      %v3999 = vsel %vm272, %v3957, 0.0
      %v4000 = vadd.f32 %v3998, %v3999
      %v4001 = vsel %vm272, %v3958, 0.0
      %v4002 = vadd.f32 %v4000, %v4001
      %v4003 = vsel %vm272, %v3959, 0.0
      %v4004 = vadd.f32 %v4002, %v4003
      %v4005 = vsel %vm272, %v3960, 0.0
      %v4006 = vadd.f32 %v4004, %v4005
      %v4007 = vsel %vm272, %v3961, 0.0
      %v4008 = vadd.f32 %v4006, %v4007
      %v4009 = vsel %vm272, %v3962, 0.0
      %v4010 = vadd.f32 %v4008, %v4009
      %v4011 = vsel %vm272, %v3963, 0.0
      %v4012 = vadd.f32 %v4010, %v4011
      %v4013 = vsel %vm272, %v3964, 0.0
      %v4014 = vadd.f32 %v4012, %v4013
      %v4015 = vsel %vm272, %v3965, 0.0
      %v4016 = vadd.f32 %v4014, %v4015
      %v4017 = vsel %vm272, %v3966, 0.0
      %v4018 = vadd.f32 %v4016, %v4017
      %v4019 = vsel %vm272, %v3967, 0.0
      %v4020 = vadd.f32 %v4018, %v4019
      %v4021 = vsel %vm272, %v3968, 0.0
      %v4022 = vadd.f32 %v4020, %v4021
      %v4023 = vsel %vm272, %v3969, 0.0
      %v4024 = vadd.f32 %v4022, %v4023
      %v4025 = vsel %vm272, %v3970, 0.0
      %v4026 = vadd.f32 %v4024, %v4025
      %v4027 = vsel %vm272, %v3971, 0.0
      %v4028 = vadd.f32 %v4026, %v4027
      %v4029 = vsel %vm272, %v3972, 0.0
      %v4030 = vadd.f32 %v4028, %v4029
      %v4031 = vsel %vm272, %v3973, 0.0
      %v4032 = vadd.f32 %v4030, %v4031
      %v4033 = vsel %vm272, %v3974, 0.0
      %v4034 = vadd.f32 %v4032, %v4033
      %v4035 = vsel %vm272, %v3975, 0.0
      %v4036 = vadd.f32 %v4034, %v4035
      %v4037 = vsel %vm272, %v3976, 0.0
      %v4038 = vadd.f32 %v4036, %v4037
      %v4039 = vsel %vm272, %v3977, 0.0
      %v4040 = vadd.f32 %v4038, %v4039
      %v4041 = vrot.slane %v4040, 4
      %v4042 = vadd.f32 %v4040, %v4041
      %v4043 = vrot.slane %v4042, 2
      %v4044 = vadd.f32 %v4042, %v4043
      %v4045 = vrot.slane %v4044, 1
      %v4046 = vadd.f32 %v4044, %v4045
      %4047 = vst.msk [vmem:[%s268] sm:$0x1] %vm3944, %v4046
      %p4048 = scmp.lt.s32.totalorder %s18, 1
      %s4049 = scalar_select %p4048, %s18, 1
      %s4050 = smul.addr %s4049, 32
      %s4051 = smul.addr %s4050, 4
      %s4052 = scalar_lea.vmem %s4, %s4051
      %p4053 = scmp.lt.s32.totalorder %s18, 1
      %s4054 = scalar_select %p4053, %s18, 1
      %s4055 = scalar_lea.vmem %s5, %s4054
      %p4056 = scmp.lt.s32.totalorder %s18, 1
      %s4057 = scalar_select %p4056, %s18, 1
      %s4058 = scalar_lea.vmem %s6, %s4057
      // Predicated region
      $region37: #{basic_block_forward.3} parent=35 // pred_check
        %p4059 = pneg %p125
      $region38: #{basic_block_forward.3} parent=35 // pred_check_branch
        %4061 = sbr.rel (%p4059) target = $region40
      $region39: #{basic_block_forward.3} parent=35 // pred_region
        _
      $region40: #{basic_block_forward.3} parent=35 // pred_fallthru
        _
      // Predicated region
      $region41: #{basic_block_forward.3} parent=35 // pred_check
        %p4062 = pneg %p151
      $region42: #{basic_block_forward.3} parent=35 // pred_check_branch
        %4064 = sbr.rel (%p4062) target = $region44
      $region43: #{basic_block_forward.3} parent=35 // pred_region
        _
      $region44: #{basic_block_forward.3} parent=35 // pred_fallthru
        _
      // Predicated region
      $region45: #{basic_block_forward.3} parent=35 // pred_check
        %p4065 = pneg %p177
      $region46: #{basic_block_forward.3} parent=35 // pred_check_branch
        %4067 = sbr.rel (%p4065) target = $region48
      $region47: #{basic_block_forward.3} parent=35 // pred_region
        _
      $region48: #{basic_block_forward.3} parent=35 // pred_fallthru
        _
    $region36: #{basic_block_forward.3} parent=5 // pred_fallthru
      _
    %p4068 = scmp.le.s32.totalorder 2, %s13
    // Predicated region
    $region49: #{basic_block_forward.3} parent=5 // pred_check
      %p4069 = pneg %p4068
    $region50: #{basic_block_forward.3} parent=5 // pred_check_branch
      %4071 = sbr.rel (%p4069) target = $region52
    $region51: #{basic_block_forward.3} parent=5 // pred_region
      %s4072 = ssub.s32 %s13, 2
      // Predicated region
      $region53: #{basic_block_forward.3} parent=51 // pred_check
        %p4073 = pneg %p131
      $region54: #{basic_block_forward.3} parent=51 // pred_check_branch
        %4075 = sbr.rel (%p4073) target = $region56
      $region55: #{basic_block_forward.3} parent=51 // pred_region
        %p4076 = scmp.lt.s32.totalorder %s19, 1
        %s4077 = scalar_select %p4076, %s19, 1
        %s4078 = smul.addr %s4077, 32
        %s4079 = smul.addr %s4078, 4
        %s4080 = scalar_lea.vmem %s4, %s4079
      $region56: #{basic_block_forward.3} parent=51 // pred_fallthru
        _
      // Predicated region
      $region57: #{basic_block_forward.3} parent=51 // pred_check
        %p4081 = pneg %p157
      $region58: #{basic_block_forward.3} parent=51 // pred_check_branch
        %4083 = sbr.rel (%p4081) target = $region60
      $region59: #{basic_block_forward.3} parent=51 // pred_region
        %p4084 = scmp.lt.s32.totalorder %s19, 1
        %s4085 = scalar_select %p4084, %s19, 1
        %s4086 = scalar_lea.vmem %s5, %s4085
      $region60: #{basic_block_forward.3} parent=51 // pred_fallthru
        _
      // Predicated region
      $region61: #{basic_block_forward.3} parent=51 // pred_check
        %p4087 = pneg %p183
      $region62: #{basic_block_forward.3} parent=51 // pred_check_branch
        %4089 = sbr.rel (%p4087) target = $region64
      $region63: #{basic_block_forward.3} parent=51 // pred_region
        %p4090 = scmp.lt.s32.totalorder %s19, 1
        %s4091 = scalar_select %p4090, %s19, 1
        %s4092 = scalar_lea.vmem %s6, %s4091
      $region64: #{basic_block_forward.3} parent=51 // pred_fallthru
        _
    $region52: #{basic_block_forward.3} parent=5 // pred_fallthru
      _
  $region6: #{basic_block_forward.3} parent=0 // loop_footer
    %s17 = sadd.s32 1, %s13
  $region7: #{basic_block_forward.3} parent=0 // loop_footer_branch
    %12 = sbr.rel target = $region3
  $region8: #{basic_block_forward.3} parent=0 // loop_exit
    _

// kernel: basic_block_forward.4
$region0: #{basic_block_forward.4}
  #allocation0 [shape = 'u32[]', space=smem, size = 0x4, offset = 0x4, fixed_abs, tag = 'smem constant byte address 0x4 - core index']
  #allocation1 [shape = 'u32[144,128]{1,0:T(1,128)}', space=vmem, size = 0x12000, scoped, tag = 'internal scratch']
  #allocation2 [shape = 'bf16[304,4]{1,0:T(16,128)(2,1)}', space=vmem, size = 0x13000, scoped, tag = 'scratch operand']
  #allocation3 [shape = 'bf16[256,36]{1,0:T(16,128)(2,1)}', space=vmem, size = 0x10000, scoped, tag = 'scratch operand']
  %s0 = inlined_call_operand.vmem [shape: bf16[2,256,4], index: 0, kind: input, shape index: {}]
  %s1 = inlined_call_operand.vmem [shape: bf16[36,4], index: 1, kind: input, shape index: {}]
  %s2 = inlined_call_operand.vmem [shape: f32[1,4], index: 2, kind: input, shape index: {}]
  %s3 = inlined_call_operand.vmem [shape: f32[1,4], index: 3, kind: input, shape index: {}]
  %s4 = inlined_call_operand.vmem [shape: bf16[2,256,4], index: 4, kind: output, shape index: {0}]
  %s5 = inlined_call_operand.vmem [shape: f32[2,1,4], index: 5, kind: output, shape index: {1}]
  %s6 = inlined_call_operand.vmem [shape: f32[2,1,4], index: 6, kind: output, shape index: {2}]
  %7 = xla_tuple %s4, %s5, %s6
  %s8 = sld [smem:[#allocation0]]
  $region65: #{basic_block_forward.4} parent=0
    _
  %s10 = ssub.s32 1, %s8
  %s11 = scalar_select 0, %s10, %s8
  loop: start=0, step=1, limit=4
  $region2: #{basic_block_forward.4} parent=0 // loop_pre_header
    _
  $region3: #{basic_block_forward.4} parent=0 // loop_header
    %s13 = sphi 0, %s17
    %p14 = scmp.ge.s32.totalorder %s13, 4
    %s23 = sphi 0, %s25
    %s26 = sphi 0, %s23
    %s27 = sphi 0, %s26
    %s43 = sphi 0, %s27
    %s47 = sphi 0, %s47
    %s49 = sphi 0, %s47
    %s50 = sphi 0, %s49
    %s64 = sphi 0, %s50
    %s68 = sphi 0, %s68
    %s70 = sphi 0, %s68
    %s71 = sphi 0, %s70
    %s85 = sphi 0, %s71
    %s89 = sphi 0, %s89
    %s91 = sphi 0, %s89
    %s92 = sphi 0, %s91
    %s106 = sphi 0, %s92
    %s112 = sphi 0, %s114
    %s115 = sphi 0, %s112
    %s116 = sphi 0, %s115
    %s132 = sphi 0, %s116
    %s138 = sphi 0, %s140
    %s141 = sphi 0, %s138
    %s142 = sphi 0, %s141
    %s158 = sphi 0, %s142
    %s164 = sphi 0, %s166
    %s167 = sphi 0, %s164
    %s168 = sphi 0, %s167
    %s184 = sphi 0, %s168
  $region4: #{basic_block_forward.4} parent=0 // loop_header_branch
    %16 = sbr.rel (%p14) target = $region8
  $region5: #{basic_block_forward.4} parent=0 // loop_body
    %s18 = ssub.s32 %s13, 1
    %s19 = ssub.s32 %s13, 2
    %s20 = sadd.s32 %s13, 1
    %s21 = ssub.s32 %s13, %s20
    %p22 = scmp.eq.s32.totalorder %s21, 0
    %s24 = sadd.s32 %s23, 1
    %s25 = scalar_select %p22, %s23, %s24
    %p28 = pneg %p22
    %p29 = scmp.eq.s32.totalorder %s13, 1
    %p30 = por %p28, %p29
    %p31 = scmp.ne.s32.totalorder %s23, %s26
    %p32 = scmp.eq.s32.totalorder %s13, 0
    %p33 = por %p31, %p32
    %p34 = scmp.ne.s32.totalorder %s23, %s26
    %p35 = scmp.eq.s32.totalorder %s18, 1
    %p36 = por %p34, %p35
    %p37 = scmp.ne.s32.totalorder %s26, %s27
    %p38 = scmp.eq.s32.totalorder %s18, 0
    %p39 = por %p37, %p38
    %p40 = scmp.ne.s32.totalorder %s26, %s27
    %p41 = scmp.eq.s32.totalorder %s19, 1
    %p42 = por %p40, %p41
    %p44 = scmp.ne.s32.totalorder %s27, %s43
    %p45 = scmp.eq.s32.totalorder %s19, 0
    %p46 = por %p44, %p45
    %s48 = sadd.s32 %s47, 1
    %p51 = scmp.eq.s32.totalorder %s13, 1
    %p52 = scmp.ne.s32.totalorder %s47, %s49
    %p53 = scmp.eq.s32.totalorder %s13, 0
    %p54 = por %p52, %p53
    %p55 = scmp.ne.s32.totalorder %s47, %s49
    %p56 = scmp.eq.s32.totalorder %s18, 1
    %p57 = por %p55, %p56
    %p58 = scmp.ne.s32.totalorder %s49, %s50
    %p59 = scmp.eq.s32.totalorder %s18, 0
    %p60 = por %p58, %p59
    %p61 = scmp.ne.s32.totalorder %s49, %s50
    %p62 = scmp.eq.s32.totalorder %s19, 1
    %p63 = por %p61, %p62
    %p65 = scmp.ne.s32.totalorder %s50, %s64
    %p66 = scmp.eq.s32.totalorder %s19, 0
    %p67 = por %p65, %p66
    %s69 = sadd.s32 %s68, 1
    %p72 = scmp.eq.s32.totalorder %s13, 1
    %p73 = scmp.ne.s32.totalorder %s68, %s70
    %p74 = scmp.eq.s32.totalorder %s13, 0
    %p75 = por %p73, %p74
    %p76 = scmp.ne.s32.totalorder %s68, %s70
    %p77 = scmp.eq.s32.totalorder %s18, 1
    %p78 = por %p76, %p77
    %p79 = scmp.ne.s32.totalorder %s70, %s71
    %p80 = scmp.eq.s32.totalorder %s18, 0
    %p81 = por %p79, %p80
    %p82 = scmp.ne.s32.totalorder %s70, %s71
    %p83 = scmp.eq.s32.totalorder %s19, 1
    %p84 = por %p82, %p83
    %p86 = scmp.ne.s32.totalorder %s71, %s85
    %p87 = scmp.eq.s32.totalorder %s19, 0
    %p88 = por %p86, %p87
    %s90 = sadd.s32 %s89, 1
    %p93 = scmp.eq.s32.totalorder %s13, 1
    %p94 = scmp.ne.s32.totalorder %s89, %s91
    %p95 = scmp.eq.s32.totalorder %s13, 0
    %p96 = por %p94, %p95
    %p97 = scmp.ne.s32.totalorder %s89, %s91
    %p98 = scmp.eq.s32.totalorder %s18, 1
    %p99 = por %p97, %p98
    %p100 = scmp.ne.s32.totalorder %s91, %s92
    %p101 = scmp.eq.s32.totalorder %s18, 0
    %p102 = por %p100, %p101
    %p103 = scmp.ne.s32.totalorder %s91, %s92
    %p104 = scmp.eq.s32.totalorder %s19, 1
    %p105 = por %p103, %p104
    %p107 = scmp.ne.s32.totalorder %s92, %s106
    %p108 = scmp.eq.s32.totalorder %s19, 0
    %p109 = por %p107, %p108
    %s110 = ssub.s32 %s13, %s20
    %p111 = scmp.eq.s32.totalorder %s110, 0
    %s113 = sadd.s32 %s112, 1
    %s114 = scalar_select %p111, %s112, %s113
    %p117 = pneg %p111
    %p118 = scmp.eq.s32.totalorder %s13, 1
    %p119 = por %p117, %p118
    %p120 = scmp.ne.s32.totalorder %s112, %s115
    %p121 = scmp.eq.s32.totalorder %s13, 0
    %p122 = por %p120, %p121
    %p123 = scmp.ne.s32.totalorder %s112, %s115
    %p124 = scmp.eq.s32.totalorder %s18, 1
    %p125 = por %p123, %p124
    %p126 = scmp.ne.s32.totalorder %s115, %s116
    %p127 = scmp.eq.s32.totalorder %s18, 0
    %p128 = por %p126, %p127
    %p129 = scmp.ne.s32.totalorder %s115, %s116
    %p130 = scmp.eq.s32.totalorder %s19, 1
    %p131 = por %p129, %p130
    %p133 = scmp.ne.s32.totalorder %s116, %s132
    %p134 = scmp.eq.s32.totalorder %s19, 0
    %p135 = por %p133, %p134
    %s136 = ssub.s32 %s13, %s20
    %p137 = scmp.eq.s32.totalorder %s136, 0
    %s139 = sadd.s32 %s138, 1
    %s140 = scalar_select %p137, %s138, %s139
    %p143 = pneg %p137
    %p144 = scmp.eq.s32.totalorder %s13, 1
    %p145 = por %p143, %p144
    %p146 = scmp.ne.s32.totalorder %s138, %s141
    %p147 = scmp.eq.s32.totalorder %s13, 0
    %p148 = por %p146, %p147
    %p149 = scmp.ne.s32.totalorder %s138, %s141
    %p150 = scmp.eq.s32.totalorder %s18, 1
    %p151 = por %p149, %p150
    %p152 = scmp.ne.s32.totalorder %s141, %s142
    %p153 = scmp.eq.s32.totalorder %s18, 0
    %p154 = por %p152, %p153
    %p155 = scmp.ne.s32.totalorder %s141, %s142
    %p156 = scmp.eq.s32.totalorder %s19, 1
    %p157 = por %p155, %p156
    %p159 = scmp.ne.s32.totalorder %s142, %s158
    %p160 = scmp.eq.s32.totalorder %s19, 0
    %p161 = por %p159, %p160
    %s162 = ssub.s32 %s13, %s20
    %p163 = scmp.eq.s32.totalorder %s162, 0
    %s165 = sadd.s32 %s164, 1
    %s166 = scalar_select %p163, %s164, %s165
    %p169 = pneg %p163
    %p170 = scmp.eq.s32.totalorder %s13, 1
    %p171 = por %p169, %p170
    %p172 = scmp.ne.s32.totalorder %s164, %s167
    %p173 = scmp.eq.s32.totalorder %s13, 0
    %p174 = por %p172, %p173
    %p175 = scmp.ne.s32.totalorder %s164, %s167
    %p176 = scmp.eq.s32.totalorder %s18, 1
    %p177 = por %p175, %p176
    %p178 = scmp.ne.s32.totalorder %s167, %s168
    %p179 = scmp.eq.s32.totalorder %s18, 0
    %p180 = por %p178, %p179
    %p181 = scmp.ne.s32.totalorder %s167, %s168
    %p182 = scmp.eq.s32.totalorder %s19, 1
    %p183 = por %p181, %p182
    %p185 = scmp.ne.s32.totalorder %s168, %s184
    %p186 = scmp.eq.s32.totalorder %s19, 0
    %p187 = por %p185, %p186
    %p188 = scmp.le.s32.totalorder 1, %s13
    %p189 = scmp.lt.s32.totalorder %s13, 3
    %p190 = pnand %p188, %p189
    %p191 = pneg %p190
    // Predicated region
    $region9: #{basic_block_forward.4} parent=5 // pred_check
      _
    $region10: #{basic_block_forward.4} parent=5 // pred_check_branch
      %193 = sbr.rel (%p190) target = $region12
    $region11: #{basic_block_forward.4} parent=5 // pred_region
      %s194 = ssub.s32 %s13, 1
      // Predicated region
      $region13: #{basic_block_forward.4} parent=11 // pred_check
        %p195 = pneg %p60
      $region14: #{basic_block_forward.4} parent=11 // pred_check_branch
        %197 = sbr.rel (%p195) target = $region16
      $region15: #{basic_block_forward.4} parent=11 // pred_region
        _
      $region16: #{basic_block_forward.4} parent=11 // pred_fallthru
        _
      // Predicated region
      $region17: #{basic_block_forward.4} parent=11 // pred_check
        %p198 = pneg %p81
      $region18: #{basic_block_forward.4} parent=11 // pred_check_branch
        %200 = sbr.rel (%p198) target = $region20
      $region19: #{basic_block_forward.4} parent=11 // pred_region
        _
      $region20: #{basic_block_forward.4} parent=11 // pred_fallthru
        _
      // Predicated region
      $region21: #{basic_block_forward.4} parent=11 // pred_check
        %p201 = pneg %p102
      $region22: #{basic_block_forward.4} parent=11 // pred_check_branch
        %203 = sbr.rel (%p201) target = $region24
      $region23: #{basic_block_forward.4} parent=11 // pred_region
        _
      $region24: #{basic_block_forward.4} parent=11 // pred_fallthru
        _
    $region12: #{basic_block_forward.4} parent=5 // pred_fallthru
      _
    %p204 = scmp.lt.s32.totalorder %s13, 2
    // Predicated region
    $region25: #{basic_block_forward.4} parent=5 // pred_check
      %p205 = pneg %p204
    $region26: #{basic_block_forward.4} parent=5 // pred_check_branch
      %207 = sbr.rel (%p205) target = $region28
    $region27: #{basic_block_forward.4} parent=5 // pred_region
      // Predicated region
      $region29: #{basic_block_forward.4} parent=27 // pred_check
        %p208 = pneg %p33
      $region30: #{basic_block_forward.4} parent=27 // pred_check_branch
        %210 = sbr.rel (%p208) target = $region32
      $region31: #{basic_block_forward.4} parent=27 // pred_region
        %p211 = scmp.lt.s32.totalorder %s13, 1
        %s212 = scalar_select %p211, %s13, 1
        %s213 = smul.addr %s212, 32
        %s214 = smul.addr %s213, 4
        %s215 = scalar_lea.vmem %s0, %s214
      $region32: #{basic_block_forward.4} parent=27 // pred_fallthru
        _
    $region28: #{basic_block_forward.4} parent=5 // pred_fallthru
      _
    %p216 = scmp.le.s32.totalorder 1, %s13
    %p217 = scmp.lt.s32.totalorder %s13, 3
    %p218 = pnand %p216, %p217
    %p219 = pneg %p218
    // Predicated region
    $region33: #{basic_block_forward.4} parent=5 // pred_check
      _
    $region34: #{basic_block_forward.4} parent=5 // pred_check_branch
      %221 = sbr.rel (%p218) target = $region36
    $region35: #{basic_block_forward.4} parent=5 // pred_region
      %s222 = ssub.s32 %s13, 1
      %p223 = scmp.lt.s32.totalorder %s18, 1
      %s224 = scalar_select %p223, %s18, 1
      %s225 = smul.addr %s224, 32
      %s226 = smul.addr %s225, 4
      %s227 = scalar_lea.vmem %s0, %s226
      %p228 = pneg %p39
      %p229 = pneg %p36
      %p230 = pneg %p60
      %p231 = pneg %p57
      %p232 = pneg %p81
      %p233 = pneg %p78
      %p234 = pneg %p102
      %p235 = pneg %p99
      %p236 = pneg %p128
      %p237 = pneg %p125
      %p238 = scmp.lt.s32.totalorder %s18, 1
      %s239 = scalar_select %p238, %s18, 1
      %s240 = smul.addr %s239, 32
      %s241 = smul.addr %s240, 4
      %s242 = scalar_lea.vmem %s4, %s241
      %p243 = pneg %p154
      %p244 = pneg %p151
      %p245 = scmp.lt.s32.totalorder %s18, 1
      %s246 = scalar_select %p245, %s18, 1
      %s247 = scalar_lea.vmem %s5, %s246
      %p248 = pneg %p180
      %p249 = pneg %p177
      %p250 = scmp.lt.s32.totalorder %s18, 1
      %s251 = scalar_select %p250, %s18, 1
      %s252 = scalar_lea.vmem %s6, %s251
      %p253 = scmp.lt.s32.totalorder %s18, 1
      %s254 = scalar_select %p253, %s18, 1
      %s255 = smul.addr %s254, 32
      %s256 = smul.addr %s255, 4
      %s257 = scalar_lea.vmem %s0, %s256
      %p258 = scmp.lt.s32.totalorder %s18, 1
      %s259 = scalar_select %p258, %s18, 1
      %s260 = smul.addr %s259, 32
      %s261 = smul.addr %s260, 4
      %s262 = scalar_lea.vmem %s4, %s261
      %p263 = scmp.lt.s32.totalorder %s18, 1
      %s264 = scalar_select %p263, %s18, 1
      %s265 = scalar_lea.vmem %s5, %s264
      %p266 = scmp.lt.s32.totalorder %s18, 1
      %s267 = scalar_select %p266, %s18, 1
      %s268 = scalar_lea.vmem %s6, %s267
      %vm272 = vcmask 31744
      %273 = vst.msk [vmem:[#allocation2] sm:$0xff] %vm272, 0
      %vm274 = vcmask 27648
      %275 = vst.msk [vmem:[#allocation2 + $0x8] sm:$0xf] %vm274, 0
      %vm276 = vcmask 31748
      %277 = vst.msk [vmem:[#allocation2 + $0x88] sm:$0xf0] %vm276, 0
      %278 = vst.msk [vmem:[#allocation2 + $0x90] sm:$0xff] %vm272, 0
      %v279 = vld [vmem:[%s257] sm:$0xf]
      %v280 = vld [vmem:[%s257 + $0x4] sm:$0xf]
      %v281 = vld [vmem:[%s257 + $0x8] sm:$0xf]
      %v282 = vld [vmem:[%s257 + $0xc] sm:$0xf]
      %v283 = vld [vmem:[%s257 + $0x10] sm:$0xf]
      %v284 = vld [vmem:[%s257 + $0x14] sm:$0xf]
      %v285 = vld [vmem:[%s257 + $0x18] sm:$0xf]
      %v286 = vld [vmem:[%s257 + $0x1c] sm:$0xf]
      %v287 = vld [vmem:[%s257 + $0x20] sm:$0xf]
      %v288 = vld [vmem:[%s257 + $0x24] sm:$0xf]
      %v289 = vld [vmem:[%s257 + $0x28] sm:$0xf]
      %v290 = vld [vmem:[%s257 + $0x2c] sm:$0xf]
      %v291 = vld [vmem:[%s257 + $0x30] sm:$0xf]
      %v292 = vld [vmem:[%s257 + $0x34] sm:$0xf]
      %v293 = vld [vmem:[%s257 + $0x38] sm:$0xf]
      %v294 = vld [vmem:[%s257 + $0x3c] sm:$0xf]
      %v295 = vld [vmem:[%s257 + $0x40] sm:$0xf]
      %v296 = vld [vmem:[%s257 + $0x44] sm:$0xf]
      %v297 = vld [vmem:[%s257 + $0x48] sm:$0xf]
      %v298 = vld [vmem:[%s257 + $0x4c] sm:$0xf]
      %v299 = vld [vmem:[%s257 + $0x50] sm:$0xf]
      %v300 = vld [vmem:[%s257 + $0x54] sm:$0xf]
      %v301 = vld [vmem:[%s257 + $0x58] sm:$0xf]
      %v302 = vld [vmem:[%s257 + $0x5c] sm:$0xf]
      %v303 = vld [vmem:[%s257 + $0x60] sm:$0xf]
      %v304 = vld [vmem:[%s257 + $0x64] sm:$0xf]
      %v305 = vld [vmem:[%s257 + $0x68] sm:$0xf]
      %v306 = vld [vmem:[%s257 + $0x6c] sm:$0xf]
      %v307 = vld [vmem:[%s257 + $0x70] sm:$0xf]
      %v308 = vld [vmem:[%s257 + $0x74] sm:$0xf]
      %v309 = vld [vmem:[%s257 + $0x78] sm:$0xf]
      %v310 = vld [vmem:[%s257 + $0x7c] sm:$0xf]
      %v311 = vunpack.c.l.bf16 %v279
      %v312 = vunpack.c.l.bf16 %v280
      %v313 = vunpack.c.l.bf16 %v281
      %v314 = vunpack.c.l.bf16 %v282
      %v315 = vunpack.c.l.bf16 %v283
      %v316 = vunpack.c.l.bf16 %v284
      %v317 = vunpack.c.l.bf16 %v285
      %v318 = vunpack.c.l.bf16 %v286
      %v319 = vunpack.c.l.bf16 %v287
      %v320 = vunpack.c.l.bf16 %v288
      %v321 = vunpack.c.l.bf16 %v289
      %v322 = vunpack.c.l.bf16 %v290
      %v323 = vunpack.c.l.bf16 %v291
      %v324 = vunpack.c.l.bf16 %v292
      %v325 = vunpack.c.l.bf16 %v293
      %v326 = vunpack.c.l.bf16 %v294
      %v327 = vunpack.c.l.bf16 %v295
      %v328 = vunpack.c.l.bf16 %v296
      %v329 = vunpack.c.l.bf16 %v297
      %v330 = vunpack.c.l.bf16 %v298
      %v331 = vunpack.c.l.bf16 %v299
      %v332 = vunpack.c.l.bf16 %v300
      %v333 = vunpack.c.l.bf16 %v301
      %v334 = vunpack.c.l.bf16 %v302
      %v335 = vunpack.c.l.bf16 %v303
      %v336 = vunpack.c.l.bf16 %v304
      %v337 = vunpack.c.l.bf16 %v305
      %v338 = vunpack.c.l.bf16 %v306
      %v339 = vunpack.c.l.bf16 %v307
      %v340 = vunpack.c.l.bf16 %v308
      %v341 = vunpack.c.l.bf16 %v309
      %v342 = vunpack.c.l.bf16 %v310
      %v343 = vld [vmem:[%s2] sm:$0x1]
      %v345 = vlaneseq
      %v346 = vshrl.u32 %v345, 7
      %v347 = vsub.s32 0, %v346
      %v348 = vrot.slane %v343, %v347
      %v350 = vmul.f32 %v311, %v348
      %v351 = vmul.f32 %v312, %v348
      %v352 = vmul.f32 %v313, %v348
      %v353 = vmul.f32 %v314, %v348
      %v354 = vmul.f32 %v315, %v348
      %v355 = vmul.f32 %v316, %v348
      %v356 = vmul.f32 %v317, %v348
      %v357 = vmul.f32 %v318, %v348
      %v358 = vmul.f32 %v319, %v348
      %v359 = vmul.f32 %v320, %v348
      %v360 = vmul.f32 %v321, %v348
      %v361 = vmul.f32 %v322, %v348
      %v362 = vmul.f32 %v323, %v348
      %v363 = vmul.f32 %v324, %v348
      %v364 = vmul.f32 %v325, %v348
      %v365 = vmul.f32 %v326, %v348
      %v366 = vmul.f32 %v327, %v348
      %v367 = vmul.f32 %v328, %v348
      %v368 = vmul.f32 %v329, %v348
      %v369 = vmul.f32 %v330, %v348
      %v370 = vmul.f32 %v331, %v348
      %v371 = vmul.f32 %v332, %v348
      %v372 = vmul.f32 %v333, %v348
      %v373 = vmul.f32 %v334, %v348
      %v374 = vmul.f32 %v335, %v348
      %v375 = vmul.f32 %v336, %v348
      %v376 = vmul.f32 %v337, %v348
      %v377 = vmul.f32 %v338, %v348
      %v378 = vmul.f32 %v339, %v348
      %v379 = vmul.f32 %v340, %v348
      %v380 = vmul.f32 %v341, %v348
      %v381 = vmul.f32 %v342, %v348
      %v382 = vld [vmem:[%s3] sm:$0x1]
      %v384 = vlaneseq
      %v385 = vshrl.u32 %v384, 7
      %v386 = vsub.s32 0, %v385
      %v387 = vrot.slane %v382, %v386
      %v389 = vadd.f32 %v350, %v387
      %v390 = vadd.f32 %v351, %v387
      %v391 = vadd.f32 %v352, %v387
      %v392 = vadd.f32 %v353, %v387
      %v393 = vadd.f32 %v354, %v387
      %v394 = vadd.f32 %v355, %v387
      %v395 = vadd.f32 %v356, %v387
      %v396 = vadd.f32 %v357, %v387
      %v397 = vadd.f32 %v358, %v387
      %v398 = vadd.f32 %v359, %v387
      %v399 = vadd.f32 %v360, %v387
      %v400 = vadd.f32 %v361, %v387
      %v401 = vadd.f32 %v362, %v387
      %v402 = vadd.f32 %v363, %v387
      %v403 = vadd.f32 %v364, %v387
      %v404 = vadd.f32 %v365, %v387
      %v405 = vadd.f32 %v366, %v387
      %v406 = vadd.f32 %v367, %v387
      %v407 = vadd.f32 %v368, %v387
      %v408 = vadd.f32 %v369, %v387
      %v409 = vadd.f32 %v370, %v387
      %v410 = vadd.f32 %v371, %v387
      %v411 = vadd.f32 %v372, %v387
      %v412 = vadd.f32 %v373, %v387
      %v413 = vadd.f32 %v374, %v387
      %v414 = vadd.f32 %v375, %v387
      %v415 = vadd.f32 %v376, %v387
      %v416 = vadd.f32 %v377, %v387
      %v417 = vadd.f32 %v378, %v387
      %v418 = vadd.f32 %v379, %v387
      %v419 = vadd.f32 %v380, %v387
      %v420 = vadd.f32 %v381, %v387
      %v421 = vmax.f32 %v389, 0.0
      %v422 = vmax.f32 %v390, 0.0
      %v423 = vmax.f32 %v391, 0.0
      %v424 = vmax.f32 %v392, 0.0
      %v425 = vmax.f32 %v393, 0.0
      %v426 = vmax.f32 %v394, 0.0
      %v427 = vmax.f32 %v395, 0.0
      %v428 = vmax.f32 %v396, 0.0
      %v429 = vmax.f32 %v397, 0.0
      %v430 = vmax.f32 %v398, 0.0
      %v431 = vmax.f32 %v399, 0.0
      %v432 = vmax.f32 %v400, 0.0
      %v433 = vmax.f32 %v401, 0.0
      %v434 = vmax.f32 %v402, 0.0
      %v435 = vmax.f32 %v403, 0.0
      %v436 = vmax.f32 %v404, 0.0
      %v437 = vmax.f32 %v405, 0.0
      %v438 = vmax.f32 %v406, 0.0
      %v439 = vmax.f32 %v407, 0.0
      %v440 = vmax.f32 %v408, 0.0
      %v441 = vmax.f32 %v409, 0.0
      %v442 = vmax.f32 %v410, 0.0
      %v443 = vmax.f32 %v411, 0.0
      %v444 = vmax.f32 %v412, 0.0
      %v445 = vmax.f32 %v413, 0.0
      %v446 = vmax.f32 %v414, 0.0
      %v447 = vmax.f32 %v415, 0.0
      %v448 = vmax.f32 %v416, 0.0
      %v449 = vmax.f32 %v417, 0.0
      %v450 = vmax.f32 %v418, 0.0
      %v451 = vmax.f32 %v419, 0.0
      %v452 = vmax.f32 %v420, 0.0
      %v453 = vpack.c.bf16 %v422, %v421
      %v454 = vpack.c.bf16 %v424, %v423
      %v455 = vpack.c.bf16 %v426, %v425
      %v456 = vpack.c.bf16 %v428, %v427
      %v457 = vpack.c.bf16 %v430, %v429
      %v458 = vpack.c.bf16 %v432, %v431
      %v459 = vpack.c.bf16 %v434, %v433
      %v460 = vpack.c.bf16 %v436, %v435
      %v461 = vpack.c.bf16 %v438, %v437
      %v462 = vpack.c.bf16 %v440, %v439
      %v463 = vpack.c.bf16 %v442, %v441
      %v464 = vpack.c.bf16 %v444, %v443
      %v465 = vpack.c.bf16 %v446, %v445
      %v466 = vpack.c.bf16 %v448, %v447
      %v467 = vpack.c.bf16 %v450, %v449
      %v468 = vpack.c.bf16 %v452, %v451
      %vm485 = vcmask 1043456
      %v486 = vrot.slane %v453, 4
      %v487 = vrot.slane %v454, 4
      %v488 = vsel %vm485, %v486, %v487
      %v489 = vrot.slane %v455, 4
      %v490 = vsel %vm485, %v487, %v489
      %v491 = vrot.slane %v456, 4
      %v492 = vsel %vm485, %v489, %v491
      %v493 = vrot.slane %v457, 4
      %v494 = vsel %vm485, %v491, %v493
      %v495 = vrot.slane %v458, 4
      %v496 = vsel %vm485, %v493, %v495
      %v497 = vrot.slane %v459, 4
      %v498 = vsel %vm485, %v495, %v497
      %v499 = vrot.slane %v460, 4
      %v500 = vsel %vm485, %v497, %v499
      %v501 = vrot.slane %v461, 4
      %v502 = vsel %vm485, %v499, %v501
      %v503 = vrot.slane %v462, 4
      %v504 = vsel %vm485, %v501, %v503
      %v505 = vrot.slane %v463, 4
      %v506 = vsel %vm485, %v503, %v505
      %v507 = vrot.slane %v464, 4
      %v508 = vsel %vm485, %v505, %v507
      %v509 = vrot.slane %v465, 4
      %v510 = vsel %vm485, %v507, %v509
      %v511 = vrot.slane %v466, 4
      %v512 = vsel %vm485, %v509, %v511
      %v513 = vrot.slane %v467, 4
      %v514 = vsel %vm485, %v511, %v513
      %v515 = vrot.slane %v468, 4
      %v516 = vsel %vm485, %v513, %v515
      %534 = vst.msk [vmem:[#allocation2 + $0x8] sm:$0xf0] %vm276, %v486
      %535 = vst.msk [vmem:[#allocation2 + $0x10] sm:$0xff] %vm272, %v488
      %536 = vst.msk [vmem:[#allocation2 + $0x18] sm:$0xff] %vm272, %v490
      %537 = vst.msk [vmem:[#allocation2 + $0x20] sm:$0xff] %vm272, %v492
      %538 = vst.msk [vmem:[#allocation2 + $0x28] sm:$0xff] %vm272, %v494
      %539 = vst.msk [vmem:[#allocation2 + $0x30] sm:$0xff] %vm272, %v496
      %540 = vst.msk [vmem:[#allocation2 + $0x38] sm:$0xff] %vm272, %v498
      %541 = vst.msk [vmem:[#allocation2 + $0x40] sm:$0xff] %vm272, %v500
      %542 = vst.msk [vmem:[#allocation2 + $0x48] sm:$0xff] %vm272, %v502
      %543 = vst.msk [vmem:[#allocation2 + $0x50] sm:$0xff] %vm272, %v504
      %544 = vst.msk [vmem:[#allocation2 + $0x58] sm:$0xff] %vm272, %v506
      %545 = vst.msk [vmem:[#allocation2 + $0x60] sm:$0xff] %vm272, %v508
      %546 = vst.msk [vmem:[#allocation2 + $0x68] sm:$0xff] %vm272, %v510
      %547 = vst.msk [vmem:[#allocation2 + $0x70] sm:$0xff] %vm272, %v512
      %548 = vst.msk [vmem:[#allocation2 + $0x78] sm:$0xff] %vm272, %v514
      %549 = vst.msk [vmem:[#allocation2 + $0x80] sm:$0xff] %vm272, %v516
      %550 = vst.msk [vmem:[#allocation2 + $0x88] sm:$0xf] %vm274, %v515
      %v551 = vlaneseq
      %v552 = vshrl.u32 %v551, 7
      %v553 = vadd.s32 %v552, 8
      %v554 = vadd.s32 %v552, 16
      %v555 = vadd.s32 %v552, 24
      %v556 = vadd.s32 %v552, 32
      %v557 = vadd.s32 %v552, 40
      %v558 = vadd.s32 %v552, 48
      %v559 = vadd.s32 %v552, 56
      %v560 = vadd.s32 %v552, 64
      %v561 = vadd.s32 %v552, 72
      %v562 = vadd.s32 %v552, 80
      %v563 = vadd.s32 %v552, 88
      %v564 = vadd.s32 %v552, 96
      %v565 = vadd.s32 %v552, 104
      %v566 = vadd.s32 %v552, 112
      %v567 = vadd.s32 %v552, 120
      %v568 = vadd.s32 %v552, 128
      %v569 = vadd.s32 %v552, 136
      %v570 = vadd.s32 %v552, 144
      %v571 = vadd.s32 %v552, 152
      %v572 = vadd.s32 %v552, 160
      %v573 = vadd.s32 %v552, 168
      %v574 = vadd.s32 %v552, 176
      %v575 = vadd.s32 %v552, 184
      %v576 = vadd.s32 %v552, 192
      %v577 = vadd.s32 %v552, 200
      %v578 = vadd.s32 %v552, 208
      %v579 = vadd.s32 %v552, 216
      %v580 = vadd.s32 %v552, 224
      %v581 = vadd.s32 %v552, 232
      %v582 = vadd.s32 %v552, 240
      %v583 = vadd.s32 %v552, 248
      %vm584 = vcmp.lt.s32.totalorder %v552, 0
      %v585 = vsub.s32 0, %v552
      %v586 = vsel %vm584, %v585, %v552
      %v587 = vshrl.u32 %v586, 4
      %v588 = vand.u32 %v586, 15
      %v589 = vsub.s32 0, %v588
      %v590 = vsel %vm584, %v589, %v588
      %vm591 = vcmp.lt.s32.totalorder %v553, 0
      %v592 = vsub.s32 0, %v553
      %v593 = vsel %vm591, %v592, %v553
      %v594 = vshrl.u32 %v593, 4
      %v595 = vand.u32 %v593, 15
      %v596 = vsub.s32 0, %v595
      %v597 = vsel %vm591, %v596, %v595
      %vm598 = vcmp.lt.s32.totalorder %v554, 0
      %v599 = vsub.s32 0, %v554
      %v600 = vsel %vm598, %v599, %v554
      %v601 = vshrl.u32 %v600, 4
      %v602 = vand.u32 %v600, 15
      %v603 = vsub.s32 0, %v602
      %v604 = vsel %vm598, %v603, %v602
      %vm605 = vcmp.lt.s32.totalorder %v555, 0
      %v606 = vsub.s32 0, %v555
      %v607 = vsel %vm605, %v606, %v555
      %v608 = vshrl.u32 %v607, 4
      %v609 = vand.u32 %v607, 15
      %v610 = vsub.s32 0, %v609
      %v611 = vsel %vm605, %v610, %v609
      %vm612 = vcmp.lt.s32.totalorder %v556, 0
      %v613 = vsub.s32 0, %v556
      %v614 = vsel %vm612, %v613, %v556
      %v615 = vshrl.u32 %v614, 4
      %v616 = vand.u32 %v614, 15
      %v617 = vsub.s32 0, %v616
      %v618 = vsel %vm612, %v617, %v616
      %vm619 = vcmp.lt.s32.totalorder %v557, 0
      %v620 = vsub.s32 0, %v557
      %v621 = vsel %vm619, %v620, %v557
      %v622 = vshrl.u32 %v621, 4
      %v623 = vand.u32 %v621, 15
      %v624 = vsub.s32 0, %v623
      %v625 = vsel %vm619, %v624, %v623
      %vm626 = vcmp.lt.s32.totalorder %v558, 0
      %v627 = vsub.s32 0, %v558
      %v628 = vsel %vm626, %v627, %v558
      %v629 = vshrl.u32 %v628, 4
      %v630 = vand.u32 %v628, 15
      %v631 = vsub.s32 0, %v630
      %v632 = vsel %vm626, %v631, %v630
      %vm633 = vcmp.lt.s32.totalorder %v559, 0
      %v634 = vsub.s32 0, %v559
      %v635 = vsel %vm633, %v634, %v559
      %v636 = vshrl.u32 %v635, 4
      %v637 = vand.u32 %v635, 15
      %v638 = vsub.s32 0, %v637
      %v639 = vsel %vm633, %v638, %v637
      %vm640 = vcmp.lt.s32.totalorder %v560, 0
      %v641 = vsub.s32 0, %v560
      %v642 = vsel %vm640, %v641, %v560
      %v643 = vshrl.u32 %v642, 4
      %v644 = vand.u32 %v642, 15
      %v645 = vsub.s32 0, %v644
      %v646 = vsel %vm640, %v645, %v644
      %vm647 = vcmp.lt.s32.totalorder %v561, 0
      %v648 = vsub.s32 0, %v561
      %v649 = vsel %vm647, %v648, %v561
      %v650 = vshrl.u32 %v649, 4
      %v651 = vand.u32 %v649, 15
      %v652 = vsub.s32 0, %v651
      %v653 = vsel %vm647, %v652, %v651
      %vm654 = vcmp.lt.s32.totalorder %v562, 0
      %v655 = vsub.s32 0, %v562
      %v656 = vsel %vm654, %v655, %v562
      %v657 = vshrl.u32 %v656, 4
      %v658 = vand.u32 %v656, 15
      %v659 = vsub.s32 0, %v658
      %v660 = vsel %vm654, %v659, %v658
      %vm661 = vcmp.lt.s32.totalorder %v563, 0
      %v662 = vsub.s32 0, %v563
      %v663 = vsel %vm661, %v662, %v563
      %v664 = vshrl.u32 %v663, 4
      %v665 = vand.u32 %v663, 15
      %v666 = vsub.s32 0, %v665
      %v667 = vsel %vm661, %v666, %v665
      %vm668 = vcmp.lt.s32.totalorder %v564, 0
      %v669 = vsub.s32 0, %v564
      %v670 = vsel %vm668, %v669, %v564
      %v671 = vshrl.u32 %v670, 4
      %v672 = vand.u32 %v670, 15
      %v673 = vsub.s32 0, %v672
      %v674 = vsel %vm668, %v673, %v672
      %vm675 = vcmp.lt.s32.totalorder %v565, 0
      %v676 = vsub.s32 0, %v565
      %v677 = vsel %vm675, %v676, %v565
      %v678 = vshrl.u32 %v677, 4
      %v679 = vand.u32 %v677, 15
      %v680 = vsub.s32 0, %v679
      %v681 = vsel %vm675, %v680, %v679
      %vm682 = vcmp.lt.s32.totalorder %v566, 0
      %v683 = vsub.s32 0, %v566
      %v684 = vsel %vm682, %v683, %v566
      %v685 = vshrl.u32 %v684, 4
      %v686 = vand.u32 %v684, 15
      %v687 = vsub.s32 0, %v686
      %v688 = vsel %vm682, %v687, %v686
      %vm689 = vcmp.lt.s32.totalorder %v567, 0
      %v690 = vsub.s32 0, %v567
      %v691 = vsel %vm689, %v690, %v567
      %v692 = vshrl.u32 %v691, 4
      %v693 = vand.u32 %v691, 15
      %v694 = vsub.s32 0, %v693
      %v695 = vsel %vm689, %v694, %v693
      %vm696 = vcmp.lt.s32.totalorder %v568, 0
      %v697 = vsub.s32 0, %v568
      %v698 = vsel %vm696, %v697, %v568
      %v699 = vshrl.u32 %v698, 4
      %v700 = vand.u32 %v698, 15
      %v701 = vsub.s32 0, %v700
      %v702 = vsel %vm696, %v701, %v700
      %vm703 = vcmp.lt.s32.totalorder %v569, 0
      %v704 = vsub.s32 0, %v569
      %v705 = vsel %vm703, %v704, %v569
      %v706 = vshrl.u32 %v705, 4
      %v707 = vand.u32 %v705, 15
      %v708 = vsub.s32 0, %v707
      %v709 = vsel %vm703, %v708, %v707
      %vm710 = vcmp.lt.s32.totalorder %v570, 0
      %v711 = vsub.s32 0, %v570
      %v712 = vsel %vm710, %v711, %v570
      %v713 = vshrl.u32 %v712, 4
      %v714 = vand.u32 %v712, 15
      %v715 = vsub.s32 0, %v714
      %v716 = vsel %vm710, %v715, %v714
      %vm717 = vcmp.lt.s32.totalorder %v571, 0
      %v718 = vsub.s32 0, %v571
      %v719 = vsel %vm717, %v718, %v571
      %v720 = vshrl.u32 %v719, 4
      %v721 = vand.u32 %v719, 15
      %v722 = vsub.s32 0, %v721
      %v723 = vsel %vm717, %v722, %v721
      %vm724 = vcmp.lt.s32.totalorder %v572, 0
      %v725 = vsub.s32 0, %v572
      %v726 = vsel %vm724, %v725, %v572
      %v727 = vshrl.u32 %v726, 4
      %v728 = vand.u32 %v726, 15
      %v729 = vsub.s32 0, %v728
      %v730 = vsel %vm724, %v729, %v728
      %vm731 = vcmp.lt.s32.totalorder %v573, 0
      %v732 = vsub.s32 0, %v573
      %v733 = vsel %vm731, %v732, %v573
      %v734 = vshrl.u32 %v733, 4
      %v735 = vand.u32 %v733, 15
      %v736 = vsub.s32 0, %v735
      %v737 = vsel %vm731, %v736, %v735
      %vm738 = vcmp.lt.s32.totalorder %v574, 0
      %v739 = vsub.s32 0, %v574
      %v740 = vsel %vm738, %v739, %v574
      %v741 = vshrl.u32 %v740, 4
      %v742 = vand.u32 %v740, 15
      %v743 = vsub.s32 0, %v742
      %v744 = vsel %vm738, %v743, %v742
      %vm745 = vcmp.lt.s32.totalorder %v575, 0
      %v746 = vsub.s32 0, %v575
      %v747 = vsel %vm745, %v746, %v575
      %v748 = vshrl.u32 %v747, 4
      %v749 = vand.u32 %v747, 15
      %v750 = vsub.s32 0, %v749
      %v751 = vsel %vm745, %v750, %v749
      %vm752 = vcmp.lt.s32.totalorder %v576, 0
      %v753 = vsub.s32 0, %v576
      %v754 = vsel %vm752, %v753, %v576
      %v755 = vshrl.u32 %v754, 4
      %v756 = vand.u32 %v754, 15
      %v757 = vsub.s32 0, %v756
      %v758 = vsel %vm752, %v757, %v756
      %vm759 = vcmp.lt.s32.totalorder %v577, 0
      %v760 = vsub.s32 0, %v577
      %v761 = vsel %vm759, %v760, %v577
      %v762 = vshrl.u32 %v761, 4
      %v763 = vand.u32 %v761, 15
      %v764 = vsub.s32 0, %v763
      %v765 = vsel %vm759, %v764, %v763
      %vm766 = vcmp.lt.s32.totalorder %v578, 0
      %v767 = vsub.s32 0, %v578
      %v768 = vsel %vm766, %v767, %v578
      %v769 = vshrl.u32 %v768, 4
      %v770 = vand.u32 %v768, 15
      %v771 = vsub.s32 0, %v770
      %v772 = vsel %vm766, %v771, %v770
      %vm773 = vcmp.lt.s32.totalorder %v579, 0
      %v774 = vsub.s32 0, %v579
      %v775 = vsel %vm773, %v774, %v579
      %v776 = vshrl.u32 %v775, 4
      %v777 = vand.u32 %v775, 15
      %v778 = vsub.s32 0, %v777
      %v779 = vsel %vm773, %v778, %v777
      %vm780 = vcmp.lt.s32.totalorder %v580, 0
      %v781 = vsub.s32 0, %v580
      %v782 = vsel %vm780, %v781, %v580
      %v783 = vshrl.u32 %v782, 4
      %v784 = vand.u32 %v782, 15
      %v785 = vsub.s32 0, %v784
      %v786 = vsel %vm780, %v785, %v784
      %vm787 = vcmp.lt.s32.totalorder %v581, 0
      %v788 = vsub.s32 0, %v581
      %v789 = vsel %vm787, %v788, %v581
      %v790 = vshrl.u32 %v789, 4
      %v791 = vand.u32 %v789, 15
      %v792 = vsub.s32 0, %v791
      %v793 = vsel %vm787, %v792, %v791
      %vm794 = vcmp.lt.s32.totalorder %v582, 0
      %v795 = vsub.s32 0, %v582
      %v796 = vsel %vm794, %v795, %v582
      %v797 = vshrl.u32 %v796, 4
      %v798 = vand.u32 %v796, 15
      %v799 = vsub.s32 0, %v798
      %v800 = vsel %vm794, %v799, %v798
      %vm801 = vcmp.lt.s32.totalorder %v583, 0
      %v802 = vsub.s32 0, %v583
      %v803 = vsel %vm801, %v802, %v583
      %v804 = vshrl.u32 %v803, 4
      %v805 = vand.u32 %v803, 15
      %v806 = vsub.s32 0, %v805
      %v807 = vsel %vm801, %v806, %v805
      %vm808 = vcmp.ne.s32.totalorder %v590, 0
      %vm809 = vcmp.ne.s32.totalorder %v597, 0
      %vm810 = vcmp.ne.s32.totalorder %v604, 0
      %vm811 = vcmp.ne.s32.totalorder %v611, 0
      %vm812 = vcmp.ne.s32.totalorder %v618, 0
      %vm813 = vcmp.ne.s32.totalorder %v625, 0
      %vm814 = vcmp.ne.s32.totalorder %v632, 0
      %vm815 = vcmp.ne.s32.totalorder %v639, 0
      %vm816 = vcmp.ne.s32.totalorder %v646, 0
      %vm817 = vcmp.ne.s32.totalorder %v653, 0
      %vm818 = vcmp.ne.s32.totalorder %v660, 0
      %vm819 = vcmp.ne.s32.totalorder %v667, 0
      %vm820 = vcmp.ne.s32.totalorder %v674, 0
      %vm821 = vcmp.ne.s32.totalorder %v681, 0
      %vm822 = vcmp.ne.s32.totalorder %v688, 0
      %vm823 = vcmp.ne.s32.totalorder %v695, 0
      %vm824 = vcmp.ne.s32.totalorder %v702, 0
      %vm825 = vcmp.ne.s32.totalorder %v709, 0
      %vm826 = vcmp.ne.s32.totalorder %v716, 0
      %vm827 = vcmp.ne.s32.totalorder %v723, 0
      %vm828 = vcmp.ne.s32.totalorder %v730, 0
      %vm829 = vcmp.ne.s32.totalorder %v737, 0
      %vm830 = vcmp.ne.s32.totalorder %v744, 0
      %vm831 = vcmp.ne.s32.totalorder %v751, 0
      %vm832 = vcmp.ne.s32.totalorder %v758, 0
      %vm833 = vcmp.ne.s32.totalorder %v765, 0
      %vm834 = vcmp.ne.s32.totalorder %v772, 0
      %vm835 = vcmp.ne.s32.totalorder %v779, 0
      %vm836 = vcmp.ne.s32.totalorder %v786, 0
      %vm837 = vcmp.ne.s32.totalorder %v793, 0
      %vm838 = vcmp.ne.s32.totalorder %v800, 0
      %vm839 = vcmp.ne.s32.totalorder %v807, 0
      %vm840 = vcmp.lt.s32.totalorder %v590, 0
      %vm841 = vcmp.lt.s32.totalorder %v597, 0
      %vm842 = vcmp.lt.s32.totalorder %v604, 0
      %vm843 = vcmp.lt.s32.totalorder %v611, 0
      %vm844 = vcmp.lt.s32.totalorder %v618, 0
      %vm845 = vcmp.lt.s32.totalorder %v625, 0
      %vm846 = vcmp.lt.s32.totalorder %v632, 0
      %vm847 = vcmp.lt.s32.totalorder %v639, 0
      %vm848 = vcmp.lt.s32.totalorder %v646, 0
      %vm849 = vcmp.lt.s32.totalorder %v653, 0
      %vm850 = vcmp.lt.s32.totalorder %v660, 0
      %vm851 = vcmp.lt.s32.totalorder %v667, 0
      %vm852 = vcmp.lt.s32.totalorder %v674, 0
      %vm853 = vcmp.lt.s32.totalorder %v681, 0
      %vm854 = vcmp.lt.s32.totalorder %v688, 0
      %vm855 = vcmp.lt.s32.totalorder %v695, 0
      %vm856 = vcmp.lt.s32.totalorder %v702, 0
      %vm857 = vcmp.lt.s32.totalorder %v709, 0
      %vm858 = vcmp.lt.s32.totalorder %v716, 0
      %vm859 = vcmp.lt.s32.totalorder %v723, 0
      %vm860 = vcmp.lt.s32.totalorder %v730, 0
      %vm861 = vcmp.lt.s32.totalorder %v737, 0
      %vm862 = vcmp.lt.s32.totalorder %v744, 0
      %vm863 = vcmp.lt.s32.totalorder %v751, 0
      %vm864 = vcmp.lt.s32.totalorder %v758, 0
      %vm865 = vcmp.lt.s32.totalorder %v765, 0
      %vm866 = vcmp.lt.s32.totalorder %v772, 0
      %vm867 = vcmp.lt.s32.totalorder %v779, 0
      %vm868 = vcmp.lt.s32.totalorder %v786, 0
      %vm869 = vcmp.lt.s32.totalorder %v793, 0
      %vm870 = vcmp.lt.s32.totalorder %v800, 0
      %vm871 = vcmp.lt.s32.totalorder %v807, 0
      %vm872 = vmand %vm840, %vm808
      %vm873 = vmand %vm841, %vm809
      %vm874 = vmand %vm842, %vm810
      %vm875 = vmand %vm843, %vm811
      %vm876 = vmand %vm844, %vm812
      %vm877 = vmand %vm845, %vm813
      %vm878 = vmand %vm846, %vm814
      %vm879 = vmand %vm847, %vm815
      %vm880 = vmand %vm848, %vm816
      %vm881 = vmand %vm849, %vm817
      %vm882 = vmand %vm850, %vm818
      %vm883 = vmand %vm851, %vm819
      %vm884 = vmand %vm852, %vm820
      %vm885 = vmand %vm853, %vm821
      %vm886 = vmand %vm854, %vm822
      %vm887 = vmand %vm855, %vm823
      %vm888 = vmand %vm856, %vm824
      %vm889 = vmand %vm857, %vm825
      %vm890 = vmand %vm858, %vm826
      %vm891 = vmand %vm859, %vm827
      %vm892 = vmand %vm860, %vm828
      %vm893 = vmand %vm861, %vm829
      %vm894 = vmand %vm862, %vm830
      %vm895 = vmand %vm863, %vm831
      %vm896 = vmand %vm864, %vm832
      %vm897 = vmand %vm865, %vm833
      %vm898 = vmand %vm866, %vm834
      %vm899 = vmand %vm867, %vm835
      %vm900 = vmand %vm868, %vm836
      %vm901 = vmand %vm869, %vm837
      %vm902 = vmand %vm870, %vm838
      %vm903 = vmand %vm871, %vm839
      %v904 = vadd.s32 %v590, 16
      %v905 = vadd.s32 %v597, 16
      %v906 = vadd.s32 %v604, 16
      %v907 = vadd.s32 %v611, 16
      %v908 = vadd.s32 %v618, 16
      %v909 = vadd.s32 %v625, 16
      %v910 = vadd.s32 %v632, 16
      %v911 = vadd.s32 %v639, 16
      %v912 = vadd.s32 %v646, 16
      %v913 = vadd.s32 %v653, 16
      %v914 = vadd.s32 %v660, 16
      %v915 = vadd.s32 %v667, 16
      %v916 = vadd.s32 %v674, 16
      %v917 = vadd.s32 %v681, 16
      %v918 = vadd.s32 %v688, 16
      %v919 = vadd.s32 %v695, 16
      %v920 = vadd.s32 %v702, 16
      %v921 = vadd.s32 %v709, 16
      %v922 = vadd.s32 %v716, 16
      %v923 = vadd.s32 %v723, 16
      %v924 = vadd.s32 %v730, 16
      %v925 = vadd.s32 %v737, 16
      %v926 = vadd.s32 %v744, 16
      %v927 = vadd.s32 %v751, 16
      %v928 = vadd.s32 %v758, 16
      %v929 = vadd.s32 %v765, 16
      %v930 = vadd.s32 %v772, 16
      %v931 = vadd.s32 %v779, 16
      %v932 = vadd.s32 %v786, 16
      %v933 = vadd.s32 %v793, 16
      %v934 = vadd.s32 %v800, 16
      %v935 = vadd.s32 %v807, 16
      %v936 = vsel %vm872, %v904, %v590
      %v937 = vsel %vm873, %v905, %v597
      %v938 = vsel %vm874, %v906, %v604
      %v939 = vsel %vm875, %v907, %v611
      %v940 = vsel %vm876, %v908, %v618
      %v941 = vsel %vm877, %v909, %v625
      %v942 = vsel %vm878, %v910, %v632
      %v943 = vsel %vm879, %v911, %v639
      %v944 = vsel %vm880, %v912, %v646
      %v945 = vsel %vm881, %v913, %v653
      %v946 = vsel %vm882, %v914, %v660
      %v947 = vsel %vm883, %v915, %v667
      %v948 = vsel %vm884, %v916, %v674
      %v949 = vsel %vm885, %v917, %v681
      %v950 = vsel %vm886, %v918, %v688
      %v951 = vsel %vm887, %v919, %v695
      %v952 = vsel %vm888, %v920, %v702
      %v953 = vsel %vm889, %v921, %v709
      %v954 = vsel %vm890, %v922, %v716
      %v955 = vsel %vm891, %v923, %v723
      %v956 = vsel %vm892, %v924, %v730
      %v957 = vsel %vm893, %v925, %v737
      %v958 = vsel %vm894, %v926, %v744
      %v959 = vsel %vm895, %v927, %v751
      %v960 = vsel %vm896, %v928, %v758
      %v961 = vsel %vm897, %v929, %v765
      %v962 = vsel %vm898, %v930, %v772
      %v963 = vsel %vm899, %v931, %v779
      %v964 = vsel %vm900, %v932, %v786
      %v965 = vsel %vm901, %v933, %v793
      %v966 = vsel %vm902, %v934, %v800
      %v967 = vsel %vm903, %v935, %v807
      %vm968 = vcmp.ne.s32.totalorder %v936, 0
      %vm969 = vcmp.ne.s32.totalorder %v937, 0
      %vm970 = vcmp.ne.s32.totalorder %v938, 0
      %vm971 = vcmp.ne.s32.totalorder %v939, 0
      %vm972 = vcmp.ne.s32.totalorder %v940, 0
      %vm973 = vcmp.ne.s32.totalorder %v941, 0
      %vm974 = vcmp.ne.s32.totalorder %v942, 0
      %vm975 = vcmp.ne.s32.totalorder %v943, 0
      %vm976 = vcmp.ne.s32.totalorder %v944, 0
      %vm977 = vcmp.ne.s32.totalorder %v945, 0
      %vm978 = vcmp.ne.s32.totalorder %v946, 0
      %vm979 = vcmp.ne.s32.totalorder %v947, 0
      %vm980 = vcmp.ne.s32.totalorder %v948, 0
      %vm981 = vcmp.ne.s32.totalorder %v949, 0
      %vm982 = vcmp.ne.s32.totalorder %v950, 0
      %vm983 = vcmp.ne.s32.totalorder %v951, 0
      %vm984 = vcmp.ne.s32.totalorder %v952, 0
      %vm985 = vcmp.ne.s32.totalorder %v953, 0
      %vm986 = vcmp.ne.s32.totalorder %v954, 0
      %vm987 = vcmp.ne.s32.totalorder %v955, 0
      %vm988 = vcmp.ne.s32.totalorder %v956, 0
      %vm989 = vcmp.ne.s32.totalorder %v957, 0
      %vm990 = vcmp.ne.s32.totalorder %v958, 0
      %vm991 = vcmp.ne.s32.totalorder %v959, 0
      %vm992 = vcmp.ne.s32.totalorder %v960, 0
      %vm993 = vcmp.ne.s32.totalorder %v961, 0
      %vm994 = vcmp.ne.s32.totalorder %v962, 0
      %vm995 = vcmp.ne.s32.totalorder %v963, 0
      %vm996 = vcmp.ne.s32.totalorder %v964, 0
      %vm997 = vcmp.ne.s32.totalorder %v965, 0
      %vm998 = vcmp.ne.s32.totalorder %v966, 0
      %vm999 = vcmp.ne.s32.totalorder %v967, 0
      %vm1000 = vcmp.ne.s32.totalorder %v936, 15
      %vm1001 = vcmp.ne.s32.totalorder %v937, 15
      %vm1002 = vcmp.ne.s32.totalorder %v938, 15
      %vm1003 = vcmp.ne.s32.totalorder %v939, 15
      %vm1004 = vcmp.ne.s32.totalorder %v940, 15
      %vm1005 = vcmp.ne.s32.totalorder %v941, 15
      %vm1006 = vcmp.ne.s32.totalorder %v942, 15
      %vm1007 = vcmp.ne.s32.totalorder %v943, 15
      %vm1008 = vcmp.ne.s32.totalorder %v944, 15
      %vm1009 = vcmp.ne.s32.totalorder %v945, 15
      %vm1010 = vcmp.ne.s32.totalorder %v946, 15
      %vm1011 = vcmp.ne.s32.totalorder %v947, 15
      %vm1012 = vcmp.ne.s32.totalorder %v948, 15
      %vm1013 = vcmp.ne.s32.totalorder %v949, 15
      %vm1014 = vcmp.ne.s32.totalorder %v950, 15
      %vm1015 = vcmp.ne.s32.totalorder %v951, 15
      %vm1016 = vcmp.ne.s32.totalorder %v952, 15
      %vm1017 = vcmp.ne.s32.totalorder %v953, 15
      %vm1018 = vcmp.ne.s32.totalorder %v954, 15
      %vm1019 = vcmp.ne.s32.totalorder %v955, 15
      %vm1020 = vcmp.ne.s32.totalorder %v956, 15
      %vm1021 = vcmp.ne.s32.totalorder %v957, 15
      %vm1022 = vcmp.ne.s32.totalorder %v958, 15
      %vm1023 = vcmp.ne.s32.totalorder %v959, 15
      %vm1024 = vcmp.ne.s32.totalorder %v960, 15
      %vm1025 = vcmp.ne.s32.totalorder %v961, 15
      %vm1026 = vcmp.ne.s32.totalorder %v962, 15
      %vm1027 = vcmp.ne.s32.totalorder %v963, 15
      %vm1028 = vcmp.ne.s32.totalorder %v964, 15
      %vm1029 = vcmp.ne.s32.totalorder %v965, 15
      %vm1030 = vcmp.ne.s32.totalorder %v966, 15
      %vm1031 = vcmp.ne.s32.totalorder %v967, 15
      %v1032 = vld [vmem:[#allocation2] sm:$0xf8]
      %v1033 = vld [vmem:[#allocation2 + $0x8] sm:$0xff]
      %v1034 = vld [vmem:[#allocation2 + $0x10] sm:$0xff]
      %v1035 = vld [vmem:[#allocation2 + $0x18] sm:$0xff]
      %v1036 = vld [vmem:[#allocation2 + $0x20] sm:$0xff]
      %v1037 = vld [vmem:[#allocation2 + $0x28] sm:$0xff]
      %v1038 = vld [vmem:[#allocation2 + $0x30] sm:$0xff]
      %v1039 = vld [vmem:[#allocation2 + $0x38] sm:$0xff]
      %v1040 = vld [vmem:[#allocation2 + $0x40] sm:$0xff]
      %v1041 = vld [vmem:[#allocation2 + $0x48] sm:$0xff]
      %v1042 = vld [vmem:[#allocation2 + $0x50] sm:$0xff]
      %v1043 = vld [vmem:[#allocation2 + $0x58] sm:$0xff]
      %v1044 = vld [vmem:[#allocation2 + $0x60] sm:$0xff]
      %v1045 = vld [vmem:[#allocation2 + $0x68] sm:$0xff]
      %v1046 = vld [vmem:[#allocation2 + $0x70] sm:$0xff]
      %v1047 = vld [vmem:[#allocation2 + $0x78] sm:$0xff]
      %v1048 = vld [vmem:[#allocation2 + $0x80] sm:$0xf]
      %v1049 = vsel %vm968, 1, 0
      %v1050 = vsel %vm969, 1, 0
      %v1051 = vsel %vm970, 1, 0
      %v1052 = vsel %vm971, 1, 0
      %v1053 = vsel %vm972, 1, 0
      %v1054 = vsel %vm973, 1, 0
      %v1055 = vsel %vm974, 1, 0
      %v1056 = vsel %vm975, 1, 0
      %v1057 = vsel %vm976, 1, 0
      %v1058 = vsel %vm977, 1, 0
      %v1059 = vsel %vm978, 1, 0
      %v1060 = vsel %vm979, 1, 0
      %v1061 = vsel %vm980, 1, 0
      %v1062 = vsel %vm981, 1, 0
      %v1063 = vsel %vm982, 1, 0
      %v1064 = vsel %vm983, 1, 0
      %v1065 = vsel %vm984, 1, 0
      %v1066 = vsel %vm985, 1, 0
      %v1067 = vsel %vm986, 1, 0
      %v1068 = vsel %vm987, 1, 0
      %v1069 = vsel %vm988, 1, 0
      %v1070 = vsel %vm989, 1, 0
      %v1071 = vsel %vm990, 1, 0
      %v1072 = vsel %vm991, 1, 0
      %v1073 = vsel %vm992, 1, 0
      %v1074 = vsel %vm993, 1, 0
      %v1075 = vsel %vm994, 1, 0
      %v1076 = vsel %vm995, 1, 0
      %v1077 = vsel %vm996, 1, 0
      %v1078 = vsel %vm997, 1, 0
      %v1079 = vsel %vm998, 1, 0
      %v1080 = vsel %vm999, 1, 0
      %vm1081 = vcmp.eq.s32.totalorder %v1049, 1
      %vm1082 = vcmp.eq.s32.totalorder %v1050, 1
      %vm1083 = vcmp.eq.s32.totalorder %v1051, 1
      %vm1084 = vcmp.eq.s32.totalorder %v1052, 1
      %vm1085 = vcmp.eq.s32.totalorder %v1053, 1
      %vm1086 = vcmp.eq.s32.totalorder %v1054, 1
      %vm1087 = vcmp.eq.s32.totalorder %v1055, 1
      %vm1088 = vcmp.eq.s32.totalorder %v1056, 1
      %vm1089 = vcmp.eq.s32.totalorder %v1057, 1
      %vm1090 = vcmp.eq.s32.totalorder %v1058, 1
      %vm1091 = vcmp.eq.s32.totalorder %v1059, 1
      %vm1092 = vcmp.eq.s32.totalorder %v1060, 1
      %vm1093 = vcmp.eq.s32.totalorder %v1061, 1
      %vm1094 = vcmp.eq.s32.totalorder %v1062, 1
      %vm1095 = vcmp.eq.s32.totalorder %v1063, 1
      %vm1096 = vcmp.eq.s32.totalorder %v1064, 1
      %vm1097 = vcmp.eq.s32.totalorder %v1065, 1
      %vm1098 = vcmp.eq.s32.totalorder %v1066, 1
      %vm1099 = vcmp.eq.s32.totalorder %v1067, 1
      %vm1100 = vcmp.eq.s32.totalorder %v1068, 1
      %vm1101 = vcmp.eq.s32.totalorder %v1069, 1
      %vm1102 = vcmp.eq.s32.totalorder %v1070, 1
      %vm1103 = vcmp.eq.s32.totalorder %v1071, 1
      %vm1104 = vcmp.eq.s32.totalorder %v1072, 1
      %vm1105 = vcmp.eq.s32.totalorder %v1073, 1
      %vm1106 = vcmp.eq.s32.totalorder %v1074, 1
      %vm1107 = vcmp.eq.s32.totalorder %v1075, 1
      %vm1108 = vcmp.eq.s32.totalorder %v1076, 1
      %vm1109 = vcmp.eq.s32.totalorder %v1077, 1
      %vm1110 = vcmp.eq.s32.totalorder %v1078, 1
      %vm1111 = vcmp.eq.s32.totalorder %v1079, 1
      %vm1112 = vcmp.eq.s32.totalorder %v1080, 1
      %vm1113 = vmpackc.low %vm1081, %vm1081
      %vm1114 = vmpackc.low %vm1082, %vm1082
      %vm1115 = vmpackc.low %vm1083, %vm1083
      %vm1116 = vmpackc.low %vm1084, %vm1084
      %vm1117 = vmpackc.low %vm1085, %vm1085
      %vm1118 = vmpackc.low %vm1086, %vm1086
      %vm1119 = vmpackc.low %vm1087, %vm1087
      %vm1120 = vmpackc.low %vm1088, %vm1088
      %vm1121 = vmpackc.low %vm1089, %vm1089
      %vm1122 = vmpackc.low %vm1090, %vm1090
      %vm1123 = vmpackc.low %vm1091, %vm1091
      %vm1124 = vmpackc.low %vm1092, %vm1092
      %vm1125 = vmpackc.low %vm1093, %vm1093
      %vm1126 = vmpackc.low %vm1094, %vm1094
      %vm1127 = vmpackc.low %vm1095, %vm1095
      %vm1128 = vmpackc.low %vm1096, %vm1096
      %vm1129 = vmpackc.low %vm1097, %vm1097
      %vm1130 = vmpackc.low %vm1098, %vm1098
      %vm1131 = vmpackc.low %vm1099, %vm1099
      %vm1132 = vmpackc.low %vm1100, %vm1100
      %vm1133 = vmpackc.low %vm1101, %vm1101
      %vm1134 = vmpackc.low %vm1102, %vm1102
      %vm1135 = vmpackc.low %vm1103, %vm1103
      %vm1136 = vmpackc.low %vm1104, %vm1104
      %vm1137 = vmpackc.low %vm1105, %vm1105
      %vm1138 = vmpackc.low %vm1106, %vm1106
      %vm1139 = vmpackc.low %vm1107, %vm1107
      %vm1140 = vmpackc.low %vm1108, %vm1108
      %vm1141 = vmpackc.low %vm1109, %vm1109
      %vm1142 = vmpackc.low %vm1110, %vm1110
      %vm1143 = vmpackc.low %vm1111, %vm1111
      %vm1144 = vmpackc.low %vm1112, %vm1112
      %v1145 = vsel %vm1113, 65537, 0
      %v1146 = vsel %vm1114, 65537, 0
      %v1147 = vsel %vm1115, 65537, 0
      %v1148 = vsel %vm1116, 65537, 0
      %v1149 = vsel %vm1117, 65537, 0
      %v1150 = vsel %vm1118, 65537, 0
      %v1151 = vsel %vm1119, 65537, 0
      %v1152 = vsel %vm1120, 65537, 0
      %v1153 = vsel %vm1121, 65537, 0
      %v1154 = vsel %vm1122, 65537, 0
      %v1155 = vsel %vm1123, 65537, 0
      %v1156 = vsel %vm1124, 65537, 0
      %v1157 = vsel %vm1125, 65537, 0
      %v1158 = vsel %vm1126, 65537, 0
      %v1159 = vsel %vm1127, 65537, 0
      %v1160 = vsel %vm1128, 65537, 0
      %v1161 = vsel %vm1129, 65537, 0
      %v1162 = vsel %vm1130, 65537, 0
      %v1163 = vsel %vm1131, 65537, 0
      %v1164 = vsel %vm1132, 65537, 0
      %v1165 = vsel %vm1133, 65537, 0
      %v1166 = vsel %vm1134, 65537, 0
      %v1167 = vsel %vm1135, 65537, 0
      %v1168 = vsel %vm1136, 65537, 0
      %v1169 = vsel %vm1137, 65537, 0
      %v1170 = vsel %vm1138, 65537, 0
      %v1171 = vsel %vm1139, 65537, 0
      %v1172 = vsel %vm1140, 65537, 0
      %v1173 = vsel %vm1141, 65537, 0
      %v1174 = vsel %vm1142, 65537, 0
      %v1175 = vsel %vm1143, 65537, 0
      %v1176 = vsel %vm1144, 65537, 0
      %v1177 = vunpack.c.l.b16 %v1145
      %v1178 = vunpack.c.l.b16 %v1146
      %v1179 = vunpack.c.l.b16 %v1147
      %v1180 = vunpack.c.l.b16 %v1148
      %v1181 = vunpack.c.l.b16 %v1149
      %v1182 = vunpack.c.l.b16 %v1150
      %v1183 = vunpack.c.l.b16 %v1151
      %v1184 = vunpack.c.l.b16 %v1152
      %v1185 = vunpack.c.l.b16 %v1153
      %v1186 = vunpack.c.l.b16 %v1154
      %v1187 = vunpack.c.l.b16 %v1155
      %v1188 = vunpack.c.l.b16 %v1156
      %v1189 = vunpack.c.l.b16 %v1157
      %v1190 = vunpack.c.l.b16 %v1158
      %v1191 = vunpack.c.l.b16 %v1159
      %v1192 = vunpack.c.l.b16 %v1160
      %v1193 = vunpack.c.l.b16 %v1161
      %v1194 = vunpack.c.l.b16 %v1162
      %v1195 = vunpack.c.l.b16 %v1163
      %v1196 = vunpack.c.l.b16 %v1164
      %v1197 = vunpack.c.l.b16 %v1165
      %v1198 = vunpack.c.l.b16 %v1166
      %v1199 = vunpack.c.l.b16 %v1167
      %v1200 = vunpack.c.l.b16 %v1168
      %v1201 = vunpack.c.l.b16 %v1169
      %v1202 = vunpack.c.l.b16 %v1170
      %v1203 = vunpack.c.l.b16 %v1171
      %v1204 = vunpack.c.l.b16 %v1172
      %v1205 = vunpack.c.l.b16 %v1173
      %v1206 = vunpack.c.l.b16 %v1174
      %v1207 = vunpack.c.l.b16 %v1175
      %v1208 = vunpack.c.l.b16 %v1176
      %v1209 = vpack.c.b16 %v1178, %v1177
      %v1210 = vpack.c.b16 %v1180, %v1179
      %v1211 = vpack.c.b16 %v1182, %v1181
      %v1212 = vpack.c.b16 %v1184, %v1183
      %v1213 = vpack.c.b16 %v1186, %v1185
      %v1214 = vpack.c.b16 %v1188, %v1187
      %v1215 = vpack.c.b16 %v1190, %v1189
      %v1216 = vpack.c.b16 %v1192, %v1191
      %v1217 = vpack.c.b16 %v1194, %v1193
      %v1218 = vpack.c.b16 %v1196, %v1195
      %v1219 = vpack.c.b16 %v1198, %v1197
      %v1220 = vpack.c.b16 %v1200, %v1199
      %v1221 = vpack.c.b16 %v1202, %v1201
      %v1222 = vpack.c.b16 %v1204, %v1203
      %v1223 = vpack.c.b16 %v1206, %v1205
      %v1224 = vpack.c.b16 %v1208, %v1207
      %vm1225 = vsmask.f32 3328
      %v1227 = vshrl.u32 %v1209, 16
      %v1229 = vrot.slane %v1227, 4
      %v1230 = vshll.u32 %v1209, 16
      %v1232 = vrot.slane %v1230, 5
      %v1233 = vor.u32 %v1229, %v1232
      %v1235 = vshrl.u32 %v1210, 16
      %v1237 = vrot.slane %v1235, 4
      %v1238 = vshll.u32 %v1210, 16
      %v1240 = vrot.slane %v1238, 5
      %v1241 = vor.u32 %v1237, %v1240
      %v1242 = vsel %vm1225, %v1233, %v1241
      %v1244 = vshrl.u32 %v1211, 16
      %v1246 = vrot.slane %v1244, 4
      %v1247 = vshll.u32 %v1211, 16
      %v1249 = vrot.slane %v1247, 5
      %v1250 = vor.u32 %v1246, %v1249
      %v1251 = vsel %vm1225, %v1241, %v1250
      %v1253 = vshrl.u32 %v1212, 16
      %v1255 = vrot.slane %v1253, 4
      %v1256 = vshll.u32 %v1212, 16
      %v1258 = vrot.slane %v1256, 5
      %v1259 = vor.u32 %v1255, %v1258
      %v1260 = vsel %vm1225, %v1250, %v1259
      %v1262 = vshrl.u32 %v1213, 16
      %v1264 = vrot.slane %v1262, 4
      %v1265 = vshll.u32 %v1213, 16
      %v1267 = vrot.slane %v1265, 5
      %v1268 = vor.u32 %v1264, %v1267
      %v1269 = vsel %vm1225, %v1259, %v1268
      %v1271 = vshrl.u32 %v1214, 16
      %v1273 = vrot.slane %v1271, 4
      %v1274 = vshll.u32 %v1214, 16
      %v1276 = vrot.slane %v1274, 5
      %v1277 = vor.u32 %v1273, %v1276
      %v1278 = vsel %vm1225, %v1268, %v1277
      %v1280 = vshrl.u32 %v1215, 16
      %v1282 = vrot.slane %v1280, 4
      %v1283 = vshll.u32 %v1215, 16
      %v1285 = vrot.slane %v1283, 5
      %v1286 = vor.u32 %v1282, %v1285
      %v1287 = vsel %vm1225, %v1277, %v1286
      %v1289 = vshrl.u32 %v1216, 16
      %v1291 = vrot.slane %v1289, 4
      %v1292 = vshll.u32 %v1216, 16
      %v1294 = vrot.slane %v1292, 5
      %v1295 = vor.u32 %v1291, %v1294
      %v1296 = vsel %vm1225, %v1286, %v1295
      %v1298 = vshrl.u32 %v1217, 16
      %v1300 = vrot.slane %v1298, 4
      %v1301 = vshll.u32 %v1217, 16
      %v1303 = vrot.slane %v1301, 5
      %v1304 = vor.u32 %v1300, %v1303
      %v1305 = vsel %vm1225, %v1295, %v1304
      %v1307 = vshrl.u32 %v1218, 16
      %v1309 = vrot.slane %v1307, 4
      %v1310 = vshll.u32 %v1218, 16
      %v1312 = vrot.slane %v1310, 5
      %v1313 = vor.u32 %v1309, %v1312
      %v1314 = vsel %vm1225, %v1304, %v1313
      %v1316 = vshrl.u32 %v1219, 16
      %v1318 = vrot.slane %v1316, 4
      %v1319 = vshll.u32 %v1219, 16
      %v1321 = vrot.slane %v1319, 5
      %v1322 = vor.u32 %v1318, %v1321
      %v1323 = vsel %vm1225, %v1313, %v1322
      %v1325 = vshrl.u32 %v1220, 16
      %v1327 = vrot.slane %v1325, 4
      %v1328 = vshll.u32 %v1220, 16
      %v1330 = vrot.slane %v1328, 5
      %v1331 = vor.u32 %v1327, %v1330
      %v1332 = vsel %vm1225, %v1322, %v1331
      %v1334 = vshrl.u32 %v1221, 16
      %v1336 = vrot.slane %v1334, 4
      %v1337 = vshll.u32 %v1221, 16
      %v1339 = vrot.slane %v1337, 5
      %v1340 = vor.u32 %v1336, %v1339
      %v1341 = vsel %vm1225, %v1331, %v1340
      %v1343 = vshrl.u32 %v1222, 16
      %v1345 = vrot.slane %v1343, 4
      %v1346 = vshll.u32 %v1222, 16
      %v1348 = vrot.slane %v1346, 5
      %v1349 = vor.u32 %v1345, %v1348
      %v1350 = vsel %vm1225, %v1340, %v1349
      %v1352 = vshrl.u32 %v1223, 16
      %v1354 = vrot.slane %v1352, 4
      %v1355 = vshll.u32 %v1223, 16
      %v1357 = vrot.slane %v1355, 5
      %v1358 = vor.u32 %v1354, %v1357
      %v1359 = vsel %vm1225, %v1349, %v1358
      %v1361 = vshrl.u32 %v1224, 16
      %v1363 = vrot.slane %v1361, 4
      %v1364 = vshll.u32 %v1224, 16
      %v1366 = vrot.slane %v1364, 5
      %v1367 = vor.u32 %v1363, %v1366
      %v1368 = vsel %vm1225, %v1358, %v1367
      %vm1369 = vcmp.ne.s16.totalorder %v1233, 0
      %vm1370 = vcmp.ne.s16.totalorder %v1242, 0
      %vm1371 = vcmp.ne.s16.totalorder %v1251, 0
      %vm1372 = vcmp.ne.s16.totalorder %v1260, 0
      %vm1373 = vcmp.ne.s16.totalorder %v1269, 0
      %vm1374 = vcmp.ne.s16.totalorder %v1278, 0
      %vm1375 = vcmp.ne.s16.totalorder %v1287, 0
      %vm1376 = vcmp.ne.s16.totalorder %v1296, 0
      %vm1377 = vcmp.ne.s16.totalorder %v1305, 0
      %vm1378 = vcmp.ne.s16.totalorder %v1314, 0
      %vm1379 = vcmp.ne.s16.totalorder %v1323, 0
      %vm1380 = vcmp.ne.s16.totalorder %v1332, 0
      %vm1381 = vcmp.ne.s16.totalorder %v1341, 0
      %vm1382 = vcmp.ne.s16.totalorder %v1350, 0
      %vm1383 = vcmp.ne.s16.totalorder %v1359, 0
      %vm1384 = vcmp.ne.s16.totalorder %v1368, 0
      %vm1385 = vcmp.ne.s16.totalorder %v1367, 0
      %v1386 = vsel %vm1369, %v1032, 0
      %v1387 = vsel %vm1370, %v1033, 0
      %v1388 = vsel %vm1371, %v1034, 0
      %v1389 = vsel %vm1372, %v1035, 0
      %v1390 = vsel %vm1373, %v1036, 0
      %v1391 = vsel %vm1374, %v1037, 0
      %v1392 = vsel %vm1375, %v1038, 0
      %v1393 = vsel %vm1376, %v1039, 0
      %v1394 = vsel %vm1377, %v1040, 0
      %v1395 = vsel %vm1378, %v1041, 0
      %v1396 = vsel %vm1379, %v1042, 0
      %v1397 = vsel %vm1380, %v1043, 0
      %v1398 = vsel %vm1381, %v1044, 0
      %v1399 = vsel %vm1382, %v1045, 0
      %v1400 = vsel %vm1383, %v1046, 0
      %v1401 = vsel %vm1384, %v1047, 0
      %v1402 = vsel %vm1385, %v1048, 0
      %vm1403 = vsmask.f32 4352
      %v1405 = vshrl.u32 %v1386, 16
      %v1407 = vrot.slane %v1405, 3
      %v1408 = vshll.u32 %v1386, 16
      %v1410 = vrot.slane %v1408, 4
      %v1411 = vor.u32 %v1407, %v1410
      %v1413 = vshrl.u32 %v1387, 16
      %v1415 = vrot.slane %v1413, 3
      %v1416 = vshll.u32 %v1387, 16
      %v1418 = vrot.slane %v1416, 4
      %v1419 = vor.u32 %v1415, %v1418
      %v1420 = vsel %vm1403, %v1411, %v1419
      %v1422 = vshrl.u32 %v1388, 16
      %v1424 = vrot.slane %v1422, 3
      %v1425 = vshll.u32 %v1388, 16
      %v1427 = vrot.slane %v1425, 4
      %v1428 = vor.u32 %v1424, %v1427
      %v1429 = vsel %vm1403, %v1419, %v1428
      %v1431 = vshrl.u32 %v1389, 16
      %v1433 = vrot.slane %v1431, 3
      %v1434 = vshll.u32 %v1389, 16
      %v1436 = vrot.slane %v1434, 4
      %v1437 = vor.u32 %v1433, %v1436
      %v1438 = vsel %vm1403, %v1428, %v1437
      %v1440 = vshrl.u32 %v1390, 16
      %v1442 = vrot.slane %v1440, 3
      %v1443 = vshll.u32 %v1390, 16
      %v1445 = vrot.slane %v1443, 4
      %v1446 = vor.u32 %v1442, %v1445
      %v1447 = vsel %vm1403, %v1437, %v1446
      %v1449 = vshrl.u32 %v1391, 16
      %v1451 = vrot.slane %v1449, 3
      %v1452 = vshll.u32 %v1391, 16
      %v1454 = vrot.slane %v1452, 4
      %v1455 = vor.u32 %v1451, %v1454
      %v1456 = vsel %vm1403, %v1446, %v1455
      %v1458 = vshrl.u32 %v1392, 16
      %v1460 = vrot.slane %v1458, 3
      %v1461 = vshll.u32 %v1392, 16
      %v1463 = vrot.slane %v1461, 4
      %v1464 = vor.u32 %v1460, %v1463
      %v1465 = vsel %vm1403, %v1455, %v1464
      %v1467 = vshrl.u32 %v1393, 16
      %v1469 = vrot.slane %v1467, 3
      %v1470 = vshll.u32 %v1393, 16
      %v1472 = vrot.slane %v1470, 4
      %v1473 = vor.u32 %v1469, %v1472
      %v1474 = vsel %vm1403, %v1464, %v1473
      %v1476 = vshrl.u32 %v1394, 16
      %v1478 = vrot.slane %v1476, 3
      %v1479 = vshll.u32 %v1394, 16
      %v1481 = vrot.slane %v1479, 4
      %v1482 = vor.u32 %v1478, %v1481
      %v1483 = vsel %vm1403, %v1473, %v1482
      %v1485 = vshrl.u32 %v1395, 16
      %v1487 = vrot.slane %v1485, 3
      %v1488 = vshll.u32 %v1395, 16
      %v1490 = vrot.slane %v1488, 4
      %v1491 = vor.u32 %v1487, %v1490
      %v1492 = vsel %vm1403, %v1482, %v1491
      %v1494 = vshrl.u32 %v1396, 16
      %v1496 = vrot.slane %v1494, 3
      %v1497 = vshll.u32 %v1396, 16
      %v1499 = vrot.slane %v1497, 4
      %v1500 = vor.u32 %v1496, %v1499
      %v1501 = vsel %vm1403, %v1491, %v1500
      %v1503 = vshrl.u32 %v1397, 16
      %v1505 = vrot.slane %v1503, 3
      %v1506 = vshll.u32 %v1397, 16
      %v1508 = vrot.slane %v1506, 4
      %v1509 = vor.u32 %v1505, %v1508
      %v1510 = vsel %vm1403, %v1500, %v1509
      %v1512 = vshrl.u32 %v1398, 16
      %v1514 = vrot.slane %v1512, 3
      %v1515 = vshll.u32 %v1398, 16
      %v1517 = vrot.slane %v1515, 4
      %v1518 = vor.u32 %v1514, %v1517
      %v1519 = vsel %vm1403, %v1509, %v1518
      %v1521 = vshrl.u32 %v1399, 16
      %v1523 = vrot.slane %v1521, 3
      %v1524 = vshll.u32 %v1399, 16
      %v1526 = vrot.slane %v1524, 4
      %v1527 = vor.u32 %v1523, %v1526
      %v1528 = vsel %vm1403, %v1518, %v1527
      %v1530 = vshrl.u32 %v1400, 16
      %v1532 = vrot.slane %v1530, 3
      %v1533 = vshll.u32 %v1400, 16
      %v1535 = vrot.slane %v1533, 4
      %v1536 = vor.u32 %v1532, %v1535
      %v1537 = vsel %vm1403, %v1527, %v1536
      %v1539 = vshrl.u32 %v1401, 16
      %v1541 = vrot.slane %v1539, 3
      %v1542 = vshll.u32 %v1401, 16
      %v1544 = vrot.slane %v1542, 4
      %v1545 = vor.u32 %v1541, %v1544
      %v1546 = vsel %vm1403, %v1536, %v1545
      %v1548 = vshrl.u32 %v1402, 16
      %v1550 = vrot.slane %v1548, 3
      %v1551 = vshll.u32 %v1402, 16
      %v1553 = vrot.slane %v1551, 4
      %v1554 = vor.u32 %v1550, %v1553
      %v1555 = vsel %vm1403, %v1545, %v1554
      %1572 = vst.msk [vmem:[#allocation3] sm:$0xff] %vm272, %v1420
      %1573 = vst.msk [vmem:[#allocation3 + $0x8] sm:$0xff] %vm272, %v1429
      %1574 = vst.msk [vmem:[#allocation3 + $0x10] sm:$0xff] %vm272, %v1438
      %1575 = vst.msk [vmem:[#allocation3 + $0x18] sm:$0xff] %vm272, %v1447
      %1576 = vst.msk [vmem:[#allocation3 + $0x20] sm:$0xff] %vm272, %v1456
      %1577 = vst.msk [vmem:[#allocation3 + $0x28] sm:$0xff] %vm272, %v1465
      %1578 = vst.msk [vmem:[#allocation3 + $0x30] sm:$0xff] %vm272, %v1474
      %1579 = vst.msk [vmem:[#allocation3 + $0x38] sm:$0xff] %vm272, %v1483
      %1580 = vst.msk [vmem:[#allocation3 + $0x40] sm:$0xff] %vm272, %v1492
      %1581 = vst.msk [vmem:[#allocation3 + $0x48] sm:$0xff] %vm272, %v1501
      %1582 = vst.msk [vmem:[#allocation3 + $0x50] sm:$0xff] %vm272, %v1510
      %1583 = vst.msk [vmem:[#allocation3 + $0x58] sm:$0xff] %vm272, %v1519
      %1584 = vst.msk [vmem:[#allocation3 + $0x60] sm:$0xff] %vm272, %v1528
      %1585 = vst.msk [vmem:[#allocation3 + $0x68] sm:$0xff] %vm272, %v1537
      %1586 = vst.msk [vmem:[#allocation3 + $0x70] sm:$0xff] %vm272, %v1546
      %1587 = vst.msk [vmem:[#allocation3 + $0x78] sm:$0xff] %vm272, %v1555
      %v1588 = vld [vmem:[#allocation2] sm:$0xf0]
      %v1589 = vld [vmem:[#allocation2 + $0x8] sm:$0xff]
      %v1590 = vld [vmem:[#allocation2 + $0x10] sm:$0xff]
      %v1591 = vld [vmem:[#allocation2 + $0x18] sm:$0xff]
      %v1592 = vld [vmem:[#allocation2 + $0x20] sm:$0xff]
      %v1593 = vld [vmem:[#allocation2 + $0x28] sm:$0xff]
      %v1594 = vld [vmem:[#allocation2 + $0x30] sm:$0xff]
      %v1595 = vld [vmem:[#allocation2 + $0x38] sm:$0xff]
      %v1596 = vld [vmem:[#allocation2 + $0x40] sm:$0xff]
      %v1597 = vld [vmem:[#allocation2 + $0x48] sm:$0xff]
      %v1598 = vld [vmem:[#allocation2 + $0x50] sm:$0xff]
      %v1599 = vld [vmem:[#allocation2 + $0x58] sm:$0xff]
      %v1600 = vld [vmem:[#allocation2 + $0x60] sm:$0xff]
      %v1601 = vld [vmem:[#allocation2 + $0x68] sm:$0xff]
      %v1602 = vld [vmem:[#allocation2 + $0x70] sm:$0xff]
      %v1603 = vld [vmem:[#allocation2 + $0x78] sm:$0xff]
      %v1604 = vld [vmem:[#allocation2 + $0x80] sm:$0xf]
      %v1622 = vrot.slane %v1588, 4
      %v1623 = vrot.slane %v1589, 4
      %v1624 = vsel %vm485, %v1622, %v1623
      %v1625 = vrot.slane %v1590, 4
      %v1626 = vsel %vm485, %v1623, %v1625
      %v1627 = vrot.slane %v1591, 4
      %v1628 = vsel %vm485, %v1625, %v1627
      %v1629 = vrot.slane %v1592, 4
      %v1630 = vsel %vm485, %v1627, %v1629
      %v1631 = vrot.slane %v1593, 4
      %v1632 = vsel %vm485, %v1629, %v1631
      %v1633 = vrot.slane %v1594, 4
      %v1634 = vsel %vm485, %v1631, %v1633
      %v1635 = vrot.slane %v1595, 4
      %v1636 = vsel %vm485, %v1633, %v1635
      %v1637 = vrot.slane %v1596, 4
      %v1638 = vsel %vm485, %v1635, %v1637
      %v1639 = vrot.slane %v1597, 4
      %v1640 = vsel %vm485, %v1637, %v1639
      %v1641 = vrot.slane %v1598, 4
      %v1642 = vsel %vm485, %v1639, %v1641
      %v1643 = vrot.slane %v1599, 4
      %v1644 = vsel %vm485, %v1641, %v1643
      %v1645 = vrot.slane %v1600, 4
      %v1646 = vsel %vm485, %v1643, %v1645
      %v1647 = vrot.slane %v1601, 4
      %v1648 = vsel %vm485, %v1645, %v1647
      %v1649 = vrot.slane %v1602, 4
      %v1650 = vsel %vm485, %v1647, %v1649
      %v1651 = vrot.slane %v1603, 4
      %v1652 = vsel %vm485, %v1649, %v1651
      %v1653 = vrot.slane %v1604, 4
      %v1654 = vsel %vm485, %v1651, %v1653
      %1655 = vrot.lane.b32.xlu0 %v1624, 4
      %v1656 = vpop.permute.xlu0 %1655
      %1657 = vrot.lane.b32.xlu0 %v1626, 4
      %v1658 = vpop.permute.xlu0 %1657
      %1659 = vrot.lane.b32.xlu0 %v1628, 4
      %v1660 = vpop.permute.xlu0 %1659
      %1661 = vrot.lane.b32.xlu0 %v1630, 4
      %v1662 = vpop.permute.xlu0 %1661
      %1663 = vrot.lane.b32.xlu0 %v1632, 4
      %v1664 = vpop.permute.xlu0 %1663
      %1665 = vrot.lane.b32.xlu0 %v1634, 4
      %v1666 = vpop.permute.xlu0 %1665
      %1667 = vrot.lane.b32.xlu0 %v1636, 4
      %v1668 = vpop.permute.xlu0 %1667
      %1669 = vrot.lane.b32.xlu0 %v1638, 4
      %v1670 = vpop.permute.xlu0 %1669
      %1671 = vrot.lane.b32.xlu0 %v1640, 4
      %v1672 = vpop.permute.xlu0 %1671
      %1673 = vrot.lane.b32.xlu0 %v1642, 4
      %v1674 = vpop.permute.xlu0 %1673
      %1675 = vrot.lane.b32.xlu0 %v1644, 4
      %v1676 = vpop.permute.xlu0 %1675
      %1677 = vrot.lane.b32.xlu0 %v1646, 4
      %v1678 = vpop.permute.xlu0 %1677
      %1679 = vrot.lane.b32.xlu0 %v1648, 4
      %v1680 = vpop.permute.xlu0 %1679
      %1681 = vrot.lane.b32.xlu0 %v1650, 4
      %v1682 = vpop.permute.xlu0 %1681
      %1683 = vrot.lane.b32.xlu0 %v1652, 4
      %v1684 = vpop.permute.xlu0 %1683
      %1685 = vrot.lane.b32.xlu0 %v1654, 4
      %v1686 = vpop.permute.xlu0 %1685
      %vm1703 = vcmask 64544
      %1704 = vst.msk [vmem:[#allocation3] sm:$0xff] %vm1703, %v1656
      %1705 = vst.msk [vmem:[#allocation3 + $0x8] sm:$0xff] %vm1703, %v1658
      %1706 = vst.msk [vmem:[#allocation3 + $0x10] sm:$0xff] %vm1703, %v1660
      %1707 = vst.msk [vmem:[#allocation3 + $0x18] sm:$0xff] %vm1703, %v1662
      %1708 = vst.msk [vmem:[#allocation3 + $0x20] sm:$0xff] %vm1703, %v1664
      %1709 = vst.msk [vmem:[#allocation3 + $0x28] sm:$0xff] %vm1703, %v1666
      %1710 = vst.msk [vmem:[#allocation3 + $0x30] sm:$0xff] %vm1703, %v1668
      %1711 = vst.msk [vmem:[#allocation3 + $0x38] sm:$0xff] %vm1703, %v1670
      %1712 = vst.msk [vmem:[#allocation3 + $0x40] sm:$0xff] %vm1703, %v1672
      %1713 = vst.msk [vmem:[#allocation3 + $0x48] sm:$0xff] %vm1703, %v1674
      %1714 = vst.msk [vmem:[#allocation3 + $0x50] sm:$0xff] %vm1703, %v1676
      %1715 = vst.msk [vmem:[#allocation3 + $0x58] sm:$0xff] %vm1703, %v1678
      %1716 = vst.msk [vmem:[#allocation3 + $0x60] sm:$0xff] %vm1703, %v1680
      %1717 = vst.msk [vmem:[#allocation3 + $0x68] sm:$0xff] %vm1703, %v1682
      %1718 = vst.msk [vmem:[#allocation3 + $0x70] sm:$0xff] %vm1703, %v1684
      %1719 = vst.msk [vmem:[#allocation3 + $0x78] sm:$0xff] %vm1703, %v1686
      %v1720 = vld [vmem:[#allocation2] sm:$0xf0]
      %v1721 = vld [vmem:[#allocation2 + $0x8] sm:$0xff]
      %v1722 = vld [vmem:[#allocation2 + $0x10] sm:$0xff]
      %v1723 = vld [vmem:[#allocation2 + $0x18] sm:$0xff]
      %v1724 = vld [vmem:[#allocation2 + $0x20] sm:$0xff]
      %v1725 = vld [vmem:[#allocation2 + $0x28] sm:$0xff]
      %v1726 = vld [vmem:[#allocation2 + $0x30] sm:$0xff]
      %v1727 = vld [vmem:[#allocation2 + $0x38] sm:$0xff]
      %v1728 = vld [vmem:[#allocation2 + $0x40] sm:$0xff]
      %v1729 = vld [vmem:[#allocation2 + $0x48] sm:$0xff]
      %v1730 = vld [vmem:[#allocation2 + $0x50] sm:$0xff]
      %v1731 = vld [vmem:[#allocation2 + $0x58] sm:$0xff]
      %v1732 = vld [vmem:[#allocation2 + $0x60] sm:$0xff]
      %v1733 = vld [vmem:[#allocation2 + $0x68] sm:$0xff]
      %v1734 = vld [vmem:[#allocation2 + $0x70] sm:$0xff]
      %v1735 = vld [vmem:[#allocation2 + $0x78] sm:$0xff]
      %v1736 = vld [vmem:[#allocation2 + $0x80] sm:$0x1f]
      %v1737 = vsel %vm1000, 1, 0
      %v1738 = vsel %vm1001, 1, 0
      %v1739 = vsel %vm1002, 1, 0
      %v1740 = vsel %vm1003, 1, 0
      %v1741 = vsel %vm1004, 1, 0
      %v1742 = vsel %vm1005, 1, 0
      %v1743 = vsel %vm1006, 1, 0
      %v1744 = vsel %vm1007, 1, 0
      %v1745 = vsel %vm1008, 1, 0
      %v1746 = vsel %vm1009, 1, 0
      %v1747 = vsel %vm1010, 1, 0
      %v1748 = vsel %vm1011, 1, 0
      %v1749 = vsel %vm1012, 1, 0
      %v1750 = vsel %vm1013, 1, 0
      %v1751 = vsel %vm1014, 1, 0
      %v1752 = vsel %vm1015, 1, 0
      %v1753 = vsel %vm1016, 1, 0
      %v1754 = vsel %vm1017, 1, 0
      %v1755 = vsel %vm1018, 1, 0
      %v1756 = vsel %vm1019, 1, 0
      %v1757 = vsel %vm1020, 1, 0
      %v1758 = vsel %vm1021, 1, 0
      %v1759 = vsel %vm1022, 1, 0
      %v1760 = vsel %vm1023, 1, 0
      %v1761 = vsel %vm1024, 1, 0
      %v1762 = vsel %vm1025, 1, 0
      %v1763 = vsel %vm1026, 1, 0
      %v1764 = vsel %vm1027, 1, 0
      %v1765 = vsel %vm1028, 1, 0
      %v1766 = vsel %vm1029, 1, 0
      %v1767 = vsel %vm1030, 1, 0
      %v1768 = vsel %vm1031, 1, 0
      %vm1769 = vcmp.eq.s32.totalorder %v1737, 1
      %vm1770 = vcmp.eq.s32.totalorder %v1738, 1
      %vm1771 = vcmp.eq.s32.totalorder %v1739, 1
      %vm1772 = vcmp.eq.s32.totalorder %v1740, 1
      %vm1773 = vcmp.eq.s32.totalorder %v1741, 1
      %vm1774 = vcmp.eq.s32.totalorder %v1742, 1
      %vm1775 = vcmp.eq.s32.totalorder %v1743, 1
      %vm1776 = vcmp.eq.s32.totalorder %v1744, 1
      %vm1777 = vcmp.eq.s32.totalorder %v1745, 1
      %vm1778 = vcmp.eq.s32.totalorder %v1746, 1
      %vm1779 = vcmp.eq.s32.totalorder %v1747, 1
      %vm1780 = vcmp.eq.s32.totalorder %v1748, 1
      %vm1781 = vcmp.eq.s32.totalorder %v1749, 1
      %vm1782 = vcmp.eq.s32.totalorder %v1750, 1
      %vm1783 = vcmp.eq.s32.totalorder %v1751, 1
      %vm1784 = vcmp.eq.s32.totalorder %v1752, 1
      %vm1785 = vcmp.eq.s32.totalorder %v1753, 1
      %vm1786 = vcmp.eq.s32.totalorder %v1754, 1
      %vm1787 = vcmp.eq.s32.totalorder %v1755, 1
      %vm1788 = vcmp.eq.s32.totalorder %v1756, 1
      %vm1789 = vcmp.eq.s32.totalorder %v1757, 1
      %vm1790 = vcmp.eq.s32.totalorder %v1758, 1
      %vm1791 = vcmp.eq.s32.totalorder %v1759, 1
      %vm1792 = vcmp.eq.s32.totalorder %v1760, 1
      %vm1793 = vcmp.eq.s32.totalorder %v1761, 1
      %vm1794 = vcmp.eq.s32.totalorder %v1762, 1
      %vm1795 = vcmp.eq.s32.totalorder %v1763, 1
      %vm1796 = vcmp.eq.s32.totalorder %v1764, 1
      %vm1797 = vcmp.eq.s32.totalorder %v1765, 1
      %vm1798 = vcmp.eq.s32.totalorder %v1766, 1
      %vm1799 = vcmp.eq.s32.totalorder %v1767, 1
      %vm1800 = vcmp.eq.s32.totalorder %v1768, 1
      %vm1801 = vmpackc.low %vm1769, %vm1769
      %vm1802 = vmpackc.low %vm1770, %vm1770
      %vm1803 = vmpackc.low %vm1771, %vm1771
      %vm1804 = vmpackc.low %vm1772, %vm1772
      %vm1805 = vmpackc.low %vm1773, %vm1773
      %vm1806 = vmpackc.low %vm1774, %vm1774
      %vm1807 = vmpackc.low %vm1775, %vm1775
      %vm1808 = vmpackc.low %vm1776, %vm1776
      %vm1809 = vmpackc.low %vm1777, %vm1777
      %vm1810 = vmpackc.low %vm1778, %vm1778
      %vm1811 = vmpackc.low %vm1779, %vm1779
      %vm1812 = vmpackc.low %vm1780, %vm1780
      %vm1813 = vmpackc.low %vm1781, %vm1781
      %vm1814 = vmpackc.low %vm1782, %vm1782
      %vm1815 = vmpackc.low %vm1783, %vm1783
      %vm1816 = vmpackc.low %vm1784, %vm1784
      %vm1817 = vmpackc.low %vm1785, %vm1785
      %vm1818 = vmpackc.low %vm1786, %vm1786
      %vm1819 = vmpackc.low %vm1787, %vm1787
      %vm1820 = vmpackc.low %vm1788, %vm1788
      %vm1821 = vmpackc.low %vm1789, %vm1789
      %vm1822 = vmpackc.low %vm1790, %vm1790
      %vm1823 = vmpackc.low %vm1791, %vm1791
      %vm1824 = vmpackc.low %vm1792, %vm1792
      %vm1825 = vmpackc.low %vm1793, %vm1793
      %vm1826 = vmpackc.low %vm1794, %vm1794
      %vm1827 = vmpackc.low %vm1795, %vm1795
      %vm1828 = vmpackc.low %vm1796, %vm1796
      %vm1829 = vmpackc.low %vm1797, %vm1797
      %vm1830 = vmpackc.low %vm1798, %vm1798
      %vm1831 = vmpackc.low %vm1799, %vm1799
      %vm1832 = vmpackc.low %vm1800, %vm1800
      %v1833 = vsel %vm1801, 65537, 0
      %v1834 = vsel %vm1802, 65537, 0
      %v1835 = vsel %vm1803, 65537, 0
      %v1836 = vsel %vm1804, 65537, 0
      %v1837 = vsel %vm1805, 65537, 0
      %v1838 = vsel %vm1806, 65537, 0
      %v1839 = vsel %vm1807, 65537, 0
      %v1840 = vsel %vm1808, 65537, 0
      %v1841 = vsel %vm1809, 65537, 0
      %v1842 = vsel %vm1810, 65537, 0
      %v1843 = vsel %vm1811, 65537, 0
      %v1844 = vsel %vm1812, 65537, 0
      %v1845 = vsel %vm1813, 65537, 0
      %v1846 = vsel %vm1814, 65537, 0
      %v1847 = vsel %vm1815, 65537, 0
      %v1848 = vsel %vm1816, 65537, 0
      %v1849 = vsel %vm1817, 65537, 0
      %v1850 = vsel %vm1818, 65537, 0
      %v1851 = vsel %vm1819, 65537, 0
      %v1852 = vsel %vm1820, 65537, 0
      %v1853 = vsel %vm1821, 65537, 0
      %v1854 = vsel %vm1822, 65537, 0
      %v1855 = vsel %vm1823, 65537, 0
      %v1856 = vsel %vm1824, 65537, 0
      %v1857 = vsel %vm1825, 65537, 0
      %v1858 = vsel %vm1826, 65537, 0
      %v1859 = vsel %vm1827, 65537, 0
      %v1860 = vsel %vm1828, 65537, 0
      %v1861 = vsel %vm1829, 65537, 0
      %v1862 = vsel %vm1830, 65537, 0
      %v1863 = vsel %vm1831, 65537, 0
      %v1864 = vsel %vm1832, 65537, 0
      %v1865 = vunpack.c.l.b16 %v1833
      %v1866 = vunpack.c.l.b16 %v1834
      %v1867 = vunpack.c.l.b16 %v1835
      %v1868 = vunpack.c.l.b16 %v1836
      %v1869 = vunpack.c.l.b16 %v1837
      %v1870 = vunpack.c.l.b16 %v1838
      %v1871 = vunpack.c.l.b16 %v1839
      %v1872 = vunpack.c.l.b16 %v1840
      %v1873 = vunpack.c.l.b16 %v1841
      %v1874 = vunpack.c.l.b16 %v1842
      %v1875 = vunpack.c.l.b16 %v1843
      %v1876 = vunpack.c.l.b16 %v1844
      %v1877 = vunpack.c.l.b16 %v1845
      %v1878 = vunpack.c.l.b16 %v1846
      %v1879 = vunpack.c.l.b16 %v1847
      %v1880 = vunpack.c.l.b16 %v1848
      %v1881 = vunpack.c.l.b16 %v1849
      %v1882 = vunpack.c.l.b16 %v1850
      %v1883 = vunpack.c.l.b16 %v1851
      %v1884 = vunpack.c.l.b16 %v1852
      %v1885 = vunpack.c.l.b16 %v1853
      %v1886 = vunpack.c.l.b16 %v1854
      %v1887 = vunpack.c.l.b16 %v1855
      %v1888 = vunpack.c.l.b16 %v1856
      %v1889 = vunpack.c.l.b16 %v1857
      %v1890 = vunpack.c.l.b16 %v1858
      %v1891 = vunpack.c.l.b16 %v1859
      %v1892 = vunpack.c.l.b16 %v1860
      %v1893 = vunpack.c.l.b16 %v1861
      %v1894 = vunpack.c.l.b16 %v1862
      %v1895 = vunpack.c.l.b16 %v1863
      %v1896 = vunpack.c.l.b16 %v1864
      %v1897 = vpack.c.b16 %v1866, %v1865
      %v1898 = vpack.c.b16 %v1868, %v1867
      %v1899 = vpack.c.b16 %v1870, %v1869
      %v1900 = vpack.c.b16 %v1872, %v1871
      %v1901 = vpack.c.b16 %v1874, %v1873
      %v1902 = vpack.c.b16 %v1876, %v1875
      %v1903 = vpack.c.b16 %v1878, %v1877
      %v1904 = vpack.c.b16 %v1880, %v1879
      %v1905 = vpack.c.b16 %v1882, %v1881
      %v1906 = vpack.c.b16 %v1884, %v1883
      %v1907 = vpack.c.b16 %v1886, %v1885
      %v1908 = vpack.c.b16 %v1888, %v1887
      %v1909 = vpack.c.b16 %v1890, %v1889
      %v1910 = vpack.c.b16 %v1892, %v1891
      %v1911 = vpack.c.b16 %v1894, %v1893
      %v1912 = vpack.c.b16 %v1896, %v1895
      %v1914 = vshrl.u32 %v1897, 16
      %v1916 = vrot.slane %v1914, 3
      %v1917 = vshll.u32 %v1897, 16
      %v1919 = vrot.slane %v1917, 4
      %v1920 = vor.u32 %v1916, %v1919
      %v1922 = vshrl.u32 %v1898, 16
      %v1924 = vrot.slane %v1922, 3
      %v1925 = vshll.u32 %v1898, 16
      %v1927 = vrot.slane %v1925, 4
      %v1928 = vor.u32 %v1924, %v1927
      %v1929 = vsel %vm1403, %v1920, %v1928
      %v1931 = vshrl.u32 %v1899, 16
      %v1933 = vrot.slane %v1931, 3
      %v1934 = vshll.u32 %v1899, 16
      %v1936 = vrot.slane %v1934, 4
      %v1937 = vor.u32 %v1933, %v1936
      %v1938 = vsel %vm1403, %v1928, %v1937
      %v1940 = vshrl.u32 %v1900, 16
      %v1942 = vrot.slane %v1940, 3
      %v1943 = vshll.u32 %v1900, 16
      %v1945 = vrot.slane %v1943, 4
      %v1946 = vor.u32 %v1942, %v1945
      %v1947 = vsel %vm1403, %v1937, %v1946
      %v1949 = vshrl.u32 %v1901, 16
      %v1951 = vrot.slane %v1949, 3
      %v1952 = vshll.u32 %v1901, 16
      %v1954 = vrot.slane %v1952, 4
      %v1955 = vor.u32 %v1951, %v1954
      %v1956 = vsel %vm1403, %v1946, %v1955
      %v1958 = vshrl.u32 %v1902, 16
      %v1960 = vrot.slane %v1958, 3
      %v1961 = vshll.u32 %v1902, 16
      %v1963 = vrot.slane %v1961, 4
      %v1964 = vor.u32 %v1960, %v1963
      %v1965 = vsel %vm1403, %v1955, %v1964
      %v1967 = vshrl.u32 %v1903, 16
      %v1969 = vrot.slane %v1967, 3
      %v1970 = vshll.u32 %v1903, 16
      %v1972 = vrot.slane %v1970, 4
      %v1973 = vor.u32 %v1969, %v1972
      %v1974 = vsel %vm1403, %v1964, %v1973
      %v1976 = vshrl.u32 %v1904, 16
      %v1978 = vrot.slane %v1976, 3
      %v1979 = vshll.u32 %v1904, 16
      %v1981 = vrot.slane %v1979, 4
      %v1982 = vor.u32 %v1978, %v1981
      %v1983 = vsel %vm1403, %v1973, %v1982
      %v1985 = vshrl.u32 %v1905, 16
      %v1987 = vrot.slane %v1985, 3
      %v1988 = vshll.u32 %v1905, 16
      %v1990 = vrot.slane %v1988, 4
      %v1991 = vor.u32 %v1987, %v1990
      %v1992 = vsel %vm1403, %v1982, %v1991
      %v1994 = vshrl.u32 %v1906, 16
      %v1996 = vrot.slane %v1994, 3
      %v1997 = vshll.u32 %v1906, 16
      %v1999 = vrot.slane %v1997, 4
      %v2000 = vor.u32 %v1996, %v1999
      %v2001 = vsel %vm1403, %v1991, %v2000
      %v2003 = vshrl.u32 %v1907, 16
      %v2005 = vrot.slane %v2003, 3
      %v2006 = vshll.u32 %v1907, 16
      %v2008 = vrot.slane %v2006, 4
      %v2009 = vor.u32 %v2005, %v2008
      %v2010 = vsel %vm1403, %v2000, %v2009
      %v2012 = vshrl.u32 %v1908, 16
      %v2014 = vrot.slane %v2012, 3
      %v2015 = vshll.u32 %v1908, 16
      %v2017 = vrot.slane %v2015, 4
      %v2018 = vor.u32 %v2014, %v2017
      %v2019 = vsel %vm1403, %v2009, %v2018
      %v2021 = vshrl.u32 %v1909, 16
      %v2023 = vrot.slane %v2021, 3
      %v2024 = vshll.u32 %v1909, 16
      %v2026 = vrot.slane %v2024, 4
      %v2027 = vor.u32 %v2023, %v2026
      %v2028 = vsel %vm1403, %v2018, %v2027
      %v2030 = vshrl.u32 %v1910, 16
      %v2032 = vrot.slane %v2030, 3
      %v2033 = vshll.u32 %v1910, 16
      %v2035 = vrot.slane %v2033, 4
      %v2036 = vor.u32 %v2032, %v2035
      %v2037 = vsel %vm1403, %v2027, %v2036
      %v2039 = vshrl.u32 %v1911, 16
      %v2041 = vrot.slane %v2039, 3
      %v2042 = vshll.u32 %v1911, 16
      %v2044 = vrot.slane %v2042, 4
      %v2045 = vor.u32 %v2041, %v2044
      %v2046 = vsel %vm1403, %v2036, %v2045
      %v2048 = vshrl.u32 %v1912, 16
      %v2050 = vrot.slane %v2048, 3
      %v2051 = vshll.u32 %v1912, 16
      %v2053 = vrot.slane %v2051, 4
      %v2054 = vor.u32 %v2050, %v2053
      %v2055 = vsel %vm1403, %v2045, %v2054
      %vm2056 = vcmp.ne.s16.totalorder %v1920, 0
      %vm2057 = vcmp.ne.s16.totalorder %v1929, 0
      %vm2058 = vcmp.ne.s16.totalorder %v1938, 0
      %vm2059 = vcmp.ne.s16.totalorder %v1947, 0
      %vm2060 = vcmp.ne.s16.totalorder %v1956, 0
      %vm2061 = vcmp.ne.s16.totalorder %v1965, 0
      %vm2062 = vcmp.ne.s16.totalorder %v1974, 0
      %vm2063 = vcmp.ne.s16.totalorder %v1983, 0
      %vm2064 = vcmp.ne.s16.totalorder %v1992, 0
      %vm2065 = vcmp.ne.s16.totalorder %v2001, 0
      %vm2066 = vcmp.ne.s16.totalorder %v2010, 0
      %vm2067 = vcmp.ne.s16.totalorder %v2019, 0
      %vm2068 = vcmp.ne.s16.totalorder %v2028, 0
      %vm2069 = vcmp.ne.s16.totalorder %v2037, 0
      %vm2070 = vcmp.ne.s16.totalorder %v2046, 0
      %vm2071 = vcmp.ne.s16.totalorder %v2055, 0
      %vm2072 = vcmp.ne.s16.totalorder %v2054, 0
      %v2073 = vsel %vm2056, %v1720, 0
      %v2074 = vsel %vm2057, %v1721, 0
      %v2075 = vsel %vm2058, %v1722, 0
      %v2076 = vsel %vm2059, %v1723, 0
      %v2077 = vsel %vm2060, %v1724, 0
      %v2078 = vsel %vm2061, %v1725, 0
      %v2079 = vsel %vm2062, %v1726, 0
      %v2080 = vsel %vm2063, %v1727, 0
      %v2081 = vsel %vm2064, %v1728, 0
      %v2082 = vsel %vm2065, %v1729, 0
      %v2083 = vsel %vm2066, %v1730, 0
      %v2084 = vsel %vm2067, %v1731, 0
      %v2085 = vsel %vm2068, %v1732, 0
      %v2086 = vsel %vm2069, %v1733, 0
      %v2087 = vsel %vm2070, %v1734, 0
      %v2088 = vsel %vm2071, %v1735, 0
      %v2089 = vsel %vm2072, %v1736, 0
      %v2091 = vshrl.u32 %v2073, 16
      %v2093 = vrot.slane %v2091, 4
      %v2094 = vshll.u32 %v2073, 16
      %v2096 = vrot.slane %v2094, 5
      %v2097 = vor.u32 %v2093, %v2096
      %v2099 = vshrl.u32 %v2074, 16
      %v2101 = vrot.slane %v2099, 4
      %v2102 = vshll.u32 %v2074, 16
      %v2104 = vrot.slane %v2102, 5
      %v2105 = vor.u32 %v2101, %v2104
      %v2106 = vsel %vm1225, %v2097, %v2105
      %v2108 = vshrl.u32 %v2075, 16
      %v2110 = vrot.slane %v2108, 4
      %v2111 = vshll.u32 %v2075, 16
      %v2113 = vrot.slane %v2111, 5
      %v2114 = vor.u32 %v2110, %v2113
      %v2115 = vsel %vm1225, %v2105, %v2114
      %v2117 = vshrl.u32 %v2076, 16
      %v2119 = vrot.slane %v2117, 4
      %v2120 = vshll.u32 %v2076, 16
      %v2122 = vrot.slane %v2120, 5
      %v2123 = vor.u32 %v2119, %v2122
      %v2124 = vsel %vm1225, %v2114, %v2123
      %v2126 = vshrl.u32 %v2077, 16
      %v2128 = vrot.slane %v2126, 4
      %v2129 = vshll.u32 %v2077, 16
      %v2131 = vrot.slane %v2129, 5
      %v2132 = vor.u32 %v2128, %v2131
      %v2133 = vsel %vm1225, %v2123, %v2132
      %v2135 = vshrl.u32 %v2078, 16
      %v2137 = vrot.slane %v2135, 4
      %v2138 = vshll.u32 %v2078, 16
      %v2140 = vrot.slane %v2138, 5
      %v2141 = vor.u32 %v2137, %v2140
      %v2142 = vsel %vm1225, %v2132, %v2141
      %v2144 = vshrl.u32 %v2079, 16
      %v2146 = vrot.slane %v2144, 4
      %v2147 = vshll.u32 %v2079, 16
      %v2149 = vrot.slane %v2147, 5
      %v2150 = vor.u32 %v2146, %v2149
      %v2151 = vsel %vm1225, %v2141, %v2150
      %v2153 = vshrl.u32 %v2080, 16
      %v2155 = vrot.slane %v2153, 4
      %v2156 = vshll.u32 %v2080, 16
      %v2158 = vrot.slane %v2156, 5
      %v2159 = vor.u32 %v2155, %v2158
      %v2160 = vsel %vm1225, %v2150, %v2159
      %v2162 = vshrl.u32 %v2081, 16
      %v2164 = vrot.slane %v2162, 4
      %v2165 = vshll.u32 %v2081, 16
      %v2167 = vrot.slane %v2165, 5
      %v2168 = vor.u32 %v2164, %v2167
      %v2169 = vsel %vm1225, %v2159, %v2168
      %v2171 = vshrl.u32 %v2082, 16
      %v2173 = vrot.slane %v2171, 4
      %v2174 = vshll.u32 %v2082, 16
      %v2176 = vrot.slane %v2174, 5
      %v2177 = vor.u32 %v2173, %v2176
      %v2178 = vsel %vm1225, %v2168, %v2177
      %v2180 = vshrl.u32 %v2083, 16
      %v2182 = vrot.slane %v2180, 4
      %v2183 = vshll.u32 %v2083, 16
      %v2185 = vrot.slane %v2183, 5
      %v2186 = vor.u32 %v2182, %v2185
      %v2187 = vsel %vm1225, %v2177, %v2186
      %v2189 = vshrl.u32 %v2084, 16
      %v2191 = vrot.slane %v2189, 4
      %v2192 = vshll.u32 %v2084, 16
      %v2194 = vrot.slane %v2192, 5
      %v2195 = vor.u32 %v2191, %v2194
      %v2196 = vsel %vm1225, %v2186, %v2195
      %v2198 = vshrl.u32 %v2085, 16
      %v2200 = vrot.slane %v2198, 4
      %v2201 = vshll.u32 %v2085, 16
      %v2203 = vrot.slane %v2201, 5
      %v2204 = vor.u32 %v2200, %v2203
      %v2205 = vsel %vm1225, %v2195, %v2204
      %v2207 = vshrl.u32 %v2086, 16
      %v2209 = vrot.slane %v2207, 4
      %v2210 = vshll.u32 %v2086, 16
      %v2212 = vrot.slane %v2210, 5
      %v2213 = vor.u32 %v2209, %v2212
      %v2214 = vsel %vm1225, %v2204, %v2213
      %v2216 = vshrl.u32 %v2087, 16
      %v2218 = vrot.slane %v2216, 4
      %v2219 = vshll.u32 %v2087, 16
      %v2221 = vrot.slane %v2219, 5
      %v2222 = vor.u32 %v2218, %v2221
      %v2223 = vsel %vm1225, %v2213, %v2222
      %v2225 = vshrl.u32 %v2088, 16
      %v2227 = vrot.slane %v2225, 4
      %v2228 = vshll.u32 %v2088, 16
      %v2230 = vrot.slane %v2228, 5
      %v2231 = vor.u32 %v2227, %v2230
      %v2232 = vsel %vm1225, %v2222, %v2231
      %v2234 = vshrl.u32 %v2089, 16
      %v2236 = vrot.slane %v2234, 4
      %v2237 = vshll.u32 %v2089, 16
      %v2239 = vrot.slane %v2237, 5
      %v2240 = vor.u32 %v2236, %v2239
      %v2241 = vsel %vm1225, %v2231, %v2240
      %2242 = vrot.lane.b32.xlu0 %v2106, 8
      %v2243 = vpop.permute.xlu0 %2242
      %2244 = vrot.lane.b32.xlu0 %v2115, 8
      %v2245 = vpop.permute.xlu0 %2244
      %2246 = vrot.lane.b32.xlu0 %v2124, 8
      %v2247 = vpop.permute.xlu0 %2246
      %2248 = vrot.lane.b32.xlu0 %v2133, 8
      %v2249 = vpop.permute.xlu0 %2248
      %2250 = vrot.lane.b32.xlu0 %v2142, 8
      %v2251 = vpop.permute.xlu0 %2250
      %2252 = vrot.lane.b32.xlu0 %v2151, 8
      %v2253 = vpop.permute.xlu0 %2252
      %2254 = vrot.lane.b32.xlu0 %v2160, 8
      %v2255 = vpop.permute.xlu0 %2254
      %2256 = vrot.lane.b32.xlu0 %v2169, 8
      %v2257 = vpop.permute.xlu0 %2256
      %2258 = vrot.lane.b32.xlu0 %v2178, 8
      %v2259 = vpop.permute.xlu0 %2258
      %2260 = vrot.lane.b32.xlu0 %v2187, 8
      %v2261 = vpop.permute.xlu0 %2260
      %2262 = vrot.lane.b32.xlu0 %v2196, 8
      %v2263 = vpop.permute.xlu0 %2262
      %2264 = vrot.lane.b32.xlu0 %v2205, 8
      %v2265 = vpop.permute.xlu0 %2264
      %2266 = vrot.lane.b32.xlu0 %v2214, 8
      %v2267 = vpop.permute.xlu0 %2266
      %2268 = vrot.lane.b32.xlu0 %v2223, 8
      %v2269 = vpop.permute.xlu0 %2268
      %2270 = vrot.lane.b32.xlu0 %v2232, 8
      %v2271 = vpop.permute.xlu0 %2270
      %2272 = vrot.lane.b32.xlu0 %v2241, 8
      %v2273 = vpop.permute.xlu0 %2272
      %vm2290 = vcmask 97344
      %2291 = vst.msk [vmem:[#allocation3] sm:$0xff] %vm2290, %v2243
      %2292 = vst.msk [vmem:[#allocation3 + $0x8] sm:$0xff] %vm2290, %v2245
      %2293 = vst.msk [vmem:[#allocation3 + $0x10] sm:$0xff] %vm2290, %v2247
      %2294 = vst.msk [vmem:[#allocation3 + $0x18] sm:$0xff] %vm2290, %v2249
      %2295 = vst.msk [vmem:[#allocation3 + $0x20] sm:$0xff] %vm2290, %v2251
      %2296 = vst.msk [vmem:[#allocation3 + $0x28] sm:$0xff] %vm2290, %v2253
      %2297 = vst.msk [vmem:[#allocation3 + $0x30] sm:$0xff] %vm2290, %v2255
      %2298 = vst.msk [vmem:[#allocation3 + $0x38] sm:$0xff] %vm2290, %v2257
      %2299 = vst.msk [vmem:[#allocation3 + $0x40] sm:$0xff] %vm2290, %v2259
      %2300 = vst.msk [vmem:[#allocation3 + $0x48] sm:$0xff] %vm2290, %v2261
      %2301 = vst.msk [vmem:[#allocation3 + $0x50] sm:$0xff] %vm2290, %v2263
      %2302 = vst.msk [vmem:[#allocation3 + $0x58] sm:$0xff] %vm2290, %v2265
      %2303 = vst.msk [vmem:[#allocation3 + $0x60] sm:$0xff] %vm2290, %v2267
      %2304 = vst.msk [vmem:[#allocation3 + $0x68] sm:$0xff] %vm2290, %v2269
      %2305 = vst.msk [vmem:[#allocation3 + $0x70] sm:$0xff] %vm2290, %v2271
      %2306 = vst.msk [vmem:[#allocation3 + $0x78] sm:$0xff] %vm2290, %v2273
      %v2307 = vld [vmem:[#allocation2 + $0x8] sm:$0xf8]
      %v2308 = vld [vmem:[#allocation2 + $0x10] sm:$0xff]
      %v2309 = vld [vmem:[#allocation2 + $0x18] sm:$0xff]
      %v2310 = vld [vmem:[#allocation2 + $0x20] sm:$0xff]
      %v2311 = vld [vmem:[#allocation2 + $0x28] sm:$0xff]
      %v2312 = vld [vmem:[#allocation2 + $0x30] sm:$0xff]
      %v2313 = vld [vmem:[#allocation2 + $0x38] sm:$0xff]
      %v2314 = vld [vmem:[#allocation2 + $0x40] sm:$0xff]
      %v2315 = vld [vmem:[#allocation2 + $0x48] sm:$0xff]
      %v2316 = vld [vmem:[#allocation2 + $0x50] sm:$0xff]
      %v2317 = vld [vmem:[#allocation2 + $0x58] sm:$0xff]
      %v2318 = vld [vmem:[#allocation2 + $0x60] sm:$0xff]
      %v2319 = vld [vmem:[#allocation2 + $0x68] sm:$0xff]
      %v2320 = vld [vmem:[#allocation2 + $0x70] sm:$0xff]
      %v2321 = vld [vmem:[#allocation2 + $0x78] sm:$0xff]
      %v2322 = vld [vmem:[#allocation2 + $0x80] sm:$0xff]
      %v2323 = vld [vmem:[#allocation2 + $0x88] sm:$0xf]
      %v2324 = vsel %vm1369, %v2307, 0
      %v2325 = vsel %vm1370, %v2308, 0
      %v2326 = vsel %vm1371, %v2309, 0
      %v2327 = vsel %vm1372, %v2310, 0
      %v2328 = vsel %vm1373, %v2311, 0
      %v2329 = vsel %vm1374, %v2312, 0
      %v2330 = vsel %vm1375, %v2313, 0
      %v2331 = vsel %vm1376, %v2314, 0
      %v2332 = vsel %vm1377, %v2315, 0
      %v2333 = vsel %vm1378, %v2316, 0
      %v2334 = vsel %vm1379, %v2317, 0
      %v2335 = vsel %vm1380, %v2318, 0
      %v2336 = vsel %vm1381, %v2319, 0
      %v2337 = vsel %vm1382, %v2320, 0
      %v2338 = vsel %vm1383, %v2321, 0
      %v2339 = vsel %vm1384, %v2322, 0
      %v2340 = vsel %vm1385, %v2323, 0
      %v2342 = vshrl.u32 %v2324, 16
      %v2344 = vrot.slane %v2342, 3
      %v2345 = vshll.u32 %v2324, 16
      %v2347 = vrot.slane %v2345, 4
      %v2348 = vor.u32 %v2344, %v2347
      %v2350 = vshrl.u32 %v2325, 16
      %v2352 = vrot.slane %v2350, 3
      %v2353 = vshll.u32 %v2325, 16
      %v2355 = vrot.slane %v2353, 4
      %v2356 = vor.u32 %v2352, %v2355
      %v2357 = vsel %vm1403, %v2348, %v2356
      %v2359 = vshrl.u32 %v2326, 16
      %v2361 = vrot.slane %v2359, 3
      %v2362 = vshll.u32 %v2326, 16
      %v2364 = vrot.slane %v2362, 4
      %v2365 = vor.u32 %v2361, %v2364
      %v2366 = vsel %vm1403, %v2356, %v2365
      %v2368 = vshrl.u32 %v2327, 16
      %v2370 = vrot.slane %v2368, 3
      %v2371 = vshll.u32 %v2327, 16
      %v2373 = vrot.slane %v2371, 4
      %v2374 = vor.u32 %v2370, %v2373
      %v2375 = vsel %vm1403, %v2365, %v2374
      %v2377 = vshrl.u32 %v2328, 16
      %v2379 = vrot.slane %v2377, 3
      %v2380 = vshll.u32 %v2328, 16
      %v2382 = vrot.slane %v2380, 4
      %v2383 = vor.u32 %v2379, %v2382
      %v2384 = vsel %vm1403, %v2374, %v2383
      %v2386 = vshrl.u32 %v2329, 16
      %v2388 = vrot.slane %v2386, 3
      %v2389 = vshll.u32 %v2329, 16
      %v2391 = vrot.slane %v2389, 4
      %v2392 = vor.u32 %v2388, %v2391
      %v2393 = vsel %vm1403, %v2383, %v2392
      %v2395 = vshrl.u32 %v2330, 16
      %v2397 = vrot.slane %v2395, 3
      %v2398 = vshll.u32 %v2330, 16
      %v2400 = vrot.slane %v2398, 4
      %v2401 = vor.u32 %v2397, %v2400
      %v2402 = vsel %vm1403, %v2392, %v2401
      %v2404 = vshrl.u32 %v2331, 16
      %v2406 = vrot.slane %v2404, 3
      %v2407 = vshll.u32 %v2331, 16
      %v2409 = vrot.slane %v2407, 4
      %v2410 = vor.u32 %v2406, %v2409
      %v2411 = vsel %vm1403, %v2401, %v2410
      %v2413 = vshrl.u32 %v2332, 16
      %v2415 = vrot.slane %v2413, 3
      %v2416 = vshll.u32 %v2332, 16
      %v2418 = vrot.slane %v2416, 4
      %v2419 = vor.u32 %v2415, %v2418
      %v2420 = vsel %vm1403, %v2410, %v2419
      %v2422 = vshrl.u32 %v2333, 16
      %v2424 = vrot.slane %v2422, 3
      %v2425 = vshll.u32 %v2333, 16
      %v2427 = vrot.slane %v2425, 4
      %v2428 = vor.u32 %v2424, %v2427
      %v2429 = vsel %vm1403, %v2419, %v2428
      %v2431 = vshrl.u32 %v2334, 16
      %v2433 = vrot.slane %v2431, 3
      %v2434 = vshll.u32 %v2334, 16
      %v2436 = vrot.slane %v2434, 4
      %v2437 = vor.u32 %v2433, %v2436
      %v2438 = vsel %vm1403, %v2428, %v2437
      %v2440 = vshrl.u32 %v2335, 16
      %v2442 = vrot.slane %v2440, 3
      %v2443 = vshll.u32 %v2335, 16
      %v2445 = vrot.slane %v2443, 4
      %v2446 = vor.u32 %v2442, %v2445
      %v2447 = vsel %vm1403, %v2437, %v2446
      %v2449 = vshrl.u32 %v2336, 16
      %v2451 = vrot.slane %v2449, 3
      %v2452 = vshll.u32 %v2336, 16
      %v2454 = vrot.slane %v2452, 4
      %v2455 = vor.u32 %v2451, %v2454
      %v2456 = vsel %vm1403, %v2446, %v2455
      %v2458 = vshrl.u32 %v2337, 16
      %v2460 = vrot.slane %v2458, 3
      %v2461 = vshll.u32 %v2337, 16
      %v2463 = vrot.slane %v2461, 4
      %v2464 = vor.u32 %v2460, %v2463
      %v2465 = vsel %vm1403, %v2455, %v2464
      %v2467 = vshrl.u32 %v2338, 16
      %v2469 = vrot.slane %v2467, 3
      %v2470 = vshll.u32 %v2338, 16
      %v2472 = vrot.slane %v2470, 4
      %v2473 = vor.u32 %v2469, %v2472
      %v2474 = vsel %vm1403, %v2464, %v2473
      %v2476 = vshrl.u32 %v2339, 16
      %v2478 = vrot.slane %v2476, 3
      %v2479 = vshll.u32 %v2339, 16
      %v2481 = vrot.slane %v2479, 4
      %v2482 = vor.u32 %v2478, %v2481
      %v2483 = vsel %vm1403, %v2473, %v2482
      %v2485 = vshrl.u32 %v2340, 16
      %v2487 = vrot.slane %v2485, 3
      %v2488 = vshll.u32 %v2340, 16
      %v2490 = vrot.slane %v2488, 4
      %v2491 = vor.u32 %v2487, %v2490
      %v2492 = vsel %vm1403, %v2482, %v2491
      %2493 = vrot.lane.b32.xlu0 %v2357, 12
      %v2494 = vpop.permute.xlu0 %2493
      %2495 = vrot.lane.b32.xlu0 %v2366, 12
      %v2496 = vpop.permute.xlu0 %2495
      %2497 = vrot.lane.b32.xlu0 %v2375, 12
      %v2498 = vpop.permute.xlu0 %2497
      %2499 = vrot.lane.b32.xlu0 %v2384, 12
      %v2500 = vpop.permute.xlu0 %2499
      %2501 = vrot.lane.b32.xlu0 %v2393, 12
      %v2502 = vpop.permute.xlu0 %2501
      %2503 = vrot.lane.b32.xlu0 %v2402, 12
      %v2504 = vpop.permute.xlu0 %2503
      %2505 = vrot.lane.b32.xlu0 %v2411, 12
      %v2506 = vpop.permute.xlu0 %2505
      %2507 = vrot.lane.b32.xlu0 %v2420, 12
      %v2508 = vpop.permute.xlu0 %2507
      %2509 = vrot.lane.b32.xlu0 %v2429, 12
      %v2510 = vpop.permute.xlu0 %2509
      %2511 = vrot.lane.b32.xlu0 %v2438, 12
      %v2512 = vpop.permute.xlu0 %2511
      %2513 = vrot.lane.b32.xlu0 %v2447, 12
      %v2514 = vpop.permute.xlu0 %2513
      %2515 = vrot.lane.b32.xlu0 %v2456, 12
      %v2516 = vpop.permute.xlu0 %2515
      %2517 = vrot.lane.b32.xlu0 %v2465, 12
      %v2518 = vpop.permute.xlu0 %2517
      %2519 = vrot.lane.b32.xlu0 %v2474, 12
      %v2520 = vpop.permute.xlu0 %2519
      %2521 = vrot.lane.b32.xlu0 %v2483, 12
      %v2522 = vpop.permute.xlu0 %2521
      %2523 = vrot.lane.b32.xlu0 %v2492, 12
      %v2524 = vpop.permute.xlu0 %2523
      %vm2541 = vcmask 130144
      %2542 = vst.msk [vmem:[#allocation3] sm:$0xff] %vm2541, %v2494
      %2543 = vst.msk [vmem:[#allocation3 + $0x8] sm:$0xff] %vm2541, %v2496
      %2544 = vst.msk [vmem:[#allocation3 + $0x10] sm:$0xff] %vm2541, %v2498
      %2545 = vst.msk [vmem:[#allocation3 + $0x18] sm:$0xff] %vm2541, %v2500
      %2546 = vst.msk [vmem:[#allocation3 + $0x20] sm:$0xff] %vm2541, %v2502
      %2547 = vst.msk [vmem:[#allocation3 + $0x28] sm:$0xff] %vm2541, %v2504
      %2548 = vst.msk [vmem:[#allocation3 + $0x30] sm:$0xff] %vm2541, %v2506
      %2549 = vst.msk [vmem:[#allocation3 + $0x38] sm:$0xff] %vm2541, %v2508
      %2550 = vst.msk [vmem:[#allocation3 + $0x40] sm:$0xff] %vm2541, %v2510
      %2551 = vst.msk [vmem:[#allocation3 + $0x48] sm:$0xff] %vm2541, %v2512
      %2552 = vst.msk [vmem:[#allocation3 + $0x50] sm:$0xff] %vm2541, %v2514
      %2553 = vst.msk [vmem:[#allocation3 + $0x58] sm:$0xff] %vm2541, %v2516
      %2554 = vst.msk [vmem:[#allocation3 + $0x60] sm:$0xff] %vm2541, %v2518
      %2555 = vst.msk [vmem:[#allocation3 + $0x68] sm:$0xff] %vm2541, %v2520
      %2556 = vst.msk [vmem:[#allocation3 + $0x70] sm:$0xff] %vm2541, %v2522
      %2557 = vst.msk [vmem:[#allocation3 + $0x78] sm:$0xff] %vm2541, %v2524
      %v2558 = vld [vmem:[#allocation2 + $0x8] sm:$0xf0]
      %v2559 = vld [vmem:[#allocation2 + $0x10] sm:$0xff]
      %v2560 = vld [vmem:[#allocation2 + $0x18] sm:$0xff]
      %v2561 = vld [vmem:[#allocation2 + $0x20] sm:$0xff]
      %v2562 = vld [vmem:[#allocation2 + $0x28] sm:$0xff]
      %v2563 = vld [vmem:[#allocation2 + $0x30] sm:$0xff]
      %v2564 = vld [vmem:[#allocation2 + $0x38] sm:$0xff]
      %v2565 = vld [vmem:[#allocation2 + $0x40] sm:$0xff]
      %v2566 = vld [vmem:[#allocation2 + $0x48] sm:$0xff]
      %v2567 = vld [vmem:[#allocation2 + $0x50] sm:$0xff]
      %v2568 = vld [vmem:[#allocation2 + $0x58] sm:$0xff]
      %v2569 = vld [vmem:[#allocation2 + $0x60] sm:$0xff]
      %v2570 = vld [vmem:[#allocation2 + $0x68] sm:$0xff]
      %v2571 = vld [vmem:[#allocation2 + $0x70] sm:$0xff]
      %v2572 = vld [vmem:[#allocation2 + $0x78] sm:$0xff]
      %v2573 = vld [vmem:[#allocation2 + $0x80] sm:$0xff]
      %v2574 = vld [vmem:[#allocation2 + $0x88] sm:$0xf]
      %v2592 = vrot.slane %v2558, 4
      %v2593 = vrot.slane %v2559, 4
      %v2594 = vsel %vm485, %v2592, %v2593
      %v2595 = vrot.slane %v2560, 4
      %v2596 = vsel %vm485, %v2593, %v2595
      %v2597 = vrot.slane %v2561, 4
      %v2598 = vsel %vm485, %v2595, %v2597
      %v2599 = vrot.slane %v2562, 4
      %v2600 = vsel %vm485, %v2597, %v2599
      %v2601 = vrot.slane %v2563, 4
      %v2602 = vsel %vm485, %v2599, %v2601
      %v2603 = vrot.slane %v2564, 4
      %v2604 = vsel %vm485, %v2601, %v2603
      %v2605 = vrot.slane %v2565, 4
      %v2606 = vsel %vm485, %v2603, %v2605
      %v2607 = vrot.slane %v2566, 4
      %v2608 = vsel %vm485, %v2605, %v2607
      %v2609 = vrot.slane %v2567, 4
      %v2610 = vsel %vm485, %v2607, %v2609
      %v2611 = vrot.slane %v2568, 4
      %v2612 = vsel %vm485, %v2609, %v2611
      %v2613 = vrot.slane %v2569, 4
      %v2614 = vsel %vm485, %v2611, %v2613
      %v2615 = vrot.slane %v2570, 4
      %v2616 = vsel %vm485, %v2613, %v2615
      %v2617 = vrot.slane %v2571, 4
      %v2618 = vsel %vm485, %v2615, %v2617
      %v2619 = vrot.slane %v2572, 4
      %v2620 = vsel %vm485, %v2617, %v2619
      %v2621 = vrot.slane %v2573, 4
      %v2622 = vsel %vm485, %v2619, %v2621
      %v2623 = vrot.slane %v2574, 4
      %v2624 = vsel %vm485, %v2621, %v2623
      %2625 = vrot.lane.b32.xlu0 %v2594, 16
      %v2626 = vpop.permute.xlu0 %2625
      %2627 = vrot.lane.b32.xlu0 %v2596, 16
      %v2628 = vpop.permute.xlu0 %2627
      %2629 = vrot.lane.b32.xlu0 %v2598, 16
      %v2630 = vpop.permute.xlu0 %2629
      %2631 = vrot.lane.b32.xlu0 %v2600, 16
      %v2632 = vpop.permute.xlu0 %2631
      %2633 = vrot.lane.b32.xlu0 %v2602, 16
      %v2634 = vpop.permute.xlu0 %2633
      %2635 = vrot.lane.b32.xlu0 %v2604, 16
      %v2636 = vpop.permute.xlu0 %2635
      %2637 = vrot.lane.b32.xlu0 %v2606, 16
      %v2638 = vpop.permute.xlu0 %2637
      %2639 = vrot.lane.b32.xlu0 %v2608, 16
      %v2640 = vpop.permute.xlu0 %2639
      %2641 = vrot.lane.b32.xlu0 %v2610, 16
      %v2642 = vpop.permute.xlu0 %2641
      %2643 = vrot.lane.b32.xlu0 %v2612, 16
      %v2644 = vpop.permute.xlu0 %2643
      %2645 = vrot.lane.b32.xlu0 %v2614, 16
      %v2646 = vpop.permute.xlu0 %2645
      %2647 = vrot.lane.b32.xlu0 %v2616, 16
      %v2648 = vpop.permute.xlu0 %2647
      %2649 = vrot.lane.b32.xlu0 %v2618, 16
      %v2650 = vpop.permute.xlu0 %2649
      %2651 = vrot.lane.b32.xlu0 %v2620, 16
      %v2652 = vpop.permute.xlu0 %2651
      %2653 = vrot.lane.b32.xlu0 %v2622, 16
      %v2654 = vpop.permute.xlu0 %2653
      %2655 = vrot.lane.b32.xlu0 %v2624, 16
      %v2656 = vpop.permute.xlu0 %2655
      %vm2673 = vcmask 162944
      %2674 = vst.msk [vmem:[#allocation3] sm:$0xff] %vm2673, %v2626
      %2675 = vst.msk [vmem:[#allocation3 + $0x8] sm:$0xff] %vm2673, %v2628
      %2676 = vst.msk [vmem:[#allocation3 + $0x10] sm:$0xff] %vm2673, %v2630
      %2677 = vst.msk [vmem:[#allocation3 + $0x18] sm:$0xff] %vm2673, %v2632
      %2678 = vst.msk [vmem:[#allocation3 + $0x20] sm:$0xff] %vm2673, %v2634
      %2679 = vst.msk [vmem:[#allocation3 + $0x28] sm:$0xff] %vm2673, %v2636
      %2680 = vst.msk [vmem:[#allocation3 + $0x30] sm:$0xff] %vm2673, %v2638
      %2681 = vst.msk [vmem:[#allocation3 + $0x38] sm:$0xff] %vm2673, %v2640
      %2682 = vst.msk [vmem:[#allocation3 + $0x40] sm:$0xff] %vm2673, %v2642
      %2683 = vst.msk [vmem:[#allocation3 + $0x48] sm:$0xff] %vm2673, %v2644
      %2684 = vst.msk [vmem:[#allocation3 + $0x50] sm:$0xff] %vm2673, %v2646
      %2685 = vst.msk [vmem:[#allocation3 + $0x58] sm:$0xff] %vm2673, %v2648
      %2686 = vst.msk [vmem:[#allocation3 + $0x60] sm:$0xff] %vm2673, %v2650
      %2687 = vst.msk [vmem:[#allocation3 + $0x68] sm:$0xff] %vm2673, %v2652
      %2688 = vst.msk [vmem:[#allocation3 + $0x70] sm:$0xff] %vm2673, %v2654
      %2689 = vst.msk [vmem:[#allocation3 + $0x78] sm:$0xff] %vm2673, %v2656
      %v2690 = vld [vmem:[#allocation2 + $0x8] sm:$0xf0]
      %v2691 = vld [vmem:[#allocation2 + $0x10] sm:$0xff]
      %v2692 = vld [vmem:[#allocation2 + $0x18] sm:$0xff]
      %v2693 = vld [vmem:[#allocation2 + $0x20] sm:$0xff]
      %v2694 = vld [vmem:[#allocation2 + $0x28] sm:$0xff]
      %v2695 = vld [vmem:[#allocation2 + $0x30] sm:$0xff]
      %v2696 = vld [vmem:[#allocation2 + $0x38] sm:$0xff]
      %v2697 = vld [vmem:[#allocation2 + $0x40] sm:$0xff]
      %v2698 = vld [vmem:[#allocation2 + $0x48] sm:$0xff]
      %v2699 = vld [vmem:[#allocation2 + $0x50] sm:$0xff]
      %v2700 = vld [vmem:[#allocation2 + $0x58] sm:$0xff]
      %v2701 = vld [vmem:[#allocation2 + $0x60] sm:$0xff]
      %v2702 = vld [vmem:[#allocation2 + $0x68] sm:$0xff]
      %v2703 = vld [vmem:[#allocation2 + $0x70] sm:$0xff]
      %v2704 = vld [vmem:[#allocation2 + $0x78] sm:$0xff]
      %v2705 = vld [vmem:[#allocation2 + $0x80] sm:$0xff]
      %v2706 = vld [vmem:[#allocation2 + $0x88] sm:$0x1f]
      %v2707 = vsel %vm2056, %v2690, 0
      %v2708 = vsel %vm2057, %v2691, 0
      %v2709 = vsel %vm2058, %v2692, 0
      %v2710 = vsel %vm2059, %v2693, 0
      %v2711 = vsel %vm2060, %v2694, 0
      %v2712 = vsel %vm2061, %v2695, 0
      %v2713 = vsel %vm2062, %v2696, 0
      %v2714 = vsel %vm2063, %v2697, 0
      %v2715 = vsel %vm2064, %v2698, 0
      %v2716 = vsel %vm2065, %v2699, 0
      %v2717 = vsel %vm2066, %v2700, 0
      %v2718 = vsel %vm2067, %v2701, 0
      %v2719 = vsel %vm2068, %v2702, 0
      %v2720 = vsel %vm2069, %v2703, 0
      %v2721 = vsel %vm2070, %v2704, 0
      %v2722 = vsel %vm2071, %v2705, 0
      %v2723 = vsel %vm2072, %v2706, 0
      %v2725 = vshrl.u32 %v2707, 16
      %v2727 = vrot.slane %v2725, 4
      %v2728 = vshll.u32 %v2707, 16
      %v2730 = vrot.slane %v2728, 5
      %v2731 = vor.u32 %v2727, %v2730
      %v2733 = vshrl.u32 %v2708, 16
      %v2735 = vrot.slane %v2733, 4
      %v2736 = vshll.u32 %v2708, 16
      %v2738 = vrot.slane %v2736, 5
      %v2739 = vor.u32 %v2735, %v2738
      %v2740 = vsel %vm1225, %v2731, %v2739
      %v2742 = vshrl.u32 %v2709, 16
      %v2744 = vrot.slane %v2742, 4
      %v2745 = vshll.u32 %v2709, 16
      %v2747 = vrot.slane %v2745, 5
      %v2748 = vor.u32 %v2744, %v2747
      %v2749 = vsel %vm1225, %v2739, %v2748
      %v2751 = vshrl.u32 %v2710, 16
      %v2753 = vrot.slane %v2751, 4
      %v2754 = vshll.u32 %v2710, 16
      %v2756 = vrot.slane %v2754, 5
      %v2757 = vor.u32 %v2753, %v2756
      %v2758 = vsel %vm1225, %v2748, %v2757
      %v2760 = vshrl.u32 %v2711, 16
      %v2762 = vrot.slane %v2760, 4
      %v2763 = vshll.u32 %v2711, 16
      %v2765 = vrot.slane %v2763, 5
      %v2766 = vor.u32 %v2762, %v2765
      %v2767 = vsel %vm1225, %v2757, %v2766
      %v2769 = vshrl.u32 %v2712, 16
      %v2771 = vrot.slane %v2769, 4
      %v2772 = vshll.u32 %v2712, 16
      %v2774 = vrot.slane %v2772, 5
      %v2775 = vor.u32 %v2771, %v2774
      %v2776 = vsel %vm1225, %v2766, %v2775
      %v2778 = vshrl.u32 %v2713, 16
      %v2780 = vrot.slane %v2778, 4
      %v2781 = vshll.u32 %v2713, 16
      %v2783 = vrot.slane %v2781, 5
      %v2784 = vor.u32 %v2780, %v2783
      %v2785 = vsel %vm1225, %v2775, %v2784
      %v2787 = vshrl.u32 %v2714, 16
      %v2789 = vrot.slane %v2787, 4
      %v2790 = vshll.u32 %v2714, 16
      %v2792 = vrot.slane %v2790, 5
      %v2793 = vor.u32 %v2789, %v2792
      %v2794 = vsel %vm1225, %v2784, %v2793
      %v2796 = vshrl.u32 %v2715, 16
      %v2798 = vrot.slane %v2796, 4
      %v2799 = vshll.u32 %v2715, 16
      %v2801 = vrot.slane %v2799, 5
      %v2802 = vor.u32 %v2798, %v2801
      %v2803 = vsel %vm1225, %v2793, %v2802
      %v2805 = vshrl.u32 %v2716, 16
      %v2807 = vrot.slane %v2805, 4
      %v2808 = vshll.u32 %v2716, 16
      %v2810 = vrot.slane %v2808, 5
      %v2811 = vor.u32 %v2807, %v2810
      %v2812 = vsel %vm1225, %v2802, %v2811
      %v2814 = vshrl.u32 %v2717, 16
      %v2816 = vrot.slane %v2814, 4
      %v2817 = vshll.u32 %v2717, 16
      %v2819 = vrot.slane %v2817, 5
      %v2820 = vor.u32 %v2816, %v2819
      %v2821 = vsel %vm1225, %v2811, %v2820
      %v2823 = vshrl.u32 %v2718, 16
      %v2825 = vrot.slane %v2823, 4
      %v2826 = vshll.u32 %v2718, 16
      %v2828 = vrot.slane %v2826, 5
      %v2829 = vor.u32 %v2825, %v2828
      %v2830 = vsel %vm1225, %v2820, %v2829
      %v2832 = vshrl.u32 %v2719, 16
      %v2834 = vrot.slane %v2832, 4
      %v2835 = vshll.u32 %v2719, 16
      %v2837 = vrot.slane %v2835, 5
      %v2838 = vor.u32 %v2834, %v2837
      %v2839 = vsel %vm1225, %v2829, %v2838
      %v2841 = vshrl.u32 %v2720, 16
      %v2843 = vrot.slane %v2841, 4
      %v2844 = vshll.u32 %v2720, 16
      %v2846 = vrot.slane %v2844, 5
      %v2847 = vor.u32 %v2843, %v2846
      %v2848 = vsel %vm1225, %v2838, %v2847
      %v2850 = vshrl.u32 %v2721, 16
      %v2852 = vrot.slane %v2850, 4
      %v2853 = vshll.u32 %v2721, 16
      %v2855 = vrot.slane %v2853, 5
      %v2856 = vor.u32 %v2852, %v2855
      %v2857 = vsel %vm1225, %v2847, %v2856
      %v2859 = vshrl.u32 %v2722, 16
      %v2861 = vrot.slane %v2859, 4
      %v2862 = vshll.u32 %v2722, 16
      %v2864 = vrot.slane %v2862, 5
      %v2865 = vor.u32 %v2861, %v2864
      %v2866 = vsel %vm1225, %v2856, %v2865
      %v2868 = vshrl.u32 %v2723, 16
      %v2870 = vrot.slane %v2868, 4
      %v2871 = vshll.u32 %v2723, 16
      %v2873 = vrot.slane %v2871, 5
      %v2874 = vor.u32 %v2870, %v2873
      %v2875 = vsel %vm1225, %v2865, %v2874
      %2876 = vrot.lane.b32.xlu0 %v2740, 20
      %v2877 = vpop.permute.xlu0 %2876
      %2878 = vrot.lane.b32.xlu0 %v2749, 20
      %v2879 = vpop.permute.xlu0 %2878
      %2880 = vrot.lane.b32.xlu0 %v2758, 20
      %v2881 = vpop.permute.xlu0 %2880
      %2882 = vrot.lane.b32.xlu0 %v2767, 20
      %v2883 = vpop.permute.xlu0 %2882
      %2884 = vrot.lane.b32.xlu0 %v2776, 20
      %v2885 = vpop.permute.xlu0 %2884
      %2886 = vrot.lane.b32.xlu0 %v2785, 20
      %v2887 = vpop.permute.xlu0 %2886
      %2888 = vrot.lane.b32.xlu0 %v2794, 20
      %v2889 = vpop.permute.xlu0 %2888
      %2890 = vrot.lane.b32.xlu0 %v2803, 20
      %v2891 = vpop.permute.xlu0 %2890
      %2892 = vrot.lane.b32.xlu0 %v2812, 20
      %v2893 = vpop.permute.xlu0 %2892
      %2894 = vrot.lane.b32.xlu0 %v2821, 20
      %v2895 = vpop.permute.xlu0 %2894
      %2896 = vrot.lane.b32.xlu0 %v2830, 20
      %v2897 = vpop.permute.xlu0 %2896
      %2898 = vrot.lane.b32.xlu0 %v2839, 20
      %v2899 = vpop.permute.xlu0 %2898
      %2900 = vrot.lane.b32.xlu0 %v2848, 20
      %v2901 = vpop.permute.xlu0 %2900
      %2902 = vrot.lane.b32.xlu0 %v2857, 20
      %v2903 = vpop.permute.xlu0 %2902
      %2904 = vrot.lane.b32.xlu0 %v2866, 20
      %v2905 = vpop.permute.xlu0 %2904
      %2906 = vrot.lane.b32.xlu0 %v2875, 20
      %v2907 = vpop.permute.xlu0 %2906
      %vm2924 = vcmask 195744
      %2925 = vst.msk [vmem:[#allocation3] sm:$0xff] %vm2924, %v2877
      %2926 = vst.msk [vmem:[#allocation3 + $0x8] sm:$0xff] %vm2924, %v2879
      %2927 = vst.msk [vmem:[#allocation3 + $0x10] sm:$0xff] %vm2924, %v2881
      %2928 = vst.msk [vmem:[#allocation3 + $0x18] sm:$0xff] %vm2924, %v2883
      %2929 = vst.msk [vmem:[#allocation3 + $0x20] sm:$0xff] %vm2924, %v2885
      %2930 = vst.msk [vmem:[#allocation3 + $0x28] sm:$0xff] %vm2924, %v2887
      %2931 = vst.msk [vmem:[#allocation3 + $0x30] sm:$0xff] %vm2924, %v2889
      %2932 = vst.msk [vmem:[#allocation3 + $0x38] sm:$0xff] %vm2924, %v2891
      %2933 = vst.msk [vmem:[#allocation3 + $0x40] sm:$0xff] %vm2924, %v2893
      %2934 = vst.msk [vmem:[#allocation3 + $0x48] sm:$0xff] %vm2924, %v2895
      %2935 = vst.msk [vmem:[#allocation3 + $0x50] sm:$0xff] %vm2924, %v2897
      %2936 = vst.msk [vmem:[#allocation3 + $0x58] sm:$0xff] %vm2924, %v2899
      %2937 = vst.msk [vmem:[#allocation3 + $0x60] sm:$0xff] %vm2924, %v2901
      %2938 = vst.msk [vmem:[#allocation3 + $0x68] sm:$0xff] %vm2924, %v2903
      %2939 = vst.msk [vmem:[#allocation3 + $0x70] sm:$0xff] %vm2924, %v2905
      %2940 = vst.msk [vmem:[#allocation3 + $0x78] sm:$0xff] %vm2924, %v2907
      %v2941 = vld [vmem:[#allocation2 + $0x10] sm:$0xf8]
      %v2942 = vld [vmem:[#allocation2 + $0x18] sm:$0xff]
      %v2943 = vld [vmem:[#allocation2 + $0x20] sm:$0xff]
      %v2944 = vld [vmem:[#allocation2 + $0x28] sm:$0xff]
      %v2945 = vld [vmem:[#allocation2 + $0x30] sm:$0xff]
      %v2946 = vld [vmem:[#allocation2 + $0x38] sm:$0xff]
      %v2947 = vld [vmem:[#allocation2 + $0x40] sm:$0xff]
      %v2948 = vld [vmem:[#allocation2 + $0x48] sm:$0xff]
      %v2949 = vld [vmem:[#allocation2 + $0x50] sm:$0xff]
      %v2950 = vld [vmem:[#allocation2 + $0x58] sm:$0xff]
      %v2951 = vld [vmem:[#allocation2 + $0x60] sm:$0xff]
      %v2952 = vld [vmem:[#allocation2 + $0x68] sm:$0xff]
      %v2953 = vld [vmem:[#allocation2 + $0x70] sm:$0xff]
      %v2954 = vld [vmem:[#allocation2 + $0x78] sm:$0xff]
      %v2955 = vld [vmem:[#allocation2 + $0x80] sm:$0xff]
      %v2956 = vld [vmem:[#allocation2 + $0x88] sm:$0xff]
      %v2957 = vld [vmem:[#allocation2 + $0x90] sm:$0xf]
      %v2958 = vsel %vm1369, %v2941, 0
      %v2959 = vsel %vm1370, %v2942, 0
      %v2960 = vsel %vm1371, %v2943, 0
      %v2961 = vsel %vm1372, %v2944, 0
      %v2962 = vsel %vm1373, %v2945, 0
      %v2963 = vsel %vm1374, %v2946, 0
      %v2964 = vsel %vm1375, %v2947, 0
      %v2965 = vsel %vm1376, %v2948, 0
      %v2966 = vsel %vm1377, %v2949, 0
      %v2967 = vsel %vm1378, %v2950, 0
      %v2968 = vsel %vm1379, %v2951, 0
      %v2969 = vsel %vm1380, %v2952, 0
      %v2970 = vsel %vm1381, %v2953, 0
      %v2971 = vsel %vm1382, %v2954, 0
      %v2972 = vsel %vm1383, %v2955, 0
      %v2973 = vsel %vm1384, %v2956, 0
      %v2974 = vsel %vm1385, %v2957, 0
      %v2976 = vshrl.u32 %v2958, 16
      %v2978 = vrot.slane %v2976, 3
      %v2979 = vshll.u32 %v2958, 16
      %v2981 = vrot.slane %v2979, 4
      %v2982 = vor.u32 %v2978, %v2981
      %v2984 = vshrl.u32 %v2959, 16
      %v2986 = vrot.slane %v2984, 3
      %v2987 = vshll.u32 %v2959, 16
      %v2989 = vrot.slane %v2987, 4
      %v2990 = vor.u32 %v2986, %v2989
      %v2991 = vsel %vm1403, %v2982, %v2990
      %v2993 = vshrl.u32 %v2960, 16
      %v2995 = vrot.slane %v2993, 3
      %v2996 = vshll.u32 %v2960, 16
      %v2998 = vrot.slane %v2996, 4
      %v2999 = vor.u32 %v2995, %v2998
      %v3000 = vsel %vm1403, %v2990, %v2999
      %v3002 = vshrl.u32 %v2961, 16
      %v3004 = vrot.slane %v3002, 3
      %v3005 = vshll.u32 %v2961, 16
      %v3007 = vrot.slane %v3005, 4
      %v3008 = vor.u32 %v3004, %v3007
      %v3009 = vsel %vm1403, %v2999, %v3008
      %v3011 = vshrl.u32 %v2962, 16
      %v3013 = vrot.slane %v3011, 3
      %v3014 = vshll.u32 %v2962, 16
      %v3016 = vrot.slane %v3014, 4
      %v3017 = vor.u32 %v3013, %v3016
      %v3018 = vsel %vm1403, %v3008, %v3017
      %v3020 = vshrl.u32 %v2963, 16
      %v3022 = vrot.slane %v3020, 3
      %v3023 = vshll.u32 %v2963, 16
      %v3025 = vrot.slane %v3023, 4
      %v3026 = vor.u32 %v3022, %v3025
      %v3027 = vsel %vm1403, %v3017, %v3026
      %v3029 = vshrl.u32 %v2964, 16
      %v3031 = vrot.slane %v3029, 3
      %v3032 = vshll.u32 %v2964, 16
      %v3034 = vrot.slane %v3032, 4
      %v3035 = vor.u32 %v3031, %v3034
      %v3036 = vsel %vm1403, %v3026, %v3035
      %v3038 = vshrl.u32 %v2965, 16
      %v3040 = vrot.slane %v3038, 3
      %v3041 = vshll.u32 %v2965, 16
      %v3043 = vrot.slane %v3041, 4
      %v3044 = vor.u32 %v3040, %v3043
      %v3045 = vsel %vm1403, %v3035, %v3044
      %v3047 = vshrl.u32 %v2966, 16
      %v3049 = vrot.slane %v3047, 3
      %v3050 = vshll.u32 %v2966, 16
      %v3052 = vrot.slane %v3050, 4
      %v3053 = vor.u32 %v3049, %v3052
      %v3054 = vsel %vm1403, %v3044, %v3053
      %v3056 = vshrl.u32 %v2967, 16
      %v3058 = vrot.slane %v3056, 3
      %v3059 = vshll.u32 %v2967, 16
      %v3061 = vrot.slane %v3059, 4
      %v3062 = vor.u32 %v3058, %v3061
      %v3063 = vsel %vm1403, %v3053, %v3062
      %v3065 = vshrl.u32 %v2968, 16
      %v3067 = vrot.slane %v3065, 3
      %v3068 = vshll.u32 %v2968, 16
      %v3070 = vrot.slane %v3068, 4
      %v3071 = vor.u32 %v3067, %v3070
      %v3072 = vsel %vm1403, %v3062, %v3071
      %v3074 = vshrl.u32 %v2969, 16
      %v3076 = vrot.slane %v3074, 3
      %v3077 = vshll.u32 %v2969, 16
      %v3079 = vrot.slane %v3077, 4
      %v3080 = vor.u32 %v3076, %v3079
      %v3081 = vsel %vm1403, %v3071, %v3080
      %v3083 = vshrl.u32 %v2970, 16
      %v3085 = vrot.slane %v3083, 3
      %v3086 = vshll.u32 %v2970, 16
      %v3088 = vrot.slane %v3086, 4
      %v3089 = vor.u32 %v3085, %v3088
      %v3090 = vsel %vm1403, %v3080, %v3089
      %v3092 = vshrl.u32 %v2971, 16
      %v3094 = vrot.slane %v3092, 3
      %v3095 = vshll.u32 %v2971, 16
      %v3097 = vrot.slane %v3095, 4
      %v3098 = vor.u32 %v3094, %v3097
      %v3099 = vsel %vm1403, %v3089, %v3098
      %v3101 = vshrl.u32 %v2972, 16
      %v3103 = vrot.slane %v3101, 3
      %v3104 = vshll.u32 %v2972, 16
      %v3106 = vrot.slane %v3104, 4
      %v3107 = vor.u32 %v3103, %v3106
      %v3108 = vsel %vm1403, %v3098, %v3107
      %v3110 = vshrl.u32 %v2973, 16
      %v3112 = vrot.slane %v3110, 3
      %v3113 = vshll.u32 %v2973, 16
      %v3115 = vrot.slane %v3113, 4
      %v3116 = vor.u32 %v3112, %v3115
      %v3117 = vsel %vm1403, %v3107, %v3116
      %v3119 = vshrl.u32 %v2974, 16
      %v3121 = vrot.slane %v3119, 3
      %v3122 = vshll.u32 %v2974, 16
      %v3124 = vrot.slane %v3122, 4
      %v3125 = vor.u32 %v3121, %v3124
      %v3126 = vsel %vm1403, %v3116, %v3125
      %3127 = vrot.lane.b32.xlu0 %v2991, 24
      %v3128 = vpop.permute.xlu0 %3127
      %3129 = vrot.lane.b32.xlu0 %v3000, 24
      %v3130 = vpop.permute.xlu0 %3129
      %3131 = vrot.lane.b32.xlu0 %v3009, 24
      %v3132 = vpop.permute.xlu0 %3131
      %3133 = vrot.lane.b32.xlu0 %v3018, 24
      %v3134 = vpop.permute.xlu0 %3133
      %3135 = vrot.lane.b32.xlu0 %v3027, 24
      %v3136 = vpop.permute.xlu0 %3135
      %3137 = vrot.lane.b32.xlu0 %v3036, 24
      %v3138 = vpop.permute.xlu0 %3137
      %3139 = vrot.lane.b32.xlu0 %v3045, 24
      %v3140 = vpop.permute.xlu0 %3139
      %3141 = vrot.lane.b32.xlu0 %v3054, 24
      %v3142 = vpop.permute.xlu0 %3141
      %3143 = vrot.lane.b32.xlu0 %v3063, 24
      %v3144 = vpop.permute.xlu0 %3143
      %3145 = vrot.lane.b32.xlu0 %v3072, 24
      %v3146 = vpop.permute.xlu0 %3145
      %3147 = vrot.lane.b32.xlu0 %v3081, 24
      %v3148 = vpop.permute.xlu0 %3147
      %3149 = vrot.lane.b32.xlu0 %v3090, 24
      %v3150 = vpop.permute.xlu0 %3149
      %3151 = vrot.lane.b32.xlu0 %v3099, 24
      %v3152 = vpop.permute.xlu0 %3151
      %3153 = vrot.lane.b32.xlu0 %v3108, 24
      %v3154 = vpop.permute.xlu0 %3153
      %3155 = vrot.lane.b32.xlu0 %v3117, 24
      %v3156 = vpop.permute.xlu0 %3155
      %3157 = vrot.lane.b32.xlu0 %v3126, 24
      %v3158 = vpop.permute.xlu0 %3157
      %vm3175 = vcmask 228544
      %3176 = vst.msk [vmem:[#allocation3] sm:$0xff] %vm3175, %v3128
      %3177 = vst.msk [vmem:[#allocation3 + $0x8] sm:$0xff] %vm3175, %v3130
      %3178 = vst.msk [vmem:[#allocation3 + $0x10] sm:$0xff] %vm3175, %v3132
      %3179 = vst.msk [vmem:[#allocation3 + $0x18] sm:$0xff] %vm3175, %v3134
      %3180 = vst.msk [vmem:[#allocation3 + $0x20] sm:$0xff] %vm3175, %v3136
      %3181 = vst.msk [vmem:[#allocation3 + $0x28] sm:$0xff] %vm3175, %v3138
      %3182 = vst.msk [vmem:[#allocation3 + $0x30] sm:$0xff] %vm3175, %v3140
      %3183 = vst.msk [vmem:[#allocation3 + $0x38] sm:$0xff] %vm3175, %v3142
      %3184 = vst.msk [vmem:[#allocation3 + $0x40] sm:$0xff] %vm3175, %v3144
      %3185 = vst.msk [vmem:[#allocation3 + $0x48] sm:$0xff] %vm3175, %v3146
      %3186 = vst.msk [vmem:[#allocation3 + $0x50] sm:$0xff] %vm3175, %v3148
      %3187 = vst.msk [vmem:[#allocation3 + $0x58] sm:$0xff] %vm3175, %v3150
      %3188 = vst.msk [vmem:[#allocation3 + $0x60] sm:$0xff] %vm3175, %v3152
      %3189 = vst.msk [vmem:[#allocation3 + $0x68] sm:$0xff] %vm3175, %v3154
      %3190 = vst.msk [vmem:[#allocation3 + $0x70] sm:$0xff] %vm3175, %v3156
      %3191 = vst.msk [vmem:[#allocation3 + $0x78] sm:$0xff] %vm3175, %v3158
      %v3192 = vld [vmem:[#allocation2 + $0x10] sm:$0xf0]
      %v3193 = vld [vmem:[#allocation2 + $0x18] sm:$0xff]
      %v3194 = vld [vmem:[#allocation2 + $0x20] sm:$0xff]
      %v3195 = vld [vmem:[#allocation2 + $0x28] sm:$0xff]
      %v3196 = vld [vmem:[#allocation2 + $0x30] sm:$0xff]
      %v3197 = vld [vmem:[#allocation2 + $0x38] sm:$0xff]
      %v3198 = vld [vmem:[#allocation2 + $0x40] sm:$0xff]
      %v3199 = vld [vmem:[#allocation2 + $0x48] sm:$0xff]
      %v3200 = vld [vmem:[#allocation2 + $0x50] sm:$0xff]
      %v3201 = vld [vmem:[#allocation2 + $0x58] sm:$0xff]
      %v3202 = vld [vmem:[#allocation2 + $0x60] sm:$0xff]
      %v3203 = vld [vmem:[#allocation2 + $0x68] sm:$0xff]
      %v3204 = vld [vmem:[#allocation2 + $0x70] sm:$0xff]
      %v3205 = vld [vmem:[#allocation2 + $0x78] sm:$0xff]
      %v3206 = vld [vmem:[#allocation2 + $0x80] sm:$0xff]
      %v3207 = vld [vmem:[#allocation2 + $0x88] sm:$0xff]
      %v3208 = vld [vmem:[#allocation2 + $0x90] sm:$0xf]
      %v3226 = vrot.slane %v3192, 4
      %v3227 = vrot.slane %v3193, 4
      %v3228 = vsel %vm485, %v3226, %v3227
      %v3229 = vrot.slane %v3194, 4
      %v3230 = vsel %vm485, %v3227, %v3229
      %v3231 = vrot.slane %v3195, 4
      %v3232 = vsel %vm485, %v3229, %v3231
      %v3233 = vrot.slane %v3196, 4
      %v3234 = vsel %vm485, %v3231, %v3233
      %v3235 = vrot.slane %v3197, 4
      %v3236 = vsel %vm485, %v3233, %v3235
      %v3237 = vrot.slane %v3198, 4
      %v3238 = vsel %vm485, %v3235, %v3237
      %v3239 = vrot.slane %v3199, 4
      %v3240 = vsel %vm485, %v3237, %v3239
      %v3241 = vrot.slane %v3200, 4
      %v3242 = vsel %vm485, %v3239, %v3241
      %v3243 = vrot.slane %v3201, 4
      %v3244 = vsel %vm485, %v3241, %v3243
      %v3245 = vrot.slane %v3202, 4
      %v3246 = vsel %vm485, %v3243, %v3245
      %v3247 = vrot.slane %v3203, 4
      %v3248 = vsel %vm485, %v3245, %v3247
      %v3249 = vrot.slane %v3204, 4
      %v3250 = vsel %vm485, %v3247, %v3249
      %v3251 = vrot.slane %v3205, 4
      %v3252 = vsel %vm485, %v3249, %v3251
      %v3253 = vrot.slane %v3206, 4
      %v3254 = vsel %vm485, %v3251, %v3253
      %v3255 = vrot.slane %v3207, 4
      %v3256 = vsel %vm485, %v3253, %v3255
      %v3257 = vrot.slane %v3208, 4
      %v3258 = vsel %vm485, %v3255, %v3257
      %3259 = vrot.lane.b32.xlu0 %v3228, 28
      %v3260 = vpop.permute.xlu0 %3259
      %3261 = vrot.lane.b32.xlu0 %v3230, 28
      %v3262 = vpop.permute.xlu0 %3261
      %3263 = vrot.lane.b32.xlu0 %v3232, 28
      %v3264 = vpop.permute.xlu0 %3263
      %3265 = vrot.lane.b32.xlu0 %v3234, 28
      %v3266 = vpop.permute.xlu0 %3265
      %3267 = vrot.lane.b32.xlu0 %v3236, 28
      %v3268 = vpop.permute.xlu0 %3267
      %3269 = vrot.lane.b32.xlu0 %v3238, 28
      %v3270 = vpop.permute.xlu0 %3269
      %3271 = vrot.lane.b32.xlu0 %v3240, 28
      %v3272 = vpop.permute.xlu0 %3271
      %3273 = vrot.lane.b32.xlu0 %v3242, 28
      %v3274 = vpop.permute.xlu0 %3273
      %3275 = vrot.lane.b32.xlu0 %v3244, 28
      %v3276 = vpop.permute.xlu0 %3275
      %3277 = vrot.lane.b32.xlu0 %v3246, 28
      %v3278 = vpop.permute.xlu0 %3277
      %3279 = vrot.lane.b32.xlu0 %v3248, 28
      %v3280 = vpop.permute.xlu0 %3279
      %3281 = vrot.lane.b32.xlu0 %v3250, 28
      %v3282 = vpop.permute.xlu0 %3281
      %3283 = vrot.lane.b32.xlu0 %v3252, 28
      %v3284 = vpop.permute.xlu0 %3283
      %3285 = vrot.lane.b32.xlu0 %v3254, 28
      %v3286 = vpop.permute.xlu0 %3285
      %3287 = vrot.lane.b32.xlu0 %v3256, 28
      %v3288 = vpop.permute.xlu0 %3287
      %3289 = vrot.lane.b32.xlu0 %v3258, 28
      %v3290 = vpop.permute.xlu0 %3289
      %vm3307 = vcmask 261344
      %3308 = vst.msk [vmem:[#allocation3] sm:$0xff] %vm3307, %v3260
      %3309 = vst.msk [vmem:[#allocation3 + $0x8] sm:$0xff] %vm3307, %v3262
      %3310 = vst.msk [vmem:[#allocation3 + $0x10] sm:$0xff] %vm3307, %v3264
      %3311 = vst.msk [vmem:[#allocation3 + $0x18] sm:$0xff] %vm3307, %v3266
      %3312 = vst.msk [vmem:[#allocation3 + $0x20] sm:$0xff] %vm3307, %v3268
      %3313 = vst.msk [vmem:[#allocation3 + $0x28] sm:$0xff] %vm3307, %v3270
      %3314 = vst.msk [vmem:[#allocation3 + $0x30] sm:$0xff] %vm3307, %v3272
      %3315 = vst.msk [vmem:[#allocation3 + $0x38] sm:$0xff] %vm3307, %v3274
      %3316 = vst.msk [vmem:[#allocation3 + $0x40] sm:$0xff] %vm3307, %v3276
      %3317 = vst.msk [vmem:[#allocation3 + $0x48] sm:$0xff] %vm3307, %v3278
      %3318 = vst.msk [vmem:[#allocation3 + $0x50] sm:$0xff] %vm3307, %v3280
      %3319 = vst.msk [vmem:[#allocation3 + $0x58] sm:$0xff] %vm3307, %v3282
      %3320 = vst.msk [vmem:[#allocation3 + $0x60] sm:$0xff] %vm3307, %v3284
      %3321 = vst.msk [vmem:[#allocation3 + $0x68] sm:$0xff] %vm3307, %v3286
      %3322 = vst.msk [vmem:[#allocation3 + $0x70] sm:$0xff] %vm3307, %v3288
      %3323 = vst.msk [vmem:[#allocation3 + $0x78] sm:$0xff] %vm3307, %v3290
      %v3324 = vld [vmem:[#allocation2 + $0x10] sm:$0xf0]
      %v3325 = vld [vmem:[#allocation2 + $0x18] sm:$0xff]
      %v3326 = vld [vmem:[#allocation2 + $0x20] sm:$0xff]
      %v3327 = vld [vmem:[#allocation2 + $0x28] sm:$0xff]
      %v3328 = vld [vmem:[#allocation2 + $0x30] sm:$0xff]
      %v3329 = vld [vmem:[#allocation2 + $0x38] sm:$0xff]
      %v3330 = vld [vmem:[#allocation2 + $0x40] sm:$0xff]
      %v3331 = vld [vmem:[#allocation2 + $0x48] sm:$0xff]
      %v3332 = vld [vmem:[#allocation2 + $0x50] sm:$0xff]
      %v3333 = vld [vmem:[#allocation2 + $0x58] sm:$0xff]
      %v3334 = vld [vmem:[#allocation2 + $0x60] sm:$0xff]
      %v3335 = vld [vmem:[#allocation2 + $0x68] sm:$0xff]
      %v3336 = vld [vmem:[#allocation2 + $0x70] sm:$0xff]
      %v3337 = vld [vmem:[#allocation2 + $0x78] sm:$0xff]
      %v3338 = vld [vmem:[#allocation2 + $0x80] sm:$0xff]
      %v3339 = vld [vmem:[#allocation2 + $0x88] sm:$0xff]
      %v3340 = vld [vmem:[#allocation2 + $0x90] sm:$0x1f]
      %v3341 = vsel %vm2056, %v3324, 0
      %v3342 = vsel %vm2057, %v3325, 0
      %v3343 = vsel %vm2058, %v3326, 0
      %v3344 = vsel %vm2059, %v3327, 0
      %v3345 = vsel %vm2060, %v3328, 0
      %v3346 = vsel %vm2061, %v3329, 0
      %v3347 = vsel %vm2062, %v3330, 0
      %v3348 = vsel %vm2063, %v3331, 0
      %v3349 = vsel %vm2064, %v3332, 0
      %v3350 = vsel %vm2065, %v3333, 0
      %v3351 = vsel %vm2066, %v3334, 0
      %v3352 = vsel %vm2067, %v3335, 0
      %v3353 = vsel %vm2068, %v3336, 0
      %v3354 = vsel %vm2069, %v3337, 0
      %v3355 = vsel %vm2070, %v3338, 0
      %v3356 = vsel %vm2071, %v3339, 0
      %v3357 = vsel %vm2072, %v3340, 0
      %v3359 = vshrl.u32 %v3341, 16
      %v3361 = vrot.slane %v3359, 4
      %v3362 = vshll.u32 %v3341, 16
      %v3364 = vrot.slane %v3362, 5
      %v3365 = vor.u32 %v3361, %v3364
      %v3367 = vshrl.u32 %v3342, 16
      %v3369 = vrot.slane %v3367, 4
      %v3370 = vshll.u32 %v3342, 16
      %v3372 = vrot.slane %v3370, 5
      %v3373 = vor.u32 %v3369, %v3372
      %v3374 = vsel %vm1225, %v3365, %v3373
      %v3376 = vshrl.u32 %v3343, 16
      %v3378 = vrot.slane %v3376, 4
      %v3379 = vshll.u32 %v3343, 16
      %v3381 = vrot.slane %v3379, 5
      %v3382 = vor.u32 %v3378, %v3381
      %v3383 = vsel %vm1225, %v3373, %v3382
      %v3385 = vshrl.u32 %v3344, 16
      %v3387 = vrot.slane %v3385, 4
      %v3388 = vshll.u32 %v3344, 16
      %v3390 = vrot.slane %v3388, 5
      %v3391 = vor.u32 %v3387, %v3390
      %v3392 = vsel %vm1225, %v3382, %v3391
      %v3394 = vshrl.u32 %v3345, 16
      %v3396 = vrot.slane %v3394, 4
      %v3397 = vshll.u32 %v3345, 16
      %v3399 = vrot.slane %v3397, 5
      %v3400 = vor.u32 %v3396, %v3399
      %v3401 = vsel %vm1225, %v3391, %v3400
      %v3403 = vshrl.u32 %v3346, 16
      %v3405 = vrot.slane %v3403, 4
      %v3406 = vshll.u32 %v3346, 16
      %v3408 = vrot.slane %v3406, 5
      %v3409 = vor.u32 %v3405, %v3408
      %v3410 = vsel %vm1225, %v3400, %v3409
      %v3412 = vshrl.u32 %v3347, 16
      %v3414 = vrot.slane %v3412, 4
      %v3415 = vshll.u32 %v3347, 16
      %v3417 = vrot.slane %v3415, 5
      %v3418 = vor.u32 %v3414, %v3417
      %v3419 = vsel %vm1225, %v3409, %v3418
      %v3421 = vshrl.u32 %v3348, 16
      %v3423 = vrot.slane %v3421, 4
      %v3424 = vshll.u32 %v3348, 16
      %v3426 = vrot.slane %v3424, 5
      %v3427 = vor.u32 %v3423, %v3426
      %v3428 = vsel %vm1225, %v3418, %v3427
      %v3430 = vshrl.u32 %v3349, 16
      %v3432 = vrot.slane %v3430, 4
      %v3433 = vshll.u32 %v3349, 16
      %v3435 = vrot.slane %v3433, 5
      %v3436 = vor.u32 %v3432, %v3435
      %v3437 = vsel %vm1225, %v3427, %v3436
      %v3439 = vshrl.u32 %v3350, 16
      %v3441 = vrot.slane %v3439, 4
      %v3442 = vshll.u32 %v3350, 16
      %v3444 = vrot.slane %v3442, 5
      %v3445 = vor.u32 %v3441, %v3444
      %v3446 = vsel %vm1225, %v3436, %v3445
      %v3448 = vshrl.u32 %v3351, 16
      %v3450 = vrot.slane %v3448, 4
      %v3451 = vshll.u32 %v3351, 16
      %v3453 = vrot.slane %v3451, 5
      %v3454 = vor.u32 %v3450, %v3453
      %v3455 = vsel %vm1225, %v3445, %v3454
      %v3457 = vshrl.u32 %v3352, 16
      %v3459 = vrot.slane %v3457, 4
      %v3460 = vshll.u32 %v3352, 16
      %v3462 = vrot.slane %v3460, 5
      %v3463 = vor.u32 %v3459, %v3462
      %v3464 = vsel %vm1225, %v3454, %v3463
      %v3466 = vshrl.u32 %v3353, 16
      %v3468 = vrot.slane %v3466, 4
      %v3469 = vshll.u32 %v3353, 16
      %v3471 = vrot.slane %v3469, 5
      %v3472 = vor.u32 %v3468, %v3471
      %v3473 = vsel %vm1225, %v3463, %v3472
      %v3475 = vshrl.u32 %v3354, 16
      %v3477 = vrot.slane %v3475, 4
      %v3478 = vshll.u32 %v3354, 16
      %v3480 = vrot.slane %v3478, 5
      %v3481 = vor.u32 %v3477, %v3480
      %v3482 = vsel %vm1225, %v3472, %v3481
      %v3484 = vshrl.u32 %v3355, 16
      %v3486 = vrot.slane %v3484, 4
      %v3487 = vshll.u32 %v3355, 16
      %v3489 = vrot.slane %v3487, 5
      %v3490 = vor.u32 %v3486, %v3489
      %v3491 = vsel %vm1225, %v3481, %v3490
      %v3493 = vshrl.u32 %v3356, 16
      %v3495 = vrot.slane %v3493, 4
      %v3496 = vshll.u32 %v3356, 16
      %v3498 = vrot.slane %v3496, 5
      %v3499 = vor.u32 %v3495, %v3498
      %v3500 = vsel %vm1225, %v3490, %v3499
      %v3502 = vshrl.u32 %v3357, 16
      %v3504 = vrot.slane %v3502, 4
      %v3505 = vshll.u32 %v3357, 16
      %v3507 = vrot.slane %v3505, 5
      %v3508 = vor.u32 %v3504, %v3507
      %v3509 = vsel %vm1225, %v3499, %v3508
      %3510 = vrot.lane.b32.xlu0 %v3374, 32
      %v3511 = vpop.permute.xlu0 %3510
      %3512 = vrot.lane.b32.xlu0 %v3383, 32
      %v3513 = vpop.permute.xlu0 %3512
      %3514 = vrot.lane.b32.xlu0 %v3392, 32
      %v3515 = vpop.permute.xlu0 %3514
      %3516 = vrot.lane.b32.xlu0 %v3401, 32
      %v3517 = vpop.permute.xlu0 %3516
      %3518 = vrot.lane.b32.xlu0 %v3410, 32
      %v3519 = vpop.permute.xlu0 %3518
      %3520 = vrot.lane.b32.xlu0 %v3419, 32
      %v3521 = vpop.permute.xlu0 %3520
      %3522 = vrot.lane.b32.xlu0 %v3428, 32
      %v3523 = vpop.permute.xlu0 %3522
      %3524 = vrot.lane.b32.xlu0 %v3437, 32
      %v3525 = vpop.permute.xlu0 %3524
      %3526 = vrot.lane.b32.xlu0 %v3446, 32
      %v3527 = vpop.permute.xlu0 %3526
      %3528 = vrot.lane.b32.xlu0 %v3455, 32
      %v3529 = vpop.permute.xlu0 %3528
      %3530 = vrot.lane.b32.xlu0 %v3464, 32
      %v3531 = vpop.permute.xlu0 %3530
      %3532 = vrot.lane.b32.xlu0 %v3473, 32
      %v3533 = vpop.permute.xlu0 %3532
      %3534 = vrot.lane.b32.xlu0 %v3482, 32
      %v3535 = vpop.permute.xlu0 %3534
      %3536 = vrot.lane.b32.xlu0 %v3491, 32
      %v3537 = vpop.permute.xlu0 %3536
      %3538 = vrot.lane.b32.xlu0 %v3500, 32
      %v3539 = vpop.permute.xlu0 %3538
      %3540 = vrot.lane.b32.xlu0 %v3509, 32
      %v3541 = vpop.permute.xlu0 %3540
      %vm3558 = vcmask 294144
      %3559 = vst.msk [vmem:[#allocation3] sm:$0xff] %vm3558, %v3511
      %3560 = vst.msk [vmem:[#allocation3 + $0x8] sm:$0xff] %vm3558, %v3513
      %3561 = vst.msk [vmem:[#allocation3 + $0x10] sm:$0xff] %vm3558, %v3515
      %3562 = vst.msk [vmem:[#allocation3 + $0x18] sm:$0xff] %vm3558, %v3517
      %3563 = vst.msk [vmem:[#allocation3 + $0x20] sm:$0xff] %vm3558, %v3519
      %3564 = vst.msk [vmem:[#allocation3 + $0x28] sm:$0xff] %vm3558, %v3521
      %3565 = vst.msk [vmem:[#allocation3 + $0x30] sm:$0xff] %vm3558, %v3523
      %3566 = vst.msk [vmem:[#allocation3 + $0x38] sm:$0xff] %vm3558, %v3525
      %3567 = vst.msk [vmem:[#allocation3 + $0x40] sm:$0xff] %vm3558, %v3527
      %3568 = vst.msk [vmem:[#allocation3 + $0x48] sm:$0xff] %vm3558, %v3529
      %3569 = vst.msk [vmem:[#allocation3 + $0x50] sm:$0xff] %vm3558, %v3531
      %3570 = vst.msk [vmem:[#allocation3 + $0x58] sm:$0xff] %vm3558, %v3533
      %3571 = vst.msk [vmem:[#allocation3 + $0x60] sm:$0xff] %vm3558, %v3535
      %3572 = vst.msk [vmem:[#allocation3 + $0x68] sm:$0xff] %vm3558, %v3537
      %3573 = vst.msk [vmem:[#allocation3 + $0x70] sm:$0xff] %vm3558, %v3539
      %3574 = vst.msk [vmem:[#allocation3 + $0x78] sm:$0xff] %vm3558, %v3541
      %v3575 = vld [vmem:[#allocation3] sm:$0xff]
      %v3576 = vld [vmem:[#allocation3 + $0x8] sm:$0xff]
      %v3577 = vld [vmem:[#allocation3 + $0x10] sm:$0xff]
      %v3578 = vld [vmem:[#allocation3 + $0x18] sm:$0xff]
      %v3579 = vld [vmem:[#allocation3 + $0x20] sm:$0xff]
      %v3580 = vld [vmem:[#allocation3 + $0x28] sm:$0xff]
      %v3581 = vld [vmem:[#allocation3 + $0x30] sm:$0xff]
      %v3582 = vld [vmem:[#allocation3 + $0x38] sm:$0xff]
      %v3583 = vld [vmem:[#allocation3 + $0x40] sm:$0xff]
      %v3584 = vld [vmem:[#allocation3 + $0x48] sm:$0xff]
      %v3585 = vld [vmem:[#allocation3 + $0x50] sm:$0xff]
      %v3586 = vld [vmem:[#allocation3 + $0x58] sm:$0xff]
      %v3587 = vld [vmem:[#allocation3 + $0x60] sm:$0xff]
      %v3588 = vld [vmem:[#allocation3 + $0x68] sm:$0xff]
      %v3589 = vld [vmem:[#allocation3 + $0x70] sm:$0xff]
      %v3590 = vld [vmem:[#allocation3 + $0x78] sm:$0xff]
      %v3591 = vld [vmem:[%s1] sm:$0xf]
      %v3592 = vld [vmem:[%s1 + $0x4] sm:$0xf]
      %v3593 = vld [vmem:[%s1 + $0x8] sm:$0xf]
      %v3594 = vld [vmem:[%s1 + $0xc] sm:$0xf]
      %v3595 = vld [vmem:[%s1 + $0x10] sm:$0x3]
      %v3601 = vunpack.c.l.b16 %v3591
      %v3602 = vunpack.c.l.b16 %v3592
      %v3603 = vunpack.c.l.b16 %v3593
      %v3604 = vunpack.c.l.b16 %v3594
      %v3605 = vunpack.c.l.b16 %v3595
      %v3606 = vpack.c.b16 %v3602, %v3601
      %v3607 = vpack.c.b16 %v3604, %v3603
      %v3608 = vpack.c.b16 %v3605, %v3605
      %vm3611 = vcmask 293888
      %v3613 = vsel %vm3611, %v3575, 0
      %v3616 = vsel %vm3611, %v3576, 0
      %v3619 = vsel %vm3611, %v3577, 0
      %v3622 = vsel %vm3611, %v3578, 0
      %v3625 = vsel %vm3611, %v3579, 0
      %v3628 = vsel %vm3611, %v3580, 0
      %v3631 = vsel %vm3611, %v3581, 0
      %v3634 = vsel %vm3611, %v3582, 0
      %v3637 = vsel %vm3611, %v3583, 0
      %v3640 = vsel %vm3611, %v3584, 0
      %v3643 = vsel %vm3611, %v3585, 0
      %v3646 = vsel %vm3611, %v3586, 0
      %v3649 = vsel %vm3611, %v3587, 0
      %v3652 = vsel %vm3611, %v3588, 0
      %v3655 = vsel %vm3611, %v3589, 0
      %v3658 = vsel %vm3611, %v3590, 0
      %vm3660 = vcmask 1041408
      %v3662 = vsel %vm3660, %v3608, 0
      %3664 = vmatprep.subr.bf16.mxu0 0
      %3665 = vmatpush1.bf16.msra.mxu0 %v3606
      %3666 = vmatprep.subr.bf16.mxu0 0
      %3667 = vmatpush1.bf16.msra.mxu0 %v3607
      %3668 = vmatprep.subr.bf16.mxu0 0
      %3669 = vmatpush1.bf16.msra.mxu0 %v3662
      %3670 = vmatprep.subr.bf16.mxu0 0
      %3671 = vmatpush1.bf16.msra.mxu0 0
      %3672 = vmatprep.subr.bf16.mxu0 0
      %3673 = vmatpush1.bf16.msra.mxu0 0
      %3674 = vmatprep.subr.bf16.mxu0 0
      %3675 = vmatpush1.bf16.msra.mxu0 0
      %3676 = vmatprep.subr.bf16.mxu0 0
      %3677 = vmatpush1.bf16.msra.mxu0 0
      %3678 = vmatprep.subr.bf16.mxu0 0
      %3679 = vmatpush1.bf16.msra.mxu0 0
      %3680 = vmatprep.subr.bf16.mxu0 0
      %3681 = vmatpush1.bf16.msra.mxu0 0
      %3682 = vmatprep.subr.bf16.mxu0 0
      %3683 = vmatpush1.bf16.msra.mxu0 0
      %3684 = vmatprep.subr.bf16.mxu0 0
      %3685 = vmatpush1.bf16.msra.mxu0 0
      %3686 = vmatprep.subr.bf16.mxu0 0
      %3687 = vmatpush1.bf16.msra.mxu0 0
      %3688 = vmatprep.subr.bf16.mxu0 0
      %3689 = vmatpush1.bf16.msra.mxu0 0
      %3690 = vmatprep.subr.bf16.mxu0 0
      %3691 = vmatpush1.bf16.msra.mxu0 0
      %3692 = vmatprep.subr.bf16.mxu0 0
      %3693 = vmatpush1.bf16.msra.mxu0 0
      %3694 = vmatprep.subr.bf16.mxu0 0
      %3695 = vmatpush1.bf16.msra.mxu0 0
      %3696 = vmatprep.mubr.bf16.mxu0 0
      %3697 = vmatmul.mubr.bf16.gmra.mrb[0].mxu0 %v3613
      %v3698 = vpop.f32.mrb[0].mxu0
      %v3699 = vadd.f32 0.0, %v3698
      %v3700 = vpop.f32.mrb[0].mxu0
      %v3701 = vpop.f32.mrb[0].mxu0
      %v3702 = vadd.f32 0.0, %v3701
      %v3703 = vpop.f32.mrb[0].mxu0
      %3704 = vmatprep.mubr.bf16.mxu0 0
      %3705 = vmatmul.mubr.bf16.gmra.mrb[0].mxu0 %v3616
      %v3706 = vpop.f32.mrb[0].mxu0
      %v3707 = vadd.f32 0.0, %v3706
      %v3708 = vpop.f32.mrb[0].mxu0
      %v3709 = vpop.f32.mrb[0].mxu0
      %v3710 = vadd.f32 0.0, %v3709
      %v3711 = vpop.f32.mrb[0].mxu0
      %3712 = vmatprep.mubr.bf16.mxu0 0
      %3713 = vmatmul.mubr.bf16.gmra.mrb[0].mxu0 %v3619
      %v3714 = vpop.f32.mrb[0].mxu0
      %v3715 = vadd.f32 0.0, %v3714
      %v3716 = vpop.f32.mrb[0].mxu0
      %v3717 = vpop.f32.mrb[0].mxu0
      %v3718 = vadd.f32 0.0, %v3717
      %v3719 = vpop.f32.mrb[0].mxu0
      %3720 = vmatprep.mubr.bf16.mxu0 0
      %3721 = vmatmul.mubr.bf16.gmra.mrb[0].mxu0 %v3622
      %v3722 = vpop.f32.mrb[0].mxu0
      %v3723 = vadd.f32 0.0, %v3722
      %v3724 = vpop.f32.mrb[0].mxu0
      %v3725 = vpop.f32.mrb[0].mxu0
      %v3726 = vadd.f32 0.0, %v3725
      %v3727 = vpop.f32.mrb[0].mxu0
      %3728 = vmatprep.mubr.bf16.mxu0 0
      %3729 = vmatmul.mubr.bf16.gmra.mrb[0].mxu0 %v3625
      %v3730 = vpop.f32.mrb[0].mxu0
      %v3731 = vadd.f32 0.0, %v3730
      %v3732 = vpop.f32.mrb[0].mxu0
      %v3733 = vpop.f32.mrb[0].mxu0
      %v3734 = vadd.f32 0.0, %v3733
      %v3735 = vpop.f32.mrb[0].mxu0
      %3736 = vmatprep.mubr.bf16.mxu0 0
      %3737 = vmatmul.mubr.bf16.gmra.mrb[0].mxu0 %v3628
      %v3738 = vpop.f32.mrb[0].mxu0
      %v3739 = vadd.f32 0.0, %v3738
      %v3740 = vpop.f32.mrb[0].mxu0
      %v3741 = vpop.f32.mrb[0].mxu0
      %v3742 = vadd.f32 0.0, %v3741
      %v3743 = vpop.f32.mrb[0].mxu0
      %3744 = vmatprep.mubr.bf16.mxu0 0
      %3745 = vmatmul.mubr.bf16.gmra.mrb[0].mxu0 %v3631
      %v3746 = vpop.f32.mrb[0].mxu0
      %v3747 = vadd.f32 0.0, %v3746
      %v3748 = vpop.f32.mrb[0].mxu0
      %v3749 = vpop.f32.mrb[0].mxu0
      %v3750 = vadd.f32 0.0, %v3749
      %v3751 = vpop.f32.mrb[0].mxu0
      %3752 = vmatprep.mubr.bf16.mxu0 0
      %3753 = vmatmul.mubr.bf16.gmra.mrb[0].mxu0 %v3634
      %v3754 = vpop.f32.mrb[0].mxu0
      %v3755 = vadd.f32 0.0, %v3754
      %v3756 = vpop.f32.mrb[0].mxu0
      %v3757 = vpop.f32.mrb[0].mxu0
      %v3758 = vadd.f32 0.0, %v3757
      %v3759 = vpop.f32.mrb[0].mxu0
      %3760 = vmatprep.mubr.bf16.mxu0 0
      %3761 = vmatmul.mubr.bf16.gmra.mrb[0].mxu0 %v3637
      %v3762 = vpop.f32.mrb[0].mxu0
      %v3763 = vadd.f32 0.0, %v3762
      %v3764 = vpop.f32.mrb[0].mxu0
      %v3765 = vpop.f32.mrb[0].mxu0
      %v3766 = vadd.f32 0.0, %v3765
      %v3767 = vpop.f32.mrb[0].mxu0
      %3768 = vmatprep.mubr.bf16.mxu0 0
      %3769 = vmatmul.mubr.bf16.gmra.mrb[0].mxu0 %v3640
      %v3770 = vpop.f32.mrb[0].mxu0
      %v3771 = vadd.f32 0.0, %v3770
      %v3772 = vpop.f32.mrb[0].mxu0
      %v3773 = vpop.f32.mrb[0].mxu0
      %v3774 = vadd.f32 0.0, %v3773
      %v3775 = vpop.f32.mrb[0].mxu0
      %3776 = vmatprep.mubr.bf16.mxu0 0
      %3777 = vmatmul.mubr.bf16.gmra.mrb[0].mxu0 %v3643
      %v3778 = vpop.f32.mrb[0].mxu0
      %v3779 = vadd.f32 0.0, %v3778
      %v3780 = vpop.f32.mrb[0].mxu0
      %v3781 = vpop.f32.mrb[0].mxu0
      %v3782 = vadd.f32 0.0, %v3781
      %v3783 = vpop.f32.mrb[0].mxu0
      %3784 = vmatprep.mubr.bf16.mxu0 0
      %3785 = vmatmul.mubr.bf16.gmra.mrb[0].mxu0 %v3646
      %v3786 = vpop.f32.mrb[0].mxu0
      %v3787 = vadd.f32 0.0, %v3786
      %v3788 = vpop.f32.mrb[0].mxu0
      %v3789 = vpop.f32.mrb[0].mxu0
      %v3790 = vadd.f32 0.0, %v3789
      %v3791 = vpop.f32.mrb[0].mxu0
      %3792 = vmatprep.mubr.bf16.mxu0 0
      %3793 = vmatmul.mubr.bf16.gmra.mrb[0].mxu0 %v3649
      %v3794 = vpop.f32.mrb[0].mxu0
      %v3795 = vadd.f32 0.0, %v3794
      %v3796 = vpop.f32.mrb[0].mxu0
      %v3797 = vpop.f32.mrb[0].mxu0
      %v3798 = vadd.f32 0.0, %v3797
      %v3799 = vpop.f32.mrb[0].mxu0
      %3800 = vmatprep.mubr.bf16.mxu0 0
      %3801 = vmatmul.mubr.bf16.gmra.mrb[0].mxu0 %v3652
      %v3802 = vpop.f32.mrb[0].mxu0
      %v3803 = vadd.f32 0.0, %v3802
      %v3804 = vpop.f32.mrb[0].mxu0
      %v3805 = vpop.f32.mrb[0].mxu0
      %v3806 = vadd.f32 0.0, %v3805
      %v3807 = vpop.f32.mrb[0].mxu0
      %3808 = vmatprep.mubr.bf16.mxu0 0
      %3809 = vmatmul.mubr.bf16.gmra.mrb[0].mxu0 %v3655
      %v3810 = vpop.f32.mrb[0].mxu0
      %v3811 = vadd.f32 0.0, %v3810
      %v3812 = vpop.f32.mrb[0].mxu0
      %v3813 = vpop.f32.mrb[0].mxu0
      %v3814 = vadd.f32 0.0, %v3813
      %v3815 = vpop.f32.mrb[0].mxu0
      %3816 = vmatprep.mubr.bf16.mxu0 0
      %3817 = vmatmul.mubr.bf16.gmra.mrb[0].mxu0 %v3658
      %v3818 = vpop.f32.mrb[0].mxu0
      %v3819 = vadd.f32 0.0, %v3818
      %v3820 = vpop.f32.mrb[0].mxu0
      %v3821 = vpop.f32.mrb[0].mxu0
      %v3822 = vadd.f32 0.0, %v3821
      %v3823 = vpop.f32.mrb[0].mxu0
      %3824 = vdwg.mxu0
      %v3825 = vpack.c.bf16 %v3702, %v3699
      %v3826 = vpack.c.bf16 %v3710, %v3707
      %v3827 = vpack.c.bf16 %v3718, %v3715
      %v3828 = vpack.c.bf16 %v3726, %v3723
      %v3829 = vpack.c.bf16 %v3734, %v3731
      %v3830 = vpack.c.bf16 %v3742, %v3739
      %v3831 = vpack.c.bf16 %v3750, %v3747
      %v3832 = vpack.c.bf16 %v3758, %v3755
      %v3833 = vpack.c.bf16 %v3766, %v3763
      %v3834 = vpack.c.bf16 %v3774, %v3771
      %v3835 = vpack.c.bf16 %v3782, %v3779
      %v3836 = vpack.c.bf16 %v3790, %v3787
      %v3837 = vpack.c.bf16 %v3798, %v3795
      %v3838 = vpack.c.bf16 %v3806, %v3803
      %v3839 = vpack.c.bf16 %v3814, %v3811
      %v3840 = vpack.c.bf16 %v3822, %v3819
      %v3857 = vunpack.c.l.b16 %v3825
      %v3858 = vunpack.c.h.b16 %v3825
      %v3859 = vunpack.c.l.b16 %v3826
      %v3860 = vunpack.c.h.b16 %v3826
      %v3861 = vunpack.c.l.b16 %v3827
      %v3862 = vunpack.c.h.b16 %v3827
      %v3863 = vunpack.c.l.b16 %v3828
      %v3864 = vunpack.c.h.b16 %v3828
      %v3865 = vunpack.c.l.b16 %v3829
      %v3866 = vunpack.c.h.b16 %v3829
      %v3867 = vunpack.c.l.b16 %v3830
      %v3868 = vunpack.c.h.b16 %v3830
      %v3869 = vunpack.c.l.b16 %v3831
      %v3870 = vunpack.c.h.b16 %v3831
      %v3871 = vunpack.c.l.b16 %v3832
      %v3872 = vunpack.c.h.b16 %v3832
      %v3873 = vunpack.c.l.b16 %v3833
      %v3874 = vunpack.c.h.b16 %v3833
      %v3875 = vunpack.c.l.b16 %v3834
      %v3876 = vunpack.c.h.b16 %v3834
      %v3877 = vunpack.c.l.b16 %v3835
      %v3878 = vunpack.c.h.b16 %v3835
      %v3879 = vunpack.c.l.b16 %v3836
      %v3880 = vunpack.c.h.b16 %v3836
      %v3881 = vunpack.c.l.b16 %v3837
      %v3882 = vunpack.c.h.b16 %v3837
      %v3883 = vunpack.c.l.b16 %v3838
      %v3884 = vunpack.c.h.b16 %v3838
      %v3885 = vunpack.c.l.b16 %v3839
      %v3886 = vunpack.c.h.b16 %v3839
      %v3887 = vunpack.c.l.b16 %v3840
      %v3888 = vunpack.c.h.b16 %v3840
      %v3889 = vpack.c.b16 %v3857, %v3857
      %v3890 = vpack.c.b16 %v3858, %v3858
      %v3891 = vpack.c.b16 %v3859, %v3859
      %v3892 = vpack.c.b16 %v3860, %v3860
      %v3893 = vpack.c.b16 %v3861, %v3861
      %v3894 = vpack.c.b16 %v3862, %v3862
      %v3895 = vpack.c.b16 %v3863, %v3863
      %v3896 = vpack.c.b16 %v3864, %v3864
      %v3897 = vpack.c.b16 %v3865, %v3865
      %v3898 = vpack.c.b16 %v3866, %v3866
      %v3899 = vpack.c.b16 %v3867, %v3867
      %v3900 = vpack.c.b16 %v3868, %v3868
      %v3901 = vpack.c.b16 %v3869, %v3869
      %v3902 = vpack.c.b16 %v3870, %v3870
      %v3903 = vpack.c.b16 %v3871, %v3871
      %v3904 = vpack.c.b16 %v3872, %v3872
      %v3905 = vpack.c.b16 %v3873, %v3873
      %v3906 = vpack.c.b16 %v3874, %v3874
      %v3907 = vpack.c.b16 %v3875, %v3875
      %v3908 = vpack.c.b16 %v3876, %v3876
      %v3909 = vpack.c.b16 %v3877, %v3877
      %v3910 = vpack.c.b16 %v3878, %v3878
      %v3911 = vpack.c.b16 %v3879, %v3879
      %v3912 = vpack.c.b16 %v3880, %v3880
      %v3913 = vpack.c.b16 %v3881, %v3881
      %v3914 = vpack.c.b16 %v3882, %v3882
      %v3915 = vpack.c.b16 %v3883, %v3883
      %v3916 = vpack.c.b16 %v3884, %v3884
      %v3917 = vpack.c.b16 %v3885, %v3885
      %v3918 = vpack.c.b16 %v3886, %v3886
      %v3919 = vpack.c.b16 %v3887, %v3887
      %v3920 = vpack.c.b16 %v3888, %v3888
      %3953 = vst.msk [vmem:[%s262] sm:$0xf] %vm274, %v3889
      %3954 = vst.msk [vmem:[%s262 + $0x4] sm:$0xf] %vm274, %v3890
      %3955 = vst.msk [vmem:[%s262 + $0x8] sm:$0xf] %vm274, %v3891
      %3956 = vst.msk [vmem:[%s262 + $0xc] sm:$0xf] %vm274, %v3892
      %3957 = vst.msk [vmem:[%s262 + $0x10] sm:$0xf] %vm274, %v3893
      %3958 = vst.msk [vmem:[%s262 + $0x14] sm:$0xf] %vm274, %v3894
      %3959 = vst.msk [vmem:[%s262 + $0x18] sm:$0xf] %vm274, %v3895
      %3960 = vst.msk [vmem:[%s262 + $0x1c] sm:$0xf] %vm274, %v3896
      %3961 = vst.msk [vmem:[%s262 + $0x20] sm:$0xf] %vm274, %v3897
      %3962 = vst.msk [vmem:[%s262 + $0x24] sm:$0xf] %vm274, %v3898
      %3963 = vst.msk [vmem:[%s262 + $0x28] sm:$0xf] %vm274, %v3899
      %3964 = vst.msk [vmem:[%s262 + $0x2c] sm:$0xf] %vm274, %v3900
      %3965 = vst.msk [vmem:[%s262 + $0x30] sm:$0xf] %vm274, %v3901
      %3966 = vst.msk [vmem:[%s262 + $0x34] sm:$0xf] %vm274, %v3902
      %3967 = vst.msk [vmem:[%s262 + $0x38] sm:$0xf] %vm274, %v3903
      %3968 = vst.msk [vmem:[%s262 + $0x3c] sm:$0xf] %vm274, %v3904
      %3969 = vst.msk [vmem:[%s262 + $0x40] sm:$0xf] %vm274, %v3905
      %3970 = vst.msk [vmem:[%s262 + $0x44] sm:$0xf] %vm274, %v3906
      %3971 = vst.msk [vmem:[%s262 + $0x48] sm:$0xf] %vm274, %v3907
      %3972 = vst.msk [vmem:[%s262 + $0x4c] sm:$0xf] %vm274, %v3908
      %3973 = vst.msk [vmem:[%s262 + $0x50] sm:$0xf] %vm274, %v3909
      %3974 = vst.msk [vmem:[%s262 + $0x54] sm:$0xf] %vm274, %v3910
      %3975 = vst.msk [vmem:[%s262 + $0x58] sm:$0xf] %vm274, %v3911
      %3976 = vst.msk [vmem:[%s262 + $0x5c] sm:$0xf] %vm274, %v3912
      %3977 = vst.msk [vmem:[%s262 + $0x60] sm:$0xf] %vm274, %v3913
      %3978 = vst.msk [vmem:[%s262 + $0x64] sm:$0xf] %vm274, %v3914
      %3979 = vst.msk [vmem:[%s262 + $0x68] sm:$0xf] %vm274, %v3915
      %3980 = vst.msk [vmem:[%s262 + $0x6c] sm:$0xf] %vm274, %v3916
      %3981 = vst.msk [vmem:[%s262 + $0x70] sm:$0xf] %vm274, %v3917
      %3982 = vst.msk [vmem:[%s262 + $0x74] sm:$0xf] %vm274, %v3918
      %3983 = vst.msk [vmem:[%s262 + $0x78] sm:$0xf] %vm274, %v3919
      %3984 = vst.msk [vmem:[%s262 + $0x7c] sm:$0xf] %vm274, %v3920
      %v3985 = vunpack.c.l.bf16 %v3825
      %v3986 = vunpack.c.h.bf16 %v3825
      %v3987 = vunpack.c.l.bf16 %v3826
      %v3988 = vunpack.c.h.bf16 %v3826
      %v3989 = vunpack.c.l.bf16 %v3827
      %v3990 = vunpack.c.h.bf16 %v3827
      %v3991 = vunpack.c.l.bf16 %v3828
      %v3992 = vunpack.c.h.bf16 %v3828
      %v3993 = vunpack.c.l.bf16 %v3829
      %v3994 = vunpack.c.h.bf16 %v3829
      %v3995 = vunpack.c.l.bf16 %v3830
      %v3996 = vunpack.c.h.bf16 %v3830
      %v3997 = vunpack.c.l.bf16 %v3831
      %v3998 = vunpack.c.h.bf16 %v3831
      %v3999 = vunpack.c.l.bf16 %v3832
      %v4000 = vunpack.c.h.bf16 %v3832
      %v4001 = vunpack.c.l.bf16 %v3833
      %v4002 = vunpack.c.h.bf16 %v3833
      %v4003 = vunpack.c.l.bf16 %v3834
      %v4004 = vunpack.c.h.bf16 %v3834
      %v4005 = vunpack.c.l.bf16 %v3835
      %v4006 = vunpack.c.h.bf16 %v3835
      %v4007 = vunpack.c.l.bf16 %v3836
      %v4008 = vunpack.c.h.bf16 %v3836
      %v4009 = vunpack.c.l.bf16 %v3837
      %v4010 = vunpack.c.h.bf16 %v3837
      %v4011 = vunpack.c.l.bf16 %v3838
      %v4012 = vunpack.c.h.bf16 %v3838
      %v4013 = vunpack.c.l.bf16 %v3839
      %v4014 = vunpack.c.h.bf16 %v3839
      %v4015 = vunpack.c.l.bf16 %v3840
      %v4016 = vunpack.c.h.bf16 %v3840
      %v4017 = vsel %vm272, %v3985, 0.0
      %v4018 = vsel %vm272, %v3986, 0.0
      %v4019 = vadd.f32 %v4017, %v4018
      %v4020 = vsel %vm272, %v3987, 0.0
      %v4021 = vadd.f32 %v4019, %v4020
      %v4022 = vsel %vm272, %v3988, 0.0
      %v4023 = vadd.f32 %v4021, %v4022
      %v4024 = vsel %vm272, %v3989, 0.0
      %v4025 = vadd.f32 %v4023, %v4024
      %v4026 = vsel %vm272, %v3990, 0.0
      %v4027 = vadd.f32 %v4025, %v4026
      %v4028 = vsel %vm272, %v3991, 0.0
      %v4029 = vadd.f32 %v4027, %v4028
      %v4030 = vsel %vm272, %v3992, 0.0
      %v4031 = vadd.f32 %v4029, %v4030
      %v4032 = vsel %vm272, %v3993, 0.0
      %v4033 = vadd.f32 %v4031, %v4032
      %v4034 = vsel %vm272, %v3994, 0.0
      %v4035 = vadd.f32 %v4033, %v4034
      %v4036 = vsel %vm272, %v3995, 0.0
      %v4037 = vadd.f32 %v4035, %v4036
      %v4038 = vsel %vm272, %v3996, 0.0
      %v4039 = vadd.f32 %v4037, %v4038
      %v4040 = vsel %vm272, %v3997, 0.0
      %v4041 = vadd.f32 %v4039, %v4040
      %v4042 = vsel %vm272, %v3998, 0.0
      %v4043 = vadd.f32 %v4041, %v4042
      %v4044 = vsel %vm272, %v3999, 0.0
      %v4045 = vadd.f32 %v4043, %v4044
      %v4046 = vsel %vm272, %v4000, 0.0
      %v4047 = vadd.f32 %v4045, %v4046
      %v4048 = vsel %vm272, %v4001, 0.0
      %v4049 = vadd.f32 %v4047, %v4048
      %v4050 = vsel %vm272, %v4002, 0.0
      %v4051 = vadd.f32 %v4049, %v4050
      %v4052 = vsel %vm272, %v4003, 0.0
      %v4053 = vadd.f32 %v4051, %v4052
      %v4054 = vsel %vm272, %v4004, 0.0
      %v4055 = vadd.f32 %v4053, %v4054
      %v4056 = vsel %vm272, %v4005, 0.0
      %v4057 = vadd.f32 %v4055, %v4056
      %v4058 = vsel %vm272, %v4006, 0.0
      %v4059 = vadd.f32 %v4057, %v4058
      %v4060 = vsel %vm272, %v4007, 0.0
      %v4061 = vadd.f32 %v4059, %v4060
      %v4062 = vsel %vm272, %v4008, 0.0
      %v4063 = vadd.f32 %v4061, %v4062
      %v4064 = vsel %vm272, %v4009, 0.0
      %v4065 = vadd.f32 %v4063, %v4064
      %v4066 = vsel %vm272, %v4010, 0.0
      %v4067 = vadd.f32 %v4065, %v4066
      %v4068 = vsel %vm272, %v4011, 0.0
      %v4069 = vadd.f32 %v4067, %v4068
      %v4070 = vsel %vm272, %v4012, 0.0
      %v4071 = vadd.f32 %v4069, %v4070
      %v4072 = vsel %vm272, %v4013, 0.0
      %v4073 = vadd.f32 %v4071, %v4072
      %v4074 = vsel %vm272, %v4014, 0.0
      %v4075 = vadd.f32 %v4073, %v4074
      %v4076 = vsel %vm272, %v4015, 0.0
      %v4077 = vadd.f32 %v4075, %v4076
      %v4078 = vsel %vm272, %v4016, 0.0
      %v4079 = vadd.f32 %v4077, %v4078
      %v4080 = vrot.slane %v4079, 4
      %v4081 = vadd.f32 %v4079, %v4080
      %v4082 = vrot.slane %v4081, 2
      %v4083 = vadd.f32 %v4081, %v4082
      %v4084 = vrot.slane %v4083, 1
      %v4085 = vadd.f32 %v4083, %v4084
      %vm4086 = vcmask 24576
      %4087 = vst.msk [vmem:[%s265] sm:$0x1] %vm4086, %v4085
      %v4088 = vmul.f32 %v3985, %v3985
      %v4089 = vmul.f32 %v3986, %v3986
      %v4090 = vmul.f32 %v3987, %v3987
      %v4091 = vmul.f32 %v3988, %v3988
      %v4092 = vmul.f32 %v3989, %v3989
      %v4093 = vmul.f32 %v3990, %v3990
      %v4094 = vmul.f32 %v3991, %v3991
      %v4095 = vmul.f32 %v3992, %v3992
      %v4096 = vmul.f32 %v3993, %v3993
      %v4097 = vmul.f32 %v3994, %v3994
      %v4098 = vmul.f32 %v3995, %v3995
      %v4099 = vmul.f32 %v3996, %v3996
      %v4100 = vmul.f32 %v3997, %v3997
      %v4101 = vmul.f32 %v3998, %v3998
      %v4102 = vmul.f32 %v3999, %v3999
      %v4103 = vmul.f32 %v4000, %v4000
      %v4104 = vmul.f32 %v4001, %v4001
      %v4105 = vmul.f32 %v4002, %v4002
      %v4106 = vmul.f32 %v4003, %v4003
      %v4107 = vmul.f32 %v4004, %v4004
      %v4108 = vmul.f32 %v4005, %v4005
      %v4109 = vmul.f32 %v4006, %v4006
      %v4110 = vmul.f32 %v4007, %v4007
      %v4111 = vmul.f32 %v4008, %v4008
      %v4112 = vmul.f32 %v4009, %v4009
      %v4113 = vmul.f32 %v4010, %v4010
      %v4114 = vmul.f32 %v4011, %v4011
      %v4115 = vmul.f32 %v4012, %v4012
      %v4116 = vmul.f32 %v4013, %v4013
      %v4117 = vmul.f32 %v4014, %v4014
      %v4118 = vmul.f32 %v4015, %v4015
      %v4119 = vmul.f32 %v4016, %v4016
      %v4120 = vsel %vm272, %v4088, 0.0
      %v4121 = vsel %vm272, %v4089, 0.0
      %v4122 = vadd.f32 %v4120, %v4121
      %v4123 = vsel %vm272, %v4090, 0.0
      %v4124 = vadd.f32 %v4122, %v4123
      %v4125 = vsel %vm272, %v4091, 0.0
      %v4126 = vadd.f32 %v4124, %v4125
      %v4127 = vsel %vm272, %v4092, 0.0
      %v4128 = vadd.f32 %v4126, %v4127
      %v4129 = vsel %vm272, %v4093, 0.0
      %v4130 = vadd.f32 %v4128, %v4129
      %v4131 = vsel %vm272, %v4094, 0.0
      %v4132 = vadd.f32 %v4130, %v4131
      %v4133 = vsel %vm272, %v4095, 0.0
      %v4134 = vadd.f32 %v4132, %v4133
      %v4135 = vsel %vm272, %v4096, 0.0
      %v4136 = vadd.f32 %v4134, %v4135
      %v4137 = vsel %vm272, %v4097, 0.0
      %v4138 = vadd.f32 %v4136, %v4137
      %v4139 = vsel %vm272, %v4098, 0.0
      %v4140 = vadd.f32 %v4138, %v4139
      %v4141 = vsel %vm272, %v4099, 0.0
      %v4142 = vadd.f32 %v4140, %v4141
      %v4143 = vsel %vm272, %v4100, 0.0
      %v4144 = vadd.f32 %v4142, %v4143
      %v4145 = vsel %vm272, %v4101, 0.0
      %v4146 = vadd.f32 %v4144, %v4145
      %v4147 = vsel %vm272, %v4102, 0.0
      %v4148 = vadd.f32 %v4146, %v4147
      %v4149 = vsel %vm272, %v4103, 0.0
      %v4150 = vadd.f32 %v4148, %v4149
      %v4151 = vsel %vm272, %v4104, 0.0
      %v4152 = vadd.f32 %v4150, %v4151
      %v4153 = vsel %vm272, %v4105, 0.0
      %v4154 = vadd.f32 %v4152, %v4153
      %v4155 = vsel %vm272, %v4106, 0.0
      %v4156 = vadd.f32 %v4154, %v4155
      %v4157 = vsel %vm272, %v4107, 0.0
      %v4158 = vadd.f32 %v4156, %v4157
      %v4159 = vsel %vm272, %v4108, 0.0
      %v4160 = vadd.f32 %v4158, %v4159
      %v4161 = vsel %vm272, %v4109, 0.0
      %v4162 = vadd.f32 %v4160, %v4161
      %v4163 = vsel %vm272, %v4110, 0.0
      %v4164 = vadd.f32 %v4162, %v4163
      %v4165 = vsel %vm272, %v4111, 0.0
      %v4166 = vadd.f32 %v4164, %v4165
      %v4167 = vsel %vm272, %v4112, 0.0
      %v4168 = vadd.f32 %v4166, %v4167
      %v4169 = vsel %vm272, %v4113, 0.0
      %v4170 = vadd.f32 %v4168, %v4169
      %v4171 = vsel %vm272, %v4114, 0.0
      %v4172 = vadd.f32 %v4170, %v4171
      %v4173 = vsel %vm272, %v4115, 0.0
      %v4174 = vadd.f32 %v4172, %v4173
      %v4175 = vsel %vm272, %v4116, 0.0
      %v4176 = vadd.f32 %v4174, %v4175
      %v4177 = vsel %vm272, %v4117, 0.0
      %v4178 = vadd.f32 %v4176, %v4177
      %v4179 = vsel %vm272, %v4118, 0.0
      %v4180 = vadd.f32 %v4178, %v4179
      %v4181 = vsel %vm272, %v4119, 0.0
      %v4182 = vadd.f32 %v4180, %v4181
      %v4183 = vrot.slane %v4182, 4
      %v4184 = vadd.f32 %v4182, %v4183
      %v4185 = vrot.slane %v4184, 2
      %v4186 = vadd.f32 %v4184, %v4185
      %v4187 = vrot.slane %v4186, 1
      %v4188 = vadd.f32 %v4186, %v4187
      %4189 = vst.msk [vmem:[%s268] sm:$0x1] %vm4086, %v4188
      %p4190 = scmp.lt.s32.totalorder %s18, 1
      %s4191 = scalar_select %p4190, %s18, 1
      %s4192 = smul.addr %s4191, 32
      %s4193 = smul.addr %s4192, 4
      %s4194 = scalar_lea.vmem %s4, %s4193
      %p4195 = scmp.lt.s32.totalorder %s18, 1
      %s4196 = scalar_select %p4195, %s18, 1
      %s4197 = scalar_lea.vmem %s5, %s4196
      %p4198 = scmp.lt.s32.totalorder %s18, 1
      %s4199 = scalar_select %p4198, %s18, 1
      %s4200 = scalar_lea.vmem %s6, %s4199
      // Predicated region
      $region37: #{basic_block_forward.4} parent=35 // pred_check
        %p4201 = pneg %p125
      $region38: #{basic_block_forward.4} parent=35 // pred_check_branch
        %4203 = sbr.rel (%p4201) target = $region40
      $region39: #{basic_block_forward.4} parent=35 // pred_region
        _
      $region40: #{basic_block_forward.4} parent=35 // pred_fallthru
        _
      // Predicated region
      $region41: #{basic_block_forward.4} parent=35 // pred_check
        %p4204 = pneg %p151
      $region42: #{basic_block_forward.4} parent=35 // pred_check_branch
        %4206 = sbr.rel (%p4204) target = $region44
      $region43: #{basic_block_forward.4} parent=35 // pred_region
        _
      $region44: #{basic_block_forward.4} parent=35 // pred_fallthru
        _
      // Predicated region
      $region45: #{basic_block_forward.4} parent=35 // pred_check
        %p4207 = pneg %p177
      $region46: #{basic_block_forward.4} parent=35 // pred_check_branch
        %4209 = sbr.rel (%p4207) target = $region48
      $region47: #{basic_block_forward.4} parent=35 // pred_region
        _
      $region48: #{basic_block_forward.4} parent=35 // pred_fallthru
        _
    $region36: #{basic_block_forward.4} parent=5 // pred_fallthru
      _
    %p4210 = scmp.le.s32.totalorder 2, %s13
    // Predicated region
    $region49: #{basic_block_forward.4} parent=5 // pred_check
      %p4211 = pneg %p4210
    $region50: #{basic_block_forward.4} parent=5 // pred_check_branch
      %4213 = sbr.rel (%p4211) target = $region52
    $region51: #{basic_block_forward.4} parent=5 // pred_region
      %s4214 = ssub.s32 %s13, 2
      // Predicated region
      $region53: #{basic_block_forward.4} parent=51 // pred_check
        %p4215 = pneg %p131
      $region54: #{basic_block_forward.4} parent=51 // pred_check_branch
        %4217 = sbr.rel (%p4215) target = $region56
      $region55: #{basic_block_forward.4} parent=51 // pred_region
        %p4218 = scmp.lt.s32.totalorder %s19, 1
        %s4219 = scalar_select %p4218, %s19, 1
        %s4220 = smul.addr %s4219, 32
        %s4221 = smul.addr %s4220, 4
        %s4222 = scalar_lea.vmem %s4, %s4221
      $region56: #{basic_block_forward.4} parent=51 // pred_fallthru
        _
      // Predicated region
      $region57: #{basic_block_forward.4} parent=51 // pred_check
        %p4223 = pneg %p157
      $region58: #{basic_block_forward.4} parent=51 // pred_check_branch
        %4225 = sbr.rel (%p4223) target = $region60
      $region59: #{basic_block_forward.4} parent=51 // pred_region
        %p4226 = scmp.lt.s32.totalorder %s19, 1
        %s4227 = scalar_select %p4226, %s19, 1
        %s4228 = scalar_lea.vmem %s5, %s4227
      $region60: #{basic_block_forward.4} parent=51 // pred_fallthru
        _
      // Predicated region
      $region61: #{basic_block_forward.4} parent=51 // pred_check
        %p4229 = pneg %p183
      $region62: #{basic_block_forward.4} parent=51 // pred_check_branch
        %4231 = sbr.rel (%p4229) target = $region64
      $region63: #{basic_block_forward.4} parent=51 // pred_region
        %p4232 = scmp.lt.s32.totalorder %s19, 1
        %s4233 = scalar_select %p4232, %s19, 1
        %s4234 = scalar_lea.vmem %s6, %s4233
      $region64: #{basic_block_forward.4} parent=51 // pred_fallthru
        _
    $region52: #{basic_block_forward.4} parent=5 // pred_fallthru
      _
  $region6: #{basic_block_forward.4} parent=0 // loop_footer
    %s17 = sadd.s32 1, %s13
  $region7: #{basic_block_forward.4} parent=0 // loop_footer_branch
    %12 = sbr.rel target = $region3
  $region8: #{basic_block_forward.4} parent=0 // loop_exit
    _

</llo_original>
